<compile_context>
chip_gen: v6e
topology: v6e:2x2x1
jax: 0.10.0
libtpu: 0.0.40
codegen_flags: <defaults>
</compile_context>

<pallas_src>
import functools
import math

import jax
import jax.numpy as jnp
import numpy as np
from jax.experimental import pallas as pl
from jax.experimental.pallas import tpu as pltpu


def sem_attention_kernel(
    x_ref,
    wsem_ref,                      # (Din, T*Dout)      folded subspace+global sem
    wqx_ref, wkt_ref, wvt_ref,     # (T*Dout, T*T*Hdk)  q-expand / k-tile / v-tile
    hsum_ref,                      # (T*T*Hdk, T*T*H)   0/1: per-(t1,t2,h) sum over dk
    hexp_ref,                      # (T*T*H, T*T*Hdk)   0/1: prob -> dk-lane expansion
    wc2o_ref,                      # (T*T*Hdk, T*Dout)  ctx segment-sum folded with W_O
    w1_ref, w2_ref,                # PoswiseFeedForwardNet2
    wg3f_ref, wg3x_ref,            # fused [reset|update|reset_transfer] heads (f / x parts)
    wupx_ref, wupr_ref,            # SemUpdate "update" linear, split (x | rt*reset)
    gsm_ref,                       # (T*T*H, T*T*H)     f32 0/1 softmax group-sum broadcast
    gln_ref,                       # (T*Dout, T*Dout)   f32 per-token mean matrix (1/Dout)
    mtok_ref,                      # (T*Dout, Dout)     f32 token-mean matrix (1/T)
    b80_ref,                       # (4, T*Dout)  rows: b_sem, bo_tile, ln_gamma, ln_beta
    bqkv_ref,                      # (3, T*T*Hdk) rows: bq_exp, bk_tile, bv_tile
    b1_ref, b2_ref, bg3_ref, bup_ref,
    out_ref,
    *, dout, scale,
):
    f32, bf16 = jnp.float32, jnp.bfloat16

    def mxu(a, w_ref):
        # bf16 MXU operands (weights pre-cast host-side), f32 accumulation.
        return jnp.dot(a.astype(bf16), w_ref[...], preferred_element_type=f32)

    def mxu_f32(a, w_ref):
        # Tiny group-statistics matmuls kept f32 for softmax / LayerNorm fidelity.
        return jnp.dot(a, w_ref[...], preferred_element_type=f32)

    x = x_ref[...].astype(f32)                                       # (tm, Din)
    xb = x.astype(bf16)

    # ---- LGSemAttention.get_sem: subspace linears + global linear folded into ONE matmul
    sem = mxu(xb, wsem_ref) + b80_ref[0:1, :]                        # (tm, T*Dout)
    semb = sem.astype(bf16)

    # ---- sem_fusion: multi-head self-attention over the T = subspace+1 tokens ----------
    # TODO(synk): SelfAttention4 source is not provided; assumed graykode-style MHA
    # (per-head d_k=d_v=Dout, scaled dot-product, concat heads, output linear,
    #  residual = V-input, LayerNorm) — matches the pure-JAX reference below.
    q_exp = mxu(semb, wqx_ref) + bqkv_ref[0:1, :]                    # (tm, T*T*Hdk): q[t1] per (t1,t2)
    k_tile = mxu(semb, wkt_ref) + bqkv_ref[1:2, :]                   # (tm, T*T*Hdk): k[t2] per (t1,t2)
    v_tile = mxu(semb, wvt_ref) + bqkv_ref[2:3, :]                   # (tm, T*T*Hdk): v[t2] per (t1,t2)

    prod = q_exp * k_tile                                            # q*k products, all (t1,t2) pairs
    scores = mxu(prod, hsum_ref) * scale                             # (tm, T*T*H)

    # Softmax over t2 within each (t1, h) group.  The row-global max is used as the
    # stabilizer (mathematically identical; avoids grouped lane reductions) and the
    # group-structured denominator is recovered with one tiny f32 0/1 matmul.
    gmax = jnp.max(scores, axis=-1, keepdims=True)
    e = jnp.exp(scores - gmax)
    denom = mxu_f32(e, gsm_ref)                                      # per-group sum, broadcast
    p = e / jnp.maximum(denom, 1e-30)                                # exact division

    pexp = mxu(p, hexp_ref)                                          # (tm, T*T*Hdk)
    ctxw = pexp * v_tile
    # Context segment-sum over t2 is folded into the output-projection weight.
    o = mxu(ctxw, wc2o_ref) + b80_ref[1:2, :] + sem                  # + b_o + residual ('V' = sem)

    # Per-token LayerNorm; group mean/var via the f32 per-token averaging matrix.
    mu = mxu_f32(o, gln_ref)
    cen = o - mu
    var = mxu_f32(cen * cen, gln_ref)
    o_ln = cen * jax.lax.rsqrt(var + 1e-5) * b80_ref[2:3, :] + b80_ref[3:4, :]

    # Mean over the T tokens.
    m = mxu_f32(o_ln, mtok_ref)                                      # (tm, Dout)

    # ---- fc: PoswiseFeedForwardNet2 -----------------------------------------------------
    # TODO(synk): PoswiseFeedForwardNet2 source not provided; assumed
    # Linear(d, d_ff*d) -> ReLU -> Linear(d_ff*d, d) + residual (no LayerNorm).
    h1 = jnp.maximum(mxu(m, w1_ref) + b1_ref[...], 0.0)
    f = mxu(h1, w2_ref) + b2_ref[...] + m

    # NOTE: LGSemAttention's forgetgate branch is discarded by SemAttention.forward.

    # ---- SemUpdate (GRU-style gate): fused [reset|update|reset_transfer] heads ----------
    g3 = mxu(f, wg3f_ref) + mxu(xb, wg3x_ref) + bg3_ref[...]         # (tm, 3*Dout)
    reset = jax.nn.sigmoid(g3[:, 0:dout])
    update = jax.nn.sigmoid(g3[:, dout:2 * dout])
    rt = g3[:, 2 * dout:3 * dout]
    h_new = jnp.tanh(mxu(xb, wupx_ref) + mxu(rt * reset, wupr_ref) + bup_ref[...])
    out = (1.0 - update) * f + update * h_new

    out_ref[...] = out.astype(out_ref.dtype)


def _fold_weights(params, *, Din, Dout, S, H):
    """Fold the per-layer weights into the structured matrices the kernel consumes."""
    f32 = np.float32
    dk, Hdk, T, Dc = Dout, H * Dout, S + 1, Din // S
    P = T * T                                    # (t1, t2) token pairs
    g = lambda k: np.asarray(params[k], f32)

    # --- get_sem: block-diag subspace linears folded with the global linear -> one matmul
    wsub, bsub = g('wsub'), g('bsub')
    wsub_bd = np.zeros((Din, S * Dout), f32)
    bsub_flat = np.zeros((1, S * Dout), f32)
    for s in range(S):
        wsub_bd[s * Dc:(s + 1) * Dc, s * Dout:(s + 1) * Dout] = wsub[s]
        bsub_flat[0, s * Dout:(s + 1) * Dout] = bsub[s, 0]
    wg_c, wg_x = g('wg')[:S * Dout], g('wg')[S * Dout:]
    wsem = np.concatenate([wsub_bd, wsub_bd @ wg_c + wg_x], axis=1)          # (Din, T*Dout)
    bsem = np.concatenate([bsub_flat, bsub_flat @ wg_c + g('bg')], axis=1)   # (1, T*Dout)

    # --- attention: q-expand / k-tile / v-tile structured weights over all (t1,t2) pairs
    wq, wk, wv = g('wq'), g('wk'), g('wv')
    bq, bk, bv = g('bq'), g('bk'), g('bv')
    wqx = np.zeros((T * Dout, P * Hdk), f32)
    bqx = np.zeros((1, P * Hdk), f32)
    wkt, bkt = np.zeros_like(wqx), np.zeros_like(bqx)
    wvt, bvt = np.zeros_like(wqx), np.zeros_like(bqx)
    for t1 in range(T):
        for t2 in range(T):
            c0 = (t1 * T + t2) * Hdk
            wqx[t1 * Dout:(t1 + 1) * Dout, c0:c0 + Hdk] = wq
            wkt[t2 * Dout:(t2 + 1) * Dout, c0:c0 + Hdk] = wk
            wvt[t2 * Dout:(t2 + 1) * Dout, c0:c0 + Hdk] = wv
            bqx[0, c0:c0 + Hdk] = bq[0]
            bkt[0, c0:c0 + Hdk] = bk[0]
            bvt[0, c0:c0 + Hdk] = bv[0]

    # 0/1 matrices: per-(t1,t2,h) reduction over dk (scores) and its expansion (probs).
    Nsc = P * H
    hsum = np.zeros((P * Hdk, Nsc), f32)
    hexp = np.zeros((Nsc, P * Hdk), f32)
    for t1 in range(T):
        for t2 in range(T):
            for h in range(H):
                r0 = (t1 * T + t2) * Hdk + h * dk
                c = (t1 * T + t2) * H + h
                hsum[r0:r0 + dk, c] = 1.0
                hexp[c, r0:r0 + dk] = 1.0

    # Softmax group-sum broadcast: same (t1, h), all t2.
    gsm = np.zeros((Nsc, Nsc), f32)
    for t1 in range(T):
        for h in range(H):
            cols = np.array([(t1 * T + t2) * H + h for t2 in range(T)])
            gsm[np.ix_(cols, cols)] = 1.0

    # Context segment-sum over t2 folded with the block-diagonal output projection W_O.
    wo, bo = g('wo'), g('bo')
    wc2o = np.zeros((P * Hdk, T * Dout), f32)
    for t1 in range(T):
        for t2 in range(T):
            r0 = (t1 * T + t2) * Hdk
            wc2o[r0:r0 + Hdk, t1 * Dout:(t1 + 1) * Dout] = wo
    bo_tile = np.tile(bo, (1, T))

    # Per-token LayerNorm mean matrix (1/Dout) and token-mean matrix (1/T).
    gln = np.zeros((T * Dout, T * Dout), f32)
    mtok = np.zeros((T * Dout, Dout), f32)
    eye = np.eye(Dout, dtype=f32)
    for t in range(T):
        gln[t * Dout:(t + 1) * Dout, t * Dout:(t + 1) * Dout] = 1.0 / Dout
        mtok[t * Dout:(t + 1) * Dout, :] = eye / T
    lng_tile = np.tile(g('lng'), (1, T))
    lnb_tile = np.tile(g('lnb'), (1, T))

    # SemUpdate: fused [reset | update | reset_transfer] heads, concat inputs split (f | x).
    wr, wu, wrt = g('wr'), g('wu'), g('wrt')
    wg3f = np.concatenate([wr[:Dout], wu[:Dout], wrt], axis=1)               # (Dout, 3*Dout)
    wg3x = np.concatenate([wr[Dout:], wu[Dout:], np.zeros((Din, Dout), f32)], axis=1)
    bg3 = np.concatenate([g('br'), g('bu'), g('brt')], axis=1)
    wup = g('wup')
    wupx, wupr = wup[:Din], wup[Din:]

    as_bf16 = lambda a: jnp.asarray(a, jnp.bfloat16)
    as_f32 = lambda a: jnp.asarray(a, jnp.float32)
    return [
        as_bf16(wsem),
        as_bf16(wqx), as_bf16(wkt), as_bf16(wvt),
        as_bf16(hsum), as_bf16(hexp), as_bf16(wc2o),
        as_bf16(g('w1')), as_bf16(g('w2')),
        as_bf16(wg3f), as_bf16(wg3x), as_bf16(wupx), as_bf16(wupr),
        as_f32(gsm), as_f32(gln), as_f32(mtok),
        as_f32(np.concatenate([bsem, bo_tile, lng_tile, lnb_tile], axis=0)),   # (4, T*Dout)
        as_f32(np.concatenate([bqx, bkt, bvt], axis=0)),                       # (3, T*T*Hdk)
        as_f32(g('b1')), as_f32(g('b2')), as_f32(bg3), as_f32(g('bup')),
    ]


def _round_up(a, b):
    return (a + b - 1) // b * b


def sem_attention(x, params, *, subspace, n_heads, tm=256, vmem_limit_bytes=None):
    B, N, Din = x.shape
    S = subspace
    assert Din % S == 0
    Dout = params['wsub'].shape[2]
    H = n_heads
    M = B * N

    # Row tiling: clamp tm to the (padded) problem size, multiple of 8.
    # v5e/v6e (128 MiB VMEM): tm can be raised to 512-1024 for large M.
    # v7x (64 MiB VMEM, 2 TCs): keep Mpad//tm even so both cores get work, and pass
    # vmem_limit_bytes when raising tm (intermediates scale ~ tm * T*T*Hdk * 4 B).
    tm = max(8, min(_round_up(tm, 8), _round_up(M, 8)))
    Mpad = _round_up(M, tm)

    x2 = x.reshape(M, Din).astype(jnp.float32)
    if Mpad != M:
        x2 = jnp.pad(x2, ((0, Mpad - M), (0, 0)))

    weights = _fold_weights(params, Din=Din, Dout=Dout, S=S, H=H)
    # Constant index maps -> weights stay VMEM-resident across grid steps (all 2-D).
    weight_specs = [pl.BlockSpec(w.shape, lambda i: (0, 0)) for w in weights]

    cp_kwargs = dict(dimension_semantics=("parallel",))
    if vmem_limit_bytes is not None:
        cp_kwargs["vmem_limit_bytes"] = vmem_limit_bytes

    kernel = functools.partial(sem_attention_kernel, dout=Dout, scale=1.0 / math.sqrt(Dout))
    out = pl.pallas_call(
        kernel,
        out_shape=jax.ShapeDtypeStruct((Mpad, Dout), x.dtype),
        grid=(Mpad // tm,),
        in_specs=[pl.BlockSpec((tm, Din), lambda i: (i, 0))] + weight_specs,
        # TODO(synk): output is only Dout (=16) lanes wide -> masked stores; a transposed
        # (features-on-sublanes) layout would make stores lane-dense, left for follow-up.
        out_specs=pl.BlockSpec((tm, Dout), lambda i: (i, 0)),
        compiler_params=pltpu.CompilerParams(**cp_kwargs),
    )(x2, *weights)
    return out[:M].reshape(B, N, Dout)


def init_params(key, Din, Dout, S, H, dff):
    Dc = Din // S
    dk = Dout
    shapes = {
        'wsub': (S, Dc, Dout), 'bsub': (S, 1, Dout),
        'wg': (S * Dout + Din, Dout), 'bg': (1, Dout),
        'wq': (Dout, H * dk), 'bq': (1, H * dk),
        'wk': (Dout, H * dk), 'bk': (1, H * dk),
        'wv': (Dout, H * dk), 'bv': (1, H * dk),
        'wo': (H * dk, Dout), 'bo': (1, Dout),
        'w1': (Dout, dff * Dout), 'b1': (1, dff * Dout),
        'w2': (dff * Dout, Dout), 'b2': (1, Dout),
        'wr': (Dout + Din, Dout), 'br': (1, Dout),
        'wu': (Dout + Din, Dout), 'bu': (1, Dout),
        'wrt': (Dout, Dout), 'brt': (1, Dout),
        'wup': (Din + Dout, Dout), 'bup': (1, Dout),
    }
    params = {}
    keys = jax.random.split(key, len(shapes))
    for kk, (name, shp) in zip(keys, shapes.items()):
        fan_in = shp[-2] if (len(shp) >= 2 and shp[-2] > 1) else shp[-1]
        scale = 1.0 / math.sqrt(max(fan_in, 1))
        params[name] = scale * jax.random.normal(kk, shp, jnp.float32)
    params['lng'] = jnp.ones((1, Dout), jnp.float32)
    params['lnb'] = jnp.zeros((1, Dout), jnp.float32)
    return params


# ---------------- pure-JAX reference (for correctness check) -----------------
def reference(x3, p, *, subspace, n_heads):
    hp = jax.lax.Precision.HIGHEST
    dot = lambda a, b: jnp.dot(a, b, precision=hp)
    B, N, Din = x3.shape
    x = x3.reshape(-1, Din).astype(jnp.float32)
    S = subspace
    Dc = Din // S
    Dout = p['wsub'].shape[2]
    H = n_heads
    dk = Dout
    M = x.shape[0]
    T = S + 1

    combined = jnp.stack(
        [dot(x[:, s * Dc:(s + 1) * Dc], p['wsub'][s]) + p['bsub'][s, 0] for s in range(S)],
        axis=1)                                                       # (M,S,Dout)
    reshaped = combined.reshape(M, S * Dout)
    g = dot(jnp.concatenate([reshaped, x], -1), p['wg']) + p['bg'][0]
    sem = jnp.concatenate([combined, g[:, None, :]], axis=1)          # (M,T,Dout)

    def proj(w, b):
        y = dot(sem.reshape(-1, Dout), w) + b[0]
        return y.reshape(M, T, H, dk).transpose(0, 2, 1, 3)           # (M,H,T,dk)

    q, k, v = proj(p['wq'], p['bq']), proj(p['wk'], p['bk']), proj(p['wv'], p['bv'])
    scores = jnp.einsum('mhtd,mhsd->mhts', q, k, precision=hp) / math.sqrt(dk)
    attn = jax.nn.softmax(scores, axis=-1)
    ctx = jnp.einsum('mhts,mhsd->mhtd', attn, v, precision=hp)
    ctx = ctx.transpose(0, 2, 1, 3).reshape(M, T, H * dk)
    o = dot(ctx.reshape(-1, H * dk), p['wo']) + p['bo'][0]
    o = o.reshape(M, T, Dout) + sem
    mu = o.mean(-1, keepdims=True)
    var = ((o - mu) ** 2).mean(-1, keepdims=True)
    o = (o - mu) / jnp.sqrt(var + 1e-5) * p['lng'][0] + p['lnb'][0]
    m = o.mean(axis=1)
    h1 = jax.nn.relu(dot(m, p['w1']) + p['b1'][0])
    f = dot(h1, p['w2']) + p['b2'][0] + m
    catfx = jnp.concatenate([f, x], -1)
    reset = jax.nn.sigmoid(dot(catfx, p['wr']) + p['br'][0])
    update = jax.nn.sigmoid(dot(catfx, p['wu']) + p['bu'][0])
    rt = dot(f, p['wrt']) + p['brt'][0]
    h = jnp.tanh(dot(jnp.concatenate([x, rt * reset], -1), p['wup']) + p['bup'][0])
    out = (1 - update) * f + update * h
    return out.reshape(B, N, Dout)


if __name__ == "__main__":
    # args: input_dim*entity_mul=32, target_dim*entity_mul=16, token1=4, head1=2, t_dff=1
    B, N = 2, 256                       # M = 512 rows -> grid of 2 tiles of tm=256 (even; v7x-friendly)
    input_dim, target_dim = 32, 16
    subspace, n_heads, d_ff = 4, 2, 1

    key = jax.random.PRNGKey(0)
    kx, kp = jax.random.split(key)
    x = jax.random.normal(kx, (B, N, input_dim), jnp.float32)
    params = init_params(kp, input_dim, target_dim, subspace, n_heads, d_ff)

    out = sem_attention(x, params, subspace=subspace, n_heads=n_heads, tm=256)
    out = jax.block_until_ready(out)

    ref = reference(x, params, subspace=subspace, n_heads=n_heads)
    assert out.shape == (B, N, target_dim)
    # Tolerance accounts for bf16 MXU operands (f32 accumulation) throughout, including
    # the 0/1 head-sum / expand matmuls adopted per the perf review, vs the f32-HIGHEST
    # reference (softmax / LayerNorm / gate statistics stay f32 in-kernel).
    np.testing.assert_allclose(np.asarray(out), np.asarray(ref), rtol=5e-2, atol=2.5e-2)
    print("KERNEL_OK")
</pallas_src>

<mosaic_0001>
module attributes {stable_mosaic.version = 11 : i64} {
  func.func @sem_attention_kernel(%arg0: i32, %arg1: memref<256x32xf32, #tpu.memory_space<vmem>>, %arg2: memref<32x80xbf16, #tpu.memory_space<vmem>>, %arg3: memref<80x800xbf16, #tpu.memory_space<vmem>>, %arg4: memref<80x800xbf16, #tpu.memory_space<vmem>>, %arg5: memref<80x800xbf16, #tpu.memory_space<vmem>>, %arg6: memref<800x50xbf16, #tpu.memory_space<vmem>>, %arg7: memref<50x800xbf16, #tpu.memory_space<vmem>>, %arg8: memref<800x80xbf16, #tpu.memory_space<vmem>>, %arg9: memref<16x16xbf16, #tpu.memory_space<vmem>>, %arg10: memref<16x16xbf16, #tpu.memory_space<vmem>>, %arg11: memref<16x48xbf16, #tpu.memory_space<vmem>>, %arg12: memref<32x48xbf16, #tpu.memory_space<vmem>>, %arg13: memref<32x16xbf16, #tpu.memory_space<vmem>>, %arg14: memref<16x16xbf16, #tpu.memory_space<vmem>>, %arg15: memref<50x50xf32, #tpu.memory_space<vmem>>, %arg16: memref<80x80xf32, #tpu.memory_space<vmem>>, %arg17: memref<80x16xf32, #tpu.memory_space<vmem>>, %arg18: memref<4x80xf32, #tpu.memory_space<vmem>>, %arg19: memref<3x800xf32, #tpu.memory_space<vmem>>, %arg20: memref<1x16xf32, #tpu.memory_space<vmem>>, %arg21: memref<1x16xf32, #tpu.memory_space<vmem>>, %arg22: memref<1x48xf32, #tpu.memory_space<vmem>>, %arg23: memref<1x16xf32, #tpu.memory_space<vmem>>, %arg24: memref<256x16xf32, #tpu.memory_space<vmem>>) attributes {dimension_semantics = [#tpu.dimension_semantics<parallel>], iteration_bounds = array<i64: 2>, scalar_prefetch = 0 : i64, scratch_operands = 0 : i64, tpu.core_type = #tpu.core_type<tc>, window_params = [{transform_indices = @transform_0, window_bounds = array<i64: 256, 32>}, {pipeline_mode = #tpu.pipeline_mode<synchronous>, transform_indices = @transform_1, window_bounds = array<i64: 32, 80>}, {pipeline_mode = #tpu.pipeline_mode<synchronous>, transform_indices = @transform_2, window_bounds = array<i64: 80, 800>}, {pipeline_mode = #tpu.pipeline_mode<synchronous>, transform_indices = @transform_3, window_bounds = array<i64: 80, 800>}, {pipeline_mode = #tpu.pipeline_mode<synchronous>, transform_indices = @transform_4, window_bounds = array<i64: 80, 800>}, {pipeline_mode = #tpu.pipeline_mode<synchronous>, transform_indices = @transform_5, window_bounds = array<i64: 800, 50>}, {pipeline_mode = #tpu.pipeline_mode<synchronous>, transform_indices = @transform_6, window_bounds = array<i64: 50, 800>}, {pipeline_mode = #tpu.pipeline_mode<synchronous>, transform_indices = @transform_7, window_bounds = array<i64: 800, 80>}, {pipeline_mode = #tpu.pipeline_mode<synchronous>, transform_indices = @transform_8, window_bounds = array<i64: 16, 16>}, {pipeline_mode = #tpu.pipeline_mode<synchronous>, transform_indices = @transform_9, window_bounds = array<i64: 16, 16>}, {pipeline_mode = #tpu.pipeline_mode<synchronous>, transform_indices = @transform_10, window_bounds = array<i64: 16, 48>}, {pipeline_mode = #tpu.pipeline_mode<synchronous>, transform_indices = @transform_11, window_bounds = array<i64: 32, 48>}, {pipeline_mode = #tpu.pipeline_mode<synchronous>, transform_indices = @transform_12, window_bounds = array<i64: 32, 16>}, {pipeline_mode = #tpu.pipeline_mode<synchronous>, transform_indices = @transform_13, window_bounds = array<i64: 16, 16>}, {pipeline_mode = #tpu.pipeline_mode<synchronous>, transform_indices = @transform_14, window_bounds = array<i64: 50, 50>}, {pipeline_mode = #tpu.pipeline_mode<synchronous>, transform_indices = @transform_15, window_bounds = array<i64: 80, 80>}, {pipeline_mode = #tpu.pipeline_mode<synchronous>, transform_indices = @transform_16, window_bounds = array<i64: 80, 16>}, {pipeline_mode = #tpu.pipeline_mode<synchronous>, transform_indices = @transform_17, window_bounds = array<i64: 4, 80>}, {pipeline_mode = #tpu.pipeline_mode<synchronous>, transform_indices = @transform_18, window_bounds = array<i64: 3, 800>}, {pipeline_mode = #tpu.pipeline_mode<synchronous>, transform_indices = @transform_19, window_bounds = array<i64: 1, 16>}, {pipeline_mode = #tpu.pipeline_mode<synchronous>, transform_indices = @transform_20, window_bounds = array<i64: 1, 16>}, {pipeline_mode = #tpu.pipeline_mode<synchronous>, transform_indices = @transform_21, window_bounds = array<i64: 1, 48>}, {pipeline_mode = #tpu.pipeline_mode<synchronous>, transform_indices = @transform_22, window_bounds = array<i64: 1, 16>}, {transform_indices = @transform_23, window_bounds = array<i64: 256, 16>}]} {
    %c0 = arith.constant 0 : index
    %c0_0 = arith.constant 0 : index
    %0 = vector.load %arg1[%c0, %c0_0] : memref<256x32xf32, #tpu.memory_space<vmem>>, vector<256x32xf32>
    %1 = arith.truncf %0 : vector<256x32xf32> to vector<256x32xbf16>
    %c0_1 = arith.constant 0 : index
    %c0_2 = arith.constant 0 : index
    %2 = vector.load %arg2[%c0_1, %c0_2] : memref<32x80xbf16, #tpu.memory_space<vmem>>, vector<32x80xbf16>
    %cst = arith.constant dense<0.000000e+00> : vector<256x80xf32>
    %3 = tpu.matmul %1, %2, %cst {dimension_numbers = #tpu.dot_dimension_numbers<[1], [0], [0], [1], [0, 0, 1, 1], [], []>} : vector<256x32xbf16>, vector<32x80xbf16>, vector<256x80xf32> -> vector<256x80xf32>
    %c0_3 = arith.constant 0 : index
    %c0_4 = arith.constant 0 : index
    %4 = vector.load %arg18[%c0_3, %c0_4] : memref<4x80xf32, #tpu.memory_space<vmem>>, vector<1x80xf32>
    %5 = vector.broadcast %4 : vector<1x80xf32> to vector<256x80xf32>
    %6 = arith.addf %3, %5 : vector<256x80xf32>
    %7 = arith.truncf %6 : vector<256x80xf32> to vector<256x80xbf16>
    %c0_5 = arith.constant 0 : index
    %c0_6 = arith.constant 0 : index
    %8 = vector.load %arg3[%c0_5, %c0_6] : memref<80x800xbf16, #tpu.memory_space<vmem>>, vector<80x800xbf16>
    %cst_7 = arith.constant dense<0.000000e+00> : vector<256x800xf32>
    %9 = tpu.matmul %7, %8, %cst_7 {dimension_numbers = #tpu.dot_dimension_numbers<[1], [0], [0], [1], [0, 0, 1, 1], [], []>} : vector<256x80xbf16>, vector<80x800xbf16>, vector<256x800xf32> -> vector<256x800xf32>
    %c0_8 = arith.constant 0 : index
    %c0_9 = arith.constant 0 : index
    %10 = vector.load %arg19[%c0_8, %c0_9] : memref<3x800xf32, #tpu.memory_space<vmem>>, vector<1x800xf32>
    %11 = vector.broadcast %10 : vector<1x800xf32> to vector<256x800xf32>
    %12 = arith.addf %9, %11 : vector<256x800xf32>
    %c0_10 = arith.constant 0 : index
    %c0_11 = arith.constant 0 : index
    %13 = vector.load %arg4[%c0_10, %c0_11] : memref<80x800xbf16, #tpu.memory_space<vmem>>, vector<80x800xbf16>
    %cst_12 = arith.constant dense<0.000000e+00> : vector<256x800xf32>
    %14 = tpu.matmul %7, %13, %cst_12 {dimension_numbers = #tpu.dot_dimension_numbers<[1], [0], [0], [1], [0, 0, 1, 1], [], []>} : vector<256x80xbf16>, vector<80x800xbf16>, vector<256x800xf32> -> vector<256x800xf32>
    %c1 = arith.constant 1 : index
    %c0_13 = arith.constant 0 : index
    %15 = vector.load %arg19[%c1, %c0_13] : memref<3x800xf32, #tpu.memory_space<vmem>>, vector<1x800xf32>
    %16 = vector.broadcast %15 : vector<1x800xf32> to vector<256x800xf32>
    %17 = arith.addf %14, %16 : vector<256x800xf32>
    %c0_14 = arith.constant 0 : index
    %c0_15 = arith.constant 0 : index
    %18 = vector.load %arg5[%c0_14, %c0_15] : memref<80x800xbf16, #tpu.memory_space<vmem>>, vector<80x800xbf16>
    %cst_16 = arith.constant dense<0.000000e+00> : vector<256x800xf32>
    %19 = tpu.matmul %7, %18, %cst_16 {dimension_numbers = #tpu.dot_dimension_numbers<[1], [0], [0], [1], [0, 0, 1, 1], [], []>} : vector<256x80xbf16>, vector<80x800xbf16>, vector<256x800xf32> -> vector<256x800xf32>
    %c2 = arith.constant 2 : index
    %c0_17 = arith.constant 0 : index
    %20 = vector.load %arg19[%c2, %c0_17] : memref<3x800xf32, #tpu.memory_space<vmem>>, vector<1x800xf32>
    %21 = vector.broadcast %20 : vector<1x800xf32> to vector<256x800xf32>
    %22 = arith.addf %19, %21 : vector<256x800xf32>
    %23 = arith.mulf %12, %17 : vector<256x800xf32>
    %24 = arith.truncf %23 : vector<256x800xf32> to vector<256x800xbf16>
    %c0_18 = arith.constant 0 : index
    %c0_19 = arith.constant 0 : index
    %25 = vector.load %arg6[%c0_18, %c0_19] : memref<800x50xbf16, #tpu.memory_space<vmem>>, vector<800x50xbf16>
    %cst_20 = arith.constant dense<0.000000e+00> : vector<256x50xf32>
    %26 = tpu.matmul %24, %25, %cst_20 {dimension_numbers = #tpu.dot_dimension_numbers<[1], [0], [0], [1], [0, 0, 1, 1], [], []>} : vector<256x800xbf16>, vector<800x50xbf16>, vector<256x50xf32> -> vector<256x50xf32>
    %cst_21 = arith.constant 2.500000e-01 : f32
    %27 = vector.broadcast %cst_21 : f32 to vector<256x50xf32>
    %28 = arith.mulf %26, %27 : vector<256x50xf32>
    %cst_22 = arith.constant dense<0xFF800000> : vector<256xf32>
    %29 = vector.multi_reduction <maximumf>, %28, %cst_22 [1] : vector<256x50xf32> to vector<256xf32>
    %30 = vector.shape_cast %29 : vector<256xf32> to vector<256x1xf32>
    %31 = vector.broadcast %30 : vector<256x1xf32> to vector<256x50xf32>
    %32 = arith.subf %28, %31 : vector<256x50xf32>
    %33 = math.exp %32 : vector<256x50xf32>
    %c0_23 = arith.constant 0 : index
    %c0_24 = arith.constant 0 : index
    %34 = vector.load %arg15[%c0_23, %c0_24] : memref<50x50xf32, #tpu.memory_space<vmem>>, vector<50x50xf32>
    %cst_25 = arith.constant dense<0.000000e+00> : vector<256x50xf32>
    %35 = tpu.matmul %33, %34, %cst_25 {dimension_numbers = #tpu.dot_dimension_numbers<[1], [0], [0], [1], [0, 0, 1, 1], [], []>} : vector<256x50xf32>, vector<50x50xf32>, vector<256x50xf32> -> vector<256x50xf32>
    %cst_26 = arith.constant 1.000000e-30 : f32
    %36 = vector.broadcast %cst_26 : f32 to vector<256x50xf32>
    %37 = arith.maximumf %35, %36 : vector<256x50xf32>
    %38 = arith.divf %33, %37 : vector<256x50xf32>
    %39 = arith.truncf %38 : vector<256x50xf32> to vector<256x50xbf16>
    %c0_27 = arith.constant 0 : index
    %c0_28 = arith.constant 0 : index
    %40 = vector.load %arg7[%c0_27, %c0_28] : memref<50x800xbf16, #tpu.memory_space<vmem>>, vector<50x800xbf16>
    %cst_29 = arith.constant dense<0.000000e+00> : vector<256x800xf32>
    %41 = tpu.matmul %39, %40, %cst_29 {dimension_numbers = #tpu.dot_dimension_numbers<[1], [0], [0], [1], [0, 0, 1, 1], [], []>} : vector<256x50xbf16>, vector<50x800xbf16>, vector<256x800xf32> -> vector<256x800xf32>
    %42 = arith.mulf %41, %22 : vector<256x800xf32>
    %43 = arith.truncf %42 : vector<256x800xf32> to vector<256x800xbf16>
    %c0_30 = arith.constant 0 : index
    %c0_31 = arith.constant 0 : index
    %44 = vector.load %arg8[%c0_30, %c0_31] : memref<800x80xbf16, #tpu.memory_space<vmem>>, vector<800x80xbf16>
    %cst_32 = arith.constant dense<0.000000e+00> : vector<256x80xf32>
    %45 = tpu.matmul %43, %44, %cst_32 {dimension_numbers = #tpu.dot_dimension_numbers<[1], [0], [0], [1], [0, 0, 1, 1], [], []>} : vector<256x800xbf16>, vector<800x80xbf16>, vector<256x80xf32> -> vector<256x80xf32>
    %c1_33 = arith.constant 1 : index
    %c0_34 = arith.constant 0 : index
    %46 = vector.load %arg18[%c1_33, %c0_34] : memref<4x80xf32, #tpu.memory_space<vmem>>, vector<1x80xf32>
    %47 = vector.broadcast %46 : vector<1x80xf32> to vector<256x80xf32>
    %48 = arith.addf %45, %47 : vector<256x80xf32>
    %49 = arith.addf %48, %6 : vector<256x80xf32>
    %c0_35 = arith.constant 0 : index
    %c0_36 = arith.constant 0 : index
    %50 = vector.load %arg16[%c0_35, %c0_36] : memref<80x80xf32, #tpu.memory_space<vmem>>, vector<80x80xf32>
    %cst_37 = arith.constant dense<0.000000e+00> : vector<256x80xf32>
    %51 = tpu.matmul %49, %50, %cst_37 {dimension_numbers = #tpu.dot_dimension_numbers<[1], [0], [0], [1], [0, 0, 1, 1], [], []>} : vector<256x80xf32>, vector<80x80xf32>, vector<256x80xf32> -> vector<256x80xf32>
    %52 = arith.subf %49, %51 : vector<256x80xf32>
    %53 = arith.mulf %52, %52 : vector<256x80xf32>
    %c0_38 = arith.constant 0 : index
    %c0_39 = arith.constant 0 : index
    %54 = vector.load %arg16[%c0_38, %c0_39] : memref<80x80xf32, #tpu.memory_space<vmem>>, vector<80x80xf32>
    %cst_40 = arith.constant dense<0.000000e+00> : vector<256x80xf32>
    %55 = tpu.matmul %53, %54, %cst_40 {dimension_numbers = #tpu.dot_dimension_numbers<[1], [0], [0], [1], [0, 0, 1, 1], [], []>} : vector<256x80xf32>, vector<80x80xf32>, vector<256x80xf32> -> vector<256x80xf32>
    %cst_41 = arith.constant 9.99999974E-6 : f32
    %56 = vector.broadcast %cst_41 : f32 to vector<256x80xf32>
    %57 = arith.addf %55, %56 : vector<256x80xf32>
    %58 = math.rsqrt %57 : vector<256x80xf32>
    %59 = arith.mulf %52, %58 : vector<256x80xf32>
    %c2_42 = arith.constant 2 : index
    %c0_43 = arith.constant 0 : index
    %60 = vector.load %arg18[%c2_42, %c0_43] : memref<4x80xf32, #tpu.memory_space<vmem>>, vector<1x80xf32>
    %61 = vector.broadcast %60 : vector<1x80xf32> to vector<256x80xf32>
    %62 = arith.mulf %59, %61 : vector<256x80xf32>
    %c3 = arith.constant 3 : index
    %c0_44 = arith.constant 0 : index
    %63 = vector.load %arg18[%c3, %c0_44] : memref<4x80xf32, #tpu.memory_space<vmem>>, vector<1x80xf32>
    %64 = vector.broadcast %63 : vector<1x80xf32> to vector<256x80xf32>
    %65 = arith.addf %62, %64 : vector<256x80xf32>
    %c0_45 = arith.constant 0 : index
    %c0_46 = arith.constant 0 : index
    %66 = vector.load %arg17[%c0_45, %c0_46] : memref<80x16xf32, #tpu.memory_space<vmem>>, vector<80x16xf32>
    %cst_47 = arith.constant dense<0.000000e+00> : vector<256x16xf32>
    %67 = tpu.matmul %65, %66, %cst_47 {dimension_numbers = #tpu.dot_dimension_numbers<[1], [0], [0], [1], [0, 0, 1, 1], [], []>} : vector<256x80xf32>, vector<80x16xf32>, vector<256x16xf32> -> vector<256x16xf32>
    %68 = arith.truncf %67 : vector<256x16xf32> to vector<256x16xbf16>
    %c0_48 = arith.constant 0 : index
    %c0_49 = arith.constant 0 : index
    %69 = vector.load %arg9[%c0_48, %c0_49] : memref<16x16xbf16, #tpu.memory_space<vmem>>, vector<16x16xbf16>
    %cst_50 = arith.constant dense<0.000000e+00> : vector<256x16xf32>
    %70 = tpu.matmul %68, %69, %cst_50 {dimension_numbers = #tpu.dot_dimension_numbers<[1], [0], [0], [1], [0, 0, 1, 1], [], []>} : vector<256x16xbf16>, vector<16x16xbf16>, vector<256x16xf32> -> vector<256x16xf32>
    %c0_51 = arith.constant 0 : index
    %c0_52 = arith.constant 0 : index
    %71 = vector.load %arg20[%c0_51, %c0_52] : memref<1x16xf32, #tpu.memory_space<vmem>>, vector<1x16xf32>
    %72 = vector.broadcast %71 : vector<1x16xf32> to vector<256x16xf32>
    %73 = arith.addf %70, %72 : vector<256x16xf32>
    %cst_53 = arith.constant 0.000000e+00 : f32
    %74 = vector.broadcast %cst_53 : f32 to vector<256x16xf32>
    %75 = arith.maximumf %73, %74 : vector<256x16xf32>
    %76 = arith.truncf %75 : vector<256x16xf32> to vector<256x16xbf16>
    %c0_54 = arith.constant 0 : index
    %c0_55 = arith.constant 0 : index
    %77 = vector.load %arg10[%c0_54, %c0_55] : memref<16x16xbf16, #tpu.memory_space<vmem>>, vector<16x16xbf16>
    %cst_56 = arith.constant dense<0.000000e+00> : vector<256x16xf32>
    %78 = tpu.matmul %76, %77, %cst_56 {dimension_numbers = #tpu.dot_dimension_numbers<[1], [0], [0], [1], [0, 0, 1, 1], [], []>} : vector<256x16xbf16>, vector<16x16xbf16>, vector<256x16xf32> -> vector<256x16xf32>
    %c0_57 = arith.constant 0 : index
    %c0_58 = arith.constant 0 : index
    %79 = vector.load %arg21[%c0_57, %c0_58] : memref<1x16xf32, #tpu.memory_space<vmem>>, vector<1x16xf32>
    %80 = vector.broadcast %79 : vector<1x16xf32> to vector<256x16xf32>
    %81 = arith.addf %78, %80 : vector<256x16xf32>
    %82 = arith.addf %81, %67 : vector<256x16xf32>
    %83 = arith.truncf %82 : vector<256x16xf32> to vector<256x16xbf16>
    %c0_59 = arith.constant 0 : index
    %c0_60 = arith.constant 0 : index
    %84 = vector.load %arg11[%c0_59, %c0_60] : memref<16x48xbf16, #tpu.memory_space<vmem>>, vector<16x48xbf16>
    %cst_61 = arith.constant dense<0.000000e+00> : vector<256x48xf32>
    %85 = tpu.matmul %83, %84, %cst_61 {dimension_numbers = #tpu.dot_dimension_numbers<[1], [0], [0], [1], [0, 0, 1, 1], [], []>} : vector<256x16xbf16>, vector<16x48xbf16>, vector<256x48xf32> -> vector<256x48xf32>
    %c0_62 = arith.constant 0 : index
    %c0_63 = arith.constant 0 : index
    %86 = vector.load %arg12[%c0_62, %c0_63] : memref<32x48xbf16, #tpu.memory_space<vmem>>, vector<32x48xbf16>
    %cst_64 = arith.constant dense<0.000000e+00> : vector<256x48xf32>
    %87 = tpu.matmul %1, %86, %cst_64 {dimension_numbers = #tpu.dot_dimension_numbers<[1], [0], [0], [1], [0, 0, 1, 1], [], []>} : vector<256x32xbf16>, vector<32x48xbf16>, vector<256x48xf32> -> vector<256x48xf32>
    %88 = arith.addf %85, %87 : vector<256x48xf32>
    %c0_65 = arith.constant 0 : index
    %c0_66 = arith.constant 0 : index
    %89 = vector.load %arg22[%c0_65, %c0_66] : memref<1x48xf32, #tpu.memory_space<vmem>>, vector<1x48xf32>
    %90 = vector.broadcast %89 : vector<1x48xf32> to vector<256x48xf32>
    %91 = arith.addf %88, %90 : vector<256x48xf32>
    %92 = vector.extract_strided_slice %91 {offsets = [0, 0], sizes = [256, 16], strides = [1, 1]} : vector<256x48xf32> to vector<256x16xf32>
    %93 = arith.negf %92 : vector<256x16xf32>
    %94 = math.exp %93 : vector<256x16xf32>
    %cst_67 = arith.constant 1.000000e+00 : f32
    %95 = vector.broadcast %cst_67 : f32 to vector<256x16xf32>
    %96 = arith.addf %95, %94 : vector<256x16xf32>
    %97 = arith.divf %95, %96 : vector<256x16xf32>
    %98 = vector.extract_strided_slice %91 {offsets = [0, 16], sizes = [256, 16], strides = [1, 1]} : vector<256x48xf32> to vector<256x16xf32>
    %99 = arith.negf %98 : vector<256x16xf32>
    %100 = math.exp %99 : vector<256x16xf32>
    %cst_68 = arith.constant 1.000000e+00 : f32
    %101 = vector.broadcast %cst_68 : f32 to vector<256x16xf32>
    %102 = arith.addf %101, %100 : vector<256x16xf32>
    %103 = arith.divf %101, %102 : vector<256x16xf32>
    %104 = vector.extract_strided_slice %91 {offsets = [0, 32], sizes = [256, 16], strides = [1, 1]} : vector<256x48xf32> to vector<256x16xf32>
    %c0_69 = arith.constant 0 : index
    %c0_70 = arith.constant 0 : index
    %105 = vector.load %arg13[%c0_69, %c0_70] : memref<32x16xbf16, #tpu.memory_space<vmem>>, vector<32x16xbf16>
    %cst_71 = arith.constant dense<0.000000e+00> : vector<256x16xf32>
    %106 = tpu.matmul %1, %105, %cst_71 {dimension_numbers = #tpu.dot_dimension_numbers<[1], [0], [0], [1], [0, 0, 1, 1], [], []>} : vector<256x32xbf16>, vector<32x16xbf16>, vector<256x16xf32> -> vector<256x16xf32>
    %107 = arith.mulf %104, %97 : vector<256x16xf32>
    %108 = arith.truncf %107 : vector<256x16xf32> to vector<256x16xbf16>
    %c0_72 = arith.constant 0 : index
    %c0_73 = arith.constant 0 : index
    %109 = vector.load %arg14[%c0_72, %c0_73] : memref<16x16xbf16, #tpu.memory_space<vmem>>, vector<16x16xbf16>
    %cst_74 = arith.constant dense<0.000000e+00> : vector<256x16xf32>
    %110 = tpu.matmul %108, %109, %cst_74 {dimension_numbers = #tpu.dot_dimension_numbers<[1], [0], [0], [1], [0, 0, 1, 1], [], []>} : vector<256x16xbf16>, vector<16x16xbf16>, vector<256x16xf32> -> vector<256x16xf32>
    %111 = arith.addf %106, %110 : vector<256x16xf32>
    %c0_75 = arith.constant 0 : index
    %c0_76 = arith.constant 0 : index
    %112 = vector.load %arg23[%c0_75, %c0_76] : memref<1x16xf32, #tpu.memory_space<vmem>>, vector<1x16xf32>
    %113 = vector.broadcast %112 : vector<1x16xf32> to vector<256x16xf32>
    %114 = arith.addf %111, %113 : vector<256x16xf32>
    %115 = math.tanh %114 : vector<256x16xf32>
    %cst_77 = arith.constant 1.000000e+00 : f32
    %116 = vector.broadcast %cst_77 : f32 to vector<256x16xf32>
    %117 = arith.subf %116, %103 : vector<256x16xf32>
    %118 = arith.mulf %117, %82 : vector<256x16xf32>
    %119 = arith.mulf %103, %115 : vector<256x16xf32>
    %120 = arith.addf %118, %119 : vector<256x16xf32>
    %c0_78 = arith.constant 0 : index
    %c0_79 = arith.constant 0 : index
    %121 = vector.load %arg24[%c0_78, %c0_79] : memref<256x16xf32, #tpu.memory_space<vmem>>, vector<256x16xf32>
    tpu.vector_store %arg24[%c0_78, %c0_79], %120 {strides = array<i32>} : memref<256x16xf32, #tpu.memory_space<vmem>>, vector<256x16xf32>,
    return
  }
  func.func @transform_0(%arg0: i32) -> (i32, i32) {
    %c0_i32 = arith.constant 0 : i32
    %c0_i32_0 = arith.constant 0 : i32
    return %arg0, %c0_i32 : i32, i32
  }
  func.func @transform_1(%arg0: i32) -> (i32, i32) {
    %c0_i32 = arith.constant 0 : i32
    %c0_i32_0 = arith.constant 0 : i32
    %c0_i32_1 = arith.constant 0 : i32
    return %c0_i32, %c0_i32_0 : i32, i32
  }
  func.func @transform_2(%arg0: i32) -> (i32, i32) {
    %c0_i32 = arith.constant 0 : i32
    %c0_i32_0 = arith.constant 0 : i32
    %c0_i32_1 = arith.constant 0 : i32
    return %c0_i32, %c0_i32_0 : i32, i32
  }
  func.func @transform_3(%arg0: i32) -> (i32, i32) {
    %c0_i32 = arith.constant 0 : i32
    %c0_i32_0 = arith.constant 0 : i32
    %c0_i32_1 = arith.constant 0 : i32
    return %c0_i32, %c0_i32_0 : i32, i32
  }
  func.func @transform_4(%arg0: i32) -> (i32, i32) {
    %c0_i32 = arith.constant 0 : i32
    %c0_i32_0 = arith.constant 0 : i32
    %c0_i32_1 = arith.constant 0 : i32
    return %c0_i32, %c0_i32_0 : i32, i32
  }
  func.func @transform_5(%arg0: i32) -> (i32, i32) {
    %c0_i32 = arith.constant 0 : i32
    %c0_i32_0 = arith.constant 0 : i32
    %c0_i32_1 = arith.constant 0 : i32
    return %c0_i32, %c0_i32_0 : i32, i32
  }
  func.func @transform_6(%arg0: i32) -> (i32, i32) {
    %c0_i32 = arith.constant 0 : i32
    %c0_i32_0 = arith.constant 0 : i32
    %c0_i32_1 = arith.constant 0 : i32
    return %c0_i32, %c0_i32_0 : i32, i32
  }
  func.func @transform_7(%arg0: i32) -> (i32, i32) {
    %c0_i32 = arith.constant 0 : i32
    %c0_i32_0 = arith.constant 0 : i32
    %c0_i32_1 = arith.constant 0 : i32
    return %c0_i32, %c0_i32_0 : i32, i32
  }
  func.func @transform_8(%arg0: i32) -> (i32, i32) {
    %c0_i32 = arith.constant 0 : i32
    %c0_i32_0 = arith.constant 0 : i32
    %c0_i32_1 = arith.constant 0 : i32
    return %c0_i32, %c0_i32_0 : i32, i32
  }
  func.func @transform_9(%arg0: i32) -> (i32, i32) {
    %c0_i32 = arith.constant 0 : i32
    %c0_i32_0 = arith.constant 0 : i32
    %c0_i32_1 = arith.constant 0 : i32
    return %c0_i32, %c0_i32_0 : i32, i32
  }
  func.func @transform_10(%arg0: i32) -> (i32, i32) {
    %c0_i32 = arith.constant 0 : i32
    %c0_i32_0 = arith.constant 0 : i32
    %c0_i32_1 = arith.constant 0 : i32
    return %c0_i32, %c0_i32_0 : i32, i32
  }
  func.func @transform_11(%arg0: i32) -> (i32, i32) {
    %c0_i32 = arith.constant 0 : i32
    %c0_i32_0 = arith.constant 0 : i32
    %c0_i32_1 = arith.constant 0 : i32
    return %c0_i32, %c0_i32_0 : i32, i32
  }
  func.func @transform_12(%arg0: i32) -> (i32, i32) {
    %c0_i32 = arith.constant 0 : i32
    %c0_i32_0 = arith.constant 0 : i32
    %c0_i32_1 = arith.constant 0 : i32
    return %c0_i32, %c0_i32_0 : i32, i32
  }
  func.func @transform_13(%arg0: i32) -> (i32, i32) {
    %c0_i32 = arith.constant 0 : i32
    %c0_i32_0 = arith.constant 0 : i32
    %c0_i32_1 = arith.constant 0 : i32
    return %c0_i32, %c0_i32_0 : i32, i32
  }
  func.func @transform_14(%arg0: i32) -> (i32, i32) {
    %c0_i32 = arith.constant 0 : i32
    %c0_i32_0 = arith.constant 0 : i32
    %c0_i32_1 = arith.constant 0 : i32
    return %c0_i32, %c0_i32_0 : i32, i32
  }
  func.func @transform_15(%arg0: i32) -> (i32, i32) {
    %c0_i32 = arith.constant 0 : i32
    %c0_i32_0 = arith.constant 0 : i32
    %c0_i32_1 = arith.constant 0 : i32
    return %c0_i32, %c0_i32_0 : i32, i32
  }
  func.func @transform_16(%arg0: i32) -> (i32, i32) {
    %c0_i32 = arith.constant 0 : i32
    %c0_i32_0 = arith.constant 0 : i32
    %c0_i32_1 = arith.constant 0 : i32
    return %c0_i32, %c0_i32_0 : i32, i32
  }
  func.func @transform_17(%arg0: i32) -> (i32, i32) {
    %c0_i32 = arith.constant 0 : i32
    %c0_i32_0 = arith.constant 0 : i32
    %c0_i32_1 = arith.constant 0 : i32
    return %c0_i32, %c0_i32_0 : i32, i32
  }
  func.func @transform_18(%arg0: i32) -> (i32, i32) {
    %c0_i32 = arith.constant 0 : i32
    %c0_i32_0 = arith.constant 0 : i32
    %c0_i32_1 = arith.constant 0 : i32
    return %c0_i32, %c0_i32_0 : i32, i32
  }
  func.func @transform_19(%arg0: i32) -> (i32, i32) {
    %c0_i32 = arith.constant 0 : i32
    %c0_i32_0 = arith.constant 0 : i32
    %c0_i32_1 = arith.constant 0 : i32
    return %c0_i32, %c0_i32_0 : i32, i32
  }
  func.func @transform_20(%arg0: i32) -> (i32, i32) {
    %c0_i32 = arith.constant 0 : i32
    %c0_i32_0 = arith.constant 0 : i32
    %c0_i32_1 = arith.constant 0 : i32
    return %c0_i32, %c0_i32_0 : i32, i32
  }
  func.func @transform_21(%arg0: i32) -> (i32, i32) {
    %c0_i32 = arith.constant 0 : i32
    %c0_i32_0 = arith.constant 0 : i32
    %c0_i32_1 = arith.constant 0 : i32
    return %c0_i32, %c0_i32_0 : i32, i32
  }
  func.func @transform_22(%arg0: i32) -> (i32, i32) {
    %c0_i32 = arith.constant 0 : i32
    %c0_i32_0 = arith.constant 0 : i32
    %c0_i32_1 = arith.constant 0 : i32
    return %c0_i32, %c0_i32_0 : i32, i32
  }
  func.func @transform_23(%arg0: i32) -> (i32, i32) {
    %c0_i32 = arith.constant 0 : i32
    %c0_i32_0 = arith.constant 0 : i32
    return %arg0, %c0_i32 : i32, i32
  }
}

</mosaic_0001>

<llo_original>
// kernel: tpu_custom_call.1
$region0: #{tpu_custom_call.1}
  #allocation0 [shape = 'u32[]', space=smem, size = 0x4, offset = 0x4, fixed_abs, tag = 'smem constant byte address 0x4 - core index']
  #allocation1 [shape = 'u32[144,128]{1,0:T(1,128)}', space=vmem, size = 0x12000, scoped, tag = 'internal scratch']
  %s0 = inlined_call_operand.vmem [shape: f32[512,32], index: 0, kind: input, shape index: {}]
  %s1 = inlined_call_operand.vmem [shape: bf16[32,80], index: 1, kind: input, shape index: {}]
  %s2 = inlined_call_operand.vmem [shape: bf16[80,800], index: 2, kind: input, shape index: {}]
  %s3 = inlined_call_operand.vmem [shape: bf16[80,800], index: 3, kind: input, shape index: {}]
  %s4 = inlined_call_operand.vmem [shape: bf16[80,800], index: 4, kind: input, shape index: {}]
  %s5 = inlined_call_operand.vmem [shape: bf16[800,50], index: 5, kind: input, shape index: {}]
  %s6 = inlined_call_operand.vmem [shape: bf16[50,800], index: 6, kind: input, shape index: {}]
  %s7 = inlined_call_operand.vmem [shape: bf16[800,80], index: 7, kind: input, shape index: {}]
  %s8 = inlined_call_operand.vmem [shape: bf16[16,16], index: 8, kind: input, shape index: {}]
  %s9 = inlined_call_operand.vmem [shape: bf16[16,16], index: 9, kind: input, shape index: {}]
  %s10 = inlined_call_operand.vmem [shape: bf16[16,48], index: 10, kind: input, shape index: {}]
  %s11 = inlined_call_operand.vmem [shape: bf16[32,48], index: 11, kind: input, shape index: {}]
  %s12 = inlined_call_operand.vmem [shape: bf16[32,16], index: 12, kind: input, shape index: {}]
  %s13 = inlined_call_operand.vmem [shape: bf16[16,16], index: 13, kind: input, shape index: {}]
  %s14 = inlined_call_operand.vmem [shape: f32[50,50], index: 14, kind: input, shape index: {}]
  %s15 = inlined_call_operand.vmem [shape: f32[80,80], index: 15, kind: input, shape index: {}]
  %s16 = inlined_call_operand.vmem [shape: f32[80,16], index: 16, kind: input, shape index: {}]
  %s17 = inlined_call_operand.vmem [shape: f32[4,80], index: 17, kind: input, shape index: {}]
  %s18 = inlined_call_operand.vmem [shape: f32[3,800], index: 18, kind: input, shape index: {}]
  %s19 = inlined_call_operand.vmem [shape: f32[1,16], index: 19, kind: input, shape index: {}]
  %s20 = inlined_call_operand.vmem [shape: f32[1,16], index: 20, kind: input, shape index: {}]
  %s21 = inlined_call_operand.vmem [shape: f32[1,48], index: 21, kind: input, shape index: {}]
  %s22 = inlined_call_operand.vmem [shape: f32[1,16], index: 22, kind: input, shape index: {}]
  %s23 = inlined_call_operand.vmem [shape: f32[512,16], index: 23, kind: output, shape index: {}]
  %s24 = sld [smem:[#allocation0]]
  $region125: #{tpu_custom_call.1} parent=0
    _
  %s26 = ssub.s32 1, %s24
  %s27 = scalar_select 0, %s26, %s24
  loop: start=0, step=1, limit=4
  $region2: #{tpu_custom_call.1} parent=0 // loop_pre_header
    _
  $region3: #{tpu_custom_call.1} parent=0 // loop_header
    %s29 = sphi 0, %s33
    %p30 = scmp.ge.s32.totalorder %s29, 4
    %s39 = sphi 0, %s41
    %s42 = sphi 0, %s39
    %s43 = sphi 0, %s42
    %s59 = sphi 0, %s43
    %s63 = sphi 0, %s63
    %s65 = sphi 0, %s63
    %s66 = sphi 0, %s65
    %s80 = sphi 0, %s66
    %s84 = sphi 0, %s84
    %s86 = sphi 0, %s84
    %s87 = sphi 0, %s86
    %s101 = sphi 0, %s87
    %s105 = sphi 0, %s105
    %s107 = sphi 0, %s105
    %s108 = sphi 0, %s107
    %s122 = sphi 0, %s108
    %s126 = sphi 0, %s126
    %s128 = sphi 0, %s126
    %s129 = sphi 0, %s128
    %s143 = sphi 0, %s129
    %s147 = sphi 0, %s147
    %s149 = sphi 0, %s147
    %s150 = sphi 0, %s149
    %s164 = sphi 0, %s150
    %s168 = sphi 0, %s168
    %s170 = sphi 0, %s168
    %s171 = sphi 0, %s170
    %s185 = sphi 0, %s171
    %s189 = sphi 0, %s189
    %s191 = sphi 0, %s189
    %s192 = sphi 0, %s191
    %s206 = sphi 0, %s192
    %s210 = sphi 0, %s210
    %s212 = sphi 0, %s210
    %s213 = sphi 0, %s212
    %s227 = sphi 0, %s213
    %s231 = sphi 0, %s231
    %s233 = sphi 0, %s231
    %s234 = sphi 0, %s233
    %s248 = sphi 0, %s234
    %s252 = sphi 0, %s252
    %s254 = sphi 0, %s252
    %s255 = sphi 0, %s254
    %s269 = sphi 0, %s255
    %s273 = sphi 0, %s273
    %s275 = sphi 0, %s273
    %s276 = sphi 0, %s275
    %s290 = sphi 0, %s276
    %s294 = sphi 0, %s294
    %s296 = sphi 0, %s294
    %s297 = sphi 0, %s296
    %s311 = sphi 0, %s297
    %s315 = sphi 0, %s315
    %s317 = sphi 0, %s315
    %s318 = sphi 0, %s317
    %s332 = sphi 0, %s318
    %s336 = sphi 0, %s336
    %s338 = sphi 0, %s336
    %s339 = sphi 0, %s338
    %s353 = sphi 0, %s339
    %s357 = sphi 0, %s357
    %s359 = sphi 0, %s357
    %s360 = sphi 0, %s359
    %s374 = sphi 0, %s360
    %s378 = sphi 0, %s378
    %s380 = sphi 0, %s378
    %s381 = sphi 0, %s380
    %s395 = sphi 0, %s381
    %s399 = sphi 0, %s399
    %s401 = sphi 0, %s399
    %s402 = sphi 0, %s401
    %s416 = sphi 0, %s402
    %s420 = sphi 0, %s420
    %s422 = sphi 0, %s420
    %s423 = sphi 0, %s422
    %s437 = sphi 0, %s423
    %s441 = sphi 0, %s441
    %s443 = sphi 0, %s441
    %s444 = sphi 0, %s443
    %s458 = sphi 0, %s444
    %s462 = sphi 0, %s462
    %s464 = sphi 0, %s462
    %s465 = sphi 0, %s464
    %s479 = sphi 0, %s465
    %s483 = sphi 0, %s483
    %s485 = sphi 0, %s483
    %s486 = sphi 0, %s485
    %s500 = sphi 0, %s486
    %s504 = sphi 0, %s504
    %s506 = sphi 0, %s504
    %s507 = sphi 0, %s506
    %s521 = sphi 0, %s507
    %s527 = sphi 0, %s529
    %s530 = sphi 0, %s527
    %s531 = sphi 0, %s530
    %s547 = sphi 0, %s531
  $region4: #{tpu_custom_call.1} parent=0 // loop_header_branch
    %32 = sbr.rel (%p30) target = $region8
  $region5: #{tpu_custom_call.1} parent=0 // loop_body
    %s34 = ssub.s32 %s29, 1
    %s35 = ssub.s32 %s29, 2
    %s36 = sadd.s32 %s29, 1
    %s37 = ssub.s32 %s29, %s36
    %p38 = scmp.eq.s32.totalorder %s37, 0
    %s40 = sadd.s32 %s39, 1
    %s41 = scalar_select %p38, %s39, %s40
    %p44 = pneg %p38
    %p45 = scmp.eq.s32.totalorder %s29, 1
    %p46 = por %p44, %p45
    %p47 = scmp.ne.s32.totalorder %s39, %s42
    %p48 = scmp.eq.s32.totalorder %s29, 0
    %p49 = por %p47, %p48
    %p50 = scmp.ne.s32.totalorder %s39, %s42
    %p51 = scmp.eq.s32.totalorder %s34, 1
    %p52 = por %p50, %p51
    %p53 = scmp.ne.s32.totalorder %s42, %s43
    %p54 = scmp.eq.s32.totalorder %s34, 0
    %p55 = por %p53, %p54
    %p56 = scmp.ne.s32.totalorder %s42, %s43
    %p57 = scmp.eq.s32.totalorder %s35, 1
    %p58 = por %p56, %p57
    %p60 = scmp.ne.s32.totalorder %s43, %s59
    %p61 = scmp.eq.s32.totalorder %s35, 0
    %p62 = por %p60, %p61
    %s64 = sadd.s32 %s63, 1
    %p67 = scmp.eq.s32.totalorder %s29, 1
    %p68 = scmp.ne.s32.totalorder %s63, %s65
    %p69 = scmp.eq.s32.totalorder %s29, 0
    %p70 = por %p68, %p69
    %p71 = scmp.ne.s32.totalorder %s63, %s65
    %p72 = scmp.eq.s32.totalorder %s34, 1
    %p73 = por %p71, %p72
    %p74 = scmp.ne.s32.totalorder %s65, %s66
    %p75 = scmp.eq.s32.totalorder %s34, 0
    %p76 = por %p74, %p75
    %p77 = scmp.ne.s32.totalorder %s65, %s66
    %p78 = scmp.eq.s32.totalorder %s35, 1
    %p79 = por %p77, %p78
    %p81 = scmp.ne.s32.totalorder %s66, %s80
    %p82 = scmp.eq.s32.totalorder %s35, 0
    %p83 = por %p81, %p82
    %s85 = sadd.s32 %s84, 1
    %p88 = scmp.eq.s32.totalorder %s29, 1
    %p89 = scmp.ne.s32.totalorder %s84, %s86
    %p90 = scmp.eq.s32.totalorder %s29, 0
    %p91 = por %p89, %p90
    %p92 = scmp.ne.s32.totalorder %s84, %s86
    %p93 = scmp.eq.s32.totalorder %s34, 1
    %p94 = por %p92, %p93
    %p95 = scmp.ne.s32.totalorder %s86, %s87
    %p96 = scmp.eq.s32.totalorder %s34, 0
    %p97 = por %p95, %p96
    %p98 = scmp.ne.s32.totalorder %s86, %s87
    %p99 = scmp.eq.s32.totalorder %s35, 1
    %p100 = por %p98, %p99
    %p102 = scmp.ne.s32.totalorder %s87, %s101
    %p103 = scmp.eq.s32.totalorder %s35, 0
    %p104 = por %p102, %p103
    %s106 = sadd.s32 %s105, 1
    %p109 = scmp.eq.s32.totalorder %s29, 1
    %p110 = scmp.ne.s32.totalorder %s105, %s107
    %p111 = scmp.eq.s32.totalorder %s29, 0
    %p112 = por %p110, %p111
    %p113 = scmp.ne.s32.totalorder %s105, %s107
    %p114 = scmp.eq.s32.totalorder %s34, 1
    %p115 = por %p113, %p114
    %p116 = scmp.ne.s32.totalorder %s107, %s108
    %p117 = scmp.eq.s32.totalorder %s34, 0
    %p118 = por %p116, %p117
    %p119 = scmp.ne.s32.totalorder %s107, %s108
    %p120 = scmp.eq.s32.totalorder %s35, 1
    %p121 = por %p119, %p120
    %p123 = scmp.ne.s32.totalorder %s108, %s122
    %p124 = scmp.eq.s32.totalorder %s35, 0
    %p125 = por %p123, %p124
    %s127 = sadd.s32 %s126, 1
    %p130 = scmp.eq.s32.totalorder %s29, 1
    %p131 = scmp.ne.s32.totalorder %s126, %s128
    %p132 = scmp.eq.s32.totalorder %s29, 0
    %p133 = por %p131, %p132
    %p134 = scmp.ne.s32.totalorder %s126, %s128
    %p135 = scmp.eq.s32.totalorder %s34, 1
    %p136 = por %p134, %p135
    %p137 = scmp.ne.s32.totalorder %s128, %s129
    %p138 = scmp.eq.s32.totalorder %s34, 0
    %p139 = por %p137, %p138
    %p140 = scmp.ne.s32.totalorder %s128, %s129
    %p141 = scmp.eq.s32.totalorder %s35, 1
    %p142 = por %p140, %p141
    %p144 = scmp.ne.s32.totalorder %s129, %s143
    %p145 = scmp.eq.s32.totalorder %s35, 0
    %p146 = por %p144, %p145
    %s148 = sadd.s32 %s147, 1
    %p151 = scmp.eq.s32.totalorder %s29, 1
    %p152 = scmp.ne.s32.totalorder %s147, %s149
    %p153 = scmp.eq.s32.totalorder %s29, 0
    %p154 = por %p152, %p153
    %p155 = scmp.ne.s32.totalorder %s147, %s149
    %p156 = scmp.eq.s32.totalorder %s34, 1
    %p157 = por %p155, %p156
    %p158 = scmp.ne.s32.totalorder %s149, %s150
    %p159 = scmp.eq.s32.totalorder %s34, 0
    %p160 = por %p158, %p159
    %p161 = scmp.ne.s32.totalorder %s149, %s150
    %p162 = scmp.eq.s32.totalorder %s35, 1
    %p163 = por %p161, %p162
    %p165 = scmp.ne.s32.totalorder %s150, %s164
    %p166 = scmp.eq.s32.totalorder %s35, 0
    %p167 = por %p165, %p166
    %s169 = sadd.s32 %s168, 1
    %p172 = scmp.eq.s32.totalorder %s29, 1
    %p173 = scmp.ne.s32.totalorder %s168, %s170
    %p174 = scmp.eq.s32.totalorder %s29, 0
    %p175 = por %p173, %p174
    %p176 = scmp.ne.s32.totalorder %s168, %s170
    %p177 = scmp.eq.s32.totalorder %s34, 1
    %p178 = por %p176, %p177
    %p179 = scmp.ne.s32.totalorder %s170, %s171
    %p180 = scmp.eq.s32.totalorder %s34, 0
    %p181 = por %p179, %p180
    %p182 = scmp.ne.s32.totalorder %s170, %s171
    %p183 = scmp.eq.s32.totalorder %s35, 1
    %p184 = por %p182, %p183
    %p186 = scmp.ne.s32.totalorder %s171, %s185
    %p187 = scmp.eq.s32.totalorder %s35, 0
    %p188 = por %p186, %p187
    %s190 = sadd.s32 %s189, 1
    %p193 = scmp.eq.s32.totalorder %s29, 1
    %p194 = scmp.ne.s32.totalorder %s189, %s191
    %p195 = scmp.eq.s32.totalorder %s29, 0
    %p196 = por %p194, %p195
    %p197 = scmp.ne.s32.totalorder %s189, %s191
    %p198 = scmp.eq.s32.totalorder %s34, 1
    %p199 = por %p197, %p198
    %p200 = scmp.ne.s32.totalorder %s191, %s192
    %p201 = scmp.eq.s32.totalorder %s34, 0
    %p202 = por %p200, %p201
    %p203 = scmp.ne.s32.totalorder %s191, %s192
    %p204 = scmp.eq.s32.totalorder %s35, 1
    %p205 = por %p203, %p204
    %p207 = scmp.ne.s32.totalorder %s192, %s206
    %p208 = scmp.eq.s32.totalorder %s35, 0
    %p209 = por %p207, %p208
    %s211 = sadd.s32 %s210, 1
    %p214 = scmp.eq.s32.totalorder %s29, 1
    %p215 = scmp.ne.s32.totalorder %s210, %s212
    %p216 = scmp.eq.s32.totalorder %s29, 0
    %p217 = por %p215, %p216
    %p218 = scmp.ne.s32.totalorder %s210, %s212
    %p219 = scmp.eq.s32.totalorder %s34, 1
    %p220 = por %p218, %p219
    %p221 = scmp.ne.s32.totalorder %s212, %s213
    %p222 = scmp.eq.s32.totalorder %s34, 0
    %p223 = por %p221, %p222
    %p224 = scmp.ne.s32.totalorder %s212, %s213
    %p225 = scmp.eq.s32.totalorder %s35, 1
    %p226 = por %p224, %p225
    %p228 = scmp.ne.s32.totalorder %s213, %s227
    %p229 = scmp.eq.s32.totalorder %s35, 0
    %p230 = por %p228, %p229
    %s232 = sadd.s32 %s231, 1
    %p235 = scmp.eq.s32.totalorder %s29, 1
    %p236 = scmp.ne.s32.totalorder %s231, %s233
    %p237 = scmp.eq.s32.totalorder %s29, 0
    %p238 = por %p236, %p237
    %p239 = scmp.ne.s32.totalorder %s231, %s233
    %p240 = scmp.eq.s32.totalorder %s34, 1
    %p241 = por %p239, %p240
    %p242 = scmp.ne.s32.totalorder %s233, %s234
    %p243 = scmp.eq.s32.totalorder %s34, 0
    %p244 = por %p242, %p243
    %p245 = scmp.ne.s32.totalorder %s233, %s234
    %p246 = scmp.eq.s32.totalorder %s35, 1
    %p247 = por %p245, %p246
    %p249 = scmp.ne.s32.totalorder %s234, %s248
    %p250 = scmp.eq.s32.totalorder %s35, 0
    %p251 = por %p249, %p250
    %s253 = sadd.s32 %s252, 1
    %p256 = scmp.eq.s32.totalorder %s29, 1
    %p257 = scmp.ne.s32.totalorder %s252, %s254
    %p258 = scmp.eq.s32.totalorder %s29, 0
    %p259 = por %p257, %p258
    %p260 = scmp.ne.s32.totalorder %s252, %s254
    %p261 = scmp.eq.s32.totalorder %s34, 1
    %p262 = por %p260, %p261
    %p263 = scmp.ne.s32.totalorder %s254, %s255
    %p264 = scmp.eq.s32.totalorder %s34, 0
    %p265 = por %p263, %p264
    %p266 = scmp.ne.s32.totalorder %s254, %s255
    %p267 = scmp.eq.s32.totalorder %s35, 1
    %p268 = por %p266, %p267
    %p270 = scmp.ne.s32.totalorder %s255, %s269
    %p271 = scmp.eq.s32.totalorder %s35, 0
    %p272 = por %p270, %p271
    %s274 = sadd.s32 %s273, 1
    %p277 = scmp.eq.s32.totalorder %s29, 1
    %p278 = scmp.ne.s32.totalorder %s273, %s275
    %p279 = scmp.eq.s32.totalorder %s29, 0
    %p280 = por %p278, %p279
    %p281 = scmp.ne.s32.totalorder %s273, %s275
    %p282 = scmp.eq.s32.totalorder %s34, 1
    %p283 = por %p281, %p282
    %p284 = scmp.ne.s32.totalorder %s275, %s276
    %p285 = scmp.eq.s32.totalorder %s34, 0
    %p286 = por %p284, %p285
    %p287 = scmp.ne.s32.totalorder %s275, %s276
    %p288 = scmp.eq.s32.totalorder %s35, 1
    %p289 = por %p287, %p288
    %p291 = scmp.ne.s32.totalorder %s276, %s290
    %p292 = scmp.eq.s32.totalorder %s35, 0
    %p293 = por %p291, %p292
    %s295 = sadd.s32 %s294, 1
    %p298 = scmp.eq.s32.totalorder %s29, 1
    %p299 = scmp.ne.s32.totalorder %s294, %s296
    %p300 = scmp.eq.s32.totalorder %s29, 0
    %p301 = por %p299, %p300
    %p302 = scmp.ne.s32.totalorder %s294, %s296
    %p303 = scmp.eq.s32.totalorder %s34, 1
    %p304 = por %p302, %p303
    %p305 = scmp.ne.s32.totalorder %s296, %s297
    %p306 = scmp.eq.s32.totalorder %s34, 0
    %p307 = por %p305, %p306
    %p308 = scmp.ne.s32.totalorder %s296, %s297
    %p309 = scmp.eq.s32.totalorder %s35, 1
    %p310 = por %p308, %p309
    %p312 = scmp.ne.s32.totalorder %s297, %s311
    %p313 = scmp.eq.s32.totalorder %s35, 0
    %p314 = por %p312, %p313
    %s316 = sadd.s32 %s315, 1
    %p319 = scmp.eq.s32.totalorder %s29, 1
    %p320 = scmp.ne.s32.totalorder %s315, %s317
    %p321 = scmp.eq.s32.totalorder %s29, 0
    %p322 = por %p320, %p321
    %p323 = scmp.ne.s32.totalorder %s315, %s317
    %p324 = scmp.eq.s32.totalorder %s34, 1
    %p325 = por %p323, %p324
    %p326 = scmp.ne.s32.totalorder %s317, %s318
    %p327 = scmp.eq.s32.totalorder %s34, 0
    %p328 = por %p326, %p327
    %p329 = scmp.ne.s32.totalorder %s317, %s318
    %p330 = scmp.eq.s32.totalorder %s35, 1
    %p331 = por %p329, %p330
    %p333 = scmp.ne.s32.totalorder %s318, %s332
    %p334 = scmp.eq.s32.totalorder %s35, 0
    %p335 = por %p333, %p334
    %s337 = sadd.s32 %s336, 1
    %p340 = scmp.eq.s32.totalorder %s29, 1
    %p341 = scmp.ne.s32.totalorder %s336, %s338
    %p342 = scmp.eq.s32.totalorder %s29, 0
    %p343 = por %p341, %p342
    %p344 = scmp.ne.s32.totalorder %s336, %s338
    %p345 = scmp.eq.s32.totalorder %s34, 1
    %p346 = por %p344, %p345
    %p347 = scmp.ne.s32.totalorder %s338, %s339
    %p348 = scmp.eq.s32.totalorder %s34, 0
    %p349 = por %p347, %p348
    %p350 = scmp.ne.s32.totalorder %s338, %s339
    %p351 = scmp.eq.s32.totalorder %s35, 1
    %p352 = por %p350, %p351
    %p354 = scmp.ne.s32.totalorder %s339, %s353
    %p355 = scmp.eq.s32.totalorder %s35, 0
    %p356 = por %p354, %p355
    %s358 = sadd.s32 %s357, 1
    %p361 = scmp.eq.s32.totalorder %s29, 1
    %p362 = scmp.ne.s32.totalorder %s357, %s359
    %p363 = scmp.eq.s32.totalorder %s29, 0
    %p364 = por %p362, %p363
    %p365 = scmp.ne.s32.totalorder %s357, %s359
    %p366 = scmp.eq.s32.totalorder %s34, 1
    %p367 = por %p365, %p366
    %p368 = scmp.ne.s32.totalorder %s359, %s360
    %p369 = scmp.eq.s32.totalorder %s34, 0
    %p370 = por %p368, %p369
    %p371 = scmp.ne.s32.totalorder %s359, %s360
    %p372 = scmp.eq.s32.totalorder %s35, 1
    %p373 = por %p371, %p372
    %p375 = scmp.ne.s32.totalorder %s360, %s374
    %p376 = scmp.eq.s32.totalorder %s35, 0
    %p377 = por %p375, %p376
    %s379 = sadd.s32 %s378, 1
    %p382 = scmp.eq.s32.totalorder %s29, 1
    %p383 = scmp.ne.s32.totalorder %s378, %s380
    %p384 = scmp.eq.s32.totalorder %s29, 0
    %p385 = por %p383, %p384
    %p386 = scmp.ne.s32.totalorder %s378, %s380
    %p387 = scmp.eq.s32.totalorder %s34, 1
    %p388 = por %p386, %p387
    %p389 = scmp.ne.s32.totalorder %s380, %s381
    %p390 = scmp.eq.s32.totalorder %s34, 0
    %p391 = por %p389, %p390
    %p392 = scmp.ne.s32.totalorder %s380, %s381
    %p393 = scmp.eq.s32.totalorder %s35, 1
    %p394 = por %p392, %p393
    %p396 = scmp.ne.s32.totalorder %s381, %s395
    %p397 = scmp.eq.s32.totalorder %s35, 0
    %p398 = por %p396, %p397
    %s400 = sadd.s32 %s399, 1
    %p403 = scmp.eq.s32.totalorder %s29, 1
    %p404 = scmp.ne.s32.totalorder %s399, %s401
    %p405 = scmp.eq.s32.totalorder %s29, 0
    %p406 = por %p404, %p405
    %p407 = scmp.ne.s32.totalorder %s399, %s401
    %p408 = scmp.eq.s32.totalorder %s34, 1
    %p409 = por %p407, %p408
    %p410 = scmp.ne.s32.totalorder %s401, %s402
    %p411 = scmp.eq.s32.totalorder %s34, 0
    %p412 = por %p410, %p411
    %p413 = scmp.ne.s32.totalorder %s401, %s402
    %p414 = scmp.eq.s32.totalorder %s35, 1
    %p415 = por %p413, %p414
    %p417 = scmp.ne.s32.totalorder %s402, %s416
    %p418 = scmp.eq.s32.totalorder %s35, 0
    %p419 = por %p417, %p418
    %s421 = sadd.s32 %s420, 1
    %p424 = scmp.eq.s32.totalorder %s29, 1
    %p425 = scmp.ne.s32.totalorder %s420, %s422
    %p426 = scmp.eq.s32.totalorder %s29, 0
    %p427 = por %p425, %p426
    %p428 = scmp.ne.s32.totalorder %s420, %s422
    %p429 = scmp.eq.s32.totalorder %s34, 1
    %p430 = por %p428, %p429
    %p431 = scmp.ne.s32.totalorder %s422, %s423
    %p432 = scmp.eq.s32.totalorder %s34, 0
    %p433 = por %p431, %p432
    %p434 = scmp.ne.s32.totalorder %s422, %s423
    %p435 = scmp.eq.s32.totalorder %s35, 1
    %p436 = por %p434, %p435
    %p438 = scmp.ne.s32.totalorder %s423, %s437
    %p439 = scmp.eq.s32.totalorder %s35, 0
    %p440 = por %p438, %p439
    %s442 = sadd.s32 %s441, 1
    %p445 = scmp.eq.s32.totalorder %s29, 1
    %p446 = scmp.ne.s32.totalorder %s441, %s443
    %p447 = scmp.eq.s32.totalorder %s29, 0
    %p448 = por %p446, %p447
    %p449 = scmp.ne.s32.totalorder %s441, %s443
    %p450 = scmp.eq.s32.totalorder %s34, 1
    %p451 = por %p449, %p450
    %p452 = scmp.ne.s32.totalorder %s443, %s444
    %p453 = scmp.eq.s32.totalorder %s34, 0
    %p454 = por %p452, %p453
    %p455 = scmp.ne.s32.totalorder %s443, %s444
    %p456 = scmp.eq.s32.totalorder %s35, 1
    %p457 = por %p455, %p456
    %p459 = scmp.ne.s32.totalorder %s444, %s458
    %p460 = scmp.eq.s32.totalorder %s35, 0
    %p461 = por %p459, %p460
    %s463 = sadd.s32 %s462, 1
    %p466 = scmp.eq.s32.totalorder %s29, 1
    %p467 = scmp.ne.s32.totalorder %s462, %s464
    %p468 = scmp.eq.s32.totalorder %s29, 0
    %p469 = por %p467, %p468
    %p470 = scmp.ne.s32.totalorder %s462, %s464
    %p471 = scmp.eq.s32.totalorder %s34, 1
    %p472 = por %p470, %p471
    %p473 = scmp.ne.s32.totalorder %s464, %s465
    %p474 = scmp.eq.s32.totalorder %s34, 0
    %p475 = por %p473, %p474
    %p476 = scmp.ne.s32.totalorder %s464, %s465
    %p477 = scmp.eq.s32.totalorder %s35, 1
    %p478 = por %p476, %p477
    %p480 = scmp.ne.s32.totalorder %s465, %s479
    %p481 = scmp.eq.s32.totalorder %s35, 0
    %p482 = por %p480, %p481
    %s484 = sadd.s32 %s483, 1
    %p487 = scmp.eq.s32.totalorder %s29, 1
    %p488 = scmp.ne.s32.totalorder %s483, %s485
    %p489 = scmp.eq.s32.totalorder %s29, 0
    %p490 = por %p488, %p489
    %p491 = scmp.ne.s32.totalorder %s483, %s485
    %p492 = scmp.eq.s32.totalorder %s34, 1
    %p493 = por %p491, %p492
    %p494 = scmp.ne.s32.totalorder %s485, %s486
    %p495 = scmp.eq.s32.totalorder %s34, 0
    %p496 = por %p494, %p495
    %p497 = scmp.ne.s32.totalorder %s485, %s486
    %p498 = scmp.eq.s32.totalorder %s35, 1
    %p499 = por %p497, %p498
    %p501 = scmp.ne.s32.totalorder %s486, %s500
    %p502 = scmp.eq.s32.totalorder %s35, 0
    %p503 = por %p501, %p502
    %s505 = sadd.s32 %s504, 1
    %p508 = scmp.eq.s32.totalorder %s29, 1
    %p509 = scmp.ne.s32.totalorder %s504, %s506
    %p510 = scmp.eq.s32.totalorder %s29, 0
    %p511 = por %p509, %p510
    %p512 = scmp.ne.s32.totalorder %s504, %s506
    %p513 = scmp.eq.s32.totalorder %s34, 1
    %p514 = por %p512, %p513
    %p515 = scmp.ne.s32.totalorder %s506, %s507
    %p516 = scmp.eq.s32.totalorder %s34, 0
    %p517 = por %p515, %p516
    %p518 = scmp.ne.s32.totalorder %s506, %s507
    %p519 = scmp.eq.s32.totalorder %s35, 1
    %p520 = por %p518, %p519
    %p522 = scmp.ne.s32.totalorder %s507, %s521
    %p523 = scmp.eq.s32.totalorder %s35, 0
    %p524 = por %p522, %p523
    %s525 = ssub.s32 %s29, %s36
    %p526 = scmp.eq.s32.totalorder %s525, 0
    %s528 = sadd.s32 %s527, 1
    %s529 = scalar_select %p526, %s527, %s528
    %p532 = pneg %p526
    %p533 = scmp.eq.s32.totalorder %s29, 1
    %p534 = por %p532, %p533
    %p535 = scmp.ne.s32.totalorder %s527, %s530
    %p536 = scmp.eq.s32.totalorder %s29, 0
    %p537 = por %p535, %p536
    %p538 = scmp.ne.s32.totalorder %s527, %s530
    %p539 = scmp.eq.s32.totalorder %s34, 1
    %p540 = por %p538, %p539
    %p541 = scmp.ne.s32.totalorder %s530, %s531
    %p542 = scmp.eq.s32.totalorder %s34, 0
    %p543 = por %p541, %p542
    %p544 = scmp.ne.s32.totalorder %s530, %s531
    %p545 = scmp.eq.s32.totalorder %s35, 1
    %p546 = por %p544, %p545
    %p548 = scmp.ne.s32.totalorder %s531, %s547
    %p549 = scmp.eq.s32.totalorder %s35, 0
    %p550 = por %p548, %p549
    %p551 = scmp.le.s32.totalorder 1, %s29
    %p552 = scmp.lt.s32.totalorder %s29, 3
    %p553 = pnand %p551, %p552
    %p554 = pneg %p553
    // Predicated region
    $region9: #{tpu_custom_call.1} parent=5 // pred_check
      _
    $region10: #{tpu_custom_call.1} parent=5 // pred_check_branch
      %556 = sbr.rel (%p553) target = $region12
    $region11: #{tpu_custom_call.1} parent=5 // pred_region
      %s557 = ssub.s32 %s29, 1
      // Predicated region
      $region13: #{tpu_custom_call.1} parent=11 // pred_check
        %p558 = pneg %p76
      $region14: #{tpu_custom_call.1} parent=11 // pred_check_branch
        %560 = sbr.rel (%p558) target = $region16
      $region15: #{tpu_custom_call.1} parent=11 // pred_region
        _
      $region16: #{tpu_custom_call.1} parent=11 // pred_fallthru
        _
      // Predicated region
      $region17: #{tpu_custom_call.1} parent=11 // pred_check
        %p561 = pneg %p97
      $region18: #{tpu_custom_call.1} parent=11 // pred_check_branch
        %563 = sbr.rel (%p561) target = $region20
      $region19: #{tpu_custom_call.1} parent=11 // pred_region
        _
      $region20: #{tpu_custom_call.1} parent=11 // pred_fallthru
        _
      // Predicated region
      $region21: #{tpu_custom_call.1} parent=11 // pred_check
        %p564 = pneg %p118
      $region22: #{tpu_custom_call.1} parent=11 // pred_check_branch
        %566 = sbr.rel (%p564) target = $region24
      $region23: #{tpu_custom_call.1} parent=11 // pred_region
        _
      $region24: #{tpu_custom_call.1} parent=11 // pred_fallthru
        _
      // Predicated region
      $region25: #{tpu_custom_call.1} parent=11 // pred_check
        %p567 = pneg %p139
      $region26: #{tpu_custom_call.1} parent=11 // pred_check_branch
        %569 = sbr.rel (%p567) target = $region28
      $region27: #{tpu_custom_call.1} parent=11 // pred_region
        _
      $region28: #{tpu_custom_call.1} parent=11 // pred_fallthru
        _
      // Predicated region
      $region29: #{tpu_custom_call.1} parent=11 // pred_check
        %p570 = pneg %p160
      $region30: #{tpu_custom_call.1} parent=11 // pred_check_branch
        %572 = sbr.rel (%p570) target = $region32
      $region31: #{tpu_custom_call.1} parent=11 // pred_region
        _
      $region32: #{tpu_custom_call.1} parent=11 // pred_fallthru
        _
      // Predicated region
      $region33: #{tpu_custom_call.1} parent=11 // pred_check
        %p573 = pneg %p181
      $region34: #{tpu_custom_call.1} parent=11 // pred_check_branch
        %575 = sbr.rel (%p573) target = $region36
      $region35: #{tpu_custom_call.1} parent=11 // pred_region
        _
      $region36: #{tpu_custom_call.1} parent=11 // pred_fallthru
        _
      // Predicated region
      $region37: #{tpu_custom_call.1} parent=11 // pred_check
        %p576 = pneg %p202
      $region38: #{tpu_custom_call.1} parent=11 // pred_check_branch
        %578 = sbr.rel (%p576) target = $region40
      $region39: #{tpu_custom_call.1} parent=11 // pred_region
        _
      $region40: #{tpu_custom_call.1} parent=11 // pred_fallthru
        _
      // Predicated region
      $region41: #{tpu_custom_call.1} parent=11 // pred_check
        %p579 = pneg %p223
      $region42: #{tpu_custom_call.1} parent=11 // pred_check_branch
        %581 = sbr.rel (%p579) target = $region44
      $region43: #{tpu_custom_call.1} parent=11 // pred_region
        _
      $region44: #{tpu_custom_call.1} parent=11 // pred_fallthru
        _
      // Predicated region
      $region45: #{tpu_custom_call.1} parent=11 // pred_check
        %p582 = pneg %p244
      $region46: #{tpu_custom_call.1} parent=11 // pred_check_branch
        %584 = sbr.rel (%p582) target = $region48
      $region47: #{tpu_custom_call.1} parent=11 // pred_region
        _
      $region48: #{tpu_custom_call.1} parent=11 // pred_fallthru
        _
      // Predicated region
      $region49: #{tpu_custom_call.1} parent=11 // pred_check
        %p585 = pneg %p265
      $region50: #{tpu_custom_call.1} parent=11 // pred_check_branch
        %587 = sbr.rel (%p585) target = $region52
      $region51: #{tpu_custom_call.1} parent=11 // pred_region
        _
      $region52: #{tpu_custom_call.1} parent=11 // pred_fallthru
        _
      // Predicated region
      $region53: #{tpu_custom_call.1} parent=11 // pred_check
        %p588 = pneg %p286
      $region54: #{tpu_custom_call.1} parent=11 // pred_check_branch
        %590 = sbr.rel (%p588) target = $region56
      $region55: #{tpu_custom_call.1} parent=11 // pred_region
        _
      $region56: #{tpu_custom_call.1} parent=11 // pred_fallthru
        _
      // Predicated region
      $region57: #{tpu_custom_call.1} parent=11 // pred_check
        %p591 = pneg %p307
      $region58: #{tpu_custom_call.1} parent=11 // pred_check_branch
        %593 = sbr.rel (%p591) target = $region60
      $region59: #{tpu_custom_call.1} parent=11 // pred_region
        _
      $region60: #{tpu_custom_call.1} parent=11 // pred_fallthru
        _
      // Predicated region
      $region61: #{tpu_custom_call.1} parent=11 // pred_check
        %p594 = pneg %p328
      $region62: #{tpu_custom_call.1} parent=11 // pred_check_branch
        %596 = sbr.rel (%p594) target = $region64
      $region63: #{tpu_custom_call.1} parent=11 // pred_region
        _
      $region64: #{tpu_custom_call.1} parent=11 // pred_fallthru
        _
      // Predicated region
      $region65: #{tpu_custom_call.1} parent=11 // pred_check
        %p597 = pneg %p349
      $region66: #{tpu_custom_call.1} parent=11 // pred_check_branch
        %599 = sbr.rel (%p597) target = $region68
      $region67: #{tpu_custom_call.1} parent=11 // pred_region
        _
      $region68: #{tpu_custom_call.1} parent=11 // pred_fallthru
        _
      // Predicated region
      $region69: #{tpu_custom_call.1} parent=11 // pred_check
        %p600 = pneg %p370
      $region70: #{tpu_custom_call.1} parent=11 // pred_check_branch
        %602 = sbr.rel (%p600) target = $region72
      $region71: #{tpu_custom_call.1} parent=11 // pred_region
        _
      $region72: #{tpu_custom_call.1} parent=11 // pred_fallthru
        _
      // Predicated region
      $region73: #{tpu_custom_call.1} parent=11 // pred_check
        %p603 = pneg %p391
      $region74: #{tpu_custom_call.1} parent=11 // pred_check_branch
        %605 = sbr.rel (%p603) target = $region76
      $region75: #{tpu_custom_call.1} parent=11 // pred_region
        _
      $region76: #{tpu_custom_call.1} parent=11 // pred_fallthru
        _
      // Predicated region
      $region77: #{tpu_custom_call.1} parent=11 // pred_check
        %p606 = pneg %p412
      $region78: #{tpu_custom_call.1} parent=11 // pred_check_branch
        %608 = sbr.rel (%p606) target = $region80
      $region79: #{tpu_custom_call.1} parent=11 // pred_region
        _
      $region80: #{tpu_custom_call.1} parent=11 // pred_fallthru
        _
      // Predicated region
      $region81: #{tpu_custom_call.1} parent=11 // pred_check
        %p609 = pneg %p433
      $region82: #{tpu_custom_call.1} parent=11 // pred_check_branch
        %611 = sbr.rel (%p609) target = $region84
      $region83: #{tpu_custom_call.1} parent=11 // pred_region
        _
      $region84: #{tpu_custom_call.1} parent=11 // pred_fallthru
        _
      // Predicated region
      $region85: #{tpu_custom_call.1} parent=11 // pred_check
        %p612 = pneg %p454
      $region86: #{tpu_custom_call.1} parent=11 // pred_check_branch
        %614 = sbr.rel (%p612) target = $region88
      $region87: #{tpu_custom_call.1} parent=11 // pred_region
        _
      $region88: #{tpu_custom_call.1} parent=11 // pred_fallthru
        _
      // Predicated region
      $region89: #{tpu_custom_call.1} parent=11 // pred_check
        %p615 = pneg %p475
      $region90: #{tpu_custom_call.1} parent=11 // pred_check_branch
        %617 = sbr.rel (%p615) target = $region92
      $region91: #{tpu_custom_call.1} parent=11 // pred_region
        _
      $region92: #{tpu_custom_call.1} parent=11 // pred_fallthru
        _
      // Predicated region
      $region93: #{tpu_custom_call.1} parent=11 // pred_check
        %p618 = pneg %p496
      $region94: #{tpu_custom_call.1} parent=11 // pred_check_branch
        %620 = sbr.rel (%p618) target = $region96
      $region95: #{tpu_custom_call.1} parent=11 // pred_region
        _
      $region96: #{tpu_custom_call.1} parent=11 // pred_fallthru
        _
      // Predicated region
      $region97: #{tpu_custom_call.1} parent=11 // pred_check
        %p621 = pneg %p517
      $region98: #{tpu_custom_call.1} parent=11 // pred_check_branch
        %623 = sbr.rel (%p621) target = $region100
      $region99: #{tpu_custom_call.1} parent=11 // pred_region
        _
      $region100: #{tpu_custom_call.1} parent=11 // pred_fallthru
        _
    $region12: #{tpu_custom_call.1} parent=5 // pred_fallthru
      _
    %p624 = scmp.lt.s32.totalorder %s29, 2
    // Predicated region
    $region101: #{tpu_custom_call.1} parent=5 // pred_check
      %p625 = pneg %p624
    $region102: #{tpu_custom_call.1} parent=5 // pred_check_branch
      %627 = sbr.rel (%p625) target = $region104
    $region103: #{tpu_custom_call.1} parent=5 // pred_region
      // Predicated region
      $region105: #{tpu_custom_call.1} parent=103 // pred_check
        %p628 = pneg %p49
      $region106: #{tpu_custom_call.1} parent=103 // pred_check_branch
        %630 = sbr.rel (%p628) target = $region108
      $region107: #{tpu_custom_call.1} parent=103 // pred_region
        %s631 = smul.u32 32, %s29
        %p632 = scmp.lt.s32.totalorder %s631, 63
        %s633 = scalar_select %p632, %s631, 63
        %s634 = smul.addr %s633, 8
        %s635 = scalar_lea.vmem %s0, %s634
        %s636 = smul.u32 32, %s29
      $region108: #{tpu_custom_call.1} parent=103 // pred_fallthru
        _
    $region104: #{tpu_custom_call.1} parent=5 // pred_fallthru
      _
    %p637 = scmp.le.s32.totalorder 1, %s29
    %p638 = scmp.lt.s32.totalorder %s29, 3
    %p639 = pnand %p637, %p638
    %p640 = pneg %p639
    // Predicated region
    $region109: #{tpu_custom_call.1} parent=5 // pred_check
      _
    $region110: #{tpu_custom_call.1} parent=5 // pred_check_branch
      %642 = sbr.rel (%p639) target = $region112
    $region111: #{tpu_custom_call.1} parent=5 // pred_region
      %s643 = ssub.s32 %s29, 1
      %s644 = smul.u32 32, %s34
      %p645 = scmp.lt.s32.totalorder %s644, 63
      %s646 = scalar_select %p645, %s644, 63
      %s647 = smul.addr %s646, 8
      %s648 = scalar_lea.vmem %s0, %s647
      %p649 = pneg %p55
      %p650 = pneg %p52
      %p651 = pneg %p76
      %p652 = pneg %p73
      %p653 = pneg %p97
      %p654 = pneg %p94
      %p655 = pneg %p118
      %p656 = pneg %p115
      %p657 = pneg %p139
      %p658 = pneg %p136
      %p659 = pneg %p160
      %p660 = pneg %p157
      %p661 = pneg %p181
      %p662 = pneg %p178
      %p663 = pneg %p202
      %p664 = pneg %p199
      %p665 = pneg %p223
      %p666 = pneg %p220
      %p667 = pneg %p244
      %p668 = pneg %p241
      %p669 = pneg %p265
      %p670 = pneg %p262
      %p671 = pneg %p286
      %p672 = pneg %p283
      %p673 = pneg %p307
      %p674 = pneg %p304
      %p675 = pneg %p328
      %p676 = pneg %p325
      %p677 = pneg %p349
      %p678 = pneg %p346
      %p679 = pneg %p370
      %p680 = pneg %p367
      %p681 = pneg %p391
      %p682 = pneg %p388
      %p683 = pneg %p412
      %p684 = pneg %p409
      %p685 = pneg %p433
      %p686 = pneg %p430
      %p687 = pneg %p454
      %p688 = pneg %p451
      %p689 = pneg %p475
      %p690 = pneg %p472
      %p691 = pneg %p496
      %p692 = pneg %p493
      %p693 = pneg %p517
      %p694 = pneg %p514
      %p695 = pneg %p543
      %p696 = pneg %p540
      %s697 = smul.u32 32, %s34
      %p698 = scmp.lt.s32.totalorder %s697, 63
      %s699 = scalar_select %p698, %s697, 63
      %s700 = smul.addr %s699, 8
      %s701 = scalar_lea.vmem %s23, %s700
      %s702 = smul.u32 32, %s34
      %p703 = scmp.lt.s32.totalorder %s702, 63
      %s704 = scalar_select %p703, %s702, 63
      %s705 = smul.addr %s704, 8
      %s706 = scalar_lea.vmem %s0, %s705
      %s707 = smul.u32 32, %s34
      %s708 = smul.u32 32, %s34
      %p709 = scmp.lt.s32.totalorder %s708, 63
      %s710 = scalar_select %p709, %s708, 63
      %s711 = smul.addr %s710, 8
      %s712 = scalar_lea.vmem %s23, %s711
      %s713 = smul.u32 32, %s34
      %v715 = vld [vmem:[%s706] sm:$0xff]
      %v716 = vld [vmem:[%s706 + $0x8] sm:$0xff]
      %v717 = vld [vmem:[%s706 + $0x10] sm:$0xff]
      %v718 = vld [vmem:[%s706 + $0x18] sm:$0xff]
      %v719 = vld [vmem:[%s706 + $0x20] sm:$0xff]
      %v720 = vld [vmem:[%s706 + $0x28] sm:$0xff]
      %v721 = vld [vmem:[%s706 + $0x30] sm:$0xff]
      %v722 = vld [vmem:[%s706 + $0x38] sm:$0xff]
      %v723 = vld [vmem:[%s706 + $0x40] sm:$0xff]
      %v724 = vld [vmem:[%s706 + $0x48] sm:$0xff]
      %v725 = vld [vmem:[%s706 + $0x50] sm:$0xff]
      %v726 = vld [vmem:[%s706 + $0x58] sm:$0xff]
      %v727 = vld [vmem:[%s706 + $0x60] sm:$0xff]
      %v728 = vld [vmem:[%s706 + $0x68] sm:$0xff]
      %v729 = vld [vmem:[%s706 + $0x70] sm:$0xff]
      %v730 = vld [vmem:[%s706 + $0x78] sm:$0xff]
      %v731 = vld [vmem:[%s706 + $0x80] sm:$0xff]
      %v732 = vld [vmem:[%s706 + $0x88] sm:$0xff]
      %v733 = vld [vmem:[%s706 + $0x90] sm:$0xff]
      %v734 = vld [vmem:[%s706 + $0x98] sm:$0xff]
      %v735 = vld [vmem:[%s706 + $0xa0] sm:$0xff]
      %v736 = vld [vmem:[%s706 + $0xa8] sm:$0xff]
      %v737 = vld [vmem:[%s706 + $0xb0] sm:$0xff]
      %v738 = vld [vmem:[%s706 + $0xb8] sm:$0xff]
      %v739 = vld [vmem:[%s706 + $0xc0] sm:$0xff]
      %v740 = vld [vmem:[%s706 + $0xc8] sm:$0xff]
      %v741 = vld [vmem:[%s706 + $0xd0] sm:$0xff]
      %v742 = vld [vmem:[%s706 + $0xd8] sm:$0xff]
      %v743 = vld [vmem:[%s706 + $0xe0] sm:$0xff]
      %v744 = vld [vmem:[%s706 + $0xe8] sm:$0xff]
      %v745 = vld [vmem:[%s706 + $0xf0] sm:$0xff]
      %v746 = vld [vmem:[%s706 + $0xf8] sm:$0xff]
      %v747 = vpack.c.bf16 %v716, %v715
      %v748 = vpack.c.bf16 %v718, %v717
      %v749 = vpack.c.bf16 %v720, %v719
      %v750 = vpack.c.bf16 %v722, %v721
      %v751 = vpack.c.bf16 %v724, %v723
      %v752 = vpack.c.bf16 %v726, %v725
      %v753 = vpack.c.bf16 %v728, %v727
      %v754 = vpack.c.bf16 %v730, %v729
      %v755 = vpack.c.bf16 %v732, %v731
      %v756 = vpack.c.bf16 %v734, %v733
      %v757 = vpack.c.bf16 %v736, %v735
      %v758 = vpack.c.bf16 %v738, %v737
      %v759 = vpack.c.bf16 %v740, %v739
      %v760 = vpack.c.bf16 %v742, %v741
      %v761 = vpack.c.bf16 %v744, %v743
      %v762 = vpack.c.bf16 %v746, %v745
      %v763 = vld [vmem:[%s1] sm:$0xf]
      %v764 = vld [vmem:[%s1 + $0x4] sm:$0xf]
      %v765 = vld [vmem:[%s1 + $0x8] sm:$0xf]
      %v766 = vld [vmem:[%s1 + $0xc] sm:$0xf]
      %v767 = vld [vmem:[%s17] sm:$0x1]
      %v768 = vlaneseq
      %v769 = vshrl.u32 %v768, 7
      %v770 = vsub.s32 0, %v769
      %v771 = vrot.slane %v767, %v770
      %v776 = vunpack.c.l.b16 %v763
      %v777 = vunpack.c.l.b16 %v764
      %v778 = vunpack.c.l.b16 %v765
      %v779 = vunpack.c.l.b16 %v766
      %v780 = vpack.c.b16 %v777, %v776
      %v781 = vpack.c.b16 %v779, %v778
      %vm784 = vcmask 261120
      %v786 = vsel %vm784, %v747, 0
      %v789 = vsel %vm784, %v748, 0
      %v792 = vsel %vm784, %v749, 0
      %v795 = vsel %vm784, %v750, 0
      %v798 = vsel %vm784, %v751, 0
      %v801 = vsel %vm784, %v752, 0
      %v804 = vsel %vm784, %v753, 0
      %v807 = vsel %vm784, %v754, 0
      %v810 = vsel %vm784, %v755, 0
      %v813 = vsel %vm784, %v756, 0
      %v816 = vsel %vm784, %v757, 0
      %v819 = vsel %vm784, %v758, 0
      %v822 = vsel %vm784, %v759, 0
      %v825 = vsel %vm784, %v760, 0
      %v828 = vsel %vm784, %v761, 0
      %v831 = vsel %vm784, %v762, 0
      %833 = vmatprep.subr.bf16.mxu0 0
      %834 = vmatpush1.bf16.msra.mxu0 0
      %835 = vmatprep.subr.bf16.mxu0 0
      %836 = vmatpush1.bf16.msra.mxu0 0
      %837 = vmatprep.subr.bf16.mxu0 0
      %838 = vmatpush1.bf16.msra.mxu0 0
      %839 = vmatprep.subr.bf16.mxu0 0
      %840 = vmatpush1.bf16.msra.mxu0 0
      %841 = vmatprep.subr.bf16.mxu0 0
      %842 = vmatpush1.bf16.msra.mxu0 0
      %843 = vmatprep.subr.bf16.mxu0 0
      %844 = vmatpush1.bf16.msra.mxu0 0
      %845 = vmatprep.subr.bf16.mxu0 0
      %846 = vmatpush1.bf16.msra.mxu0 %v781
      %847 = vmatprep.subr.bf16.mxu0 0
      %848 = vmatpush1.bf16.msra.mxu0 %v780
      %849 = vmatprep.subr.bf16.mxu0 0
      %850 = vmatpush2.bf16.msra.mxu0 0
      %851 = vmatprep.subr.bf16.mxu0 0
      %852 = vmatpush2.bf16.msra.mxu0 0
      %853 = vmatprep.subr.bf16.mxu0 0
      %854 = vmatpush2.bf16.msra.mxu0 0
      %855 = vmatprep.subr.bf16.mxu0 0
      %856 = vmatpush2.bf16.msra.mxu0 0
      %857 = vmatprep.subr.bf16.mxu0 0
      %858 = vmatpush2.bf16.msra.mxu0 0
      %859 = vmatprep.subr.bf16.mxu0 0
      %860 = vmatpush2.bf16.msra.mxu0 0
      %861 = vmatprep.subr.bf16.mxu0 0
      %862 = vmatpush2.bf16.msra.mxu0 0
      %863 = vmatprep.subr.bf16.mxu0 0
      %864 = vmatpush2.bf16.msra.mxu0 0
      %865 = vmatprep.mubr.bf16.mxu0 0
      %866 = vmatmul.mubr.bf16.gmra.mxu0 %v786
      %v867 = vpop.f32.mrf.mxu0
      %v868 = vadd.f32 %v771, %v867
      %v869 = vpop.f32.mrf.mxu0
      %v870 = vpop.f32.mrf.mxu0
      %v871 = vadd.f32 %v771, %v870
      %v872 = vpop.f32.mrf.mxu0
      %873 = vmatprep.mubr.bf16.mxu0 0
      %874 = vmatmul.mubr.bf16.gmra.mxu0 %v789
      %v875 = vpop.f32.mrf.mxu0
      %v876 = vadd.f32 %v771, %v875
      %v877 = vpop.f32.mrf.mxu0
      %v878 = vpop.f32.mrf.mxu0
      %v879 = vadd.f32 %v771, %v878
      %v880 = vpop.f32.mrf.mxu0
      %881 = vmatprep.mubr.bf16.mxu0 0
      %882 = vmatmul.mubr.bf16.gmra.mxu0 %v792
      %v883 = vpop.f32.mrf.mxu0
      %v884 = vadd.f32 %v771, %v883
      %v885 = vpop.f32.mrf.mxu0
      %v886 = vpop.f32.mrf.mxu0
      %v887 = vadd.f32 %v771, %v886
      %v888 = vpop.f32.mrf.mxu0
      %889 = vmatprep.mubr.bf16.mxu0 0
      %890 = vmatmul.mubr.bf16.gmra.mxu0 %v795
      %v891 = vpop.f32.mrf.mxu0
      %v892 = vadd.f32 %v771, %v891
      %v893 = vpop.f32.mrf.mxu0
      %v894 = vpop.f32.mrf.mxu0
      %v895 = vadd.f32 %v771, %v894
      %v896 = vpop.f32.mrf.mxu0
      %897 = vmatprep.mubr.bf16.mxu0 0
      %898 = vmatmul.mubr.bf16.gmra.mxu0 %v798
      %v899 = vpop.f32.mrf.mxu0
      %v900 = vadd.f32 %v771, %v899
      %v901 = vpop.f32.mrf.mxu0
      %v902 = vpop.f32.mrf.mxu0
      %v903 = vadd.f32 %v771, %v902
      %v904 = vpop.f32.mrf.mxu0
      %905 = vmatprep.mubr.bf16.mxu0 0
      %906 = vmatmul.mubr.bf16.gmra.mxu0 %v801
      %v907 = vpop.f32.mrf.mxu0
      %v908 = vadd.f32 %v771, %v907
      %v909 = vpop.f32.mrf.mxu0
      %v910 = vpop.f32.mrf.mxu0
      %v911 = vadd.f32 %v771, %v910
      %v912 = vpop.f32.mrf.mxu0
      %913 = vmatprep.mubr.bf16.mxu0 0
      %914 = vmatmul.mubr.bf16.gmra.mxu0 %v804
      %v915 = vpop.f32.mrf.mxu0
      %v916 = vadd.f32 %v771, %v915
      %v917 = vpop.f32.mrf.mxu0
      %v918 = vpop.f32.mrf.mxu0
      %v919 = vadd.f32 %v771, %v918
      %v920 = vpop.f32.mrf.mxu0
      %921 = vmatprep.mubr.bf16.mxu0 0
      %922 = vmatmul.mubr.bf16.gmra.mxu0 %v807
      %v923 = vpop.f32.mrf.mxu0
      %v924 = vadd.f32 %v771, %v923
      %v925 = vpop.f32.mrf.mxu0
      %v926 = vpop.f32.mrf.mxu0
      %v927 = vadd.f32 %v771, %v926
      %v928 = vpop.f32.mrf.mxu0
      %929 = vmatprep.mubr.bf16.mxu0 0
      %930 = vmatmul.mubr.bf16.gmra.mxu0 %v810
      %v931 = vpop.f32.mrf.mxu0
      %v932 = vadd.f32 %v771, %v931
      %v933 = vpop.f32.mrf.mxu0
      %v934 = vpop.f32.mrf.mxu0
      %v935 = vadd.f32 %v771, %v934
      %v936 = vpop.f32.mrf.mxu0
      %937 = vmatprep.mubr.bf16.mxu0 0
      %938 = vmatmul.mubr.bf16.gmra.mxu0 %v813
      %v939 = vpop.f32.mrf.mxu0
      %v940 = vadd.f32 %v771, %v939
      %v941 = vpop.f32.mrf.mxu0
      %v942 = vpop.f32.mrf.mxu0
      %v943 = vadd.f32 %v771, %v942
      %v944 = vpop.f32.mrf.mxu0
      %945 = vmatprep.mubr.bf16.mxu0 0
      %946 = vmatmul.mubr.bf16.gmra.mxu0 %v816
      %v947 = vpop.f32.mrf.mxu0
      %v948 = vadd.f32 %v771, %v947
      %v949 = vpop.f32.mrf.mxu0
      %v950 = vpop.f32.mrf.mxu0
      %v951 = vadd.f32 %v771, %v950
      %v952 = vpop.f32.mrf.mxu0
      %953 = vmatprep.mubr.bf16.mxu0 0
      %954 = vmatmul.mubr.bf16.gmra.mxu0 %v819
      %v955 = vpop.f32.mrf.mxu0
      %v956 = vadd.f32 %v771, %v955
      %v957 = vpop.f32.mrf.mxu0
      %v958 = vpop.f32.mrf.mxu0
      %v959 = vadd.f32 %v771, %v958
      %v960 = vpop.f32.mrf.mxu0
      %961 = vmatprep.mubr.bf16.mxu0 0
      %962 = vmatmul.mubr.bf16.gmra.mxu0 %v822
      %v963 = vpop.f32.mrf.mxu0
      %v964 = vadd.f32 %v771, %v963
      %v965 = vpop.f32.mrf.mxu0
      %v966 = vpop.f32.mrf.mxu0
      %v967 = vadd.f32 %v771, %v966
      %v968 = vpop.f32.mrf.mxu0
      %969 = vmatprep.mubr.bf16.mxu0 0
      %970 = vmatmul.mubr.bf16.gmra.mxu0 %v825
      %v971 = vpop.f32.mrf.mxu0
      %v972 = vadd.f32 %v771, %v971
      %v973 = vpop.f32.mrf.mxu0
      %v974 = vpop.f32.mrf.mxu0
      %v975 = vadd.f32 %v771, %v974
      %v976 = vpop.f32.mrf.mxu0
      %977 = vmatprep.mubr.bf16.mxu0 0
      %978 = vmatmul.mubr.bf16.gmra.mxu0 %v828
      %v979 = vpop.f32.mrf.mxu0
      %v980 = vadd.f32 %v771, %v979
      %v981 = vpop.f32.mrf.mxu0
      %v982 = vpop.f32.mrf.mxu0
      %v983 = vadd.f32 %v771, %v982
      %v984 = vpop.f32.mrf.mxu0
      %985 = vmatprep.mubr.bf16.mxu0 0
      %986 = vmatmul.mubr.bf16.gmra.mxu0 %v831
      %v987 = vpop.f32.mrf.mxu0
      %v988 = vadd.f32 %v771, %v987
      %v989 = vpop.f32.mrf.mxu0
      %v990 = vpop.f32.mrf.mxu0
      %v991 = vadd.f32 %v771, %v990
      %v992 = vpop.f32.mrf.mxu0
      %993 = vdwg.mxu0
      %v994 = vpack.c.bf16 %v871, %v868
      %v995 = vpack.c.bf16 %v879, %v876
      %v996 = vpack.c.bf16 %v887, %v884
      %v997 = vpack.c.bf16 %v895, %v892
      %v998 = vpack.c.bf16 %v903, %v900
      %v999 = vpack.c.bf16 %v911, %v908
      %v1000 = vpack.c.bf16 %v919, %v916
      %v1001 = vpack.c.bf16 %v927, %v924
      %v1002 = vpack.c.bf16 %v935, %v932
      %v1003 = vpack.c.bf16 %v943, %v940
      %v1004 = vpack.c.bf16 %v951, %v948
      %v1005 = vpack.c.bf16 %v959, %v956
      %v1006 = vpack.c.bf16 %v967, %v964
      %v1007 = vpack.c.bf16 %v975, %v972
      %v1008 = vpack.c.bf16 %v983, %v980
      %v1009 = vpack.c.bf16 %v991, %v988
      %v1010 = vld [vmem:[%s2] sm:$0xff]
      %v1011 = vld [vmem:[%s2 + $0x8] sm:$0xff]
      %v1012 = vld [vmem:[%s2 + $0x10] sm:$0xff]
      %v1013 = vld [vmem:[%s2 + $0x18] sm:$0xf]
      %v1014 = vld [vmem:[%s2 + $0x1c] sm:$0xff]
      %v1015 = vld [vmem:[%s2 + $0x24] sm:$0xff]
      %v1016 = vld [vmem:[%s2 + $0x2c] sm:$0xff]
      %v1017 = vld [vmem:[%s2 + $0x34] sm:$0xf]
      %v1018 = vld [vmem:[%s2 + $0x38] sm:$0xff]
      %v1019 = vld [vmem:[%s2 + $0x40] sm:$0xff]
      %v1020 = vld [vmem:[%s2 + $0x48] sm:$0xff]
      %v1021 = vld [vmem:[%s2 + $0x50] sm:$0xf]
      %v1022 = vld [vmem:[%s2 + $0x54] sm:$0xff]
      %v1023 = vld [vmem:[%s2 + $0x5c] sm:$0xff]
      %v1024 = vld [vmem:[%s2 + $0x64] sm:$0xff]
      %v1025 = vld [vmem:[%s2 + $0x6c] sm:$0xf]
      %v1026 = vld [vmem:[%s2 + $0x70] sm:$0xff]
      %v1027 = vld [vmem:[%s2 + $0x78] sm:$0xff]
      %v1028 = vld [vmem:[%s2 + $0x80] sm:$0xff]
      %v1029 = vld [vmem:[%s2 + $0x88] sm:$0xf]
      %v1030 = vld [vmem:[%s2 + $0x8c] sm:$0xff]
      %v1031 = vld [vmem:[%s2 + $0x94] sm:$0xff]
      %v1032 = vld [vmem:[%s2 + $0x9c] sm:$0xff]
      %v1033 = vld [vmem:[%s2 + $0xa4] sm:$0xf]
      %v1034 = vld [vmem:[%s2 + $0xa8] sm:$0xff]
      %v1035 = vld [vmem:[%s2 + $0xb0] sm:$0xff]
      %v1036 = vld [vmem:[%s2 + $0xb8] sm:$0xff]
      %v1037 = vld [vmem:[%s2 + $0xc0] sm:$0xf]
      %v1038 = vld [vmem:[%s2 + $0xc4] sm:$0xff]
      %v1039 = vld [vmem:[%s2 + $0xcc] sm:$0xff]
      %v1040 = vld [vmem:[%s2 + $0xd4] sm:$0xff]
      %v1041 = vld [vmem:[%s2 + $0xdc] sm:$0xf]
      %v1042 = vld [vmem:[%s2 + $0xe0] sm:$0xff]
      %v1043 = vld [vmem:[%s2 + $0xe8] sm:$0xff]
      %v1044 = vld [vmem:[%s2 + $0xf0] sm:$0xff]
      %v1045 = vld [vmem:[%s2 + $0xf8] sm:$0xf]
      %v1046 = vld [vmem:[%s2 + $0xfc] sm:$0xff]
      %v1047 = vld [vmem:[%s2 + $0x104] sm:$0xff]
      %v1048 = vld [vmem:[%s2 + $0x10c] sm:$0xff]
      %v1049 = vld [vmem:[%s2 + $0x114] sm:$0xf]
      %v1050 = vld [vmem:[%s18] ss:$4 sm:$0x7f]
      %v1052 = vlaneseq
      %v1053 = vshrl.u32 %v1052, 7
      %v1054 = vsub.s32 0, %v1053
      %v1055 = vrot.slane %v1050, %v1054
      %v1056 = vlaneseq
      %v1057 = vshrl.u32 %v1056, 7
      %v1058 = vsub.s32 1, %v1057
      %v1059 = vrot.slane %v1050, %v1058
      %v1060 = vlaneseq
      %v1061 = vshrl.u32 %v1060, 7
      %v1062 = vsub.s32 2, %v1061
      %v1063 = vrot.slane %v1050, %v1062
      %v1064 = vlaneseq
      %v1065 = vshrl.u32 %v1064, 7
      %v1066 = vsub.s32 3, %v1065
      %v1067 = vrot.slane %v1050, %v1066
      %v1068 = vlaneseq
      %v1069 = vshrl.u32 %v1068, 7
      %v1070 = vsub.s32 4, %v1069
      %v1071 = vrot.slane %v1050, %v1070
      %v1072 = vlaneseq
      %v1073 = vshrl.u32 %v1072, 7
      %v1074 = vsub.s32 5, %v1073
      %v1075 = vrot.slane %v1050, %v1074
      %v1076 = vlaneseq
      %v1077 = vshrl.u32 %v1076, 7
      %v1078 = vsub.s32 6, %v1077
      %v1079 = vrot.slane %v1050, %v1078
      %v1127 = vunpack.c.l.b16 %v1010
      %v1128 = vunpack.c.h.b16 %v1010
      %v1129 = vunpack.c.l.b16 %v1011
      %v1130 = vunpack.c.h.b16 %v1011
      %v1131 = vunpack.c.l.b16 %v1012
      %v1132 = vunpack.c.h.b16 %v1012
      %v1133 = vunpack.c.l.b16 %v1013
      %v1134 = vunpack.c.l.b16 %v1014
      %v1135 = vunpack.c.h.b16 %v1014
      %v1136 = vunpack.c.l.b16 %v1015
      %v1137 = vunpack.c.h.b16 %v1015
      %v1138 = vunpack.c.l.b16 %v1016
      %v1139 = vunpack.c.h.b16 %v1016
      %v1140 = vunpack.c.l.b16 %v1017
      %v1141 = vunpack.c.l.b16 %v1018
      %v1142 = vunpack.c.h.b16 %v1018
      %v1143 = vunpack.c.l.b16 %v1019
      %v1144 = vunpack.c.h.b16 %v1019
      %v1145 = vunpack.c.l.b16 %v1020
      %v1146 = vunpack.c.h.b16 %v1020
      %v1147 = vunpack.c.l.b16 %v1021
      %v1148 = vunpack.c.l.b16 %v1022
      %v1149 = vunpack.c.h.b16 %v1022
      %v1150 = vunpack.c.l.b16 %v1023
      %v1151 = vunpack.c.h.b16 %v1023
      %v1152 = vunpack.c.l.b16 %v1024
      %v1153 = vunpack.c.h.b16 %v1024
      %v1154 = vunpack.c.l.b16 %v1025
      %v1155 = vunpack.c.l.b16 %v1026
      %v1156 = vunpack.c.h.b16 %v1026
      %v1157 = vunpack.c.l.b16 %v1027
      %v1158 = vunpack.c.h.b16 %v1027
      %v1159 = vunpack.c.l.b16 %v1028
      %v1160 = vunpack.c.h.b16 %v1028
      %v1161 = vunpack.c.l.b16 %v1029
      %v1162 = vunpack.c.l.b16 %v1030
      %v1163 = vunpack.c.h.b16 %v1030
      %v1164 = vunpack.c.l.b16 %v1031
      %v1165 = vunpack.c.h.b16 %v1031
      %v1166 = vunpack.c.l.b16 %v1032
      %v1167 = vunpack.c.h.b16 %v1032
      %v1168 = vunpack.c.l.b16 %v1033
      %v1169 = vunpack.c.l.b16 %v1034
      %v1170 = vunpack.c.h.b16 %v1034
      %v1171 = vunpack.c.l.b16 %v1035
      %v1172 = vunpack.c.h.b16 %v1035
      %v1173 = vunpack.c.l.b16 %v1036
      %v1174 = vunpack.c.h.b16 %v1036
      %v1175 = vunpack.c.l.b16 %v1037
      %v1176 = vunpack.c.l.b16 %v1038
      %v1177 = vunpack.c.h.b16 %v1038
      %v1178 = vunpack.c.l.b16 %v1039
      %v1179 = vunpack.c.h.b16 %v1039
      %v1180 = vunpack.c.l.b16 %v1040
      %v1181 = vunpack.c.h.b16 %v1040
      %v1182 = vunpack.c.l.b16 %v1041
      %v1183 = vunpack.c.l.b16 %v1042
      %v1184 = vunpack.c.h.b16 %v1042
      %v1185 = vunpack.c.l.b16 %v1043
      %v1186 = vunpack.c.h.b16 %v1043
      %v1187 = vunpack.c.l.b16 %v1044
      %v1188 = vunpack.c.h.b16 %v1044
      %v1189 = vunpack.c.l.b16 %v1045
      %v1190 = vunpack.c.l.b16 %v1046
      %v1191 = vunpack.c.h.b16 %v1046
      %v1192 = vunpack.c.l.b16 %v1047
      %v1193 = vunpack.c.h.b16 %v1047
      %v1194 = vunpack.c.l.b16 %v1048
      %v1195 = vunpack.c.h.b16 %v1048
      %v1196 = vunpack.c.l.b16 %v1049
      %v1197 = vpack.c.b16 %v1134, %v1127
      %v1198 = vpack.c.b16 %v1135, %v1128
      %v1199 = vpack.c.b16 %v1136, %v1129
      %v1200 = vpack.c.b16 %v1137, %v1130
      %v1201 = vpack.c.b16 %v1138, %v1131
      %v1202 = vpack.c.b16 %v1139, %v1132
      %v1203 = vpack.c.b16 %v1140, %v1133
      %v1204 = vpack.c.b16 %v1148, %v1141
      %v1205 = vpack.c.b16 %v1149, %v1142
      %v1206 = vpack.c.b16 %v1150, %v1143
      %v1207 = vpack.c.b16 %v1151, %v1144
      %v1208 = vpack.c.b16 %v1152, %v1145
      %v1209 = vpack.c.b16 %v1153, %v1146
      %v1210 = vpack.c.b16 %v1154, %v1147
      %v1211 = vpack.c.b16 %v1162, %v1155
      %v1212 = vpack.c.b16 %v1163, %v1156
      %v1213 = vpack.c.b16 %v1164, %v1157
      %v1214 = vpack.c.b16 %v1165, %v1158
      %v1215 = vpack.c.b16 %v1166, %v1159
      %v1216 = vpack.c.b16 %v1167, %v1160
      %v1217 = vpack.c.b16 %v1168, %v1161
      %v1218 = vpack.c.b16 %v1176, %v1169
      %v1219 = vpack.c.b16 %v1177, %v1170
      %v1220 = vpack.c.b16 %v1178, %v1171
      %v1221 = vpack.c.b16 %v1179, %v1172
      %v1222 = vpack.c.b16 %v1180, %v1173
      %v1223 = vpack.c.b16 %v1181, %v1174
      %v1224 = vpack.c.b16 %v1182, %v1175
      %v1225 = vpack.c.b16 %v1190, %v1183
      %v1226 = vpack.c.b16 %v1191, %v1184
      %v1227 = vpack.c.b16 %v1192, %v1185
      %v1228 = vpack.c.b16 %v1193, %v1186
      %v1229 = vpack.c.b16 %v1194, %v1187
      %v1230 = vpack.c.b16 %v1195, %v1188
      %v1231 = vpack.c.b16 %v1196, %v1189
      %vm1267 = vcmask 654336
      %v1269 = vsel %vm1267, %v994, 0
      %v1272 = vsel %vm1267, %v995, 0
      %v1275 = vsel %vm1267, %v996, 0
      %v1278 = vsel %vm1267, %v997, 0
      %v1281 = vsel %vm1267, %v998, 0
      %v1284 = vsel %vm1267, %v999, 0
      %v1287 = vsel %vm1267, %v1000, 0
      %v1290 = vsel %vm1267, %v1001, 0
      %v1293 = vsel %vm1267, %v1002, 0
      %v1296 = vsel %vm1267, %v1003, 0
      %v1299 = vsel %vm1267, %v1004, 0
      %v1302 = vsel %vm1267, %v1005, 0
      %v1305 = vsel %vm1267, %v1006, 0
      %v1308 = vsel %vm1267, %v1007, 0
      %v1311 = vsel %vm1267, %v1008, 0
      %v1314 = vsel %vm1267, %v1009, 0
      %1316 = vmatprep.subr.bf16.mxu0 0
      %1317 = vmatpush1.bf16.msra.mxu0 0
      %1318 = vmatprep.subr.bf16.mxu0 0
      %1319 = vmatpush1.bf16.msra.mxu0 0
      %1320 = vmatprep.subr.bf16.mxu0 0
      %1321 = vmatpush1.bf16.msra.mxu0 0
      %1322 = vmatprep.subr.bf16.mxu0 %v1226
      %1323 = vmatpush1.bf16.msra.mxu0 %v1225
      %1324 = vmatprep.subr.bf16.mxu0 %v1219
      %1325 = vmatpush1.bf16.msra.mxu0 %v1218
      %1326 = vmatprep.subr.bf16.mxu0 %v1212
      %1327 = vmatpush1.bf16.msra.mxu0 %v1211
      %1328 = vmatprep.subr.bf16.mxu0 %v1205
      %1329 = vmatpush1.bf16.msra.mxu0 %v1204
      %1330 = vmatprep.subr.bf16.mxu0 %v1198
      %1331 = vmatpush1.bf16.msra.mxu0 %v1197
      %1332 = vmatprep.subr.bf16.mxu0 0
      %1333 = vmatpush2.bf16.msra.mxu0 0
      %1334 = vmatprep.subr.bf16.mxu0 0
      %1335 = vmatpush2.bf16.msra.mxu0 0
      %1336 = vmatprep.subr.bf16.mxu0 0
      %1337 = vmatpush2.bf16.msra.mxu0 0
      %1338 = vmatprep.subr.bf16.mxu0 0
      %1339 = vmatpush2.bf16.msra.mxu0 0
      %1340 = vmatprep.subr.bf16.mxu0 0
      %1341 = vmatpush2.bf16.msra.mxu0 0
      %1342 = vmatprep.subr.bf16.mxu0 0
      %1343 = vmatpush2.bf16.msra.mxu0 0
      %1344 = vmatprep.subr.bf16.mxu0 0
      %1345 = vmatpush2.bf16.msra.mxu0 0
      %1346 = vmatprep.subr.bf16.mxu0 0
      %1347 = vmatpush2.bf16.msra.mxu0 0
      %1348 = vmatprep.mubr.bf16.mxu0 0
      %1349 = vmatmul.mubr.bf16.gmra.mxu0 %v1269
      %v1350 = vpop.f32.mrf.mxu0
      %v1351 = vadd.f32 %v1055, %v1350
      %v1352 = vpop.f32.mrf.mxu0
      %v1353 = vadd.f32 %v1059, %v1352
      %v1354 = vpop.f32.mrf.mxu0
      %v1355 = vadd.f32 %v1055, %v1354
      %v1356 = vpop.f32.mrf.mxu0
      %v1357 = vadd.f32 %v1059, %v1356
      %1358 = vmatprep.mubr.bf16.mxu0 0
      %1359 = vmatmul.mubr.bf16.gmra.mxu0 %v1272
      %v1360 = vpop.f32.mrf.mxu0
      %v1361 = vadd.f32 %v1055, %v1360
      %v1362 = vpop.f32.mrf.mxu0
      %v1363 = vadd.f32 %v1059, %v1362
      %v1364 = vpop.f32.mrf.mxu0
      %v1365 = vadd.f32 %v1055, %v1364
      %v1366 = vpop.f32.mrf.mxu0
      %v1367 = vadd.f32 %v1059, %v1366
      %1368 = vmatprep.mubr.bf16.mxu0 0
      %1369 = vmatmul.mubr.bf16.gmra.mxu0 %v1275
      %v1370 = vpop.f32.mrf.mxu0
      %v1371 = vadd.f32 %v1055, %v1370
      %v1372 = vpop.f32.mrf.mxu0
      %v1373 = vadd.f32 %v1059, %v1372
      %v1374 = vpop.f32.mrf.mxu0
      %v1375 = vadd.f32 %v1055, %v1374
      %v1376 = vpop.f32.mrf.mxu0
      %v1377 = vadd.f32 %v1059, %v1376
      %1378 = vmatprep.mubr.bf16.mxu0 0
      %1379 = vmatmul.mubr.bf16.gmra.mxu0 %v1278
      %v1380 = vpop.f32.mrf.mxu0
      %v1381 = vadd.f32 %v1055, %v1380
      %v1382 = vpop.f32.mrf.mxu0
      %v1383 = vadd.f32 %v1059, %v1382
      %v1384 = vpop.f32.mrf.mxu0
      %v1385 = vadd.f32 %v1055, %v1384
      %v1386 = vpop.f32.mrf.mxu0
      %v1387 = vadd.f32 %v1059, %v1386
      %1388 = vmatprep.mubr.bf16.mxu0 0
      %1389 = vmatmul.mubr.bf16.gmra.mxu0 %v1281
      %v1390 = vpop.f32.mrf.mxu0
      %v1391 = vadd.f32 %v1055, %v1390
      %v1392 = vpop.f32.mrf.mxu0
      %v1393 = vadd.f32 %v1059, %v1392
      %v1394 = vpop.f32.mrf.mxu0
      %v1395 = vadd.f32 %v1055, %v1394
      %v1396 = vpop.f32.mrf.mxu0
      %v1397 = vadd.f32 %v1059, %v1396
      %1398 = vmatprep.mubr.bf16.mxu0 0
      %1399 = vmatmul.mubr.bf16.gmra.mxu0 %v1284
      %v1400 = vpop.f32.mrf.mxu0
      %v1401 = vadd.f32 %v1055, %v1400
      %v1402 = vpop.f32.mrf.mxu0
      %v1403 = vadd.f32 %v1059, %v1402
      %v1404 = vpop.f32.mrf.mxu0
      %v1405 = vadd.f32 %v1055, %v1404
      %v1406 = vpop.f32.mrf.mxu0
      %v1407 = vadd.f32 %v1059, %v1406
      %1408 = vmatprep.mubr.bf16.mxu0 0
      %1409 = vmatmul.mubr.bf16.gmra.mxu0 %v1287
      %v1410 = vpop.f32.mrf.mxu0
      %v1411 = vadd.f32 %v1055, %v1410
      %v1412 = vpop.f32.mrf.mxu0
      %v1413 = vadd.f32 %v1059, %v1412
      %v1414 = vpop.f32.mrf.mxu0
      %v1415 = vadd.f32 %v1055, %v1414
      %v1416 = vpop.f32.mrf.mxu0
      %v1417 = vadd.f32 %v1059, %v1416
      %1418 = vmatprep.mubr.bf16.mxu0 0
      %1419 = vmatmul.mubr.bf16.gmra.mxu0 %v1290
      %v1420 = vpop.f32.mrf.mxu0
      %v1421 = vadd.f32 %v1055, %v1420
      %v1422 = vpop.f32.mrf.mxu0
      %v1423 = vadd.f32 %v1059, %v1422
      %v1424 = vpop.f32.mrf.mxu0
      %v1425 = vadd.f32 %v1055, %v1424
      %v1426 = vpop.f32.mrf.mxu0
      %v1427 = vadd.f32 %v1059, %v1426
      %1428 = vmatprep.mubr.bf16.mxu0 0
      %1429 = vmatmul.mubr.bf16.gmra.mxu0 %v1293
      %v1430 = vpop.f32.mrf.mxu0
      %v1431 = vadd.f32 %v1055, %v1430
      %v1432 = vpop.f32.mrf.mxu0
      %v1433 = vadd.f32 %v1059, %v1432
      %v1434 = vpop.f32.mrf.mxu0
      %v1435 = vadd.f32 %v1055, %v1434
      %v1436 = vpop.f32.mrf.mxu0
      %v1437 = vadd.f32 %v1059, %v1436
      %1438 = vmatprep.mubr.bf16.mxu0 0
      %1439 = vmatmul.mubr.bf16.gmra.mxu0 %v1296
      %v1440 = vpop.f32.mrf.mxu0
      %v1441 = vadd.f32 %v1055, %v1440
      %v1442 = vpop.f32.mrf.mxu0
      %v1443 = vadd.f32 %v1059, %v1442
      %v1444 = vpop.f32.mrf.mxu0
      %v1445 = vadd.f32 %v1055, %v1444
      %v1446 = vpop.f32.mrf.mxu0
      %v1447 = vadd.f32 %v1059, %v1446
      %1448 = vmatprep.mubr.bf16.mxu0 0
      %1449 = vmatmul.mubr.bf16.gmra.mxu0 %v1299
      %v1450 = vpop.f32.mrf.mxu0
      %v1451 = vadd.f32 %v1055, %v1450
      %v1452 = vpop.f32.mrf.mxu0
      %v1453 = vadd.f32 %v1059, %v1452
      %v1454 = vpop.f32.mrf.mxu0
      %v1455 = vadd.f32 %v1055, %v1454
      %v1456 = vpop.f32.mrf.mxu0
      %v1457 = vadd.f32 %v1059, %v1456
      %1458 = vmatprep.mubr.bf16.mxu0 0
      %1459 = vmatmul.mubr.bf16.gmra.mxu0 %v1302
      %v1460 = vpop.f32.mrf.mxu0
      %v1461 = vadd.f32 %v1055, %v1460
      %v1462 = vpop.f32.mrf.mxu0
      %v1463 = vadd.f32 %v1059, %v1462
      %v1464 = vpop.f32.mrf.mxu0
      %v1465 = vadd.f32 %v1055, %v1464
      %v1466 = vpop.f32.mrf.mxu0
      %v1467 = vadd.f32 %v1059, %v1466
      %1468 = vmatprep.mubr.bf16.mxu0 0
      %1469 = vmatmul.mubr.bf16.gmra.mxu0 %v1305
      %v1470 = vpop.f32.mrf.mxu0
      %v1471 = vadd.f32 %v1055, %v1470
      %v1472 = vpop.f32.mrf.mxu0
      %v1473 = vadd.f32 %v1059, %v1472
      %v1474 = vpop.f32.mrf.mxu0
      %v1475 = vadd.f32 %v1055, %v1474
      %v1476 = vpop.f32.mrf.mxu0
      %v1477 = vadd.f32 %v1059, %v1476
      %1478 = vmatprep.mubr.bf16.mxu0 0
      %1479 = vmatmul.mubr.bf16.gmra.mxu0 %v1308
      %v1480 = vpop.f32.mrf.mxu0
      %v1481 = vadd.f32 %v1055, %v1480
      %v1482 = vpop.f32.mrf.mxu0
      %v1483 = vadd.f32 %v1059, %v1482
      %v1484 = vpop.f32.mrf.mxu0
      %v1485 = vadd.f32 %v1055, %v1484
      %v1486 = vpop.f32.mrf.mxu0
      %v1487 = vadd.f32 %v1059, %v1486
      %1488 = vmatprep.mubr.bf16.mxu0 0
      %1489 = vmatmul.mubr.bf16.gmra.mxu0 %v1311
      %v1490 = vpop.f32.mrf.mxu0
      %v1491 = vadd.f32 %v1055, %v1490
      %v1492 = vpop.f32.mrf.mxu0
      %v1493 = vadd.f32 %v1059, %v1492
      %v1494 = vpop.f32.mrf.mxu0
      %v1495 = vadd.f32 %v1055, %v1494
      %v1496 = vpop.f32.mrf.mxu0
      %v1497 = vadd.f32 %v1059, %v1496
      %1498 = vmatprep.mubr.bf16.mxu0 0
      %1499 = vmatmul.mubr.bf16.gmra.mxu0 %v1314
      %v1500 = vpop.f32.mrf.mxu0
      %v1501 = vadd.f32 %v1055, %v1500
      %v1502 = vpop.f32.mrf.mxu0
      %v1503 = vadd.f32 %v1059, %v1502
      %v1504 = vpop.f32.mrf.mxu0
      %v1505 = vadd.f32 %v1055, %v1504
      %v1506 = vpop.f32.mrf.mxu0
      %v1507 = vadd.f32 %v1059, %v1506
      %1508 = vdwg.mxu0
      %1509 = vmatprep.subr.bf16.mxu0 0
      %1510 = vmatpush1.bf16.msra.mxu0 0
      %1511 = vmatprep.subr.bf16.mxu0 0
      %1512 = vmatpush1.bf16.msra.mxu0 0
      %1513 = vmatprep.subr.bf16.mxu0 0
      %1514 = vmatpush1.bf16.msra.mxu0 0
      %1515 = vmatprep.subr.bf16.mxu0 %v1228
      %1516 = vmatpush1.bf16.msra.mxu0 %v1227
      %1517 = vmatprep.subr.bf16.mxu0 %v1221
      %1518 = vmatpush1.bf16.msra.mxu0 %v1220
      %1519 = vmatprep.subr.bf16.mxu0 %v1214
      %1520 = vmatpush1.bf16.msra.mxu0 %v1213
      %1521 = vmatprep.subr.bf16.mxu0 %v1207
      %1522 = vmatpush1.bf16.msra.mxu0 %v1206
      %1523 = vmatprep.subr.bf16.mxu0 %v1200
      %1524 = vmatpush1.bf16.msra.mxu0 %v1199
      %1525 = vmatprep.subr.bf16.mxu0 0
      %1526 = vmatpush2.bf16.msra.mxu0 0
      %1527 = vmatprep.subr.bf16.mxu0 0
      %1528 = vmatpush2.bf16.msra.mxu0 0
      %1529 = vmatprep.subr.bf16.mxu0 0
      %1530 = vmatpush2.bf16.msra.mxu0 0
      %1531 = vmatprep.subr.bf16.mxu0 0
      %1532 = vmatpush2.bf16.msra.mxu0 0
      %1533 = vmatprep.subr.bf16.mxu0 0
      %1534 = vmatpush2.bf16.msra.mxu0 0
      %1535 = vmatprep.subr.bf16.mxu0 0
      %1536 = vmatpush2.bf16.msra.mxu0 0
      %1537 = vmatprep.subr.bf16.mxu0 0
      %1538 = vmatpush2.bf16.msra.mxu0 0
      %1539 = vmatprep.subr.bf16.mxu0 0
      %1540 = vmatpush2.bf16.msra.mxu0 0
      %1541 = vmatprep.mubr.bf16.mxu0 0
      %1542 = vmatmul.mubr.bf16.gmra.mxu0 %v1269
      %v1543 = vpop.f32.mrf.mxu0
      %v1544 = vadd.f32 %v1063, %v1543
      %v1545 = vpop.f32.mrf.mxu0
      %v1546 = vadd.f32 %v1067, %v1545
      %v1547 = vpop.f32.mrf.mxu0
      %v1548 = vadd.f32 %v1063, %v1547
      %v1549 = vpop.f32.mrf.mxu0
      %v1550 = vadd.f32 %v1067, %v1549
      %1551 = vmatprep.mubr.bf16.mxu0 0
      %1552 = vmatmul.mubr.bf16.gmra.mxu0 %v1272
      %v1553 = vpop.f32.mrf.mxu0
      %v1554 = vadd.f32 %v1063, %v1553
      %v1555 = vpop.f32.mrf.mxu0
      %v1556 = vadd.f32 %v1067, %v1555
      %v1557 = vpop.f32.mrf.mxu0
      %v1558 = vadd.f32 %v1063, %v1557
      %v1559 = vpop.f32.mrf.mxu0
      %v1560 = vadd.f32 %v1067, %v1559
      %1561 = vmatprep.mubr.bf16.mxu0 0
      %1562 = vmatmul.mubr.bf16.gmra.mxu0 %v1275
      %v1563 = vpop.f32.mrf.mxu0
      %v1564 = vadd.f32 %v1063, %v1563
      %v1565 = vpop.f32.mrf.mxu0
      %v1566 = vadd.f32 %v1067, %v1565
      %v1567 = vpop.f32.mrf.mxu0
      %v1568 = vadd.f32 %v1063, %v1567
      %v1569 = vpop.f32.mrf.mxu0
      %v1570 = vadd.f32 %v1067, %v1569
      %1571 = vmatprep.mubr.bf16.mxu0 0
      %1572 = vmatmul.mubr.bf16.gmra.mxu0 %v1278
      %v1573 = vpop.f32.mrf.mxu0
      %v1574 = vadd.f32 %v1063, %v1573
      %v1575 = vpop.f32.mrf.mxu0
      %v1576 = vadd.f32 %v1067, %v1575
      %v1577 = vpop.f32.mrf.mxu0
      %v1578 = vadd.f32 %v1063, %v1577
      %v1579 = vpop.f32.mrf.mxu0
      %v1580 = vadd.f32 %v1067, %v1579
      %1581 = vmatprep.mubr.bf16.mxu0 0
      %1582 = vmatmul.mubr.bf16.gmra.mxu0 %v1281
      %v1583 = vpop.f32.mrf.mxu0
      %v1584 = vadd.f32 %v1063, %v1583
      %v1585 = vpop.f32.mrf.mxu0
      %v1586 = vadd.f32 %v1067, %v1585
      %v1587 = vpop.f32.mrf.mxu0
      %v1588 = vadd.f32 %v1063, %v1587
      %v1589 = vpop.f32.mrf.mxu0
      %v1590 = vadd.f32 %v1067, %v1589
      %1591 = vmatprep.mubr.bf16.mxu0 0
      %1592 = vmatmul.mubr.bf16.gmra.mxu0 %v1284
      %v1593 = vpop.f32.mrf.mxu0
      %v1594 = vadd.f32 %v1063, %v1593
      %v1595 = vpop.f32.mrf.mxu0
      %v1596 = vadd.f32 %v1067, %v1595
      %v1597 = vpop.f32.mrf.mxu0
      %v1598 = vadd.f32 %v1063, %v1597
      %v1599 = vpop.f32.mrf.mxu0
      %v1600 = vadd.f32 %v1067, %v1599
      %1601 = vmatprep.mubr.bf16.mxu0 0
      %1602 = vmatmul.mubr.bf16.gmra.mxu0 %v1287
      %v1603 = vpop.f32.mrf.mxu0
      %v1604 = vadd.f32 %v1063, %v1603
      %v1605 = vpop.f32.mrf.mxu0
      %v1606 = vadd.f32 %v1067, %v1605
      %v1607 = vpop.f32.mrf.mxu0
      %v1608 = vadd.f32 %v1063, %v1607
      %v1609 = vpop.f32.mrf.mxu0
      %v1610 = vadd.f32 %v1067, %v1609
      %1611 = vmatprep.mubr.bf16.mxu0 0
      %1612 = vmatmul.mubr.bf16.gmra.mxu0 %v1290
      %v1613 = vpop.f32.mrf.mxu0
      %v1614 = vadd.f32 %v1063, %v1613
      %v1615 = vpop.f32.mrf.mxu0
      %v1616 = vadd.f32 %v1067, %v1615
      %v1617 = vpop.f32.mrf.mxu0
      %v1618 = vadd.f32 %v1063, %v1617
      %v1619 = vpop.f32.mrf.mxu0
      %v1620 = vadd.f32 %v1067, %v1619
      %1621 = vmatprep.mubr.bf16.mxu0 0
      %1622 = vmatmul.mubr.bf16.gmra.mxu0 %v1293
      %v1623 = vpop.f32.mrf.mxu0
      %v1624 = vadd.f32 %v1063, %v1623
      %v1625 = vpop.f32.mrf.mxu0
      %v1626 = vadd.f32 %v1067, %v1625
      %v1627 = vpop.f32.mrf.mxu0
      %v1628 = vadd.f32 %v1063, %v1627
      %v1629 = vpop.f32.mrf.mxu0
      %v1630 = vadd.f32 %v1067, %v1629
      %1631 = vmatprep.mubr.bf16.mxu0 0
      %1632 = vmatmul.mubr.bf16.gmra.mxu0 %v1296
      %v1633 = vpop.f32.mrf.mxu0
      %v1634 = vadd.f32 %v1063, %v1633
      %v1635 = vpop.f32.mrf.mxu0
      %v1636 = vadd.f32 %v1067, %v1635
      %v1637 = vpop.f32.mrf.mxu0
      %v1638 = vadd.f32 %v1063, %v1637
      %v1639 = vpop.f32.mrf.mxu0
      %v1640 = vadd.f32 %v1067, %v1639
      %1641 = vmatprep.mubr.bf16.mxu0 0
      %1642 = vmatmul.mubr.bf16.gmra.mxu0 %v1299
      %v1643 = vpop.f32.mrf.mxu0
      %v1644 = vadd.f32 %v1063, %v1643
      %v1645 = vpop.f32.mrf.mxu0
      %v1646 = vadd.f32 %v1067, %v1645
      %v1647 = vpop.f32.mrf.mxu0
      %v1648 = vadd.f32 %v1063, %v1647
      %v1649 = vpop.f32.mrf.mxu0
      %v1650 = vadd.f32 %v1067, %v1649
      %1651 = vmatprep.mubr.bf16.mxu0 0
      %1652 = vmatmul.mubr.bf16.gmra.mxu0 %v1302
      %v1653 = vpop.f32.mrf.mxu0
      %v1654 = vadd.f32 %v1063, %v1653
      %v1655 = vpop.f32.mrf.mxu0
      %v1656 = vadd.f32 %v1067, %v1655
      %v1657 = vpop.f32.mrf.mxu0
      %v1658 = vadd.f32 %v1063, %v1657
      %v1659 = vpop.f32.mrf.mxu0
      %v1660 = vadd.f32 %v1067, %v1659
      %1661 = vmatprep.mubr.bf16.mxu0 0
      %1662 = vmatmul.mubr.bf16.gmra.mxu0 %v1305
      %v1663 = vpop.f32.mrf.mxu0
      %v1664 = vadd.f32 %v1063, %v1663
      %v1665 = vpop.f32.mrf.mxu0
      %v1666 = vadd.f32 %v1067, %v1665
      %v1667 = vpop.f32.mrf.mxu0
      %v1668 = vadd.f32 %v1063, %v1667
      %v1669 = vpop.f32.mrf.mxu0
      %v1670 = vadd.f32 %v1067, %v1669
      %1671 = vmatprep.mubr.bf16.mxu0 0
      %1672 = vmatmul.mubr.bf16.gmra.mxu0 %v1308
      %v1673 = vpop.f32.mrf.mxu0
      %v1674 = vadd.f32 %v1063, %v1673
      %v1675 = vpop.f32.mrf.mxu0
      %v1676 = vadd.f32 %v1067, %v1675
      %v1677 = vpop.f32.mrf.mxu0
      %v1678 = vadd.f32 %v1063, %v1677
      %v1679 = vpop.f32.mrf.mxu0
      %v1680 = vadd.f32 %v1067, %v1679
      %1681 = vmatprep.mubr.bf16.mxu0 0
      %1682 = vmatmul.mubr.bf16.gmra.mxu0 %v1311
      %v1683 = vpop.f32.mrf.mxu0
      %v1684 = vadd.f32 %v1063, %v1683
      %v1685 = vpop.f32.mrf.mxu0
      %v1686 = vadd.f32 %v1067, %v1685
      %v1687 = vpop.f32.mrf.mxu0
      %v1688 = vadd.f32 %v1063, %v1687
      %v1689 = vpop.f32.mrf.mxu0
      %v1690 = vadd.f32 %v1067, %v1689
      %1691 = vmatprep.mubr.bf16.mxu0 0
      %1692 = vmatmul.mubr.bf16.gmra.mxu0 %v1314
      %v1693 = vpop.f32.mrf.mxu0
      %v1694 = vadd.f32 %v1063, %v1693
      %v1695 = vpop.f32.mrf.mxu0
      %v1696 = vadd.f32 %v1067, %v1695
      %v1697 = vpop.f32.mrf.mxu0
      %v1698 = vadd.f32 %v1063, %v1697
      %v1699 = vpop.f32.mrf.mxu0
      %v1700 = vadd.f32 %v1067, %v1699
      %1701 = vdwg.mxu0
      %1702 = vmatprep.subr.bf16.mxu0 0
      %1703 = vmatpush1.bf16.msra.mxu0 0
      %1704 = vmatprep.subr.bf16.mxu0 0
      %1705 = vmatpush1.bf16.msra.mxu0 0
      %1706 = vmatprep.subr.bf16.mxu0 0
      %1707 = vmatpush1.bf16.msra.mxu0 0
      %1708 = vmatprep.subr.bf16.mxu0 %v1230
      %1709 = vmatpush1.bf16.msra.mxu0 %v1229
      %1710 = vmatprep.subr.bf16.mxu0 %v1223
      %1711 = vmatpush1.bf16.msra.mxu0 %v1222
      %1712 = vmatprep.subr.bf16.mxu0 %v1216
      %1713 = vmatpush1.bf16.msra.mxu0 %v1215
      %1714 = vmatprep.subr.bf16.mxu0 %v1209
      %1715 = vmatpush1.bf16.msra.mxu0 %v1208
      %1716 = vmatprep.subr.bf16.mxu0 %v1202
      %1717 = vmatpush1.bf16.msra.mxu0 %v1201
      %1718 = vmatprep.subr.bf16.mxu0 0
      %1719 = vmatpush2.bf16.msra.mxu0 0
      %1720 = vmatprep.subr.bf16.mxu0 0
      %1721 = vmatpush2.bf16.msra.mxu0 0
      %1722 = vmatprep.subr.bf16.mxu0 0
      %1723 = vmatpush2.bf16.msra.mxu0 0
      %1724 = vmatprep.subr.bf16.mxu0 0
      %1725 = vmatpush2.bf16.msra.mxu0 0
      %1726 = vmatprep.subr.bf16.mxu0 0
      %1727 = vmatpush2.bf16.msra.mxu0 0
      %1728 = vmatprep.subr.bf16.mxu0 0
      %1729 = vmatpush2.bf16.msra.mxu0 0
      %1730 = vmatprep.subr.bf16.mxu0 0
      %1731 = vmatpush2.bf16.msra.mxu0 0
      %1732 = vmatprep.subr.bf16.mxu0 0
      %1733 = vmatpush2.bf16.msra.mxu0 0
      %1734 = vmatprep.mubr.bf16.mxu0 0
      %1735 = vmatmul.mubr.bf16.gmra.mxu0 %v1269
      %v1736 = vpop.f32.mrf.mxu0
      %v1737 = vadd.f32 %v1071, %v1736
      %v1738 = vpop.f32.mrf.mxu0
      %v1739 = vadd.f32 %v1075, %v1738
      %v1740 = vpop.f32.mrf.mxu0
      %v1741 = vadd.f32 %v1071, %v1740
      %v1742 = vpop.f32.mrf.mxu0
      %v1743 = vadd.f32 %v1075, %v1742
      %1744 = vmatprep.mubr.bf16.mxu0 0
      %1745 = vmatmul.mubr.bf16.gmra.mxu0 %v1272
      %v1746 = vpop.f32.mrf.mxu0
      %v1747 = vadd.f32 %v1071, %v1746
      %v1748 = vpop.f32.mrf.mxu0
      %v1749 = vadd.f32 %v1075, %v1748
      %v1750 = vpop.f32.mrf.mxu0
      %v1751 = vadd.f32 %v1071, %v1750
      %v1752 = vpop.f32.mrf.mxu0
      %v1753 = vadd.f32 %v1075, %v1752
      %1754 = vmatprep.mubr.bf16.mxu0 0
      %1755 = vmatmul.mubr.bf16.gmra.mxu0 %v1275
      %v1756 = vpop.f32.mrf.mxu0
      %v1757 = vadd.f32 %v1071, %v1756
      %v1758 = vpop.f32.mrf.mxu0
      %v1759 = vadd.f32 %v1075, %v1758
      %v1760 = vpop.f32.mrf.mxu0
      %v1761 = vadd.f32 %v1071, %v1760
      %v1762 = vpop.f32.mrf.mxu0
      %v1763 = vadd.f32 %v1075, %v1762
      %1764 = vmatprep.mubr.bf16.mxu0 0
      %1765 = vmatmul.mubr.bf16.gmra.mxu0 %v1278
      %v1766 = vpop.f32.mrf.mxu0
      %v1767 = vadd.f32 %v1071, %v1766
      %v1768 = vpop.f32.mrf.mxu0
      %v1769 = vadd.f32 %v1075, %v1768
      %v1770 = vpop.f32.mrf.mxu0
      %v1771 = vadd.f32 %v1071, %v1770
      %v1772 = vpop.f32.mrf.mxu0
      %v1773 = vadd.f32 %v1075, %v1772
      %1774 = vmatprep.mubr.bf16.mxu0 0
      %1775 = vmatmul.mubr.bf16.gmra.mxu0 %v1281
      %v1776 = vpop.f32.mrf.mxu0
      %v1777 = vadd.f32 %v1071, %v1776
      %v1778 = vpop.f32.mrf.mxu0
      %v1779 = vadd.f32 %v1075, %v1778
      %v1780 = vpop.f32.mrf.mxu0
      %v1781 = vadd.f32 %v1071, %v1780
      %v1782 = vpop.f32.mrf.mxu0
      %v1783 = vadd.f32 %v1075, %v1782
      %1784 = vmatprep.mubr.bf16.mxu0 0
      %1785 = vmatmul.mubr.bf16.gmra.mxu0 %v1284
      %v1786 = vpop.f32.mrf.mxu0
      %v1787 = vadd.f32 %v1071, %v1786
      %v1788 = vpop.f32.mrf.mxu0
      %v1789 = vadd.f32 %v1075, %v1788
      %v1790 = vpop.f32.mrf.mxu0
      %v1791 = vadd.f32 %v1071, %v1790
      %v1792 = vpop.f32.mrf.mxu0
      %v1793 = vadd.f32 %v1075, %v1792
      %1794 = vmatprep.mubr.bf16.mxu0 0
      %1795 = vmatmul.mubr.bf16.gmra.mxu0 %v1287
      %v1796 = vpop.f32.mrf.mxu0
      %v1797 = vadd.f32 %v1071, %v1796
      %v1798 = vpop.f32.mrf.mxu0
      %v1799 = vadd.f32 %v1075, %v1798
      %v1800 = vpop.f32.mrf.mxu0
      %v1801 = vadd.f32 %v1071, %v1800
      %v1802 = vpop.f32.mrf.mxu0
      %v1803 = vadd.f32 %v1075, %v1802
      %1804 = vmatprep.mubr.bf16.mxu0 0
      %1805 = vmatmul.mubr.bf16.gmra.mxu0 %v1290
      %v1806 = vpop.f32.mrf.mxu0
      %v1807 = vadd.f32 %v1071, %v1806
      %v1808 = vpop.f32.mrf.mxu0
      %v1809 = vadd.f32 %v1075, %v1808
      %v1810 = vpop.f32.mrf.mxu0
      %v1811 = vadd.f32 %v1071, %v1810
      %v1812 = vpop.f32.mrf.mxu0
      %v1813 = vadd.f32 %v1075, %v1812
      %1814 = vmatprep.mubr.bf16.mxu0 0
      %1815 = vmatmul.mubr.bf16.gmra.mxu0 %v1293
      %v1816 = vpop.f32.mrf.mxu0
      %v1817 = vadd.f32 %v1071, %v1816
      %v1818 = vpop.f32.mrf.mxu0
      %v1819 = vadd.f32 %v1075, %v1818
      %v1820 = vpop.f32.mrf.mxu0
      %v1821 = vadd.f32 %v1071, %v1820
      %v1822 = vpop.f32.mrf.mxu0
      %v1823 = vadd.f32 %v1075, %v1822
      %1824 = vmatprep.mubr.bf16.mxu0 0
      %1825 = vmatmul.mubr.bf16.gmra.mxu0 %v1296
      %v1826 = vpop.f32.mrf.mxu0
      %v1827 = vadd.f32 %v1071, %v1826
      %v1828 = vpop.f32.mrf.mxu0
      %v1829 = vadd.f32 %v1075, %v1828
      %v1830 = vpop.f32.mrf.mxu0
      %v1831 = vadd.f32 %v1071, %v1830
      %v1832 = vpop.f32.mrf.mxu0
      %v1833 = vadd.f32 %v1075, %v1832
      %1834 = vmatprep.mubr.bf16.mxu0 0
      %1835 = vmatmul.mubr.bf16.gmra.mxu0 %v1299
      %v1836 = vpop.f32.mrf.mxu0
      %v1837 = vadd.f32 %v1071, %v1836
      %v1838 = vpop.f32.mrf.mxu0
      %v1839 = vadd.f32 %v1075, %v1838
      %v1840 = vpop.f32.mrf.mxu0
      %v1841 = vadd.f32 %v1071, %v1840
      %v1842 = vpop.f32.mrf.mxu0
      %v1843 = vadd.f32 %v1075, %v1842
      %1844 = vmatprep.mubr.bf16.mxu0 0
      %1845 = vmatmul.mubr.bf16.gmra.mxu0 %v1302
      %v1846 = vpop.f32.mrf.mxu0
      %v1847 = vadd.f32 %v1071, %v1846
      %v1848 = vpop.f32.mrf.mxu0
      %v1849 = vadd.f32 %v1075, %v1848
      %v1850 = vpop.f32.mrf.mxu0
      %v1851 = vadd.f32 %v1071, %v1850
      %v1852 = vpop.f32.mrf.mxu0
      %v1853 = vadd.f32 %v1075, %v1852
      %1854 = vmatprep.mubr.bf16.mxu0 0
      %1855 = vmatmul.mubr.bf16.gmra.mxu0 %v1305
      %v1856 = vpop.f32.mrf.mxu0
      %v1857 = vadd.f32 %v1071, %v1856
      %v1858 = vpop.f32.mrf.mxu0
      %v1859 = vadd.f32 %v1075, %v1858
      %v1860 = vpop.f32.mrf.mxu0
      %v1861 = vadd.f32 %v1071, %v1860
      %v1862 = vpop.f32.mrf.mxu0
      %v1863 = vadd.f32 %v1075, %v1862
      %1864 = vmatprep.mubr.bf16.mxu0 0
      %1865 = vmatmul.mubr.bf16.gmra.mxu0 %v1308
      %v1866 = vpop.f32.mrf.mxu0
      %v1867 = vadd.f32 %v1071, %v1866
      %v1868 = vpop.f32.mrf.mxu0
      %v1869 = vadd.f32 %v1075, %v1868
      %v1870 = vpop.f32.mrf.mxu0
      %v1871 = vadd.f32 %v1071, %v1870
      %v1872 = vpop.f32.mrf.mxu0
      %v1873 = vadd.f32 %v1075, %v1872
      %1874 = vmatprep.mubr.bf16.mxu0 0
      %1875 = vmatmul.mubr.bf16.gmra.mxu0 %v1311
      %v1876 = vpop.f32.mrf.mxu0
      %v1877 = vadd.f32 %v1071, %v1876
      %v1878 = vpop.f32.mrf.mxu0
      %v1879 = vadd.f32 %v1075, %v1878
      %v1880 = vpop.f32.mrf.mxu0
      %v1881 = vadd.f32 %v1071, %v1880
      %v1882 = vpop.f32.mrf.mxu0
      %v1883 = vadd.f32 %v1075, %v1882
      %1884 = vmatprep.mubr.bf16.mxu0 0
      %1885 = vmatmul.mubr.bf16.gmra.mxu0 %v1314
      %v1886 = vpop.f32.mrf.mxu0
      %v1887 = vadd.f32 %v1071, %v1886
      %v1888 = vpop.f32.mrf.mxu0
      %v1889 = vadd.f32 %v1075, %v1888
      %v1890 = vpop.f32.mrf.mxu0
      %v1891 = vadd.f32 %v1071, %v1890
      %v1892 = vpop.f32.mrf.mxu0
      %v1893 = vadd.f32 %v1075, %v1892
      %1894 = vdwg.mxu0
      %1895 = vmatprep.subr.bf16.mxu0 0
      %1896 = vmatpush1.bf16.msra.mxu0 0
      %1897 = vmatprep.subr.bf16.mxu0 0
      %1898 = vmatpush1.bf16.msra.mxu0 0
      %1899 = vmatprep.subr.bf16.mxu0 0
      %1900 = vmatpush1.bf16.msra.mxu0 0
      %1901 = vmatprep.subr.bf16.mxu0 0
      %1902 = vmatpush1.bf16.msra.mxu0 %v1231
      %1903 = vmatprep.subr.bf16.mxu0 0
      %1904 = vmatpush1.bf16.msra.mxu0 %v1224
      %1905 = vmatprep.subr.bf16.mxu0 0
      %1906 = vmatpush1.bf16.msra.mxu0 %v1217
      %1907 = vmatprep.subr.bf16.mxu0 0
      %1908 = vmatpush1.bf16.msra.mxu0 %v1210
      %1909 = vmatprep.subr.bf16.mxu0 0
      %1910 = vmatpush1.bf16.msra.mxu0 %v1203
      %1911 = vmatprep.subr.bf16.mxu0 0
      %1912 = vmatpush2.bf16.msra.mxu0 0
      %1913 = vmatprep.subr.bf16.mxu0 0
      %1914 = vmatpush2.bf16.msra.mxu0 0
      %1915 = vmatprep.subr.bf16.mxu0 0
      %1916 = vmatpush2.bf16.msra.mxu0 0
      %1917 = vmatprep.subr.bf16.mxu0 0
      %1918 = vmatpush2.bf16.msra.mxu0 0
      %1919 = vmatprep.subr.bf16.mxu0 0
      %1920 = vmatpush2.bf16.msra.mxu0 0
      %1921 = vmatprep.subr.bf16.mxu0 0
      %1922 = vmatpush2.bf16.msra.mxu0 0
      %1923 = vmatprep.subr.bf16.mxu0 0
      %1924 = vmatpush2.bf16.msra.mxu0 0
      %1925 = vmatprep.subr.bf16.mxu0 0
      %1926 = vmatpush2.bf16.msra.mxu0 0
      %1927 = vmatprep.mubr.bf16.mxu0 0
      %1928 = vmatmul.mubr.bf16.gmra.mxu0 %v1269
      %v1929 = vpop.f32.mrf.mxu0
      %v1930 = vadd.f32 %v1079, %v1929
      %v1931 = vpop.f32.mrf.mxu0
      %v1932 = vpop.f32.mrf.mxu0
      %v1933 = vadd.f32 %v1079, %v1932
      %v1934 = vpop.f32.mrf.mxu0
      %1935 = vmatprep.mubr.bf16.mxu0 0
      %1936 = vmatmul.mubr.bf16.gmra.mxu0 %v1272
      %v1937 = vpop.f32.mrf.mxu0
      %v1938 = vadd.f32 %v1079, %v1937
      %v1939 = vpop.f32.mrf.mxu0
      %v1940 = vpop.f32.mrf.mxu0
      %v1941 = vadd.f32 %v1079, %v1940
      %v1942 = vpop.f32.mrf.mxu0
      %1943 = vmatprep.mubr.bf16.mxu0 0
      %1944 = vmatmul.mubr.bf16.gmra.mxu0 %v1275
      %v1945 = vpop.f32.mrf.mxu0
      %v1946 = vadd.f32 %v1079, %v1945
      %v1947 = vpop.f32.mrf.mxu0
      %v1948 = vpop.f32.mrf.mxu0
      %v1949 = vadd.f32 %v1079, %v1948
      %v1950 = vpop.f32.mrf.mxu0
      %1951 = vmatprep.mubr.bf16.mxu0 0
      %1952 = vmatmul.mubr.bf16.gmra.mxu0 %v1278
      %v1953 = vpop.f32.mrf.mxu0
      %v1954 = vadd.f32 %v1079, %v1953
      %v1955 = vpop.f32.mrf.mxu0
      %v1956 = vpop.f32.mrf.mxu0
      %v1957 = vadd.f32 %v1079, %v1956
      %v1958 = vpop.f32.mrf.mxu0
      %1959 = vmatprep.mubr.bf16.mxu0 0
      %1960 = vmatmul.mubr.bf16.gmra.mxu0 %v1281
      %v1961 = vpop.f32.mrf.mxu0
      %v1962 = vadd.f32 %v1079, %v1961
      %v1963 = vpop.f32.mrf.mxu0
      %v1964 = vpop.f32.mrf.mxu0
      %v1965 = vadd.f32 %v1079, %v1964
      %v1966 = vpop.f32.mrf.mxu0
      %1967 = vmatprep.mubr.bf16.mxu0 0
      %1968 = vmatmul.mubr.bf16.gmra.mxu0 %v1284
      %v1969 = vpop.f32.mrf.mxu0
      %v1970 = vadd.f32 %v1079, %v1969
      %v1971 = vpop.f32.mrf.mxu0
      %v1972 = vpop.f32.mrf.mxu0
      %v1973 = vadd.f32 %v1079, %v1972
      %v1974 = vpop.f32.mrf.mxu0
      %1975 = vmatprep.mubr.bf16.mxu0 0
      %1976 = vmatmul.mubr.bf16.gmra.mxu0 %v1287
      %v1977 = vpop.f32.mrf.mxu0
      %v1978 = vadd.f32 %v1079, %v1977
      %v1979 = vpop.f32.mrf.mxu0
      %v1980 = vpop.f32.mrf.mxu0
      %v1981 = vadd.f32 %v1079, %v1980
      %v1982 = vpop.f32.mrf.mxu0
      %1983 = vmatprep.mubr.bf16.mxu0 0
      %1984 = vmatmul.mubr.bf16.gmra.mxu0 %v1290
      %v1985 = vpop.f32.mrf.mxu0
      %v1986 = vadd.f32 %v1079, %v1985
      %v1987 = vpop.f32.mrf.mxu0
      %v1988 = vpop.f32.mrf.mxu0
      %v1989 = vadd.f32 %v1079, %v1988
      %v1990 = vpop.f32.mrf.mxu0
      %1991 = vmatprep.mubr.bf16.mxu0 0
      %1992 = vmatmul.mubr.bf16.gmra.mxu0 %v1293
      %v1993 = vpop.f32.mrf.mxu0
      %v1994 = vadd.f32 %v1079, %v1993
      %v1995 = vpop.f32.mrf.mxu0
      %v1996 = vpop.f32.mrf.mxu0
      %v1997 = vadd.f32 %v1079, %v1996
      %v1998 = vpop.f32.mrf.mxu0
      %1999 = vmatprep.mubr.bf16.mxu0 0
      %2000 = vmatmul.mubr.bf16.gmra.mxu0 %v1296
      %v2001 = vpop.f32.mrf.mxu0
      %v2002 = vadd.f32 %v1079, %v2001
      %v2003 = vpop.f32.mrf.mxu0
      %v2004 = vpop.f32.mrf.mxu0
      %v2005 = vadd.f32 %v1079, %v2004
      %v2006 = vpop.f32.mrf.mxu0
      %2007 = vmatprep.mubr.bf16.mxu0 0
      %2008 = vmatmul.mubr.bf16.gmra.mxu0 %v1299
      %v2009 = vpop.f32.mrf.mxu0
      %v2010 = vadd.f32 %v1079, %v2009
      %v2011 = vpop.f32.mrf.mxu0
      %v2012 = vpop.f32.mrf.mxu0
      %v2013 = vadd.f32 %v1079, %v2012
      %v2014 = vpop.f32.mrf.mxu0
      %2015 = vmatprep.mubr.bf16.mxu0 0
      %2016 = vmatmul.mubr.bf16.gmra.mxu0 %v1302
      %v2017 = vpop.f32.mrf.mxu0
      %v2018 = vadd.f32 %v1079, %v2017
      %v2019 = vpop.f32.mrf.mxu0
      %v2020 = vpop.f32.mrf.mxu0
      %v2021 = vadd.f32 %v1079, %v2020
      %v2022 = vpop.f32.mrf.mxu0
      %2023 = vmatprep.mubr.bf16.mxu0 0
      %2024 = vmatmul.mubr.bf16.gmra.mxu0 %v1305
      %v2025 = vpop.f32.mrf.mxu0
      %v2026 = vadd.f32 %v1079, %v2025
      %v2027 = vpop.f32.mrf.mxu0
      %v2028 = vpop.f32.mrf.mxu0
      %v2029 = vadd.f32 %v1079, %v2028
      %v2030 = vpop.f32.mrf.mxu0
      %2031 = vmatprep.mubr.bf16.mxu0 0
      %2032 = vmatmul.mubr.bf16.gmra.mxu0 %v1308
      %v2033 = vpop.f32.mrf.mxu0
      %v2034 = vadd.f32 %v1079, %v2033
      %v2035 = vpop.f32.mrf.mxu0
      %v2036 = vpop.f32.mrf.mxu0
      %v2037 = vadd.f32 %v1079, %v2036
      %v2038 = vpop.f32.mrf.mxu0
      %2039 = vmatprep.mubr.bf16.mxu0 0
      %2040 = vmatmul.mubr.bf16.gmra.mxu0 %v1311
      %v2041 = vpop.f32.mrf.mxu0
      %v2042 = vadd.f32 %v1079, %v2041
      %v2043 = vpop.f32.mrf.mxu0
      %v2044 = vpop.f32.mrf.mxu0
      %v2045 = vadd.f32 %v1079, %v2044
      %v2046 = vpop.f32.mrf.mxu0
      %2047 = vmatprep.mubr.bf16.mxu0 0
      %2048 = vmatmul.mubr.bf16.gmra.mxu0 %v1314
      %v2049 = vpop.f32.mrf.mxu0
      %v2050 = vadd.f32 %v1079, %v2049
      %v2051 = vpop.f32.mrf.mxu0
      %v2052 = vpop.f32.mrf.mxu0
      %v2053 = vadd.f32 %v1079, %v2052
      %v2054 = vpop.f32.mrf.mxu0
      %2055 = vdwg.mxu0
      %v2056 = vld [vmem:[%s3] sm:$0xff]
      %v2057 = vld [vmem:[%s3 + $0x8] sm:$0xff]
      %v2058 = vld [vmem:[%s3 + $0x10] sm:$0xff]
      %v2059 = vld [vmem:[%s3 + $0x18] sm:$0xf]
      %v2060 = vld [vmem:[%s3 + $0x1c] sm:$0xff]
      %v2061 = vld [vmem:[%s3 + $0x24] sm:$0xff]
      %v2062 = vld [vmem:[%s3 + $0x2c] sm:$0xff]
      %v2063 = vld [vmem:[%s3 + $0x34] sm:$0xf]
      %v2064 = vld [vmem:[%s3 + $0x38] sm:$0xff]
      %v2065 = vld [vmem:[%s3 + $0x40] sm:$0xff]
      %v2066 = vld [vmem:[%s3 + $0x48] sm:$0xff]
      %v2067 = vld [vmem:[%s3 + $0x50] sm:$0xf]
      %v2068 = vld [vmem:[%s3 + $0x54] sm:$0xff]
      %v2069 = vld [vmem:[%s3 + $0x5c] sm:$0xff]
      %v2070 = vld [vmem:[%s3 + $0x64] sm:$0xff]
      %v2071 = vld [vmem:[%s3 + $0x6c] sm:$0xf]
      %v2072 = vld [vmem:[%s3 + $0x70] sm:$0xff]
      %v2073 = vld [vmem:[%s3 + $0x78] sm:$0xff]
      %v2074 = vld [vmem:[%s3 + $0x80] sm:$0xff]
      %v2075 = vld [vmem:[%s3 + $0x88] sm:$0xf]
      %v2076 = vld [vmem:[%s3 + $0x8c] sm:$0xff]
      %v2077 = vld [vmem:[%s3 + $0x94] sm:$0xff]
      %v2078 = vld [vmem:[%s3 + $0x9c] sm:$0xff]
      %v2079 = vld [vmem:[%s3 + $0xa4] sm:$0xf]
      %v2080 = vld [vmem:[%s3 + $0xa8] sm:$0xff]
      %v2081 = vld [vmem:[%s3 + $0xb0] sm:$0xff]
      %v2082 = vld [vmem:[%s3 + $0xb8] sm:$0xff]
      %v2083 = vld [vmem:[%s3 + $0xc0] sm:$0xf]
      %v2084 = vld [vmem:[%s3 + $0xc4] sm:$0xff]
      %v2085 = vld [vmem:[%s3 + $0xcc] sm:$0xff]
      %v2086 = vld [vmem:[%s3 + $0xd4] sm:$0xff]
      %v2087 = vld [vmem:[%s3 + $0xdc] sm:$0xf]
      %v2088 = vld [vmem:[%s3 + $0xe0] sm:$0xff]
      %v2089 = vld [vmem:[%s3 + $0xe8] sm:$0xff]
      %v2090 = vld [vmem:[%s3 + $0xf0] sm:$0xff]
      %v2091 = vld [vmem:[%s3 + $0xf8] sm:$0xf]
      %v2092 = vld [vmem:[%s3 + $0xfc] sm:$0xff]
      %v2093 = vld [vmem:[%s3 + $0x104] sm:$0xff]
      %v2094 = vld [vmem:[%s3 + $0x10c] sm:$0xff]
      %v2095 = vld [vmem:[%s3 + $0x114] sm:$0xf]
      %s2096 = scalar_lea.vmem %s18, 1
      %v2097 = vld [vmem:[%s2096] ss:$4 sm:$0x7f]
      %v2099 = vlaneseq
      %v2100 = vshrl.u32 %v2099, 7
      %v2101 = vsub.s32 0, %v2100
      %v2102 = vrot.slane %v2097, %v2101
      %v2103 = vlaneseq
      %v2104 = vshrl.u32 %v2103, 7
      %v2105 = vsub.s32 1, %v2104
      %v2106 = vrot.slane %v2097, %v2105
      %v2107 = vlaneseq
      %v2108 = vshrl.u32 %v2107, 7
      %v2109 = vsub.s32 2, %v2108
      %v2110 = vrot.slane %v2097, %v2109
      %v2111 = vlaneseq
      %v2112 = vshrl.u32 %v2111, 7
      %v2113 = vsub.s32 3, %v2112
      %v2114 = vrot.slane %v2097, %v2113
      %v2115 = vlaneseq
      %v2116 = vshrl.u32 %v2115, 7
      %v2117 = vsub.s32 4, %v2116
      %v2118 = vrot.slane %v2097, %v2117
      %v2119 = vlaneseq
      %v2120 = vshrl.u32 %v2119, 7
      %v2121 = vsub.s32 5, %v2120
      %v2122 = vrot.slane %v2097, %v2121
      %v2123 = vlaneseq
      %v2124 = vshrl.u32 %v2123, 7
      %v2125 = vsub.s32 6, %v2124
      %v2126 = vrot.slane %v2097, %v2125
      %v2174 = vunpack.c.l.b16 %v2056
      %v2175 = vunpack.c.h.b16 %v2056
      %v2176 = vunpack.c.l.b16 %v2057
      %v2177 = vunpack.c.h.b16 %v2057
      %v2178 = vunpack.c.l.b16 %v2058
      %v2179 = vunpack.c.h.b16 %v2058
      %v2180 = vunpack.c.l.b16 %v2059
      %v2181 = vunpack.c.l.b16 %v2060
      %v2182 = vunpack.c.h.b16 %v2060
      %v2183 = vunpack.c.l.b16 %v2061
      %v2184 = vunpack.c.h.b16 %v2061
      %v2185 = vunpack.c.l.b16 %v2062
      %v2186 = vunpack.c.h.b16 %v2062
      %v2187 = vunpack.c.l.b16 %v2063
      %v2188 = vunpack.c.l.b16 %v2064
      %v2189 = vunpack.c.h.b16 %v2064
      %v2190 = vunpack.c.l.b16 %v2065
      %v2191 = vunpack.c.h.b16 %v2065
      %v2192 = vunpack.c.l.b16 %v2066
      %v2193 = vunpack.c.h.b16 %v2066
      %v2194 = vunpack.c.l.b16 %v2067
      %v2195 = vunpack.c.l.b16 %v2068
      %v2196 = vunpack.c.h.b16 %v2068
      %v2197 = vunpack.c.l.b16 %v2069
      %v2198 = vunpack.c.h.b16 %v2069
      %v2199 = vunpack.c.l.b16 %v2070
      %v2200 = vunpack.c.h.b16 %v2070
      %v2201 = vunpack.c.l.b16 %v2071
      %v2202 = vunpack.c.l.b16 %v2072
      %v2203 = vunpack.c.h.b16 %v2072
      %v2204 = vunpack.c.l.b16 %v2073
      %v2205 = vunpack.c.h.b16 %v2073
      %v2206 = vunpack.c.l.b16 %v2074
      %v2207 = vunpack.c.h.b16 %v2074
      %v2208 = vunpack.c.l.b16 %v2075
      %v2209 = vunpack.c.l.b16 %v2076
      %v2210 = vunpack.c.h.b16 %v2076
      %v2211 = vunpack.c.l.b16 %v2077
      %v2212 = vunpack.c.h.b16 %v2077
      %v2213 = vunpack.c.l.b16 %v2078
      %v2214 = vunpack.c.h.b16 %v2078
      %v2215 = vunpack.c.l.b16 %v2079
      %v2216 = vunpack.c.l.b16 %v2080
      %v2217 = vunpack.c.h.b16 %v2080
      %v2218 = vunpack.c.l.b16 %v2081
      %v2219 = vunpack.c.h.b16 %v2081
      %v2220 = vunpack.c.l.b16 %v2082
      %v2221 = vunpack.c.h.b16 %v2082
      %v2222 = vunpack.c.l.b16 %v2083
      %v2223 = vunpack.c.l.b16 %v2084
      %v2224 = vunpack.c.h.b16 %v2084
      %v2225 = vunpack.c.l.b16 %v2085
      %v2226 = vunpack.c.h.b16 %v2085
      %v2227 = vunpack.c.l.b16 %v2086
      %v2228 = vunpack.c.h.b16 %v2086
      %v2229 = vunpack.c.l.b16 %v2087
      %v2230 = vunpack.c.l.b16 %v2088
      %v2231 = vunpack.c.h.b16 %v2088
      %v2232 = vunpack.c.l.b16 %v2089
      %v2233 = vunpack.c.h.b16 %v2089
      %v2234 = vunpack.c.l.b16 %v2090
      %v2235 = vunpack.c.h.b16 %v2090
      %v2236 = vunpack.c.l.b16 %v2091
      %v2237 = vunpack.c.l.b16 %v2092
      %v2238 = vunpack.c.h.b16 %v2092
      %v2239 = vunpack.c.l.b16 %v2093
      %v2240 = vunpack.c.h.b16 %v2093
      %v2241 = vunpack.c.l.b16 %v2094
      %v2242 = vunpack.c.h.b16 %v2094
      %v2243 = vunpack.c.l.b16 %v2095
      %v2244 = vpack.c.b16 %v2181, %v2174
      %v2245 = vpack.c.b16 %v2182, %v2175
      %v2246 = vpack.c.b16 %v2183, %v2176
      %v2247 = vpack.c.b16 %v2184, %v2177
      %v2248 = vpack.c.b16 %v2185, %v2178
      %v2249 = vpack.c.b16 %v2186, %v2179
      %v2250 = vpack.c.b16 %v2187, %v2180
      %v2251 = vpack.c.b16 %v2195, %v2188
      %v2252 = vpack.c.b16 %v2196, %v2189
      %v2253 = vpack.c.b16 %v2197, %v2190
      %v2254 = vpack.c.b16 %v2198, %v2191
      %v2255 = vpack.c.b16 %v2199, %v2192
      %v2256 = vpack.c.b16 %v2200, %v2193
      %v2257 = vpack.c.b16 %v2201, %v2194
      %v2258 = vpack.c.b16 %v2209, %v2202
      %v2259 = vpack.c.b16 %v2210, %v2203
      %v2260 = vpack.c.b16 %v2211, %v2204
      %v2261 = vpack.c.b16 %v2212, %v2205
      %v2262 = vpack.c.b16 %v2213, %v2206
      %v2263 = vpack.c.b16 %v2214, %v2207
      %v2264 = vpack.c.b16 %v2215, %v2208
      %v2265 = vpack.c.b16 %v2223, %v2216
      %v2266 = vpack.c.b16 %v2224, %v2217
      %v2267 = vpack.c.b16 %v2225, %v2218
      %v2268 = vpack.c.b16 %v2226, %v2219
      %v2269 = vpack.c.b16 %v2227, %v2220
      %v2270 = vpack.c.b16 %v2228, %v2221
      %v2271 = vpack.c.b16 %v2229, %v2222
      %v2272 = vpack.c.b16 %v2237, %v2230
      %v2273 = vpack.c.b16 %v2238, %v2231
      %v2274 = vpack.c.b16 %v2239, %v2232
      %v2275 = vpack.c.b16 %v2240, %v2233
      %v2276 = vpack.c.b16 %v2241, %v2234
      %v2277 = vpack.c.b16 %v2242, %v2235
      %v2278 = vpack.c.b16 %v2243, %v2236
      %2314 = vmatprep.subr.bf16.mxu0 0
      %2315 = vmatpush1.bf16.msra.mxu0 0
      %2316 = vmatprep.subr.bf16.mxu0 0
      %2317 = vmatpush1.bf16.msra.mxu0 0
      %2318 = vmatprep.subr.bf16.mxu0 0
      %2319 = vmatpush1.bf16.msra.mxu0 0
      %2320 = vmatprep.subr.bf16.mxu0 %v2273
      %2321 = vmatpush1.bf16.msra.mxu0 %v2272
      %2322 = vmatprep.subr.bf16.mxu0 %v2266
      %2323 = vmatpush1.bf16.msra.mxu0 %v2265
      %2324 = vmatprep.subr.bf16.mxu0 %v2259
      %2325 = vmatpush1.bf16.msra.mxu0 %v2258
      %2326 = vmatprep.subr.bf16.mxu0 %v2252
      %2327 = vmatpush1.bf16.msra.mxu0 %v2251
      %2328 = vmatprep.subr.bf16.mxu0 %v2245
      %2329 = vmatpush1.bf16.msra.mxu0 %v2244
      %2330 = vmatprep.subr.bf16.mxu0 0
      %2331 = vmatpush2.bf16.msra.mxu0 0
      %2332 = vmatprep.subr.bf16.mxu0 0
      %2333 = vmatpush2.bf16.msra.mxu0 0
      %2334 = vmatprep.subr.bf16.mxu0 0
      %2335 = vmatpush2.bf16.msra.mxu0 0
      %2336 = vmatprep.subr.bf16.mxu0 0
      %2337 = vmatpush2.bf16.msra.mxu0 0
      %2338 = vmatprep.subr.bf16.mxu0 0
      %2339 = vmatpush2.bf16.msra.mxu0 0
      %2340 = vmatprep.subr.bf16.mxu0 0
      %2341 = vmatpush2.bf16.msra.mxu0 0
      %2342 = vmatprep.subr.bf16.mxu0 0
      %2343 = vmatpush2.bf16.msra.mxu0 0
      %2344 = vmatprep.subr.bf16.mxu0 0
      %2345 = vmatpush2.bf16.msra.mxu0 0
      %2346 = vmatprep.mubr.bf16.mxu0 0
      %2347 = vmatmul.mubr.bf16.gmra.mxu0 %v1269
      %v2348 = vpop.f32.mrf.mxu0
      %v2349 = vadd.f32 %v2102, %v2348
      %v2350 = vpop.f32.mrf.mxu0
      %v2351 = vadd.f32 %v2106, %v2350
      %v2352 = vpop.f32.mrf.mxu0
      %v2353 = vadd.f32 %v2102, %v2352
      %v2354 = vpop.f32.mrf.mxu0
      %v2355 = vadd.f32 %v2106, %v2354
      %2356 = vmatprep.mubr.bf16.mxu0 0
      %2357 = vmatmul.mubr.bf16.gmra.mxu0 %v1272
      %v2358 = vpop.f32.mrf.mxu0
      %v2359 = vadd.f32 %v2102, %v2358
      %v2360 = vpop.f32.mrf.mxu0
      %v2361 = vadd.f32 %v2106, %v2360
      %v2362 = vpop.f32.mrf.mxu0
      %v2363 = vadd.f32 %v2102, %v2362
      %v2364 = vpop.f32.mrf.mxu0
      %v2365 = vadd.f32 %v2106, %v2364
      %2366 = vmatprep.mubr.bf16.mxu0 0
      %2367 = vmatmul.mubr.bf16.gmra.mxu0 %v1275
      %v2368 = vpop.f32.mrf.mxu0
      %v2369 = vadd.f32 %v2102, %v2368
      %v2370 = vpop.f32.mrf.mxu0
      %v2371 = vadd.f32 %v2106, %v2370
      %v2372 = vpop.f32.mrf.mxu0
      %v2373 = vadd.f32 %v2102, %v2372
      %v2374 = vpop.f32.mrf.mxu0
      %v2375 = vadd.f32 %v2106, %v2374
      %2376 = vmatprep.mubr.bf16.mxu0 0
      %2377 = vmatmul.mubr.bf16.gmra.mxu0 %v1278
      %v2378 = vpop.f32.mrf.mxu0
      %v2379 = vadd.f32 %v2102, %v2378
      %v2380 = vpop.f32.mrf.mxu0
      %v2381 = vadd.f32 %v2106, %v2380
      %v2382 = vpop.f32.mrf.mxu0
      %v2383 = vadd.f32 %v2102, %v2382
      %v2384 = vpop.f32.mrf.mxu0
      %v2385 = vadd.f32 %v2106, %v2384
      %2386 = vmatprep.mubr.bf16.mxu0 0
      %2387 = vmatmul.mubr.bf16.gmra.mxu0 %v1281
      %v2388 = vpop.f32.mrf.mxu0
      %v2389 = vadd.f32 %v2102, %v2388
      %v2390 = vpop.f32.mrf.mxu0
      %v2391 = vadd.f32 %v2106, %v2390
      %v2392 = vpop.f32.mrf.mxu0
      %v2393 = vadd.f32 %v2102, %v2392
      %v2394 = vpop.f32.mrf.mxu0
      %v2395 = vadd.f32 %v2106, %v2394
      %2396 = vmatprep.mubr.bf16.mxu0 0
      %2397 = vmatmul.mubr.bf16.gmra.mxu0 %v1284
      %v2398 = vpop.f32.mrf.mxu0
      %v2399 = vadd.f32 %v2102, %v2398
      %v2400 = vpop.f32.mrf.mxu0
      %v2401 = vadd.f32 %v2106, %v2400
      %v2402 = vpop.f32.mrf.mxu0
      %v2403 = vadd.f32 %v2102, %v2402
      %v2404 = vpop.f32.mrf.mxu0
      %v2405 = vadd.f32 %v2106, %v2404
      %2406 = vmatprep.mubr.bf16.mxu0 0
      %2407 = vmatmul.mubr.bf16.gmra.mxu0 %v1287
      %v2408 = vpop.f32.mrf.mxu0
      %v2409 = vadd.f32 %v2102, %v2408
      %v2410 = vpop.f32.mrf.mxu0
      %v2411 = vadd.f32 %v2106, %v2410
      %v2412 = vpop.f32.mrf.mxu0
      %v2413 = vadd.f32 %v2102, %v2412
      %v2414 = vpop.f32.mrf.mxu0
      %v2415 = vadd.f32 %v2106, %v2414
      %2416 = vmatprep.mubr.bf16.mxu0 0
      %2417 = vmatmul.mubr.bf16.gmra.mxu0 %v1290
      %v2418 = vpop.f32.mrf.mxu0
      %v2419 = vadd.f32 %v2102, %v2418
      %v2420 = vpop.f32.mrf.mxu0
      %v2421 = vadd.f32 %v2106, %v2420
      %v2422 = vpop.f32.mrf.mxu0
      %v2423 = vadd.f32 %v2102, %v2422
      %v2424 = vpop.f32.mrf.mxu0
      %v2425 = vadd.f32 %v2106, %v2424
      %2426 = vmatprep.mubr.bf16.mxu0 0
      %2427 = vmatmul.mubr.bf16.gmra.mxu0 %v1293
      %v2428 = vpop.f32.mrf.mxu0
      %v2429 = vadd.f32 %v2102, %v2428
      %v2430 = vpop.f32.mrf.mxu0
      %v2431 = vadd.f32 %v2106, %v2430
      %v2432 = vpop.f32.mrf.mxu0
      %v2433 = vadd.f32 %v2102, %v2432
      %v2434 = vpop.f32.mrf.mxu0
      %v2435 = vadd.f32 %v2106, %v2434
      %2436 = vmatprep.mubr.bf16.mxu0 0
      %2437 = vmatmul.mubr.bf16.gmra.mxu0 %v1296
      %v2438 = vpop.f32.mrf.mxu0
      %v2439 = vadd.f32 %v2102, %v2438
      %v2440 = vpop.f32.mrf.mxu0
      %v2441 = vadd.f32 %v2106, %v2440
      %v2442 = vpop.f32.mrf.mxu0
      %v2443 = vadd.f32 %v2102, %v2442
      %v2444 = vpop.f32.mrf.mxu0
      %v2445 = vadd.f32 %v2106, %v2444
      %2446 = vmatprep.mubr.bf16.mxu0 0
      %2447 = vmatmul.mubr.bf16.gmra.mxu0 %v1299
      %v2448 = vpop.f32.mrf.mxu0
      %v2449 = vadd.f32 %v2102, %v2448
      %v2450 = vpop.f32.mrf.mxu0
      %v2451 = vadd.f32 %v2106, %v2450
      %v2452 = vpop.f32.mrf.mxu0
      %v2453 = vadd.f32 %v2102, %v2452
      %v2454 = vpop.f32.mrf.mxu0
      %v2455 = vadd.f32 %v2106, %v2454
      %2456 = vmatprep.mubr.bf16.mxu0 0
      %2457 = vmatmul.mubr.bf16.gmra.mxu0 %v1302
      %v2458 = vpop.f32.mrf.mxu0
      %v2459 = vadd.f32 %v2102, %v2458
      %v2460 = vpop.f32.mrf.mxu0
      %v2461 = vadd.f32 %v2106, %v2460
      %v2462 = vpop.f32.mrf.mxu0
      %v2463 = vadd.f32 %v2102, %v2462
      %v2464 = vpop.f32.mrf.mxu0
      %v2465 = vadd.f32 %v2106, %v2464
      %2466 = vmatprep.mubr.bf16.mxu0 0
      %2467 = vmatmul.mubr.bf16.gmra.mxu0 %v1305
      %v2468 = vpop.f32.mrf.mxu0
      %v2469 = vadd.f32 %v2102, %v2468
      %v2470 = vpop.f32.mrf.mxu0
      %v2471 = vadd.f32 %v2106, %v2470
      %v2472 = vpop.f32.mrf.mxu0
      %v2473 = vadd.f32 %v2102, %v2472
      %v2474 = vpop.f32.mrf.mxu0
      %v2475 = vadd.f32 %v2106, %v2474
      %2476 = vmatprep.mubr.bf16.mxu0 0
      %2477 = vmatmul.mubr.bf16.gmra.mxu0 %v1308
      %v2478 = vpop.f32.mrf.mxu0
      %v2479 = vadd.f32 %v2102, %v2478
      %v2480 = vpop.f32.mrf.mxu0
      %v2481 = vadd.f32 %v2106, %v2480
      %v2482 = vpop.f32.mrf.mxu0
      %v2483 = vadd.f32 %v2102, %v2482
      %v2484 = vpop.f32.mrf.mxu0
      %v2485 = vadd.f32 %v2106, %v2484
      %2486 = vmatprep.mubr.bf16.mxu0 0
      %2487 = vmatmul.mubr.bf16.gmra.mxu0 %v1311
      %v2488 = vpop.f32.mrf.mxu0
      %v2489 = vadd.f32 %v2102, %v2488
      %v2490 = vpop.f32.mrf.mxu0
      %v2491 = vadd.f32 %v2106, %v2490
      %v2492 = vpop.f32.mrf.mxu0
      %v2493 = vadd.f32 %v2102, %v2492
      %v2494 = vpop.f32.mrf.mxu0
      %v2495 = vadd.f32 %v2106, %v2494
      %2496 = vmatprep.mubr.bf16.mxu0 0
      %2497 = vmatmul.mubr.bf16.gmra.mxu0 %v1314
      %v2498 = vpop.f32.mrf.mxu0
      %v2499 = vadd.f32 %v2102, %v2498
      %v2500 = vpop.f32.mrf.mxu0
      %v2501 = vadd.f32 %v2106, %v2500
      %v2502 = vpop.f32.mrf.mxu0
      %v2503 = vadd.f32 %v2102, %v2502
      %v2504 = vpop.f32.mrf.mxu0
      %v2505 = vadd.f32 %v2106, %v2504
      %2506 = vdwg.mxu0
      %2507 = vmatprep.subr.bf16.mxu0 0
      %2508 = vmatpush1.bf16.msra.mxu0 0
      %2509 = vmatprep.subr.bf16.mxu0 0
      %2510 = vmatpush1.bf16.msra.mxu0 0
      %2511 = vmatprep.subr.bf16.mxu0 0
      %2512 = vmatpush1.bf16.msra.mxu0 0
      %2513 = vmatprep.subr.bf16.mxu0 %v2275
      %2514 = vmatpush1.bf16.msra.mxu0 %v2274
      %2515 = vmatprep.subr.bf16.mxu0 %v2268
      %2516 = vmatpush1.bf16.msra.mxu0 %v2267
      %2517 = vmatprep.subr.bf16.mxu0 %v2261
      %2518 = vmatpush1.bf16.msra.mxu0 %v2260
      %2519 = vmatprep.subr.bf16.mxu0 %v2254
      %2520 = vmatpush1.bf16.msra.mxu0 %v2253
      %2521 = vmatprep.subr.bf16.mxu0 %v2247
      %2522 = vmatpush1.bf16.msra.mxu0 %v2246
      %2523 = vmatprep.subr.bf16.mxu0 0
      %2524 = vmatpush2.bf16.msra.mxu0 0
      %2525 = vmatprep.subr.bf16.mxu0 0
      %2526 = vmatpush2.bf16.msra.mxu0 0
      %2527 = vmatprep.subr.bf16.mxu0 0
      %2528 = vmatpush2.bf16.msra.mxu0 0
      %2529 = vmatprep.subr.bf16.mxu0 0
      %2530 = vmatpush2.bf16.msra.mxu0 0
      %2531 = vmatprep.subr.bf16.mxu0 0
      %2532 = vmatpush2.bf16.msra.mxu0 0
      %2533 = vmatprep.subr.bf16.mxu0 0
      %2534 = vmatpush2.bf16.msra.mxu0 0
      %2535 = vmatprep.subr.bf16.mxu0 0
      %2536 = vmatpush2.bf16.msra.mxu0 0
      %2537 = vmatprep.subr.bf16.mxu0 0
      %2538 = vmatpush2.bf16.msra.mxu0 0
      %2539 = vmatprep.mubr.bf16.mxu0 0
      %2540 = vmatmul.mubr.bf16.gmra.mxu0 %v1269
      %v2541 = vpop.f32.mrf.mxu0
      %v2542 = vadd.f32 %v2110, %v2541
      %v2543 = vpop.f32.mrf.mxu0
      %v2544 = vadd.f32 %v2114, %v2543
      %v2545 = vpop.f32.mrf.mxu0
      %v2546 = vadd.f32 %v2110, %v2545
      %v2547 = vpop.f32.mrf.mxu0
      %v2548 = vadd.f32 %v2114, %v2547
      %2549 = vmatprep.mubr.bf16.mxu0 0
      %2550 = vmatmul.mubr.bf16.gmra.mxu0 %v1272
      %v2551 = vpop.f32.mrf.mxu0
      %v2552 = vadd.f32 %v2110, %v2551
      %v2553 = vpop.f32.mrf.mxu0
      %v2554 = vadd.f32 %v2114, %v2553
      %v2555 = vpop.f32.mrf.mxu0
      %v2556 = vadd.f32 %v2110, %v2555
      %v2557 = vpop.f32.mrf.mxu0
      %v2558 = vadd.f32 %v2114, %v2557
      %2559 = vmatprep.mubr.bf16.mxu0 0
      %2560 = vmatmul.mubr.bf16.gmra.mxu0 %v1275
      %v2561 = vpop.f32.mrf.mxu0
      %v2562 = vadd.f32 %v2110, %v2561
      %v2563 = vpop.f32.mrf.mxu0
      %v2564 = vadd.f32 %v2114, %v2563
      %v2565 = vpop.f32.mrf.mxu0
      %v2566 = vadd.f32 %v2110, %v2565
      %v2567 = vpop.f32.mrf.mxu0
      %v2568 = vadd.f32 %v2114, %v2567
      %2569 = vmatprep.mubr.bf16.mxu0 0
      %2570 = vmatmul.mubr.bf16.gmra.mxu0 %v1278
      %v2571 = vpop.f32.mrf.mxu0
      %v2572 = vadd.f32 %v2110, %v2571
      %v2573 = vpop.f32.mrf.mxu0
      %v2574 = vadd.f32 %v2114, %v2573
      %v2575 = vpop.f32.mrf.mxu0
      %v2576 = vadd.f32 %v2110, %v2575
      %v2577 = vpop.f32.mrf.mxu0
      %v2578 = vadd.f32 %v2114, %v2577
      %2579 = vmatprep.mubr.bf16.mxu0 0
      %2580 = vmatmul.mubr.bf16.gmra.mxu0 %v1281
      %v2581 = vpop.f32.mrf.mxu0
      %v2582 = vadd.f32 %v2110, %v2581
      %v2583 = vpop.f32.mrf.mxu0
      %v2584 = vadd.f32 %v2114, %v2583
      %v2585 = vpop.f32.mrf.mxu0
      %v2586 = vadd.f32 %v2110, %v2585
      %v2587 = vpop.f32.mrf.mxu0
      %v2588 = vadd.f32 %v2114, %v2587
      %2589 = vmatprep.mubr.bf16.mxu0 0
      %2590 = vmatmul.mubr.bf16.gmra.mxu0 %v1284
      %v2591 = vpop.f32.mrf.mxu0
      %v2592 = vadd.f32 %v2110, %v2591
      %v2593 = vpop.f32.mrf.mxu0
      %v2594 = vadd.f32 %v2114, %v2593
      %v2595 = vpop.f32.mrf.mxu0
      %v2596 = vadd.f32 %v2110, %v2595
      %v2597 = vpop.f32.mrf.mxu0
      %v2598 = vadd.f32 %v2114, %v2597
      %2599 = vmatprep.mubr.bf16.mxu0 0
      %2600 = vmatmul.mubr.bf16.gmra.mxu0 %v1287
      %v2601 = vpop.f32.mrf.mxu0
      %v2602 = vadd.f32 %v2110, %v2601
      %v2603 = vpop.f32.mrf.mxu0
      %v2604 = vadd.f32 %v2114, %v2603
      %v2605 = vpop.f32.mrf.mxu0
      %v2606 = vadd.f32 %v2110, %v2605
      %v2607 = vpop.f32.mrf.mxu0
      %v2608 = vadd.f32 %v2114, %v2607
      %2609 = vmatprep.mubr.bf16.mxu0 0
      %2610 = vmatmul.mubr.bf16.gmra.mxu0 %v1290
      %v2611 = vpop.f32.mrf.mxu0
      %v2612 = vadd.f32 %v2110, %v2611
      %v2613 = vpop.f32.mrf.mxu0
      %v2614 = vadd.f32 %v2114, %v2613
      %v2615 = vpop.f32.mrf.mxu0
      %v2616 = vadd.f32 %v2110, %v2615
      %v2617 = vpop.f32.mrf.mxu0
      %v2618 = vadd.f32 %v2114, %v2617
      %2619 = vmatprep.mubr.bf16.mxu0 0
      %2620 = vmatmul.mubr.bf16.gmra.mxu0 %v1293
      %v2621 = vpop.f32.mrf.mxu0
      %v2622 = vadd.f32 %v2110, %v2621
      %v2623 = vpop.f32.mrf.mxu0
      %v2624 = vadd.f32 %v2114, %v2623
      %v2625 = vpop.f32.mrf.mxu0
      %v2626 = vadd.f32 %v2110, %v2625
      %v2627 = vpop.f32.mrf.mxu0
      %v2628 = vadd.f32 %v2114, %v2627
      %2629 = vmatprep.mubr.bf16.mxu0 0
      %2630 = vmatmul.mubr.bf16.gmra.mxu0 %v1296
      %v2631 = vpop.f32.mrf.mxu0
      %v2632 = vadd.f32 %v2110, %v2631
      %v2633 = vpop.f32.mrf.mxu0
      %v2634 = vadd.f32 %v2114, %v2633
      %v2635 = vpop.f32.mrf.mxu0
      %v2636 = vadd.f32 %v2110, %v2635
      %v2637 = vpop.f32.mrf.mxu0
      %v2638 = vadd.f32 %v2114, %v2637
      %2639 = vmatprep.mubr.bf16.mxu0 0
      %2640 = vmatmul.mubr.bf16.gmra.mxu0 %v1299
      %v2641 = vpop.f32.mrf.mxu0
      %v2642 = vadd.f32 %v2110, %v2641
      %v2643 = vpop.f32.mrf.mxu0
      %v2644 = vadd.f32 %v2114, %v2643
      %v2645 = vpop.f32.mrf.mxu0
      %v2646 = vadd.f32 %v2110, %v2645
      %v2647 = vpop.f32.mrf.mxu0
      %v2648 = vadd.f32 %v2114, %v2647
      %2649 = vmatprep.mubr.bf16.mxu0 0
      %2650 = vmatmul.mubr.bf16.gmra.mxu0 %v1302
      %v2651 = vpop.f32.mrf.mxu0
      %v2652 = vadd.f32 %v2110, %v2651
      %v2653 = vpop.f32.mrf.mxu0
      %v2654 = vadd.f32 %v2114, %v2653
      %v2655 = vpop.f32.mrf.mxu0
      %v2656 = vadd.f32 %v2110, %v2655
      %v2657 = vpop.f32.mrf.mxu0
      %v2658 = vadd.f32 %v2114, %v2657
      %2659 = vmatprep.mubr.bf16.mxu0 0
      %2660 = vmatmul.mubr.bf16.gmra.mxu0 %v1305
      %v2661 = vpop.f32.mrf.mxu0
      %v2662 = vadd.f32 %v2110, %v2661
      %v2663 = vpop.f32.mrf.mxu0
      %v2664 = vadd.f32 %v2114, %v2663
      %v2665 = vpop.f32.mrf.mxu0
      %v2666 = vadd.f32 %v2110, %v2665
      %v2667 = vpop.f32.mrf.mxu0
      %v2668 = vadd.f32 %v2114, %v2667
      %2669 = vmatprep.mubr.bf16.mxu0 0
      %2670 = vmatmul.mubr.bf16.gmra.mxu0 %v1308
      %v2671 = vpop.f32.mrf.mxu0
      %v2672 = vadd.f32 %v2110, %v2671
      %v2673 = vpop.f32.mrf.mxu0
      %v2674 = vadd.f32 %v2114, %v2673
      %v2675 = vpop.f32.mrf.mxu0
      %v2676 = vadd.f32 %v2110, %v2675
      %v2677 = vpop.f32.mrf.mxu0
      %v2678 = vadd.f32 %v2114, %v2677
      %2679 = vmatprep.mubr.bf16.mxu0 0
      %2680 = vmatmul.mubr.bf16.gmra.mxu0 %v1311
      %v2681 = vpop.f32.mrf.mxu0
      %v2682 = vadd.f32 %v2110, %v2681
      %v2683 = vpop.f32.mrf.mxu0
      %v2684 = vadd.f32 %v2114, %v2683
      %v2685 = vpop.f32.mrf.mxu0
      %v2686 = vadd.f32 %v2110, %v2685
      %v2687 = vpop.f32.mrf.mxu0
      %v2688 = vadd.f32 %v2114, %v2687
      %2689 = vmatprep.mubr.bf16.mxu0 0
      %2690 = vmatmul.mubr.bf16.gmra.mxu0 %v1314
      %v2691 = vpop.f32.mrf.mxu0
      %v2692 = vadd.f32 %v2110, %v2691
      %v2693 = vpop.f32.mrf.mxu0
      %v2694 = vadd.f32 %v2114, %v2693
      %v2695 = vpop.f32.mrf.mxu0
      %v2696 = vadd.f32 %v2110, %v2695
      %v2697 = vpop.f32.mrf.mxu0
      %v2698 = vadd.f32 %v2114, %v2697
      %2699 = vdwg.mxu0
      %2700 = vmatprep.subr.bf16.mxu0 0
      %2701 = vmatpush1.bf16.msra.mxu0 0
      %2702 = vmatprep.subr.bf16.mxu0 0
      %2703 = vmatpush1.bf16.msra.mxu0 0
      %2704 = vmatprep.subr.bf16.mxu0 0
      %2705 = vmatpush1.bf16.msra.mxu0 0
      %2706 = vmatprep.subr.bf16.mxu0 %v2277
      %2707 = vmatpush1.bf16.msra.mxu0 %v2276
      %2708 = vmatprep.subr.bf16.mxu0 %v2270
      %2709 = vmatpush1.bf16.msra.mxu0 %v2269
      %2710 = vmatprep.subr.bf16.mxu0 %v2263
      %2711 = vmatpush1.bf16.msra.mxu0 %v2262
      %2712 = vmatprep.subr.bf16.mxu0 %v2256
      %2713 = vmatpush1.bf16.msra.mxu0 %v2255
      %2714 = vmatprep.subr.bf16.mxu0 %v2249
      %2715 = vmatpush1.bf16.msra.mxu0 %v2248
      %2716 = vmatprep.subr.bf16.mxu0 0
      %2717 = vmatpush2.bf16.msra.mxu0 0
      %2718 = vmatprep.subr.bf16.mxu0 0
      %2719 = vmatpush2.bf16.msra.mxu0 0
      %2720 = vmatprep.subr.bf16.mxu0 0
      %2721 = vmatpush2.bf16.msra.mxu0 0
      %2722 = vmatprep.subr.bf16.mxu0 0
      %2723 = vmatpush2.bf16.msra.mxu0 0
      %2724 = vmatprep.subr.bf16.mxu0 0
      %2725 = vmatpush2.bf16.msra.mxu0 0
      %2726 = vmatprep.subr.bf16.mxu0 0
      %2727 = vmatpush2.bf16.msra.mxu0 0
      %2728 = vmatprep.subr.bf16.mxu0 0
      %2729 = vmatpush2.bf16.msra.mxu0 0
      %2730 = vmatprep.subr.bf16.mxu0 0
      %2731 = vmatpush2.bf16.msra.mxu0 0
      %2732 = vmatprep.mubr.bf16.mxu0 0
      %2733 = vmatmul.mubr.bf16.gmra.mxu0 %v1269
      %v2734 = vpop.f32.mrf.mxu0
      %v2735 = vadd.f32 %v2118, %v2734
      %v2736 = vpop.f32.mrf.mxu0
      %v2737 = vadd.f32 %v2122, %v2736
      %v2738 = vpop.f32.mrf.mxu0
      %v2739 = vadd.f32 %v2118, %v2738
      %v2740 = vpop.f32.mrf.mxu0
      %v2741 = vadd.f32 %v2122, %v2740
      %2742 = vmatprep.mubr.bf16.mxu0 0
      %2743 = vmatmul.mubr.bf16.gmra.mxu0 %v1272
      %v2744 = vpop.f32.mrf.mxu0
      %v2745 = vadd.f32 %v2118, %v2744
      %v2746 = vpop.f32.mrf.mxu0
      %v2747 = vadd.f32 %v2122, %v2746
      %v2748 = vpop.f32.mrf.mxu0
      %v2749 = vadd.f32 %v2118, %v2748
      %v2750 = vpop.f32.mrf.mxu0
      %v2751 = vadd.f32 %v2122, %v2750
      %2752 = vmatprep.mubr.bf16.mxu0 0
      %2753 = vmatmul.mubr.bf16.gmra.mxu0 %v1275
      %v2754 = vpop.f32.mrf.mxu0
      %v2755 = vadd.f32 %v2118, %v2754
      %v2756 = vpop.f32.mrf.mxu0
      %v2757 = vadd.f32 %v2122, %v2756
      %v2758 = vpop.f32.mrf.mxu0
      %v2759 = vadd.f32 %v2118, %v2758
      %v2760 = vpop.f32.mrf.mxu0
      %v2761 = vadd.f32 %v2122, %v2760
      %2762 = vmatprep.mubr.bf16.mxu0 0
      %2763 = vmatmul.mubr.bf16.gmra.mxu0 %v1278
      %v2764 = vpop.f32.mrf.mxu0
      %v2765 = vadd.f32 %v2118, %v2764
      %v2766 = vpop.f32.mrf.mxu0
      %v2767 = vadd.f32 %v2122, %v2766
      %v2768 = vpop.f32.mrf.mxu0
      %v2769 = vadd.f32 %v2118, %v2768
      %v2770 = vpop.f32.mrf.mxu0
      %v2771 = vadd.f32 %v2122, %v2770
      %2772 = vmatprep.mubr.bf16.mxu0 0
      %2773 = vmatmul.mubr.bf16.gmra.mxu0 %v1281
      %v2774 = vpop.f32.mrf.mxu0
      %v2775 = vadd.f32 %v2118, %v2774
      %v2776 = vpop.f32.mrf.mxu0
      %v2777 = vadd.f32 %v2122, %v2776
      %v2778 = vpop.f32.mrf.mxu0
      %v2779 = vadd.f32 %v2118, %v2778
      %v2780 = vpop.f32.mrf.mxu0
      %v2781 = vadd.f32 %v2122, %v2780
      %2782 = vmatprep.mubr.bf16.mxu0 0
      %2783 = vmatmul.mubr.bf16.gmra.mxu0 %v1284
      %v2784 = vpop.f32.mrf.mxu0
      %v2785 = vadd.f32 %v2118, %v2784
      %v2786 = vpop.f32.mrf.mxu0
      %v2787 = vadd.f32 %v2122, %v2786
      %v2788 = vpop.f32.mrf.mxu0
      %v2789 = vadd.f32 %v2118, %v2788
      %v2790 = vpop.f32.mrf.mxu0
      %v2791 = vadd.f32 %v2122, %v2790
      %2792 = vmatprep.mubr.bf16.mxu0 0
      %2793 = vmatmul.mubr.bf16.gmra.mxu0 %v1287
      %v2794 = vpop.f32.mrf.mxu0
      %v2795 = vadd.f32 %v2118, %v2794
      %v2796 = vpop.f32.mrf.mxu0
      %v2797 = vadd.f32 %v2122, %v2796
      %v2798 = vpop.f32.mrf.mxu0
      %v2799 = vadd.f32 %v2118, %v2798
      %v2800 = vpop.f32.mrf.mxu0
      %v2801 = vadd.f32 %v2122, %v2800
      %2802 = vmatprep.mubr.bf16.mxu0 0
      %2803 = vmatmul.mubr.bf16.gmra.mxu0 %v1290
      %v2804 = vpop.f32.mrf.mxu0
      %v2805 = vadd.f32 %v2118, %v2804
      %v2806 = vpop.f32.mrf.mxu0
      %v2807 = vadd.f32 %v2122, %v2806
      %v2808 = vpop.f32.mrf.mxu0
      %v2809 = vadd.f32 %v2118, %v2808
      %v2810 = vpop.f32.mrf.mxu0
      %v2811 = vadd.f32 %v2122, %v2810
      %2812 = vmatprep.mubr.bf16.mxu0 0
      %2813 = vmatmul.mubr.bf16.gmra.mxu0 %v1293
      %v2814 = vpop.f32.mrf.mxu0
      %v2815 = vadd.f32 %v2118, %v2814
      %v2816 = vpop.f32.mrf.mxu0
      %v2817 = vadd.f32 %v2122, %v2816
      %v2818 = vpop.f32.mrf.mxu0
      %v2819 = vadd.f32 %v2118, %v2818
      %v2820 = vpop.f32.mrf.mxu0
      %v2821 = vadd.f32 %v2122, %v2820
      %2822 = vmatprep.mubr.bf16.mxu0 0
      %2823 = vmatmul.mubr.bf16.gmra.mxu0 %v1296
      %v2824 = vpop.f32.mrf.mxu0
      %v2825 = vadd.f32 %v2118, %v2824
      %v2826 = vpop.f32.mrf.mxu0
      %v2827 = vadd.f32 %v2122, %v2826
      %v2828 = vpop.f32.mrf.mxu0
      %v2829 = vadd.f32 %v2118, %v2828
      %v2830 = vpop.f32.mrf.mxu0
      %v2831 = vadd.f32 %v2122, %v2830
      %2832 = vmatprep.mubr.bf16.mxu0 0
      %2833 = vmatmul.mubr.bf16.gmra.mxu0 %v1299
      %v2834 = vpop.f32.mrf.mxu0
      %v2835 = vadd.f32 %v2118, %v2834
      %v2836 = vpop.f32.mrf.mxu0
      %v2837 = vadd.f32 %v2122, %v2836
      %v2838 = vpop.f32.mrf.mxu0
      %v2839 = vadd.f32 %v2118, %v2838
      %v2840 = vpop.f32.mrf.mxu0
      %v2841 = vadd.f32 %v2122, %v2840
      %2842 = vmatprep.mubr.bf16.mxu0 0
      %2843 = vmatmul.mubr.bf16.gmra.mxu0 %v1302
      %v2844 = vpop.f32.mrf.mxu0
      %v2845 = vadd.f32 %v2118, %v2844
      %v2846 = vpop.f32.mrf.mxu0
      %v2847 = vadd.f32 %v2122, %v2846
      %v2848 = vpop.f32.mrf.mxu0
      %v2849 = vadd.f32 %v2118, %v2848
      %v2850 = vpop.f32.mrf.mxu0
      %v2851 = vadd.f32 %v2122, %v2850
      %2852 = vmatprep.mubr.bf16.mxu0 0
      %2853 = vmatmul.mubr.bf16.gmra.mxu0 %v1305
      %v2854 = vpop.f32.mrf.mxu0
      %v2855 = vadd.f32 %v2118, %v2854
      %v2856 = vpop.f32.mrf.mxu0
      %v2857 = vadd.f32 %v2122, %v2856
      %v2858 = vpop.f32.mrf.mxu0
      %v2859 = vadd.f32 %v2118, %v2858
      %v2860 = vpop.f32.mrf.mxu0
      %v2861 = vadd.f32 %v2122, %v2860
      %2862 = vmatprep.mubr.bf16.mxu0 0
      %2863 = vmatmul.mubr.bf16.gmra.mxu0 %v1308
      %v2864 = vpop.f32.mrf.mxu0
      %v2865 = vadd.f32 %v2118, %v2864
      %v2866 = vpop.f32.mrf.mxu0
      %v2867 = vadd.f32 %v2122, %v2866
      %v2868 = vpop.f32.mrf.mxu0
      %v2869 = vadd.f32 %v2118, %v2868
      %v2870 = vpop.f32.mrf.mxu0
      %v2871 = vadd.f32 %v2122, %v2870
      %2872 = vmatprep.mubr.bf16.mxu0 0
      %2873 = vmatmul.mubr.bf16.gmra.mxu0 %v1311
      %v2874 = vpop.f32.mrf.mxu0
      %v2875 = vadd.f32 %v2118, %v2874
      %v2876 = vpop.f32.mrf.mxu0
      %v2877 = vadd.f32 %v2122, %v2876
      %v2878 = vpop.f32.mrf.mxu0
      %v2879 = vadd.f32 %v2118, %v2878
      %v2880 = vpop.f32.mrf.mxu0
      %v2881 = vadd.f32 %v2122, %v2880
      %2882 = vmatprep.mubr.bf16.mxu0 0
      %2883 = vmatmul.mubr.bf16.gmra.mxu0 %v1314
      %v2884 = vpop.f32.mrf.mxu0
      %v2885 = vadd.f32 %v2118, %v2884
      %v2886 = vpop.f32.mrf.mxu0
      %v2887 = vadd.f32 %v2122, %v2886
      %v2888 = vpop.f32.mrf.mxu0
      %v2889 = vadd.f32 %v2118, %v2888
      %v2890 = vpop.f32.mrf.mxu0
      %v2891 = vadd.f32 %v2122, %v2890
      %2892 = vdwg.mxu0
      %2893 = vmatprep.subr.bf16.mxu0 0
      %2894 = vmatpush1.bf16.msra.mxu0 0
      %2895 = vmatprep.subr.bf16.mxu0 0
      %2896 = vmatpush1.bf16.msra.mxu0 0
      %2897 = vmatprep.subr.bf16.mxu0 0
      %2898 = vmatpush1.bf16.msra.mxu0 0
      %2899 = vmatprep.subr.bf16.mxu0 0
      %2900 = vmatpush1.bf16.msra.mxu0 %v2278
      %2901 = vmatprep.subr.bf16.mxu0 0
      %2902 = vmatpush1.bf16.msra.mxu0 %v2271
      %2903 = vmatprep.subr.bf16.mxu0 0
      %2904 = vmatpush1.bf16.msra.mxu0 %v2264
      %2905 = vmatprep.subr.bf16.mxu0 0
      %2906 = vmatpush1.bf16.msra.mxu0 %v2257
      %2907 = vmatprep.subr.bf16.mxu0 0
      %2908 = vmatpush1.bf16.msra.mxu0 %v2250
      %2909 = vmatprep.subr.bf16.mxu0 0
      %2910 = vmatpush2.bf16.msra.mxu0 0
      %2911 = vmatprep.subr.bf16.mxu0 0
      %2912 = vmatpush2.bf16.msra.mxu0 0
      %2913 = vmatprep.subr.bf16.mxu0 0
      %2914 = vmatpush2.bf16.msra.mxu0 0
      %2915 = vmatprep.subr.bf16.mxu0 0
      %2916 = vmatpush2.bf16.msra.mxu0 0
      %2917 = vmatprep.subr.bf16.mxu0 0
      %2918 = vmatpush2.bf16.msra.mxu0 0
      %2919 = vmatprep.subr.bf16.mxu0 0
      %2920 = vmatpush2.bf16.msra.mxu0 0
      %2921 = vmatprep.subr.bf16.mxu0 0
      %2922 = vmatpush2.bf16.msra.mxu0 0
      %2923 = vmatprep.subr.bf16.mxu0 0
      %2924 = vmatpush2.bf16.msra.mxu0 0
      %2925 = vmatprep.mubr.bf16.mxu0 0
      %2926 = vmatmul.mubr.bf16.gmra.mxu0 %v1269
      %v2927 = vpop.f32.mrf.mxu0
      %v2928 = vadd.f32 %v2126, %v2927
      %v2929 = vpop.f32.mrf.mxu0
      %v2930 = vpop.f32.mrf.mxu0
      %v2931 = vadd.f32 %v2126, %v2930
      %v2932 = vpop.f32.mrf.mxu0
      %2933 = vmatprep.mubr.bf16.mxu0 0
      %2934 = vmatmul.mubr.bf16.gmra.mxu0 %v1272
      %v2935 = vpop.f32.mrf.mxu0
      %v2936 = vadd.f32 %v2126, %v2935
      %v2937 = vpop.f32.mrf.mxu0
      %v2938 = vpop.f32.mrf.mxu0
      %v2939 = vadd.f32 %v2126, %v2938
      %v2940 = vpop.f32.mrf.mxu0
      %2941 = vmatprep.mubr.bf16.mxu0 0
      %2942 = vmatmul.mubr.bf16.gmra.mxu0 %v1275
      %v2943 = vpop.f32.mrf.mxu0
      %v2944 = vadd.f32 %v2126, %v2943
      %v2945 = vpop.f32.mrf.mxu0
      %v2946 = vpop.f32.mrf.mxu0
      %v2947 = vadd.f32 %v2126, %v2946
      %v2948 = vpop.f32.mrf.mxu0
      %2949 = vmatprep.mubr.bf16.mxu0 0
      %2950 = vmatmul.mubr.bf16.gmra.mxu0 %v1278
      %v2951 = vpop.f32.mrf.mxu0
      %v2952 = vadd.f32 %v2126, %v2951
      %v2953 = vpop.f32.mrf.mxu0
      %v2954 = vpop.f32.mrf.mxu0
      %v2955 = vadd.f32 %v2126, %v2954
      %v2956 = vpop.f32.mrf.mxu0
      %2957 = vmatprep.mubr.bf16.mxu0 0
      %2958 = vmatmul.mubr.bf16.gmra.mxu0 %v1281
      %v2959 = vpop.f32.mrf.mxu0
      %v2960 = vadd.f32 %v2126, %v2959
      %v2961 = vpop.f32.mrf.mxu0
      %v2962 = vpop.f32.mrf.mxu0
      %v2963 = vadd.f32 %v2126, %v2962
      %v2964 = vpop.f32.mrf.mxu0
      %2965 = vmatprep.mubr.bf16.mxu0 0
      %2966 = vmatmul.mubr.bf16.gmra.mxu0 %v1284
      %v2967 = vpop.f32.mrf.mxu0
      %v2968 = vadd.f32 %v2126, %v2967
      %v2969 = vpop.f32.mrf.mxu0
      %v2970 = vpop.f32.mrf.mxu0
      %v2971 = vadd.f32 %v2126, %v2970
      %v2972 = vpop.f32.mrf.mxu0
      %2973 = vmatprep.mubr.bf16.mxu0 0
      %2974 = vmatmul.mubr.bf16.gmra.mxu0 %v1287
      %v2975 = vpop.f32.mrf.mxu0
      %v2976 = vadd.f32 %v2126, %v2975
      %v2977 = vpop.f32.mrf.mxu0
      %v2978 = vpop.f32.mrf.mxu0
      %v2979 = vadd.f32 %v2126, %v2978
      %v2980 = vpop.f32.mrf.mxu0
      %2981 = vmatprep.mubr.bf16.mxu0 0
      %2982 = vmatmul.mubr.bf16.gmra.mxu0 %v1290
      %v2983 = vpop.f32.mrf.mxu0
      %v2984 = vadd.f32 %v2126, %v2983
      %v2985 = vpop.f32.mrf.mxu0
      %v2986 = vpop.f32.mrf.mxu0
      %v2987 = vadd.f32 %v2126, %v2986
      %v2988 = vpop.f32.mrf.mxu0
      %2989 = vmatprep.mubr.bf16.mxu0 0
      %2990 = vmatmul.mubr.bf16.gmra.mxu0 %v1293
      %v2991 = vpop.f32.mrf.mxu0
      %v2992 = vadd.f32 %v2126, %v2991
      %v2993 = vpop.f32.mrf.mxu0
      %v2994 = vpop.f32.mrf.mxu0
      %v2995 = vadd.f32 %v2126, %v2994
      %v2996 = vpop.f32.mrf.mxu0
      %2997 = vmatprep.mubr.bf16.mxu0 0
      %2998 = vmatmul.mubr.bf16.gmra.mxu0 %v1296
      %v2999 = vpop.f32.mrf.mxu0
      %v3000 = vadd.f32 %v2126, %v2999
      %v3001 = vpop.f32.mrf.mxu0
      %v3002 = vpop.f32.mrf.mxu0
      %v3003 = vadd.f32 %v2126, %v3002
      %v3004 = vpop.f32.mrf.mxu0
      %3005 = vmatprep.mubr.bf16.mxu0 0
      %3006 = vmatmul.mubr.bf16.gmra.mxu0 %v1299
      %v3007 = vpop.f32.mrf.mxu0
      %v3008 = vadd.f32 %v2126, %v3007
      %v3009 = vpop.f32.mrf.mxu0
      %v3010 = vpop.f32.mrf.mxu0
      %v3011 = vadd.f32 %v2126, %v3010
      %v3012 = vpop.f32.mrf.mxu0
      %3013 = vmatprep.mubr.bf16.mxu0 0
      %3014 = vmatmul.mubr.bf16.gmra.mxu0 %v1302
      %v3015 = vpop.f32.mrf.mxu0
      %v3016 = vadd.f32 %v2126, %v3015
      %v3017 = vpop.f32.mrf.mxu0
      %v3018 = vpop.f32.mrf.mxu0
      %v3019 = vadd.f32 %v2126, %v3018
      %v3020 = vpop.f32.mrf.mxu0
      %3021 = vmatprep.mubr.bf16.mxu0 0
      %3022 = vmatmul.mubr.bf16.gmra.mxu0 %v1305
      %v3023 = vpop.f32.mrf.mxu0
      %v3024 = vadd.f32 %v2126, %v3023
      %v3025 = vpop.f32.mrf.mxu0
      %v3026 = vpop.f32.mrf.mxu0
      %v3027 = vadd.f32 %v2126, %v3026
      %v3028 = vpop.f32.mrf.mxu0
      %3029 = vmatprep.mubr.bf16.mxu0 0
      %3030 = vmatmul.mubr.bf16.gmra.mxu0 %v1308
      %v3031 = vpop.f32.mrf.mxu0
      %v3032 = vadd.f32 %v2126, %v3031
      %v3033 = vpop.f32.mrf.mxu0
      %v3034 = vpop.f32.mrf.mxu0
      %v3035 = vadd.f32 %v2126, %v3034
      %v3036 = vpop.f32.mrf.mxu0
      %3037 = vmatprep.mubr.bf16.mxu0 0
      %3038 = vmatmul.mubr.bf16.gmra.mxu0 %v1311
      %v3039 = vpop.f32.mrf.mxu0
      %v3040 = vadd.f32 %v2126, %v3039
      %v3041 = vpop.f32.mrf.mxu0
      %v3042 = vpop.f32.mrf.mxu0
      %v3043 = vadd.f32 %v2126, %v3042
      %v3044 = vpop.f32.mrf.mxu0
      %3045 = vmatprep.mubr.bf16.mxu0 0
      %3046 = vmatmul.mubr.bf16.gmra.mxu0 %v1314
      %v3047 = vpop.f32.mrf.mxu0
      %v3048 = vadd.f32 %v2126, %v3047
      %v3049 = vpop.f32.mrf.mxu0
      %v3050 = vpop.f32.mrf.mxu0
      %v3051 = vadd.f32 %v2126, %v3050
      %v3052 = vpop.f32.mrf.mxu0
      %3053 = vdwg.mxu0
      %v3054 = vld [vmem:[%s4] sm:$0xff]
      %v3055 = vld [vmem:[%s4 + $0x8] sm:$0xff]
      %v3056 = vld [vmem:[%s4 + $0x10] sm:$0xff]
      %v3057 = vld [vmem:[%s4 + $0x18] sm:$0xf]
      %v3058 = vld [vmem:[%s4 + $0x1c] sm:$0xff]
      %v3059 = vld [vmem:[%s4 + $0x24] sm:$0xff]
      %v3060 = vld [vmem:[%s4 + $0x2c] sm:$0xff]
      %v3061 = vld [vmem:[%s4 + $0x34] sm:$0xf]
      %v3062 = vld [vmem:[%s4 + $0x38] sm:$0xff]
      %v3063 = vld [vmem:[%s4 + $0x40] sm:$0xff]
      %v3064 = vld [vmem:[%s4 + $0x48] sm:$0xff]
      %v3065 = vld [vmem:[%s4 + $0x50] sm:$0xf]
      %v3066 = vld [vmem:[%s4 + $0x54] sm:$0xff]
      %v3067 = vld [vmem:[%s4 + $0x5c] sm:$0xff]
      %v3068 = vld [vmem:[%s4 + $0x64] sm:$0xff]
      %v3069 = vld [vmem:[%s4 + $0x6c] sm:$0xf]
      %v3070 = vld [vmem:[%s4 + $0x70] sm:$0xff]
      %v3071 = vld [vmem:[%s4 + $0x78] sm:$0xff]
      %v3072 = vld [vmem:[%s4 + $0x80] sm:$0xff]
      %v3073 = vld [vmem:[%s4 + $0x88] sm:$0xf]
      %v3074 = vld [vmem:[%s4 + $0x8c] sm:$0xff]
      %v3075 = vld [vmem:[%s4 + $0x94] sm:$0xff]
      %v3076 = vld [vmem:[%s4 + $0x9c] sm:$0xff]
      %v3077 = vld [vmem:[%s4 + $0xa4] sm:$0xf]
      %v3078 = vld [vmem:[%s4 + $0xa8] sm:$0xff]
      %v3079 = vld [vmem:[%s4 + $0xb0] sm:$0xff]
      %v3080 = vld [vmem:[%s4 + $0xb8] sm:$0xff]
      %v3081 = vld [vmem:[%s4 + $0xc0] sm:$0xf]
      %v3082 = vld [vmem:[%s4 + $0xc4] sm:$0xff]
      %v3083 = vld [vmem:[%s4 + $0xcc] sm:$0xff]
      %v3084 = vld [vmem:[%s4 + $0xd4] sm:$0xff]
      %v3085 = vld [vmem:[%s4 + $0xdc] sm:$0xf]
      %v3086 = vld [vmem:[%s4 + $0xe0] sm:$0xff]
      %v3087 = vld [vmem:[%s4 + $0xe8] sm:$0xff]
      %v3088 = vld [vmem:[%s4 + $0xf0] sm:$0xff]
      %v3089 = vld [vmem:[%s4 + $0xf8] sm:$0xf]
      %v3090 = vld [vmem:[%s4 + $0xfc] sm:$0xff]
      %v3091 = vld [vmem:[%s4 + $0x104] sm:$0xff]
      %v3092 = vld [vmem:[%s4 + $0x10c] sm:$0xff]
      %v3093 = vld [vmem:[%s4 + $0x114] sm:$0xf]
      %s3094 = scalar_lea.vmem %s18, 2
      %v3095 = vld [vmem:[%s3094] ss:$4 sm:$0x7f]
      %v3097 = vlaneseq
      %v3098 = vshrl.u32 %v3097, 7
      %v3099 = vsub.s32 0, %v3098
      %v3100 = vrot.slane %v3095, %v3099
      %v3101 = vlaneseq
      %v3102 = vshrl.u32 %v3101, 7
      %v3103 = vsub.s32 1, %v3102
      %v3104 = vrot.slane %v3095, %v3103
      %v3105 = vlaneseq
      %v3106 = vshrl.u32 %v3105, 7
      %v3107 = vsub.s32 2, %v3106
      %v3108 = vrot.slane %v3095, %v3107
      %v3109 = vlaneseq
      %v3110 = vshrl.u32 %v3109, 7
      %v3111 = vsub.s32 3, %v3110
      %v3112 = vrot.slane %v3095, %v3111
      %v3113 = vlaneseq
      %v3114 = vshrl.u32 %v3113, 7
      %v3115 = vsub.s32 4, %v3114
      %v3116 = vrot.slane %v3095, %v3115
      %v3117 = vlaneseq
      %v3118 = vshrl.u32 %v3117, 7
      %v3119 = vsub.s32 5, %v3118
      %v3120 = vrot.slane %v3095, %v3119
      %v3121 = vlaneseq
      %v3122 = vshrl.u32 %v3121, 7
      %v3123 = vsub.s32 6, %v3122
      %v3124 = vrot.slane %v3095, %v3123
      %v3172 = vunpack.c.l.b16 %v3054
      %v3173 = vunpack.c.h.b16 %v3054
      %v3174 = vunpack.c.l.b16 %v3055
      %v3175 = vunpack.c.h.b16 %v3055
      %v3176 = vunpack.c.l.b16 %v3056
      %v3177 = vunpack.c.h.b16 %v3056
      %v3178 = vunpack.c.l.b16 %v3057
      %v3179 = vunpack.c.l.b16 %v3058
      %v3180 = vunpack.c.h.b16 %v3058
      %v3181 = vunpack.c.l.b16 %v3059
      %v3182 = vunpack.c.h.b16 %v3059
      %v3183 = vunpack.c.l.b16 %v3060
      %v3184 = vunpack.c.h.b16 %v3060
      %v3185 = vunpack.c.l.b16 %v3061
      %v3186 = vunpack.c.l.b16 %v3062
      %v3187 = vunpack.c.h.b16 %v3062
      %v3188 = vunpack.c.l.b16 %v3063
      %v3189 = vunpack.c.h.b16 %v3063
      %v3190 = vunpack.c.l.b16 %v3064
      %v3191 = vunpack.c.h.b16 %v3064
      %v3192 = vunpack.c.l.b16 %v3065
      %v3193 = vunpack.c.l.b16 %v3066
      %v3194 = vunpack.c.h.b16 %v3066
      %v3195 = vunpack.c.l.b16 %v3067
      %v3196 = vunpack.c.h.b16 %v3067
      %v3197 = vunpack.c.l.b16 %v3068
      %v3198 = vunpack.c.h.b16 %v3068
      %v3199 = vunpack.c.l.b16 %v3069
      %v3200 = vunpack.c.l.b16 %v3070
      %v3201 = vunpack.c.h.b16 %v3070
      %v3202 = vunpack.c.l.b16 %v3071
      %v3203 = vunpack.c.h.b16 %v3071
      %v3204 = vunpack.c.l.b16 %v3072
      %v3205 = vunpack.c.h.b16 %v3072
      %v3206 = vunpack.c.l.b16 %v3073
      %v3207 = vunpack.c.l.b16 %v3074
      %v3208 = vunpack.c.h.b16 %v3074
      %v3209 = vunpack.c.l.b16 %v3075
      %v3210 = vunpack.c.h.b16 %v3075
      %v3211 = vunpack.c.l.b16 %v3076
      %v3212 = vunpack.c.h.b16 %v3076
      %v3213 = vunpack.c.l.b16 %v3077
      %v3214 = vunpack.c.l.b16 %v3078
      %v3215 = vunpack.c.h.b16 %v3078
      %v3216 = vunpack.c.l.b16 %v3079
      %v3217 = vunpack.c.h.b16 %v3079
      %v3218 = vunpack.c.l.b16 %v3080
      %v3219 = vunpack.c.h.b16 %v3080
      %v3220 = vunpack.c.l.b16 %v3081
      %v3221 = vunpack.c.l.b16 %v3082
      %v3222 = vunpack.c.h.b16 %v3082
      %v3223 = vunpack.c.l.b16 %v3083
      %v3224 = vunpack.c.h.b16 %v3083
      %v3225 = vunpack.c.l.b16 %v3084
      %v3226 = vunpack.c.h.b16 %v3084
      %v3227 = vunpack.c.l.b16 %v3085
      %v3228 = vunpack.c.l.b16 %v3086
      %v3229 = vunpack.c.h.b16 %v3086
      %v3230 = vunpack.c.l.b16 %v3087
      %v3231 = vunpack.c.h.b16 %v3087
      %v3232 = vunpack.c.l.b16 %v3088
      %v3233 = vunpack.c.h.b16 %v3088
      %v3234 = vunpack.c.l.b16 %v3089
      %v3235 = vunpack.c.l.b16 %v3090
      %v3236 = vunpack.c.h.b16 %v3090
      %v3237 = vunpack.c.l.b16 %v3091
      %v3238 = vunpack.c.h.b16 %v3091
      %v3239 = vunpack.c.l.b16 %v3092
      %v3240 = vunpack.c.h.b16 %v3092
      %v3241 = vunpack.c.l.b16 %v3093
      %v3242 = vpack.c.b16 %v3179, %v3172
      %v3243 = vpack.c.b16 %v3180, %v3173
      %v3244 = vpack.c.b16 %v3181, %v3174
      %v3245 = vpack.c.b16 %v3182, %v3175
      %v3246 = vpack.c.b16 %v3183, %v3176
      %v3247 = vpack.c.b16 %v3184, %v3177
      %v3248 = vpack.c.b16 %v3185, %v3178
      %v3249 = vpack.c.b16 %v3193, %v3186
      %v3250 = vpack.c.b16 %v3194, %v3187
      %v3251 = vpack.c.b16 %v3195, %v3188
      %v3252 = vpack.c.b16 %v3196, %v3189
      %v3253 = vpack.c.b16 %v3197, %v3190
      %v3254 = vpack.c.b16 %v3198, %v3191
      %v3255 = vpack.c.b16 %v3199, %v3192
      %v3256 = vpack.c.b16 %v3207, %v3200
      %v3257 = vpack.c.b16 %v3208, %v3201
      %v3258 = vpack.c.b16 %v3209, %v3202
      %v3259 = vpack.c.b16 %v3210, %v3203
      %v3260 = vpack.c.b16 %v3211, %v3204
      %v3261 = vpack.c.b16 %v3212, %v3205
      %v3262 = vpack.c.b16 %v3213, %v3206
      %v3263 = vpack.c.b16 %v3221, %v3214
      %v3264 = vpack.c.b16 %v3222, %v3215
      %v3265 = vpack.c.b16 %v3223, %v3216
      %v3266 = vpack.c.b16 %v3224, %v3217
      %v3267 = vpack.c.b16 %v3225, %v3218
      %v3268 = vpack.c.b16 %v3226, %v3219
      %v3269 = vpack.c.b16 %v3227, %v3220
      %v3270 = vpack.c.b16 %v3235, %v3228
      %v3271 = vpack.c.b16 %v3236, %v3229
      %v3272 = vpack.c.b16 %v3237, %v3230
      %v3273 = vpack.c.b16 %v3238, %v3231
      %v3274 = vpack.c.b16 %v3239, %v3232
      %v3275 = vpack.c.b16 %v3240, %v3233
      %v3276 = vpack.c.b16 %v3241, %v3234
      %3312 = vmatprep.subr.bf16.mxu0 0
      %3313 = vmatpush1.bf16.msra.mxu0 0
      %3314 = vmatprep.subr.bf16.mxu0 0
      %3315 = vmatpush1.bf16.msra.mxu0 0
      %3316 = vmatprep.subr.bf16.mxu0 0
      %3317 = vmatpush1.bf16.msra.mxu0 0
      %3318 = vmatprep.subr.bf16.mxu0 %v3271
      %3319 = vmatpush1.bf16.msra.mxu0 %v3270
      %3320 = vmatprep.subr.bf16.mxu0 %v3264
      %3321 = vmatpush1.bf16.msra.mxu0 %v3263
      %3322 = vmatprep.subr.bf16.mxu0 %v3257
      %3323 = vmatpush1.bf16.msra.mxu0 %v3256
      %3324 = vmatprep.subr.bf16.mxu0 %v3250
      %3325 = vmatpush1.bf16.msra.mxu0 %v3249
      %3326 = vmatprep.subr.bf16.mxu0 %v3243
      %3327 = vmatpush1.bf16.msra.mxu0 %v3242
      %3328 = vmatprep.subr.bf16.mxu0 0
      %3329 = vmatpush2.bf16.msra.mxu0 0
      %3330 = vmatprep.subr.bf16.mxu0 0
      %3331 = vmatpush2.bf16.msra.mxu0 0
      %3332 = vmatprep.subr.bf16.mxu0 0
      %3333 = vmatpush2.bf16.msra.mxu0 0
      %3334 = vmatprep.subr.bf16.mxu0 0
      %3335 = vmatpush2.bf16.msra.mxu0 0
      %3336 = vmatprep.subr.bf16.mxu0 0
      %3337 = vmatpush2.bf16.msra.mxu0 0
      %3338 = vmatprep.subr.bf16.mxu0 0
      %3339 = vmatpush2.bf16.msra.mxu0 0
      %3340 = vmatprep.subr.bf16.mxu0 0
      %3341 = vmatpush2.bf16.msra.mxu0 0
      %3342 = vmatprep.subr.bf16.mxu0 0
      %3343 = vmatpush2.bf16.msra.mxu0 0
      %3344 = vmatprep.mubr.bf16.mxu0 0
      %3345 = vmatmul.mubr.bf16.gmra.mxu0 %v1269
      %v3346 = vpop.f32.mrf.mxu0
      %v3347 = vadd.f32 %v3100, %v3346
      %v3348 = vpop.f32.mrf.mxu0
      %v3349 = vadd.f32 %v3104, %v3348
      %v3350 = vpop.f32.mrf.mxu0
      %v3351 = vadd.f32 %v3100, %v3350
      %v3352 = vpop.f32.mrf.mxu0
      %v3353 = vadd.f32 %v3104, %v3352
      %3354 = vmatprep.mubr.bf16.mxu0 0
      %3355 = vmatmul.mubr.bf16.gmra.mxu0 %v1272
      %v3356 = vpop.f32.mrf.mxu0
      %v3357 = vadd.f32 %v3100, %v3356
      %v3358 = vpop.f32.mrf.mxu0
      %v3359 = vadd.f32 %v3104, %v3358
      %v3360 = vpop.f32.mrf.mxu0
      %v3361 = vadd.f32 %v3100, %v3360
      %v3362 = vpop.f32.mrf.mxu0
      %v3363 = vadd.f32 %v3104, %v3362
      %3364 = vmatprep.mubr.bf16.mxu0 0
      %3365 = vmatmul.mubr.bf16.gmra.mxu0 %v1275
      %v3366 = vpop.f32.mrf.mxu0
      %v3367 = vadd.f32 %v3100, %v3366
      %v3368 = vpop.f32.mrf.mxu0
      %v3369 = vadd.f32 %v3104, %v3368
      %v3370 = vpop.f32.mrf.mxu0
      %v3371 = vadd.f32 %v3100, %v3370
      %v3372 = vpop.f32.mrf.mxu0
      %v3373 = vadd.f32 %v3104, %v3372
      %3374 = vmatprep.mubr.bf16.mxu0 0
      %3375 = vmatmul.mubr.bf16.gmra.mxu0 %v1278
      %v3376 = vpop.f32.mrf.mxu0
      %v3377 = vadd.f32 %v3100, %v3376
      %v3378 = vpop.f32.mrf.mxu0
      %v3379 = vadd.f32 %v3104, %v3378
      %v3380 = vpop.f32.mrf.mxu0
      %v3381 = vadd.f32 %v3100, %v3380
      %v3382 = vpop.f32.mrf.mxu0
      %v3383 = vadd.f32 %v3104, %v3382
      %3384 = vmatprep.mubr.bf16.mxu0 0
      %3385 = vmatmul.mubr.bf16.gmra.mxu0 %v1281
      %v3386 = vpop.f32.mrf.mxu0
      %v3387 = vadd.f32 %v3100, %v3386
      %v3388 = vpop.f32.mrf.mxu0
      %v3389 = vadd.f32 %v3104, %v3388
      %v3390 = vpop.f32.mrf.mxu0
      %v3391 = vadd.f32 %v3100, %v3390
      %v3392 = vpop.f32.mrf.mxu0
      %v3393 = vadd.f32 %v3104, %v3392
      %3394 = vmatprep.mubr.bf16.mxu0 0
      %3395 = vmatmul.mubr.bf16.gmra.mxu0 %v1284
      %v3396 = vpop.f32.mrf.mxu0
      %v3397 = vadd.f32 %v3100, %v3396
      %v3398 = vpop.f32.mrf.mxu0
      %v3399 = vadd.f32 %v3104, %v3398
      %v3400 = vpop.f32.mrf.mxu0
      %v3401 = vadd.f32 %v3100, %v3400
      %v3402 = vpop.f32.mrf.mxu0
      %v3403 = vadd.f32 %v3104, %v3402
      %3404 = vmatprep.mubr.bf16.mxu0 0
      %3405 = vmatmul.mubr.bf16.gmra.mxu0 %v1287
      %v3406 = vpop.f32.mrf.mxu0
      %v3407 = vadd.f32 %v3100, %v3406
      %v3408 = vpop.f32.mrf.mxu0
      %v3409 = vadd.f32 %v3104, %v3408
      %v3410 = vpop.f32.mrf.mxu0
      %v3411 = vadd.f32 %v3100, %v3410
      %v3412 = vpop.f32.mrf.mxu0
      %v3413 = vadd.f32 %v3104, %v3412
      %3414 = vmatprep.mubr.bf16.mxu0 0
      %3415 = vmatmul.mubr.bf16.gmra.mxu0 %v1290
      %v3416 = vpop.f32.mrf.mxu0
      %v3417 = vadd.f32 %v3100, %v3416
      %v3418 = vpop.f32.mrf.mxu0
      %v3419 = vadd.f32 %v3104, %v3418
      %v3420 = vpop.f32.mrf.mxu0
      %v3421 = vadd.f32 %v3100, %v3420
      %v3422 = vpop.f32.mrf.mxu0
      %v3423 = vadd.f32 %v3104, %v3422
      %3424 = vmatprep.mubr.bf16.mxu0 0
      %3425 = vmatmul.mubr.bf16.gmra.mxu0 %v1293
      %v3426 = vpop.f32.mrf.mxu0
      %v3427 = vadd.f32 %v3100, %v3426
      %v3428 = vpop.f32.mrf.mxu0
      %v3429 = vadd.f32 %v3104, %v3428
      %v3430 = vpop.f32.mrf.mxu0
      %v3431 = vadd.f32 %v3100, %v3430
      %v3432 = vpop.f32.mrf.mxu0
      %v3433 = vadd.f32 %v3104, %v3432
      %3434 = vmatprep.mubr.bf16.mxu0 0
      %3435 = vmatmul.mubr.bf16.gmra.mxu0 %v1296
      %v3436 = vpop.f32.mrf.mxu0
      %v3437 = vadd.f32 %v3100, %v3436
      %v3438 = vpop.f32.mrf.mxu0
      %v3439 = vadd.f32 %v3104, %v3438
      %v3440 = vpop.f32.mrf.mxu0
      %v3441 = vadd.f32 %v3100, %v3440
      %v3442 = vpop.f32.mrf.mxu0
      %v3443 = vadd.f32 %v3104, %v3442
      %3444 = vmatprep.mubr.bf16.mxu0 0
      %3445 = vmatmul.mubr.bf16.gmra.mxu0 %v1299
      %v3446 = vpop.f32.mrf.mxu0
      %v3447 = vadd.f32 %v3100, %v3446
      %v3448 = vpop.f32.mrf.mxu0
      %v3449 = vadd.f32 %v3104, %v3448
      %v3450 = vpop.f32.mrf.mxu0
      %v3451 = vadd.f32 %v3100, %v3450
      %v3452 = vpop.f32.mrf.mxu0
      %v3453 = vadd.f32 %v3104, %v3452
      %3454 = vmatprep.mubr.bf16.mxu0 0
      %3455 = vmatmul.mubr.bf16.gmra.mxu0 %v1302
      %v3456 = vpop.f32.mrf.mxu0
      %v3457 = vadd.f32 %v3100, %v3456
      %v3458 = vpop.f32.mrf.mxu0
      %v3459 = vadd.f32 %v3104, %v3458
      %v3460 = vpop.f32.mrf.mxu0
      %v3461 = vadd.f32 %v3100, %v3460
      %v3462 = vpop.f32.mrf.mxu0
      %v3463 = vadd.f32 %v3104, %v3462
      %3464 = vmatprep.mubr.bf16.mxu0 0
      %3465 = vmatmul.mubr.bf16.gmra.mxu0 %v1305
      %v3466 = vpop.f32.mrf.mxu0
      %v3467 = vadd.f32 %v3100, %v3466
      %v3468 = vpop.f32.mrf.mxu0
      %v3469 = vadd.f32 %v3104, %v3468
      %v3470 = vpop.f32.mrf.mxu0
      %v3471 = vadd.f32 %v3100, %v3470
      %v3472 = vpop.f32.mrf.mxu0
      %v3473 = vadd.f32 %v3104, %v3472
      %3474 = vmatprep.mubr.bf16.mxu0 0
      %3475 = vmatmul.mubr.bf16.gmra.mxu0 %v1308
      %v3476 = vpop.f32.mrf.mxu0
      %v3477 = vadd.f32 %v3100, %v3476
      %v3478 = vpop.f32.mrf.mxu0
      %v3479 = vadd.f32 %v3104, %v3478
      %v3480 = vpop.f32.mrf.mxu0
      %v3481 = vadd.f32 %v3100, %v3480
      %v3482 = vpop.f32.mrf.mxu0
      %v3483 = vadd.f32 %v3104, %v3482
      %3484 = vmatprep.mubr.bf16.mxu0 0
      %3485 = vmatmul.mubr.bf16.gmra.mxu0 %v1311
      %v3486 = vpop.f32.mrf.mxu0
      %v3487 = vadd.f32 %v3100, %v3486
      %v3488 = vpop.f32.mrf.mxu0
      %v3489 = vadd.f32 %v3104, %v3488
      %v3490 = vpop.f32.mrf.mxu0
      %v3491 = vadd.f32 %v3100, %v3490
      %v3492 = vpop.f32.mrf.mxu0
      %v3493 = vadd.f32 %v3104, %v3492
      %3494 = vmatprep.mubr.bf16.mxu0 0
      %3495 = vmatmul.mubr.bf16.gmra.mxu0 %v1314
      %v3496 = vpop.f32.mrf.mxu0
      %v3497 = vadd.f32 %v3100, %v3496
      %v3498 = vpop.f32.mrf.mxu0
      %v3499 = vadd.f32 %v3104, %v3498
      %v3500 = vpop.f32.mrf.mxu0
      %v3501 = vadd.f32 %v3100, %v3500
      %v3502 = vpop.f32.mrf.mxu0
      %v3503 = vadd.f32 %v3104, %v3502
      %3504 = vdwg.mxu0
      %3505 = vmatprep.subr.bf16.mxu0 0
      %3506 = vmatpush1.bf16.msra.mxu0 0
      %3507 = vmatprep.subr.bf16.mxu0 0
      %3508 = vmatpush1.bf16.msra.mxu0 0
      %3509 = vmatprep.subr.bf16.mxu0 0
      %3510 = vmatpush1.bf16.msra.mxu0 0
      %3511 = vmatprep.subr.bf16.mxu0 %v3273
      %3512 = vmatpush1.bf16.msra.mxu0 %v3272
      %3513 = vmatprep.subr.bf16.mxu0 %v3266
      %3514 = vmatpush1.bf16.msra.mxu0 %v3265
      %3515 = vmatprep.subr.bf16.mxu0 %v3259
      %3516 = vmatpush1.bf16.msra.mxu0 %v3258
      %3517 = vmatprep.subr.bf16.mxu0 %v3252
      %3518 = vmatpush1.bf16.msra.mxu0 %v3251
      %3519 = vmatprep.subr.bf16.mxu0 %v3245
      %3520 = vmatpush1.bf16.msra.mxu0 %v3244
      %3521 = vmatprep.subr.bf16.mxu0 0
      %3522 = vmatpush2.bf16.msra.mxu0 0
      %3523 = vmatprep.subr.bf16.mxu0 0
      %3524 = vmatpush2.bf16.msra.mxu0 0
      %3525 = vmatprep.subr.bf16.mxu0 0
      %3526 = vmatpush2.bf16.msra.mxu0 0
      %3527 = vmatprep.subr.bf16.mxu0 0
      %3528 = vmatpush2.bf16.msra.mxu0 0
      %3529 = vmatprep.subr.bf16.mxu0 0
      %3530 = vmatpush2.bf16.msra.mxu0 0
      %3531 = vmatprep.subr.bf16.mxu0 0
      %3532 = vmatpush2.bf16.msra.mxu0 0
      %3533 = vmatprep.subr.bf16.mxu0 0
      %3534 = vmatpush2.bf16.msra.mxu0 0
      %3535 = vmatprep.subr.bf16.mxu0 0
      %3536 = vmatpush2.bf16.msra.mxu0 0
      %3537 = vmatprep.mubr.bf16.mxu0 0
      %3538 = vmatmul.mubr.bf16.gmra.mxu0 %v1269
      %v3539 = vpop.f32.mrf.mxu0
      %v3540 = vadd.f32 %v3108, %v3539
      %v3541 = vpop.f32.mrf.mxu0
      %v3542 = vadd.f32 %v3112, %v3541
      %v3543 = vpop.f32.mrf.mxu0
      %v3544 = vadd.f32 %v3108, %v3543
      %v3545 = vpop.f32.mrf.mxu0
      %v3546 = vadd.f32 %v3112, %v3545
      %3547 = vmatprep.mubr.bf16.mxu0 0
      %3548 = vmatmul.mubr.bf16.gmra.mxu0 %v1272
      %v3549 = vpop.f32.mrf.mxu0
      %v3550 = vadd.f32 %v3108, %v3549
      %v3551 = vpop.f32.mrf.mxu0
      %v3552 = vadd.f32 %v3112, %v3551
      %v3553 = vpop.f32.mrf.mxu0
      %v3554 = vadd.f32 %v3108, %v3553
      %v3555 = vpop.f32.mrf.mxu0
      %v3556 = vadd.f32 %v3112, %v3555
      %3557 = vmatprep.mubr.bf16.mxu0 0
      %3558 = vmatmul.mubr.bf16.gmra.mxu0 %v1275
      %v3559 = vpop.f32.mrf.mxu0
      %v3560 = vadd.f32 %v3108, %v3559
      %v3561 = vpop.f32.mrf.mxu0
      %v3562 = vadd.f32 %v3112, %v3561
      %v3563 = vpop.f32.mrf.mxu0
      %v3564 = vadd.f32 %v3108, %v3563
      %v3565 = vpop.f32.mrf.mxu0
      %v3566 = vadd.f32 %v3112, %v3565
      %3567 = vmatprep.mubr.bf16.mxu0 0
      %3568 = vmatmul.mubr.bf16.gmra.mxu0 %v1278
      %v3569 = vpop.f32.mrf.mxu0
      %v3570 = vadd.f32 %v3108, %v3569
      %v3571 = vpop.f32.mrf.mxu0
      %v3572 = vadd.f32 %v3112, %v3571
      %v3573 = vpop.f32.mrf.mxu0
      %v3574 = vadd.f32 %v3108, %v3573
      %v3575 = vpop.f32.mrf.mxu0
      %v3576 = vadd.f32 %v3112, %v3575
      %3577 = vmatprep.mubr.bf16.mxu0 0
      %3578 = vmatmul.mubr.bf16.gmra.mxu0 %v1281
      %v3579 = vpop.f32.mrf.mxu0
      %v3580 = vadd.f32 %v3108, %v3579
      %v3581 = vpop.f32.mrf.mxu0
      %v3582 = vadd.f32 %v3112, %v3581
      %v3583 = vpop.f32.mrf.mxu0
      %v3584 = vadd.f32 %v3108, %v3583
      %v3585 = vpop.f32.mrf.mxu0
      %v3586 = vadd.f32 %v3112, %v3585
      %3587 = vmatprep.mubr.bf16.mxu0 0
      %3588 = vmatmul.mubr.bf16.gmra.mxu0 %v1284
      %v3589 = vpop.f32.mrf.mxu0
      %v3590 = vadd.f32 %v3108, %v3589
      %v3591 = vpop.f32.mrf.mxu0
      %v3592 = vadd.f32 %v3112, %v3591
      %v3593 = vpop.f32.mrf.mxu0
      %v3594 = vadd.f32 %v3108, %v3593
      %v3595 = vpop.f32.mrf.mxu0
      %v3596 = vadd.f32 %v3112, %v3595
      %3597 = vmatprep.mubr.bf16.mxu0 0
      %3598 = vmatmul.mubr.bf16.gmra.mxu0 %v1287
      %v3599 = vpop.f32.mrf.mxu0
      %v3600 = vadd.f32 %v3108, %v3599
      %v3601 = vpop.f32.mrf.mxu0
      %v3602 = vadd.f32 %v3112, %v3601
      %v3603 = vpop.f32.mrf.mxu0
      %v3604 = vadd.f32 %v3108, %v3603
      %v3605 = vpop.f32.mrf.mxu0
      %v3606 = vadd.f32 %v3112, %v3605
      %3607 = vmatprep.mubr.bf16.mxu0 0
      %3608 = vmatmul.mubr.bf16.gmra.mxu0 %v1290
      %v3609 = vpop.f32.mrf.mxu0
      %v3610 = vadd.f32 %v3108, %v3609
      %v3611 = vpop.f32.mrf.mxu0
      %v3612 = vadd.f32 %v3112, %v3611
      %v3613 = vpop.f32.mrf.mxu0
      %v3614 = vadd.f32 %v3108, %v3613
      %v3615 = vpop.f32.mrf.mxu0
      %v3616 = vadd.f32 %v3112, %v3615
      %3617 = vmatprep.mubr.bf16.mxu0 0
      %3618 = vmatmul.mubr.bf16.gmra.mxu0 %v1293
      %v3619 = vpop.f32.mrf.mxu0
      %v3620 = vadd.f32 %v3108, %v3619
      %v3621 = vpop.f32.mrf.mxu0
      %v3622 = vadd.f32 %v3112, %v3621
      %v3623 = vpop.f32.mrf.mxu0
      %v3624 = vadd.f32 %v3108, %v3623
      %v3625 = vpop.f32.mrf.mxu0
      %v3626 = vadd.f32 %v3112, %v3625
      %3627 = vmatprep.mubr.bf16.mxu0 0
      %3628 = vmatmul.mubr.bf16.gmra.mxu0 %v1296
      %v3629 = vpop.f32.mrf.mxu0
      %v3630 = vadd.f32 %v3108, %v3629
      %v3631 = vpop.f32.mrf.mxu0
      %v3632 = vadd.f32 %v3112, %v3631
      %v3633 = vpop.f32.mrf.mxu0
      %v3634 = vadd.f32 %v3108, %v3633
      %v3635 = vpop.f32.mrf.mxu0
      %v3636 = vadd.f32 %v3112, %v3635
      %3637 = vmatprep.mubr.bf16.mxu0 0
      %3638 = vmatmul.mubr.bf16.gmra.mxu0 %v1299
      %v3639 = vpop.f32.mrf.mxu0
      %v3640 = vadd.f32 %v3108, %v3639
      %v3641 = vpop.f32.mrf.mxu0
      %v3642 = vadd.f32 %v3112, %v3641
      %v3643 = vpop.f32.mrf.mxu0
      %v3644 = vadd.f32 %v3108, %v3643
      %v3645 = vpop.f32.mrf.mxu0
      %v3646 = vadd.f32 %v3112, %v3645
      %3647 = vmatprep.mubr.bf16.mxu0 0
      %3648 = vmatmul.mubr.bf16.gmra.mxu0 %v1302
      %v3649 = vpop.f32.mrf.mxu0
      %v3650 = vadd.f32 %v3108, %v3649
      %v3651 = vpop.f32.mrf.mxu0
      %v3652 = vadd.f32 %v3112, %v3651
      %v3653 = vpop.f32.mrf.mxu0
      %v3654 = vadd.f32 %v3108, %v3653
      %v3655 = vpop.f32.mrf.mxu0
      %v3656 = vadd.f32 %v3112, %v3655
      %3657 = vmatprep.mubr.bf16.mxu0 0
      %3658 = vmatmul.mubr.bf16.gmra.mxu0 %v1305
      %v3659 = vpop.f32.mrf.mxu0
      %v3660 = vadd.f32 %v3108, %v3659
      %v3661 = vpop.f32.mrf.mxu0
      %v3662 = vadd.f32 %v3112, %v3661
      %v3663 = vpop.f32.mrf.mxu0
      %v3664 = vadd.f32 %v3108, %v3663
      %v3665 = vpop.f32.mrf.mxu0
      %v3666 = vadd.f32 %v3112, %v3665
      %3667 = vmatprep.mubr.bf16.mxu0 0
      %3668 = vmatmul.mubr.bf16.gmra.mxu0 %v1308
      %v3669 = vpop.f32.mrf.mxu0
      %v3670 = vadd.f32 %v3108, %v3669
      %v3671 = vpop.f32.mrf.mxu0
      %v3672 = vadd.f32 %v3112, %v3671
      %v3673 = vpop.f32.mrf.mxu0
      %v3674 = vadd.f32 %v3108, %v3673
      %v3675 = vpop.f32.mrf.mxu0
      %v3676 = vadd.f32 %v3112, %v3675
      %3677 = vmatprep.mubr.bf16.mxu0 0
      %3678 = vmatmul.mubr.bf16.gmra.mxu0 %v1311
      %v3679 = vpop.f32.mrf.mxu0
      %v3680 = vadd.f32 %v3108, %v3679
      %v3681 = vpop.f32.mrf.mxu0
      %v3682 = vadd.f32 %v3112, %v3681
      %v3683 = vpop.f32.mrf.mxu0
      %v3684 = vadd.f32 %v3108, %v3683
      %v3685 = vpop.f32.mrf.mxu0
      %v3686 = vadd.f32 %v3112, %v3685
      %3687 = vmatprep.mubr.bf16.mxu0 0
      %3688 = vmatmul.mubr.bf16.gmra.mxu0 %v1314
      %v3689 = vpop.f32.mrf.mxu0
      %v3690 = vadd.f32 %v3108, %v3689
      %v3691 = vpop.f32.mrf.mxu0
      %v3692 = vadd.f32 %v3112, %v3691
      %v3693 = vpop.f32.mrf.mxu0
      %v3694 = vadd.f32 %v3108, %v3693
      %v3695 = vpop.f32.mrf.mxu0
      %v3696 = vadd.f32 %v3112, %v3695
      %3697 = vdwg.mxu0
      %3698 = vmatprep.subr.bf16.mxu0 0
      %3699 = vmatpush1.bf16.msra.mxu0 0
      %3700 = vmatprep.subr.bf16.mxu0 0
      %3701 = vmatpush1.bf16.msra.mxu0 0
      %3702 = vmatprep.subr.bf16.mxu0 0
      %3703 = vmatpush1.bf16.msra.mxu0 0
      %3704 = vmatprep.subr.bf16.mxu0 %v3275
      %3705 = vmatpush1.bf16.msra.mxu0 %v3274
      %3706 = vmatprep.subr.bf16.mxu0 %v3268
      %3707 = vmatpush1.bf16.msra.mxu0 %v3267
      %3708 = vmatprep.subr.bf16.mxu0 %v3261
      %3709 = vmatpush1.bf16.msra.mxu0 %v3260
      %3710 = vmatprep.subr.bf16.mxu0 %v3254
      %3711 = vmatpush1.bf16.msra.mxu0 %v3253
      %3712 = vmatprep.subr.bf16.mxu0 %v3247
      %3713 = vmatpush1.bf16.msra.mxu0 %v3246
      %3714 = vmatprep.subr.bf16.mxu0 0
      %3715 = vmatpush2.bf16.msra.mxu0 0
      %3716 = vmatprep.subr.bf16.mxu0 0
      %3717 = vmatpush2.bf16.msra.mxu0 0
      %3718 = vmatprep.subr.bf16.mxu0 0
      %3719 = vmatpush2.bf16.msra.mxu0 0
      %3720 = vmatprep.subr.bf16.mxu0 0
      %3721 = vmatpush2.bf16.msra.mxu0 0
      %3722 = vmatprep.subr.bf16.mxu0 0
      %3723 = vmatpush2.bf16.msra.mxu0 0
      %3724 = vmatprep.subr.bf16.mxu0 0
      %3725 = vmatpush2.bf16.msra.mxu0 0
      %3726 = vmatprep.subr.bf16.mxu0 0
      %3727 = vmatpush2.bf16.msra.mxu0 0
      %3728 = vmatprep.subr.bf16.mxu0 0
      %3729 = vmatpush2.bf16.msra.mxu0 0
      %3730 = vmatprep.mubr.bf16.mxu0 0
      %3731 = vmatmul.mubr.bf16.gmra.mxu0 %v1269
      %v3732 = vpop.f32.mrf.mxu0
      %v3733 = vadd.f32 %v3116, %v3732
      %v3734 = vpop.f32.mrf.mxu0
      %v3735 = vadd.f32 %v3120, %v3734
      %v3736 = vpop.f32.mrf.mxu0
      %v3737 = vadd.f32 %v3116, %v3736
      %v3738 = vpop.f32.mrf.mxu0
      %v3739 = vadd.f32 %v3120, %v3738
      %3740 = vmatprep.mubr.bf16.mxu0 0
      %3741 = vmatmul.mubr.bf16.gmra.mxu0 %v1272
      %v3742 = vpop.f32.mrf.mxu0
      %v3743 = vadd.f32 %v3116, %v3742
      %v3744 = vpop.f32.mrf.mxu0
      %v3745 = vadd.f32 %v3120, %v3744
      %v3746 = vpop.f32.mrf.mxu0
      %v3747 = vadd.f32 %v3116, %v3746
      %v3748 = vpop.f32.mrf.mxu0
      %v3749 = vadd.f32 %v3120, %v3748
      %3750 = vmatprep.mubr.bf16.mxu0 0
      %3751 = vmatmul.mubr.bf16.gmra.mxu0 %v1275
      %v3752 = vpop.f32.mrf.mxu0
      %v3753 = vadd.f32 %v3116, %v3752
      %v3754 = vpop.f32.mrf.mxu0
      %v3755 = vadd.f32 %v3120, %v3754
      %v3756 = vpop.f32.mrf.mxu0
      %v3757 = vadd.f32 %v3116, %v3756
      %v3758 = vpop.f32.mrf.mxu0
      %v3759 = vadd.f32 %v3120, %v3758
      %3760 = vmatprep.mubr.bf16.mxu0 0
      %3761 = vmatmul.mubr.bf16.gmra.mxu0 %v1278
      %v3762 = vpop.f32.mrf.mxu0
      %v3763 = vadd.f32 %v3116, %v3762
      %v3764 = vpop.f32.mrf.mxu0
      %v3765 = vadd.f32 %v3120, %v3764
      %v3766 = vpop.f32.mrf.mxu0
      %v3767 = vadd.f32 %v3116, %v3766
      %v3768 = vpop.f32.mrf.mxu0
      %v3769 = vadd.f32 %v3120, %v3768
      %3770 = vmatprep.mubr.bf16.mxu0 0
      %3771 = vmatmul.mubr.bf16.gmra.mxu0 %v1281
      %v3772 = vpop.f32.mrf.mxu0
      %v3773 = vadd.f32 %v3116, %v3772
      %v3774 = vpop.f32.mrf.mxu0
      %v3775 = vadd.f32 %v3120, %v3774
      %v3776 = vpop.f32.mrf.mxu0
      %v3777 = vadd.f32 %v3116, %v3776
      %v3778 = vpop.f32.mrf.mxu0
      %v3779 = vadd.f32 %v3120, %v3778
      %3780 = vmatprep.mubr.bf16.mxu0 0
      %3781 = vmatmul.mubr.bf16.gmra.mxu0 %v1284
      %v3782 = vpop.f32.mrf.mxu0
      %v3783 = vadd.f32 %v3116, %v3782
      %v3784 = vpop.f32.mrf.mxu0
      %v3785 = vadd.f32 %v3120, %v3784
      %v3786 = vpop.f32.mrf.mxu0
      %v3787 = vadd.f32 %v3116, %v3786
      %v3788 = vpop.f32.mrf.mxu0
      %v3789 = vadd.f32 %v3120, %v3788
      %3790 = vmatprep.mubr.bf16.mxu0 0
      %3791 = vmatmul.mubr.bf16.gmra.mxu0 %v1287
      %v3792 = vpop.f32.mrf.mxu0
      %v3793 = vadd.f32 %v3116, %v3792
      %v3794 = vpop.f32.mrf.mxu0
      %v3795 = vadd.f32 %v3120, %v3794
      %v3796 = vpop.f32.mrf.mxu0
      %v3797 = vadd.f32 %v3116, %v3796
      %v3798 = vpop.f32.mrf.mxu0
      %v3799 = vadd.f32 %v3120, %v3798
      %3800 = vmatprep.mubr.bf16.mxu0 0
      %3801 = vmatmul.mubr.bf16.gmra.mxu0 %v1290
      %v3802 = vpop.f32.mrf.mxu0
      %v3803 = vadd.f32 %v3116, %v3802
      %v3804 = vpop.f32.mrf.mxu0
      %v3805 = vadd.f32 %v3120, %v3804
      %v3806 = vpop.f32.mrf.mxu0
      %v3807 = vadd.f32 %v3116, %v3806
      %v3808 = vpop.f32.mrf.mxu0
      %v3809 = vadd.f32 %v3120, %v3808
      %3810 = vmatprep.mubr.bf16.mxu0 0
      %3811 = vmatmul.mubr.bf16.gmra.mxu0 %v1293
      %v3812 = vpop.f32.mrf.mxu0
      %v3813 = vadd.f32 %v3116, %v3812
      %v3814 = vpop.f32.mrf.mxu0
      %v3815 = vadd.f32 %v3120, %v3814
      %v3816 = vpop.f32.mrf.mxu0
      %v3817 = vadd.f32 %v3116, %v3816
      %v3818 = vpop.f32.mrf.mxu0
      %v3819 = vadd.f32 %v3120, %v3818
      %3820 = vmatprep.mubr.bf16.mxu0 0
      %3821 = vmatmul.mubr.bf16.gmra.mxu0 %v1296
      %v3822 = vpop.f32.mrf.mxu0
      %v3823 = vadd.f32 %v3116, %v3822
      %v3824 = vpop.f32.mrf.mxu0
      %v3825 = vadd.f32 %v3120, %v3824
      %v3826 = vpop.f32.mrf.mxu0
      %v3827 = vadd.f32 %v3116, %v3826
      %v3828 = vpop.f32.mrf.mxu0
      %v3829 = vadd.f32 %v3120, %v3828
      %3830 = vmatprep.mubr.bf16.mxu0 0
      %3831 = vmatmul.mubr.bf16.gmra.mxu0 %v1299
      %v3832 = vpop.f32.mrf.mxu0
      %v3833 = vadd.f32 %v3116, %v3832
      %v3834 = vpop.f32.mrf.mxu0
      %v3835 = vadd.f32 %v3120, %v3834
      %v3836 = vpop.f32.mrf.mxu0
      %v3837 = vadd.f32 %v3116, %v3836
      %v3838 = vpop.f32.mrf.mxu0
      %v3839 = vadd.f32 %v3120, %v3838
      %3840 = vmatprep.mubr.bf16.mxu0 0
      %3841 = vmatmul.mubr.bf16.gmra.mxu0 %v1302
      %v3842 = vpop.f32.mrf.mxu0
      %v3843 = vadd.f32 %v3116, %v3842
      %v3844 = vpop.f32.mrf.mxu0
      %v3845 = vadd.f32 %v3120, %v3844
      %v3846 = vpop.f32.mrf.mxu0
      %v3847 = vadd.f32 %v3116, %v3846
      %v3848 = vpop.f32.mrf.mxu0
      %v3849 = vadd.f32 %v3120, %v3848
      %3850 = vmatprep.mubr.bf16.mxu0 0
      %3851 = vmatmul.mubr.bf16.gmra.mxu0 %v1305
      %v3852 = vpop.f32.mrf.mxu0
      %v3853 = vadd.f32 %v3116, %v3852
      %v3854 = vpop.f32.mrf.mxu0
      %v3855 = vadd.f32 %v3120, %v3854
      %v3856 = vpop.f32.mrf.mxu0
      %v3857 = vadd.f32 %v3116, %v3856
      %v3858 = vpop.f32.mrf.mxu0
      %v3859 = vadd.f32 %v3120, %v3858
      %3860 = vmatprep.mubr.bf16.mxu0 0
      %3861 = vmatmul.mubr.bf16.gmra.mxu0 %v1308
      %v3862 = vpop.f32.mrf.mxu0
      %v3863 = vadd.f32 %v3116, %v3862
      %v3864 = vpop.f32.mrf.mxu0
      %v3865 = vadd.f32 %v3120, %v3864
      %v3866 = vpop.f32.mrf.mxu0
      %v3867 = vadd.f32 %v3116, %v3866
      %v3868 = vpop.f32.mrf.mxu0
      %v3869 = vadd.f32 %v3120, %v3868
      %3870 = vmatprep.mubr.bf16.mxu0 0
      %3871 = vmatmul.mubr.bf16.gmra.mxu0 %v1311
      %v3872 = vpop.f32.mrf.mxu0
      %v3873 = vadd.f32 %v3116, %v3872
      %v3874 = vpop.f32.mrf.mxu0
      %v3875 = vadd.f32 %v3120, %v3874
      %v3876 = vpop.f32.mrf.mxu0
      %v3877 = vadd.f32 %v3116, %v3876
      %v3878 = vpop.f32.mrf.mxu0
      %v3879 = vadd.f32 %v3120, %v3878
      %3880 = vmatprep.mubr.bf16.mxu0 0
      %3881 = vmatmul.mubr.bf16.gmra.mxu0 %v1314
      %v3882 = vpop.f32.mrf.mxu0
      %v3883 = vadd.f32 %v3116, %v3882
      %v3884 = vpop.f32.mrf.mxu0
      %v3885 = vadd.f32 %v3120, %v3884
      %v3886 = vpop.f32.mrf.mxu0
      %v3887 = vadd.f32 %v3116, %v3886
      %v3888 = vpop.f32.mrf.mxu0
      %v3889 = vadd.f32 %v3120, %v3888
      %3890 = vdwg.mxu0
      %3891 = vmatprep.subr.bf16.mxu0 0
      %3892 = vmatpush1.bf16.msra.mxu0 0
      %3893 = vmatprep.subr.bf16.mxu0 0
      %3894 = vmatpush1.bf16.msra.mxu0 0
      %3895 = vmatprep.subr.bf16.mxu0 0
      %3896 = vmatpush1.bf16.msra.mxu0 0
      %3897 = vmatprep.subr.bf16.mxu0 0
      %3898 = vmatpush1.bf16.msra.mxu0 %v3276
      %3899 = vmatprep.subr.bf16.mxu0 0
      %3900 = vmatpush1.bf16.msra.mxu0 %v3269
      %3901 = vmatprep.subr.bf16.mxu0 0
      %3902 = vmatpush1.bf16.msra.mxu0 %v3262
      %3903 = vmatprep.subr.bf16.mxu0 0
      %3904 = vmatpush1.bf16.msra.mxu0 %v3255
      %3905 = vmatprep.subr.bf16.mxu0 0
      %3906 = vmatpush1.bf16.msra.mxu0 %v3248
      %3907 = vmatprep.subr.bf16.mxu0 0
      %3908 = vmatpush2.bf16.msra.mxu0 0
      %3909 = vmatprep.subr.bf16.mxu0 0
      %3910 = vmatpush2.bf16.msra.mxu0 0
      %3911 = vmatprep.subr.bf16.mxu0 0
      %3912 = vmatpush2.bf16.msra.mxu0 0
      %3913 = vmatprep.subr.bf16.mxu0 0
      %3914 = vmatpush2.bf16.msra.mxu0 0
      %3915 = vmatprep.subr.bf16.mxu0 0
      %3916 = vmatpush2.bf16.msra.mxu0 0
      %3917 = vmatprep.subr.bf16.mxu0 0
      %3918 = vmatpush2.bf16.msra.mxu0 0
      %3919 = vmatprep.subr.bf16.mxu0 0
      %3920 = vmatpush2.bf16.msra.mxu0 0
      %3921 = vmatprep.subr.bf16.mxu0 0
      %3922 = vmatpush2.bf16.msra.mxu0 0
      %3923 = vmatprep.mubr.bf16.mxu0 0
      %3924 = vmatmul.mubr.bf16.gmra.mxu0 %v1269
      %v3925 = vpop.f32.mrf.mxu0
      %v3926 = vadd.f32 %v3124, %v3925
      %v3927 = vpop.f32.mrf.mxu0
      %v3928 = vpop.f32.mrf.mxu0
      %v3929 = vadd.f32 %v3124, %v3928
      %v3930 = vpop.f32.mrf.mxu0
      %3931 = vmatprep.mubr.bf16.mxu0 0
      %3932 = vmatmul.mubr.bf16.gmra.mxu0 %v1272
      %v3933 = vpop.f32.mrf.mxu0
      %v3934 = vadd.f32 %v3124, %v3933
      %v3935 = vpop.f32.mrf.mxu0
      %v3936 = vpop.f32.mrf.mxu0
      %v3937 = vadd.f32 %v3124, %v3936
      %v3938 = vpop.f32.mrf.mxu0
      %3939 = vmatprep.mubr.bf16.mxu0 0
      %3940 = vmatmul.mubr.bf16.gmra.mxu0 %v1275
      %v3941 = vpop.f32.mrf.mxu0
      %v3942 = vadd.f32 %v3124, %v3941
      %v3943 = vpop.f32.mrf.mxu0
      %v3944 = vpop.f32.mrf.mxu0
      %v3945 = vadd.f32 %v3124, %v3944
      %v3946 = vpop.f32.mrf.mxu0
      %3947 = vmatprep.mubr.bf16.mxu0 0
      %3948 = vmatmul.mubr.bf16.gmra.mxu0 %v1278
      %v3949 = vpop.f32.mrf.mxu0
      %v3950 = vadd.f32 %v3124, %v3949
      %v3951 = vpop.f32.mrf.mxu0
      %v3952 = vpop.f32.mrf.mxu0
      %v3953 = vadd.f32 %v3124, %v3952
      %v3954 = vpop.f32.mrf.mxu0
      %3955 = vmatprep.mubr.bf16.mxu0 0
      %3956 = vmatmul.mubr.bf16.gmra.mxu0 %v1281
      %v3957 = vpop.f32.mrf.mxu0
      %v3958 = vadd.f32 %v3124, %v3957
      %v3959 = vpop.f32.mrf.mxu0
      %v3960 = vpop.f32.mrf.mxu0
      %v3961 = vadd.f32 %v3124, %v3960
      %v3962 = vpop.f32.mrf.mxu0
      %3963 = vmatprep.mubr.bf16.mxu0 0
      %3964 = vmatmul.mubr.bf16.gmra.mxu0 %v1284
      %v3965 = vpop.f32.mrf.mxu0
      %v3966 = vadd.f32 %v3124, %v3965
      %v3967 = vpop.f32.mrf.mxu0
      %v3968 = vpop.f32.mrf.mxu0
      %v3969 = vadd.f32 %v3124, %v3968
      %v3970 = vpop.f32.mrf.mxu0
      %3971 = vmatprep.mubr.bf16.mxu0 0
      %3972 = vmatmul.mubr.bf16.gmra.mxu0 %v1287
      %v3973 = vpop.f32.mrf.mxu0
      %v3974 = vadd.f32 %v3124, %v3973
      %v3975 = vpop.f32.mrf.mxu0
      %v3976 = vpop.f32.mrf.mxu0
      %v3977 = vadd.f32 %v3124, %v3976
      %v3978 = vpop.f32.mrf.mxu0
      %3979 = vmatprep.mubr.bf16.mxu0 0
      %3980 = vmatmul.mubr.bf16.gmra.mxu0 %v1290
      %v3981 = vpop.f32.mrf.mxu0
      %v3982 = vadd.f32 %v3124, %v3981
      %v3983 = vpop.f32.mrf.mxu0
      %v3984 = vpop.f32.mrf.mxu0
      %v3985 = vadd.f32 %v3124, %v3984
      %v3986 = vpop.f32.mrf.mxu0
      %3987 = vmatprep.mubr.bf16.mxu0 0
      %3988 = vmatmul.mubr.bf16.gmra.mxu0 %v1293
      %v3989 = vpop.f32.mrf.mxu0
      %v3990 = vadd.f32 %v3124, %v3989
      %v3991 = vpop.f32.mrf.mxu0
      %v3992 = vpop.f32.mrf.mxu0
      %v3993 = vadd.f32 %v3124, %v3992
      %v3994 = vpop.f32.mrf.mxu0
      %3995 = vmatprep.mubr.bf16.mxu0 0
      %3996 = vmatmul.mubr.bf16.gmra.mxu0 %v1296
      %v3997 = vpop.f32.mrf.mxu0
      %v3998 = vadd.f32 %v3124, %v3997
      %v3999 = vpop.f32.mrf.mxu0
      %v4000 = vpop.f32.mrf.mxu0
      %v4001 = vadd.f32 %v3124, %v4000
      %v4002 = vpop.f32.mrf.mxu0
      %4003 = vmatprep.mubr.bf16.mxu0 0
      %4004 = vmatmul.mubr.bf16.gmra.mxu0 %v1299
      %v4005 = vpop.f32.mrf.mxu0
      %v4006 = vadd.f32 %v3124, %v4005
      %v4007 = vpop.f32.mrf.mxu0
      %v4008 = vpop.f32.mrf.mxu0
      %v4009 = vadd.f32 %v3124, %v4008
      %v4010 = vpop.f32.mrf.mxu0
      %4011 = vmatprep.mubr.bf16.mxu0 0
      %4012 = vmatmul.mubr.bf16.gmra.mxu0 %v1302
      %v4013 = vpop.f32.mrf.mxu0
      %v4014 = vadd.f32 %v3124, %v4013
      %v4015 = vpop.f32.mrf.mxu0
      %v4016 = vpop.f32.mrf.mxu0
      %v4017 = vadd.f32 %v3124, %v4016
      %v4018 = vpop.f32.mrf.mxu0
      %4019 = vmatprep.mubr.bf16.mxu0 0
      %4020 = vmatmul.mubr.bf16.gmra.mxu0 %v1305
      %v4021 = vpop.f32.mrf.mxu0
      %v4022 = vadd.f32 %v3124, %v4021
      %v4023 = vpop.f32.mrf.mxu0
      %v4024 = vpop.f32.mrf.mxu0
      %v4025 = vadd.f32 %v3124, %v4024
      %v4026 = vpop.f32.mrf.mxu0
      %4027 = vmatprep.mubr.bf16.mxu0 0
      %4028 = vmatmul.mubr.bf16.gmra.mxu0 %v1308
      %v4029 = vpop.f32.mrf.mxu0
      %v4030 = vadd.f32 %v3124, %v4029
      %v4031 = vpop.f32.mrf.mxu0
      %v4032 = vpop.f32.mrf.mxu0
      %v4033 = vadd.f32 %v3124, %v4032
      %v4034 = vpop.f32.mrf.mxu0
      %4035 = vmatprep.mubr.bf16.mxu0 0
      %4036 = vmatmul.mubr.bf16.gmra.mxu0 %v1311
      %v4037 = vpop.f32.mrf.mxu0
      %v4038 = vadd.f32 %v3124, %v4037
      %v4039 = vpop.f32.mrf.mxu0
      %v4040 = vpop.f32.mrf.mxu0
      %v4041 = vadd.f32 %v3124, %v4040
      %v4042 = vpop.f32.mrf.mxu0
      %4043 = vmatprep.mubr.bf16.mxu0 0
      %4044 = vmatmul.mubr.bf16.gmra.mxu0 %v1314
      %v4045 = vpop.f32.mrf.mxu0
      %v4046 = vadd.f32 %v3124, %v4045
      %v4047 = vpop.f32.mrf.mxu0
      %v4048 = vpop.f32.mrf.mxu0
      %v4049 = vadd.f32 %v3124, %v4048
      %v4050 = vpop.f32.mrf.mxu0
      %4051 = vdwg.mxu0
      %v4052 = vmul.f32 %v1351, %v2349
      %v4053 = vmul.f32 %v1353, %v2351
      %v4054 = vmul.f32 %v1544, %v2542
      %v4055 = vmul.f32 %v1546, %v2544
      %v4056 = vmul.f32 %v1737, %v2735
      %v4057 = vmul.f32 %v1739, %v2737
      %v4058 = vmul.f32 %v1930, %v2928
      %v4059 = vmul.f32 %v1355, %v2353
      %v4060 = vmul.f32 %v1357, %v2355
      %v4061 = vmul.f32 %v1548, %v2546
      %v4062 = vmul.f32 %v1550, %v2548
      %v4063 = vmul.f32 %v1741, %v2739
      %v4064 = vmul.f32 %v1743, %v2741
      %v4065 = vmul.f32 %v1933, %v2931
      %v4066 = vmul.f32 %v1361, %v2359
      %v4067 = vmul.f32 %v1363, %v2361
      %v4068 = vmul.f32 %v1554, %v2552
      %v4069 = vmul.f32 %v1556, %v2554
      %v4070 = vmul.f32 %v1747, %v2745
      %v4071 = vmul.f32 %v1749, %v2747
      %v4072 = vmul.f32 %v1938, %v2936
      %v4073 = vmul.f32 %v1365, %v2363
      %v4074 = vmul.f32 %v1367, %v2365
      %v4075 = vmul.f32 %v1558, %v2556
      %v4076 = vmul.f32 %v1560, %v2558
      %v4077 = vmul.f32 %v1751, %v2749
      %v4078 = vmul.f32 %v1753, %v2751
      %v4079 = vmul.f32 %v1941, %v2939
      %v4080 = vmul.f32 %v1371, %v2369
      %v4081 = vmul.f32 %v1373, %v2371
      %v4082 = vmul.f32 %v1564, %v2562
      %v4083 = vmul.f32 %v1566, %v2564
      %v4084 = vmul.f32 %v1757, %v2755
      %v4085 = vmul.f32 %v1759, %v2757
      %v4086 = vmul.f32 %v1946, %v2944
      %v4087 = vmul.f32 %v1375, %v2373
      %v4088 = vmul.f32 %v1377, %v2375
      %v4089 = vmul.f32 %v1568, %v2566
      %v4090 = vmul.f32 %v1570, %v2568
      %v4091 = vmul.f32 %v1761, %v2759
      %v4092 = vmul.f32 %v1763, %v2761
      %v4093 = vmul.f32 %v1949, %v2947
      %v4094 = vmul.f32 %v1381, %v2379
      %v4095 = vmul.f32 %v1383, %v2381
      %v4096 = vmul.f32 %v1574, %v2572
      %v4097 = vmul.f32 %v1576, %v2574
      %v4098 = vmul.f32 %v1767, %v2765
      %v4099 = vmul.f32 %v1769, %v2767
      %v4100 = vmul.f32 %v1954, %v2952
      %v4101 = vmul.f32 %v1385, %v2383
      %v4102 = vmul.f32 %v1387, %v2385
      %v4103 = vmul.f32 %v1578, %v2576
      %v4104 = vmul.f32 %v1580, %v2578
      %v4105 = vmul.f32 %v1771, %v2769
      %v4106 = vmul.f32 %v1773, %v2771
      %v4107 = vmul.f32 %v1957, %v2955
      %v4108 = vmul.f32 %v1391, %v2389
      %v4109 = vmul.f32 %v1393, %v2391
      %v4110 = vmul.f32 %v1584, %v2582
      %v4111 = vmul.f32 %v1586, %v2584
      %v4112 = vmul.f32 %v1777, %v2775
      %v4113 = vmul.f32 %v1779, %v2777
      %v4114 = vmul.f32 %v1962, %v2960
      %v4115 = vmul.f32 %v1395, %v2393
      %v4116 = vmul.f32 %v1397, %v2395
      %v4117 = vmul.f32 %v1588, %v2586
      %v4118 = vmul.f32 %v1590, %v2588
      %v4119 = vmul.f32 %v1781, %v2779
      %v4120 = vmul.f32 %v1783, %v2781
      %v4121 = vmul.f32 %v1965, %v2963
      %v4122 = vmul.f32 %v1401, %v2399
      %v4123 = vmul.f32 %v1403, %v2401
      %v4124 = vmul.f32 %v1594, %v2592
      %v4125 = vmul.f32 %v1596, %v2594
      %v4126 = vmul.f32 %v1787, %v2785
      %v4127 = vmul.f32 %v1789, %v2787
      %v4128 = vmul.f32 %v1970, %v2968
      %v4129 = vmul.f32 %v1405, %v2403
      %v4130 = vmul.f32 %v1407, %v2405
      %v4131 = vmul.f32 %v1598, %v2596
      %v4132 = vmul.f32 %v1600, %v2598
      %v4133 = vmul.f32 %v1791, %v2789
      %v4134 = vmul.f32 %v1793, %v2791
      %v4135 = vmul.f32 %v1973, %v2971
      %v4136 = vmul.f32 %v1411, %v2409
      %v4137 = vmul.f32 %v1413, %v2411
      %v4138 = vmul.f32 %v1604, %v2602
      %v4139 = vmul.f32 %v1606, %v2604
      %v4140 = vmul.f32 %v1797, %v2795
      %v4141 = vmul.f32 %v1799, %v2797
      %v4142 = vmul.f32 %v1978, %v2976
      %v4143 = vmul.f32 %v1415, %v2413
      %v4144 = vmul.f32 %v1417, %v2415
      %v4145 = vmul.f32 %v1608, %v2606
      %v4146 = vmul.f32 %v1610, %v2608
      %v4147 = vmul.f32 %v1801, %v2799
      %v4148 = vmul.f32 %v1803, %v2801
      %v4149 = vmul.f32 %v1981, %v2979
      %v4150 = vmul.f32 %v1421, %v2419
      %v4151 = vmul.f32 %v1423, %v2421
      %v4152 = vmul.f32 %v1614, %v2612
      %v4153 = vmul.f32 %v1616, %v2614
      %v4154 = vmul.f32 %v1807, %v2805
      %v4155 = vmul.f32 %v1809, %v2807
      %v4156 = vmul.f32 %v1986, %v2984
      %v4157 = vmul.f32 %v1425, %v2423
      %v4158 = vmul.f32 %v1427, %v2425
      %v4159 = vmul.f32 %v1618, %v2616
      %v4160 = vmul.f32 %v1620, %v2618
      %v4161 = vmul.f32 %v1811, %v2809
      %v4162 = vmul.f32 %v1813, %v2811
      %v4163 = vmul.f32 %v1989, %v2987
      %v4164 = vmul.f32 %v1431, %v2429
      %v4165 = vmul.f32 %v1433, %v2431
      %v4166 = vmul.f32 %v1624, %v2622
      %v4167 = vmul.f32 %v1626, %v2624
      %v4168 = vmul.f32 %v1817, %v2815
      %v4169 = vmul.f32 %v1819, %v2817
      %v4170 = vmul.f32 %v1994, %v2992
      %v4171 = vmul.f32 %v1435, %v2433
      %v4172 = vmul.f32 %v1437, %v2435
      %v4173 = vmul.f32 %v1628, %v2626
      %v4174 = vmul.f32 %v1630, %v2628
      %v4175 = vmul.f32 %v1821, %v2819
      %v4176 = vmul.f32 %v1823, %v2821
      %v4177 = vmul.f32 %v1997, %v2995
      %v4178 = vmul.f32 %v1441, %v2439
      %v4179 = vmul.f32 %v1443, %v2441
      %v4180 = vmul.f32 %v1634, %v2632
      %v4181 = vmul.f32 %v1636, %v2634
      %v4182 = vmul.f32 %v1827, %v2825
      %v4183 = vmul.f32 %v1829, %v2827
      %v4184 = vmul.f32 %v2002, %v3000
      %v4185 = vmul.f32 %v1445, %v2443
      %v4186 = vmul.f32 %v1447, %v2445
      %v4187 = vmul.f32 %v1638, %v2636
      %v4188 = vmul.f32 %v1640, %v2638
      %v4189 = vmul.f32 %v1831, %v2829
      %v4190 = vmul.f32 %v1833, %v2831
      %v4191 = vmul.f32 %v2005, %v3003
      %v4192 = vmul.f32 %v1451, %v2449
      %v4193 = vmul.f32 %v1453, %v2451
      %v4194 = vmul.f32 %v1644, %v2642
      %v4195 = vmul.f32 %v1646, %v2644
      %v4196 = vmul.f32 %v1837, %v2835
      %v4197 = vmul.f32 %v1839, %v2837
      %v4198 = vmul.f32 %v2010, %v3008
      %v4199 = vmul.f32 %v1455, %v2453
      %v4200 = vmul.f32 %v1457, %v2455
      %v4201 = vmul.f32 %v1648, %v2646
      %v4202 = vmul.f32 %v1650, %v2648
      %v4203 = vmul.f32 %v1841, %v2839
      %v4204 = vmul.f32 %v1843, %v2841
      %v4205 = vmul.f32 %v2013, %v3011
      %v4206 = vmul.f32 %v1461, %v2459
      %v4207 = vmul.f32 %v1463, %v2461
      %v4208 = vmul.f32 %v1654, %v2652
      %v4209 = vmul.f32 %v1656, %v2654
      %v4210 = vmul.f32 %v1847, %v2845
      %v4211 = vmul.f32 %v1849, %v2847
      %v4212 = vmul.f32 %v2018, %v3016
      %v4213 = vmul.f32 %v1465, %v2463
      %v4214 = vmul.f32 %v1467, %v2465
      %v4215 = vmul.f32 %v1658, %v2656
      %v4216 = vmul.f32 %v1660, %v2658
      %v4217 = vmul.f32 %v1851, %v2849
      %v4218 = vmul.f32 %v1853, %v2851
      %v4219 = vmul.f32 %v2021, %v3019
      %v4220 = vmul.f32 %v1471, %v2469
      %v4221 = vmul.f32 %v1473, %v2471
      %v4222 = vmul.f32 %v1664, %v2662
      %v4223 = vmul.f32 %v1666, %v2664
      %v4224 = vmul.f32 %v1857, %v2855
      %v4225 = vmul.f32 %v1859, %v2857
      %v4226 = vmul.f32 %v2026, %v3024
      %v4227 = vmul.f32 %v1475, %v2473
      %v4228 = vmul.f32 %v1477, %v2475
      %v4229 = vmul.f32 %v1668, %v2666
      %v4230 = vmul.f32 %v1670, %v2668
      %v4231 = vmul.f32 %v1861, %v2859
      %v4232 = vmul.f32 %v1863, %v2861
      %v4233 = vmul.f32 %v2029, %v3027
      %v4234 = vmul.f32 %v1481, %v2479
      %v4235 = vmul.f32 %v1483, %v2481
      %v4236 = vmul.f32 %v1674, %v2672
      %v4237 = vmul.f32 %v1676, %v2674
      %v4238 = vmul.f32 %v1867, %v2865
      %v4239 = vmul.f32 %v1869, %v2867
      %v4240 = vmul.f32 %v2034, %v3032
      %v4241 = vmul.f32 %v1485, %v2483
      %v4242 = vmul.f32 %v1487, %v2485
      %v4243 = vmul.f32 %v1678, %v2676
      %v4244 = vmul.f32 %v1680, %v2678
      %v4245 = vmul.f32 %v1871, %v2869
      %v4246 = vmul.f32 %v1873, %v2871
      %v4247 = vmul.f32 %v2037, %v3035
      %v4248 = vmul.f32 %v1491, %v2489
      %v4249 = vmul.f32 %v1493, %v2491
      %v4250 = vmul.f32 %v1684, %v2682
      %v4251 = vmul.f32 %v1686, %v2684
      %v4252 = vmul.f32 %v1877, %v2875
      %v4253 = vmul.f32 %v1879, %v2877
      %v4254 = vmul.f32 %v2042, %v3040
      %v4255 = vmul.f32 %v1495, %v2493
      %v4256 = vmul.f32 %v1497, %v2495
      %v4257 = vmul.f32 %v1688, %v2686
      %v4258 = vmul.f32 %v1690, %v2688
      %v4259 = vmul.f32 %v1881, %v2879
      %v4260 = vmul.f32 %v1883, %v2881
      %v4261 = vmul.f32 %v2045, %v3043
      %v4262 = vmul.f32 %v1501, %v2499
      %v4263 = vmul.f32 %v1503, %v2501
      %v4264 = vmul.f32 %v1694, %v2692
      %v4265 = vmul.f32 %v1696, %v2694
      %v4266 = vmul.f32 %v1887, %v2885
      %v4267 = vmul.f32 %v1889, %v2887
      %v4268 = vmul.f32 %v2050, %v3048
      %v4269 = vmul.f32 %v1505, %v2503
      %v4270 = vmul.f32 %v1507, %v2505
      %v4271 = vmul.f32 %v1698, %v2696
      %v4272 = vmul.f32 %v1700, %v2698
      %v4273 = vmul.f32 %v1891, %v2889
      %v4274 = vmul.f32 %v1893, %v2891
      %v4275 = vmul.f32 %v2053, %v3051
      %v4276 = vpack.c.bf16 %v4059, %v4052
      %v4277 = vpack.c.bf16 %v4060, %v4053
      %v4278 = vpack.c.bf16 %v4061, %v4054
      %v4279 = vpack.c.bf16 %v4062, %v4055
      %v4280 = vpack.c.bf16 %v4063, %v4056
      %v4281 = vpack.c.bf16 %v4064, %v4057
      %v4282 = vpack.c.bf16 %v4065, %v4058
      %v4283 = vpack.c.bf16 %v4073, %v4066
      %v4284 = vpack.c.bf16 %v4074, %v4067
      %v4285 = vpack.c.bf16 %v4075, %v4068
      %v4286 = vpack.c.bf16 %v4076, %v4069
      %v4287 = vpack.c.bf16 %v4077, %v4070
      %v4288 = vpack.c.bf16 %v4078, %v4071
      %v4289 = vpack.c.bf16 %v4079, %v4072
      %v4290 = vpack.c.bf16 %v4087, %v4080
      %v4291 = vpack.c.bf16 %v4088, %v4081
      %v4292 = vpack.c.bf16 %v4089, %v4082
      %v4293 = vpack.c.bf16 %v4090, %v4083
      %v4294 = vpack.c.bf16 %v4091, %v4084
      %v4295 = vpack.c.bf16 %v4092, %v4085
      %v4296 = vpack.c.bf16 %v4093, %v4086
      %v4297 = vpack.c.bf16 %v4101, %v4094
      %v4298 = vpack.c.bf16 %v4102, %v4095
      %v4299 = vpack.c.bf16 %v4103, %v4096
      %v4300 = vpack.c.bf16 %v4104, %v4097
      %v4301 = vpack.c.bf16 %v4105, %v4098
      %v4302 = vpack.c.bf16 %v4106, %v4099
      %v4303 = vpack.c.bf16 %v4107, %v4100
      %v4304 = vpack.c.bf16 %v4115, %v4108
      %v4305 = vpack.c.bf16 %v4116, %v4109
      %v4306 = vpack.c.bf16 %v4117, %v4110
      %v4307 = vpack.c.bf16 %v4118, %v4111
      %v4308 = vpack.c.bf16 %v4119, %v4112
      %v4309 = vpack.c.bf16 %v4120, %v4113
      %v4310 = vpack.c.bf16 %v4121, %v4114
      %v4311 = vpack.c.bf16 %v4129, %v4122
      %v4312 = vpack.c.bf16 %v4130, %v4123
      %v4313 = vpack.c.bf16 %v4131, %v4124
      %v4314 = vpack.c.bf16 %v4132, %v4125
      %v4315 = vpack.c.bf16 %v4133, %v4126
      %v4316 = vpack.c.bf16 %v4134, %v4127
      %v4317 = vpack.c.bf16 %v4135, %v4128
      %v4318 = vpack.c.bf16 %v4143, %v4136
      %v4319 = vpack.c.bf16 %v4144, %v4137
      %v4320 = vpack.c.bf16 %v4145, %v4138
      %v4321 = vpack.c.bf16 %v4146, %v4139
      %v4322 = vpack.c.bf16 %v4147, %v4140
      %v4323 = vpack.c.bf16 %v4148, %v4141
      %v4324 = vpack.c.bf16 %v4149, %v4142
      %v4325 = vpack.c.bf16 %v4157, %v4150
      %v4326 = vpack.c.bf16 %v4158, %v4151
      %v4327 = vpack.c.bf16 %v4159, %v4152
      %v4328 = vpack.c.bf16 %v4160, %v4153
      %v4329 = vpack.c.bf16 %v4161, %v4154
      %v4330 = vpack.c.bf16 %v4162, %v4155
      %v4331 = vpack.c.bf16 %v4163, %v4156
      %v4332 = vpack.c.bf16 %v4171, %v4164
      %v4333 = vpack.c.bf16 %v4172, %v4165
      %v4334 = vpack.c.bf16 %v4173, %v4166
      %v4335 = vpack.c.bf16 %v4174, %v4167
      %v4336 = vpack.c.bf16 %v4175, %v4168
      %v4337 = vpack.c.bf16 %v4176, %v4169
      %v4338 = vpack.c.bf16 %v4177, %v4170
      %v4339 = vpack.c.bf16 %v4185, %v4178
      %v4340 = vpack.c.bf16 %v4186, %v4179
      %v4341 = vpack.c.bf16 %v4187, %v4180
      %v4342 = vpack.c.bf16 %v4188, %v4181
      %v4343 = vpack.c.bf16 %v4189, %v4182
      %v4344 = vpack.c.bf16 %v4190, %v4183
      %v4345 = vpack.c.bf16 %v4191, %v4184
      %v4346 = vpack.c.bf16 %v4199, %v4192
      %v4347 = vpack.c.bf16 %v4200, %v4193
      %v4348 = vpack.c.bf16 %v4201, %v4194
      %v4349 = vpack.c.bf16 %v4202, %v4195
      %v4350 = vpack.c.bf16 %v4203, %v4196
      %v4351 = vpack.c.bf16 %v4204, %v4197
      %v4352 = vpack.c.bf16 %v4205, %v4198
      %v4353 = vpack.c.bf16 %v4213, %v4206
      %v4354 = vpack.c.bf16 %v4214, %v4207
      %v4355 = vpack.c.bf16 %v4215, %v4208
      %v4356 = vpack.c.bf16 %v4216, %v4209
      %v4357 = vpack.c.bf16 %v4217, %v4210
      %v4358 = vpack.c.bf16 %v4218, %v4211
      %v4359 = vpack.c.bf16 %v4219, %v4212
      %v4360 = vpack.c.bf16 %v4227, %v4220
      %v4361 = vpack.c.bf16 %v4228, %v4221
      %v4362 = vpack.c.bf16 %v4229, %v4222
      %v4363 = vpack.c.bf16 %v4230, %v4223
      %v4364 = vpack.c.bf16 %v4231, %v4224
      %v4365 = vpack.c.bf16 %v4232, %v4225
      %v4366 = vpack.c.bf16 %v4233, %v4226
      %v4367 = vpack.c.bf16 %v4241, %v4234
      %v4368 = vpack.c.bf16 %v4242, %v4235
      %v4369 = vpack.c.bf16 %v4243, %v4236
      %v4370 = vpack.c.bf16 %v4244, %v4237
      %v4371 = vpack.c.bf16 %v4245, %v4238
      %v4372 = vpack.c.bf16 %v4246, %v4239
      %v4373 = vpack.c.bf16 %v4247, %v4240
      %v4374 = vpack.c.bf16 %v4255, %v4248
      %v4375 = vpack.c.bf16 %v4256, %v4249
      %v4376 = vpack.c.bf16 %v4257, %v4250
      %v4377 = vpack.c.bf16 %v4258, %v4251
      %v4378 = vpack.c.bf16 %v4259, %v4252
      %v4379 = vpack.c.bf16 %v4260, %v4253
      %v4380 = vpack.c.bf16 %v4261, %v4254
      %v4381 = vpack.c.bf16 %v4269, %v4262
      %v4382 = vpack.c.bf16 %v4270, %v4263
      %v4383 = vpack.c.bf16 %v4271, %v4264
      %v4384 = vpack.c.bf16 %v4272, %v4265
      %v4385 = vpack.c.bf16 %v4273, %v4266
      %v4386 = vpack.c.bf16 %v4274, %v4267
      %v4387 = vpack.c.bf16 %v4275, %v4268
      %v4388 = vld [vmem:[%s5] sm:$0xf]
      %v4389 = vld [vmem:[%s5 + $0x4] sm:$0xf]
      %v4390 = vld [vmem:[%s5 + $0x8] sm:$0xf]
      %v4391 = vld [vmem:[%s5 + $0xc] sm:$0xf]
      %v4392 = vld [vmem:[%s5 + $0x10] sm:$0xf]
      %v4393 = vld [vmem:[%s5 + $0x14] sm:$0xf]
      %v4394 = vld [vmem:[%s5 + $0x18] sm:$0xf]
      %v4395 = vld [vmem:[%s5 + $0x1c] sm:$0xf]
      %v4396 = vld [vmem:[%s5 + $0x20] sm:$0xf]
      %v4397 = vld [vmem:[%s5 + $0x24] sm:$0xf]
      %v4398 = vld [vmem:[%s5 + $0x28] sm:$0xf]
      %v4399 = vld [vmem:[%s5 + $0x2c] sm:$0xf]
      %v4400 = vld [vmem:[%s5 + $0x30] sm:$0xf]
      %v4401 = vld [vmem:[%s5 + $0x34] sm:$0xf]
      %v4402 = vld [vmem:[%s5 + $0x38] sm:$0xf]
      %v4403 = vld [vmem:[%s5 + $0x3c] sm:$0xf]
      %v4404 = vld [vmem:[%s5 + $0x40] sm:$0xf]
      %v4405 = vld [vmem:[%s5 + $0x44] sm:$0xf]
      %v4406 = vld [vmem:[%s5 + $0x48] sm:$0xf]
      %v4407 = vld [vmem:[%s5 + $0x4c] sm:$0xf]
      %v4408 = vld [vmem:[%s5 + $0x50] sm:$0xf]
      %v4409 = vld [vmem:[%s5 + $0x54] sm:$0xf]
      %v4410 = vld [vmem:[%s5 + $0x58] sm:$0xf]
      %v4411 = vld [vmem:[%s5 + $0x5c] sm:$0xf]
      %v4412 = vld [vmem:[%s5 + $0x60] sm:$0xf]
      %v4413 = vld [vmem:[%s5 + $0x64] sm:$0xf]
      %v4414 = vld [vmem:[%s5 + $0x68] sm:$0xf]
      %v4415 = vld [vmem:[%s5 + $0x6c] sm:$0xf]
      %v4416 = vld [vmem:[%s5 + $0x70] sm:$0xf]
      %v4417 = vld [vmem:[%s5 + $0x74] sm:$0xf]
      %v4418 = vld [vmem:[%s5 + $0x78] sm:$0xf]
      %v4419 = vld [vmem:[%s5 + $0x7c] sm:$0xf]
      %v4420 = vld [vmem:[%s5 + $0x80] sm:$0xf]
      %v4421 = vld [vmem:[%s5 + $0x84] sm:$0xf]
      %v4422 = vld [vmem:[%s5 + $0x88] sm:$0xf]
      %v4423 = vld [vmem:[%s5 + $0x8c] sm:$0xf]
      %v4424 = vld [vmem:[%s5 + $0x90] sm:$0xf]
      %v4425 = vld [vmem:[%s5 + $0x94] sm:$0xf]
      %v4426 = vld [vmem:[%s5 + $0x98] sm:$0xf]
      %v4427 = vld [vmem:[%s5 + $0x9c] sm:$0xf]
      %v4428 = vld [vmem:[%s5 + $0xa0] sm:$0xf]
      %v4429 = vld [vmem:[%s5 + $0xa4] sm:$0xf]
      %v4430 = vld [vmem:[%s5 + $0xa8] sm:$0xf]
      %v4431 = vld [vmem:[%s5 + $0xac] sm:$0xf]
      %v4432 = vld [vmem:[%s5 + $0xb0] sm:$0xf]
      %v4433 = vld [vmem:[%s5 + $0xb4] sm:$0xf]
      %v4434 = vld [vmem:[%s5 + $0xb8] sm:$0xf]
      %v4435 = vld [vmem:[%s5 + $0xbc] sm:$0xf]
      %v4436 = vld [vmem:[%s5 + $0xc0] sm:$0xf]
      %v4437 = vld [vmem:[%s5 + $0xc4] sm:$0xf]
      %v4438 = vld [vmem:[%s5 + $0xc8] sm:$0xf]
      %v4439 = vld [vmem:[%s5 + $0xcc] sm:$0xf]
      %v4440 = vld [vmem:[%s5 + $0xd0] sm:$0xf]
      %v4441 = vld [vmem:[%s5 + $0xd4] sm:$0xf]
      %v4442 = vld [vmem:[%s5 + $0xd8] sm:$0xf]
      %v4443 = vld [vmem:[%s5 + $0xdc] sm:$0xf]
      %v4444 = vld [vmem:[%s5 + $0xe0] sm:$0xf]
      %v4445 = vld [vmem:[%s5 + $0xe4] sm:$0xf]
      %v4446 = vld [vmem:[%s5 + $0xe8] sm:$0xf]
      %v4447 = vld [vmem:[%s5 + $0xec] sm:$0xf]
      %v4448 = vld [vmem:[%s5 + $0xf0] sm:$0xf]
      %v4449 = vld [vmem:[%s5 + $0xf4] sm:$0xf]
      %v4450 = vld [vmem:[%s5 + $0xf8] sm:$0xf]
      %v4451 = vld [vmem:[%s5 + $0xfc] sm:$0xf]
      %v4452 = vld [vmem:[%s5 + $0x100] sm:$0xf]
      %v4453 = vld [vmem:[%s5 + $0x104] sm:$0xf]
      %v4454 = vld [vmem:[%s5 + $0x108] sm:$0xf]
      %v4455 = vld [vmem:[%s5 + $0x10c] sm:$0xf]
      %v4456 = vld [vmem:[%s5 + $0x110] sm:$0xf]
      %v4457 = vld [vmem:[%s5 + $0x114] sm:$0xf]
      %v4458 = vld [vmem:[%s5 + $0x118] sm:$0xf]
      %v4459 = vld [vmem:[%s5 + $0x11c] sm:$0xf]
      %v4460 = vld [vmem:[%s5 + $0x120] sm:$0xf]
      %v4461 = vld [vmem:[%s5 + $0x124] sm:$0xf]
      %v4462 = vld [vmem:[%s5 + $0x128] sm:$0xf]
      %v4463 = vld [vmem:[%s5 + $0x12c] sm:$0xf]
      %v4464 = vld [vmem:[%s5 + $0x130] sm:$0xf]
      %v4465 = vld [vmem:[%s5 + $0x134] sm:$0xf]
      %v4466 = vld [vmem:[%s5 + $0x138] sm:$0xf]
      %v4467 = vld [vmem:[%s5 + $0x13c] sm:$0xf]
      %v4468 = vld [vmem:[%s5 + $0x140] sm:$0xf]
      %v4469 = vld [vmem:[%s5 + $0x144] sm:$0xf]
      %v4470 = vld [vmem:[%s5 + $0x148] sm:$0xf]
      %v4471 = vld [vmem:[%s5 + $0x14c] sm:$0xf]
      %v4472 = vld [vmem:[%s5 + $0x150] sm:$0xf]
      %v4473 = vld [vmem:[%s5 + $0x154] sm:$0xf]
      %v4474 = vld [vmem:[%s5 + $0x158] sm:$0xf]
      %v4475 = vld [vmem:[%s5 + $0x15c] sm:$0xf]
      %v4476 = vld [vmem:[%s5 + $0x160] sm:$0xf]
      %v4477 = vld [vmem:[%s5 + $0x164] sm:$0xf]
      %v4478 = vld [vmem:[%s5 + $0x168] sm:$0xf]
      %v4479 = vld [vmem:[%s5 + $0x16c] sm:$0xf]
      %v4480 = vld [vmem:[%s5 + $0x170] sm:$0xf]
      %v4481 = vld [vmem:[%s5 + $0x174] sm:$0xf]
      %v4482 = vld [vmem:[%s5 + $0x178] sm:$0xf]
      %v4483 = vld [vmem:[%s5 + $0x17c] sm:$0xf]
      %v4484 = vld [vmem:[%s5 + $0x180] sm:$0xf]
      %v4485 = vld [vmem:[%s5 + $0x184] sm:$0xf]
      %v4486 = vld [vmem:[%s5 + $0x188] sm:$0xf]
      %v4487 = vld [vmem:[%s5 + $0x18c] sm:$0xf]
      %v4588 = vunpack.c.l.b16 %v4388
      %v4589 = vunpack.c.l.b16 %v4389
      %v4590 = vunpack.c.l.b16 %v4390
      %v4591 = vunpack.c.l.b16 %v4391
      %v4592 = vunpack.c.l.b16 %v4392
      %v4593 = vunpack.c.l.b16 %v4393
      %v4594 = vunpack.c.l.b16 %v4394
      %v4595 = vunpack.c.l.b16 %v4395
      %v4596 = vunpack.c.l.b16 %v4396
      %v4597 = vunpack.c.l.b16 %v4397
      %v4598 = vunpack.c.l.b16 %v4398
      %v4599 = vunpack.c.l.b16 %v4399
      %v4600 = vunpack.c.l.b16 %v4400
      %v4601 = vunpack.c.l.b16 %v4401
      %v4602 = vunpack.c.l.b16 %v4402
      %v4603 = vunpack.c.l.b16 %v4403
      %v4604 = vunpack.c.l.b16 %v4404
      %v4605 = vunpack.c.l.b16 %v4405
      %v4606 = vunpack.c.l.b16 %v4406
      %v4607 = vunpack.c.l.b16 %v4407
      %v4608 = vunpack.c.l.b16 %v4408
      %v4609 = vunpack.c.l.b16 %v4409
      %v4610 = vunpack.c.l.b16 %v4410
      %v4611 = vunpack.c.l.b16 %v4411
      %v4612 = vunpack.c.l.b16 %v4412
      %v4613 = vunpack.c.l.b16 %v4413
      %v4614 = vunpack.c.l.b16 %v4414
      %v4615 = vunpack.c.l.b16 %v4415
      %v4616 = vunpack.c.l.b16 %v4416
      %v4617 = vunpack.c.l.b16 %v4417
      %v4618 = vunpack.c.l.b16 %v4418
      %v4619 = vunpack.c.l.b16 %v4419
      %v4620 = vunpack.c.l.b16 %v4420
      %v4621 = vunpack.c.l.b16 %v4421
      %v4622 = vunpack.c.l.b16 %v4422
      %v4623 = vunpack.c.l.b16 %v4423
      %v4624 = vunpack.c.l.b16 %v4424
      %v4625 = vunpack.c.l.b16 %v4425
      %v4626 = vunpack.c.l.b16 %v4426
      %v4627 = vunpack.c.l.b16 %v4427
      %v4628 = vunpack.c.l.b16 %v4428
      %v4629 = vunpack.c.l.b16 %v4429
      %v4630 = vunpack.c.l.b16 %v4430
      %v4631 = vunpack.c.l.b16 %v4431
      %v4632 = vunpack.c.l.b16 %v4432
      %v4633 = vunpack.c.l.b16 %v4433
      %v4634 = vunpack.c.l.b16 %v4434
      %v4635 = vunpack.c.l.b16 %v4435
      %v4636 = vunpack.c.l.b16 %v4436
      %v4637 = vunpack.c.l.b16 %v4437
      %v4638 = vunpack.c.l.b16 %v4438
      %v4639 = vunpack.c.l.b16 %v4439
      %v4640 = vunpack.c.l.b16 %v4440
      %v4641 = vunpack.c.l.b16 %v4441
      %v4642 = vunpack.c.l.b16 %v4442
      %v4643 = vunpack.c.l.b16 %v4443
      %v4644 = vunpack.c.l.b16 %v4444
      %v4645 = vunpack.c.l.b16 %v4445
      %v4646 = vunpack.c.l.b16 %v4446
      %v4647 = vunpack.c.l.b16 %v4447
      %v4648 = vunpack.c.l.b16 %v4448
      %v4649 = vunpack.c.l.b16 %v4449
      %v4650 = vunpack.c.l.b16 %v4450
      %v4651 = vunpack.c.l.b16 %v4451
      %v4652 = vunpack.c.l.b16 %v4452
      %v4653 = vunpack.c.l.b16 %v4453
      %v4654 = vunpack.c.l.b16 %v4454
      %v4655 = vunpack.c.l.b16 %v4455
      %v4656 = vunpack.c.l.b16 %v4456
      %v4657 = vunpack.c.l.b16 %v4457
      %v4658 = vunpack.c.l.b16 %v4458
      %v4659 = vunpack.c.l.b16 %v4459
      %v4660 = vunpack.c.l.b16 %v4460
      %v4661 = vunpack.c.l.b16 %v4461
      %v4662 = vunpack.c.l.b16 %v4462
      %v4663 = vunpack.c.l.b16 %v4463
      %v4664 = vunpack.c.l.b16 %v4464
      %v4665 = vunpack.c.l.b16 %v4465
      %v4666 = vunpack.c.l.b16 %v4466
      %v4667 = vunpack.c.l.b16 %v4467
      %v4668 = vunpack.c.l.b16 %v4468
      %v4669 = vunpack.c.l.b16 %v4469
      %v4670 = vunpack.c.l.b16 %v4470
      %v4671 = vunpack.c.l.b16 %v4471
      %v4672 = vunpack.c.l.b16 %v4472
      %v4673 = vunpack.c.l.b16 %v4473
      %v4674 = vunpack.c.l.b16 %v4474
      %v4675 = vunpack.c.l.b16 %v4475
      %v4676 = vunpack.c.l.b16 %v4476
      %v4677 = vunpack.c.l.b16 %v4477
      %v4678 = vunpack.c.l.b16 %v4478
      %v4679 = vunpack.c.l.b16 %v4479
      %v4680 = vunpack.c.l.b16 %v4480
      %v4681 = vunpack.c.l.b16 %v4481
      %v4682 = vunpack.c.l.b16 %v4482
      %v4683 = vunpack.c.l.b16 %v4483
      %v4684 = vunpack.c.l.b16 %v4484
      %v4685 = vunpack.c.l.b16 %v4485
      %v4686 = vunpack.c.l.b16 %v4486
      %v4687 = vunpack.c.l.b16 %v4487
      %v4688 = vpack.c.b16 %v4589, %v4588
      %v4689 = vpack.c.b16 %v4591, %v4590
      %v4690 = vpack.c.b16 %v4593, %v4592
      %v4691 = vpack.c.b16 %v4595, %v4594
      %v4692 = vpack.c.b16 %v4597, %v4596
      %v4693 = vpack.c.b16 %v4599, %v4598
      %v4694 = vpack.c.b16 %v4601, %v4600
      %v4695 = vpack.c.b16 %v4603, %v4602
      %v4696 = vpack.c.b16 %v4605, %v4604
      %v4697 = vpack.c.b16 %v4607, %v4606
      %v4698 = vpack.c.b16 %v4609, %v4608
      %v4699 = vpack.c.b16 %v4611, %v4610
      %v4700 = vpack.c.b16 %v4613, %v4612
      %v4701 = vpack.c.b16 %v4615, %v4614
      %v4702 = vpack.c.b16 %v4617, %v4616
      %v4703 = vpack.c.b16 %v4619, %v4618
      %v4704 = vpack.c.b16 %v4621, %v4620
      %v4705 = vpack.c.b16 %v4623, %v4622
      %v4706 = vpack.c.b16 %v4625, %v4624
      %v4707 = vpack.c.b16 %v4627, %v4626
      %v4708 = vpack.c.b16 %v4629, %v4628
      %v4709 = vpack.c.b16 %v4631, %v4630
      %v4710 = vpack.c.b16 %v4633, %v4632
      %v4711 = vpack.c.b16 %v4635, %v4634
      %v4712 = vpack.c.b16 %v4637, %v4636
      %v4713 = vpack.c.b16 %v4639, %v4638
      %v4714 = vpack.c.b16 %v4641, %v4640
      %v4715 = vpack.c.b16 %v4643, %v4642
      %v4716 = vpack.c.b16 %v4645, %v4644
      %v4717 = vpack.c.b16 %v4647, %v4646
      %v4718 = vpack.c.b16 %v4649, %v4648
      %v4719 = vpack.c.b16 %v4651, %v4650
      %v4720 = vpack.c.b16 %v4653, %v4652
      %v4721 = vpack.c.b16 %v4655, %v4654
      %v4722 = vpack.c.b16 %v4657, %v4656
      %v4723 = vpack.c.b16 %v4659, %v4658
      %v4724 = vpack.c.b16 %v4661, %v4660
      %v4725 = vpack.c.b16 %v4663, %v4662
      %v4726 = vpack.c.b16 %v4665, %v4664
      %v4727 = vpack.c.b16 %v4667, %v4666
      %v4728 = vpack.c.b16 %v4669, %v4668
      %v4729 = vpack.c.b16 %v4671, %v4670
      %v4730 = vpack.c.b16 %v4673, %v4672
      %v4731 = vpack.c.b16 %v4675, %v4674
      %v4732 = vpack.c.b16 %v4677, %v4676
      %v4733 = vpack.c.b16 %v4679, %v4678
      %v4734 = vpack.c.b16 %v4681, %v4680
      %v4735 = vpack.c.b16 %v4683, %v4682
      %v4736 = vpack.c.b16 %v4685, %v4684
      %v4737 = vpack.c.b16 %v4687, %v4686
      %v4789 = vsel %vm784, %v4282, 0
      %v4792 = vsel %vm784, %v4289, 0
      %v4795 = vsel %vm784, %v4296, 0
      %v4798 = vsel %vm784, %v4303, 0
      %v4801 = vsel %vm784, %v4310, 0
      %v4804 = vsel %vm784, %v4317, 0
      %v4807 = vsel %vm784, %v4324, 0
      %v4810 = vsel %vm784, %v4331, 0
      %v4813 = vsel %vm784, %v4338, 0
      %v4816 = vsel %vm784, %v4345, 0
      %v4819 = vsel %vm784, %v4352, 0
      %v4822 = vsel %vm784, %v4359, 0
      %v4825 = vsel %vm784, %v4366, 0
      %v4828 = vsel %vm784, %v4373, 0
      %v4831 = vsel %vm784, %v4380, 0
      %v4834 = vsel %vm784, %v4387, 0
      %4836 = vmatprep.subr.bf16.mxu0 0
      %4837 = vmatpush1.bf16.msra.mxu0 %v4695
      %4838 = vmatprep.subr.bf16.mxu0 0
      %4839 = vmatpush1.bf16.msra.mxu0 %v4694
      %4840 = vmatprep.subr.bf16.mxu0 0
      %4841 = vmatpush1.bf16.msra.mxu0 %v4693
      %4842 = vmatprep.subr.bf16.mxu0 0
      %4843 = vmatpush1.bf16.msra.mxu0 %v4692
      %4844 = vmatprep.subr.bf16.mxu0 0
      %4845 = vmatpush1.bf16.msra.mxu0 %v4691
      %4846 = vmatprep.subr.bf16.mxu0 0
      %4847 = vmatpush1.bf16.msra.mxu0 %v4690
      %4848 = vmatprep.subr.bf16.mxu0 0
      %4849 = vmatpush1.bf16.msra.mxu0 %v4689
      %4850 = vmatprep.subr.bf16.mxu0 0
      %4851 = vmatpush1.bf16.msra.mxu0 %v4688
      %4852 = vmatprep.subr.bf16.mxu0 0
      %4853 = vmatpush2.bf16.msra.mxu0 %v4703
      %4854 = vmatprep.subr.bf16.mxu0 0
      %4855 = vmatpush2.bf16.msra.mxu0 %v4702
      %4856 = vmatprep.subr.bf16.mxu0 0
      %4857 = vmatpush2.bf16.msra.mxu0 %v4701
      %4858 = vmatprep.subr.bf16.mxu0 0
      %4859 = vmatpush2.bf16.msra.mxu0 %v4700
      %4860 = vmatprep.subr.bf16.mxu0 0
      %4861 = vmatpush2.bf16.msra.mxu0 %v4699
      %4862 = vmatprep.subr.bf16.mxu0 0
      %4863 = vmatpush2.bf16.msra.mxu0 %v4698
      %4864 = vmatprep.subr.bf16.mxu0 0
      %4865 = vmatpush2.bf16.msra.mxu0 %v4697
      %4866 = vmatprep.subr.bf16.mxu0 0
      %4867 = vmatpush2.bf16.msra.mxu0 %v4696
      %4868 = vmatprep.mubr.bf16.mxu0 %v4277
      %4869 = vmatmul.mubr.bf16.gmra.mxu0 %v4276
      %v4870 = vpop.f32.mrf.mxu0
      %v4871 = vadd.f32 0.0, %v4870
      %v4872 = vpop.f32.mrf.mxu0
      %v4873 = vpop.f32.mrf.mxu0
      %v4874 = vadd.f32 0.0, %v4873
      %v4875 = vpop.f32.mrf.mxu0
      %4876 = vmatprep.mubr.bf16.mxu0 %v4284
      %4877 = vmatmul.mubr.bf16.gmra.mxu0 %v4283
      %v4878 = vpop.f32.mrf.mxu0
      %v4879 = vadd.f32 0.0, %v4878
      %v4880 = vpop.f32.mrf.mxu0
      %v4881 = vpop.f32.mrf.mxu0
      %v4882 = vadd.f32 0.0, %v4881
      %v4883 = vpop.f32.mrf.mxu0
      %4884 = vmatprep.mubr.bf16.mxu0 %v4291
      %4885 = vmatmul.mubr.bf16.gmra.mxu0 %v4290
      %v4886 = vpop.f32.mrf.mxu0
      %v4887 = vadd.f32 0.0, %v4886
      %v4888 = vpop.f32.mrf.mxu0
      %v4889 = vpop.f32.mrf.mxu0
      %v4890 = vadd.f32 0.0, %v4889
      %v4891 = vpop.f32.mrf.mxu0
      %4892 = vmatprep.mubr.bf16.mxu0 %v4298
      %4893 = vmatmul.mubr.bf16.gmra.mxu0 %v4297
      %v4894 = vpop.f32.mrf.mxu0
      %v4895 = vadd.f32 0.0, %v4894
      %v4896 = vpop.f32.mrf.mxu0
      %v4897 = vpop.f32.mrf.mxu0
      %v4898 = vadd.f32 0.0, %v4897
      %v4899 = vpop.f32.mrf.mxu0
      %4900 = vmatprep.mubr.bf16.mxu0 %v4305
      %4901 = vmatmul.mubr.bf16.gmra.mxu0 %v4304
      %v4902 = vpop.f32.mrf.mxu0
      %v4903 = vadd.f32 0.0, %v4902
      %v4904 = vpop.f32.mrf.mxu0
      %v4905 = vpop.f32.mrf.mxu0
      %v4906 = vadd.f32 0.0, %v4905
      %v4907 = vpop.f32.mrf.mxu0
      %4908 = vmatprep.mubr.bf16.mxu0 %v4312
      %4909 = vmatmul.mubr.bf16.gmra.mxu0 %v4311
      %v4910 = vpop.f32.mrf.mxu0
      %v4911 = vadd.f32 0.0, %v4910
      %v4912 = vpop.f32.mrf.mxu0
      %v4913 = vpop.f32.mrf.mxu0
      %v4914 = vadd.f32 0.0, %v4913
      %v4915 = vpop.f32.mrf.mxu0
      %4916 = vmatprep.mubr.bf16.mxu0 %v4319
      %4917 = vmatmul.mubr.bf16.gmra.mxu0 %v4318
      %v4918 = vpop.f32.mrf.mxu0
      %v4919 = vadd.f32 0.0, %v4918
      %v4920 = vpop.f32.mrf.mxu0
      %v4921 = vpop.f32.mrf.mxu0
      %v4922 = vadd.f32 0.0, %v4921
      %v4923 = vpop.f32.mrf.mxu0
      %4924 = vmatprep.mubr.bf16.mxu0 %v4326
      %4925 = vmatmul.mubr.bf16.gmra.mxu0 %v4325
      %v4926 = vpop.f32.mrf.mxu0
      %v4927 = vadd.f32 0.0, %v4926
      %v4928 = vpop.f32.mrf.mxu0
      %v4929 = vpop.f32.mrf.mxu0
      %v4930 = vadd.f32 0.0, %v4929
      %v4931 = vpop.f32.mrf.mxu0
      %4932 = vmatprep.mubr.bf16.mxu0 %v4333
      %4933 = vmatmul.mubr.bf16.gmra.mxu0 %v4332
      %v4934 = vpop.f32.mrf.mxu0
      %v4935 = vadd.f32 0.0, %v4934
      %v4936 = vpop.f32.mrf.mxu0
      %v4937 = vpop.f32.mrf.mxu0
      %v4938 = vadd.f32 0.0, %v4937
      %v4939 = vpop.f32.mrf.mxu0
      %4940 = vmatprep.mubr.bf16.mxu0 %v4340
      %4941 = vmatmul.mubr.bf16.gmra.mxu0 %v4339
      %v4942 = vpop.f32.mrf.mxu0
      %v4943 = vadd.f32 0.0, %v4942
      %v4944 = vpop.f32.mrf.mxu0
      %v4945 = vpop.f32.mrf.mxu0
      %v4946 = vadd.f32 0.0, %v4945
      %v4947 = vpop.f32.mrf.mxu0
      %4948 = vmatprep.mubr.bf16.mxu0 %v4347
      %4949 = vmatmul.mubr.bf16.gmra.mxu0 %v4346
      %v4950 = vpop.f32.mrf.mxu0
      %v4951 = vadd.f32 0.0, %v4950
      %v4952 = vpop.f32.mrf.mxu0
      %v4953 = vpop.f32.mrf.mxu0
      %v4954 = vadd.f32 0.0, %v4953
      %v4955 = vpop.f32.mrf.mxu0
      %4956 = vmatprep.mubr.bf16.mxu0 %v4354
      %4957 = vmatmul.mubr.bf16.gmra.mxu0 %v4353
      %v4958 = vpop.f32.mrf.mxu0
      %v4959 = vadd.f32 0.0, %v4958
      %v4960 = vpop.f32.mrf.mxu0
      %v4961 = vpop.f32.mrf.mxu0
      %v4962 = vadd.f32 0.0, %v4961
      %v4963 = vpop.f32.mrf.mxu0
      %4964 = vmatprep.mubr.bf16.mxu0 %v4361
      %4965 = vmatmul.mubr.bf16.gmra.mxu0 %v4360
      %v4966 = vpop.f32.mrf.mxu0
      %v4967 = vadd.f32 0.0, %v4966
      %v4968 = vpop.f32.mrf.mxu0
      %v4969 = vpop.f32.mrf.mxu0
      %v4970 = vadd.f32 0.0, %v4969
      %v4971 = vpop.f32.mrf.mxu0
      %4972 = vmatprep.mubr.bf16.mxu0 %v4368
      %4973 = vmatmul.mubr.bf16.gmra.mxu0 %v4367
      %v4974 = vpop.f32.mrf.mxu0
      %v4975 = vadd.f32 0.0, %v4974
      %v4976 = vpop.f32.mrf.mxu0
      %v4977 = vpop.f32.mrf.mxu0
      %v4978 = vadd.f32 0.0, %v4977
      %v4979 = vpop.f32.mrf.mxu0
      %4980 = vmatprep.mubr.bf16.mxu0 %v4375
      %4981 = vmatmul.mubr.bf16.gmra.mxu0 %v4374
      %v4982 = vpop.f32.mrf.mxu0
      %v4983 = vadd.f32 0.0, %v4982
      %v4984 = vpop.f32.mrf.mxu0
      %v4985 = vpop.f32.mrf.mxu0
      %v4986 = vadd.f32 0.0, %v4985
      %v4987 = vpop.f32.mrf.mxu0
      %4988 = vmatprep.mubr.bf16.mxu0 %v4382
      %4989 = vmatmul.mubr.bf16.gmra.mxu0 %v4381
      %v4990 = vpop.f32.mrf.mxu0
      %v4991 = vadd.f32 0.0, %v4990
      %v4992 = vpop.f32.mrf.mxu0
      %v4993 = vpop.f32.mrf.mxu0
      %v4994 = vadd.f32 0.0, %v4993
      %v4995 = vpop.f32.mrf.mxu0
      %4996 = vdwg.mxu0
      %4997 = vmatprep.subr.bf16.mxu0 0
      %4998 = vmatpush1.bf16.msra.mxu0 %v4711
      %4999 = vmatprep.subr.bf16.mxu0 0
      %5000 = vmatpush1.bf16.msra.mxu0 %v4710
      %5001 = vmatprep.subr.bf16.mxu0 0
      %5002 = vmatpush1.bf16.msra.mxu0 %v4709
      %5003 = vmatprep.subr.bf16.mxu0 0
      %5004 = vmatpush1.bf16.msra.mxu0 %v4708
      %5005 = vmatprep.subr.bf16.mxu0 0
      %5006 = vmatpush1.bf16.msra.mxu0 %v4707
      %5007 = vmatprep.subr.bf16.mxu0 0
      %5008 = vmatpush1.bf16.msra.mxu0 %v4706
      %5009 = vmatprep.subr.bf16.mxu0 0
      %5010 = vmatpush1.bf16.msra.mxu0 %v4705
      %5011 = vmatprep.subr.bf16.mxu0 0
      %5012 = vmatpush1.bf16.msra.mxu0 %v4704
      %5013 = vmatprep.subr.bf16.mxu0 0
      %5014 = vmatpush2.bf16.msra.mxu0 %v4719
      %5015 = vmatprep.subr.bf16.mxu0 0
      %5016 = vmatpush2.bf16.msra.mxu0 %v4718
      %5017 = vmatprep.subr.bf16.mxu0 0
      %5018 = vmatpush2.bf16.msra.mxu0 %v4717
      %5019 = vmatprep.subr.bf16.mxu0 0
      %5020 = vmatpush2.bf16.msra.mxu0 %v4716
      %5021 = vmatprep.subr.bf16.mxu0 0
      %5022 = vmatpush2.bf16.msra.mxu0 %v4715
      %5023 = vmatprep.subr.bf16.mxu0 0
      %5024 = vmatpush2.bf16.msra.mxu0 %v4714
      %5025 = vmatprep.subr.bf16.mxu0 0
      %5026 = vmatpush2.bf16.msra.mxu0 %v4713
      %5027 = vmatprep.subr.bf16.mxu0 0
      %5028 = vmatpush2.bf16.msra.mxu0 %v4712
      %5029 = vmatprep.mubr.bf16.mxu0 %v4279
      %5030 = vmatmul.mubr.bf16.gmra.mxu0 %v4278
      %v5031 = vpop.f32.mrf.mxu0
      %v5032 = vadd.f32 %v4871, %v5031
      %v5033 = vpop.f32.mrf.mxu0
      %v5034 = vpop.f32.mrf.mxu0
      %v5035 = vadd.f32 %v4874, %v5034
      %v5036 = vpop.f32.mrf.mxu0
      %5037 = vmatprep.mubr.bf16.mxu0 %v4286
      %5038 = vmatmul.mubr.bf16.gmra.mxu0 %v4285
      %v5039 = vpop.f32.mrf.mxu0
      %v5040 = vadd.f32 %v4879, %v5039
      %v5041 = vpop.f32.mrf.mxu0
      %v5042 = vpop.f32.mrf.mxu0
      %v5043 = vadd.f32 %v4882, %v5042
      %v5044 = vpop.f32.mrf.mxu0
      %5045 = vmatprep.mubr.bf16.mxu0 %v4293
      %5046 = vmatmul.mubr.bf16.gmra.mxu0 %v4292
      %v5047 = vpop.f32.mrf.mxu0
      %v5048 = vadd.f32 %v4887, %v5047
      %v5049 = vpop.f32.mrf.mxu0
      %v5050 = vpop.f32.mrf.mxu0
      %v5051 = vadd.f32 %v4890, %v5050
      %v5052 = vpop.f32.mrf.mxu0
      %5053 = vmatprep.mubr.bf16.mxu0 %v4300
      %5054 = vmatmul.mubr.bf16.gmra.mxu0 %v4299
      %v5055 = vpop.f32.mrf.mxu0
      %v5056 = vadd.f32 %v4895, %v5055
      %v5057 = vpop.f32.mrf.mxu0
      %v5058 = vpop.f32.mrf.mxu0
      %v5059 = vadd.f32 %v4898, %v5058
      %v5060 = vpop.f32.mrf.mxu0
      %5061 = vmatprep.mubr.bf16.mxu0 %v4307
      %5062 = vmatmul.mubr.bf16.gmra.mxu0 %v4306
      %v5063 = vpop.f32.mrf.mxu0
      %v5064 = vadd.f32 %v4903, %v5063
      %v5065 = vpop.f32.mrf.mxu0
      %v5066 = vpop.f32.mrf.mxu0
      %v5067 = vadd.f32 %v4906, %v5066
      %v5068 = vpop.f32.mrf.mxu0
      %5069 = vmatprep.mubr.bf16.mxu0 %v4314
      %5070 = vmatmul.mubr.bf16.gmra.mxu0 %v4313
      %v5071 = vpop.f32.mrf.mxu0
      %v5072 = vadd.f32 %v4911, %v5071
      %v5073 = vpop.f32.mrf.mxu0
      %v5074 = vpop.f32.mrf.mxu0
      %v5075 = vadd.f32 %v4914, %v5074
      %v5076 = vpop.f32.mrf.mxu0
      %5077 = vmatprep.mubr.bf16.mxu0 %v4321
      %5078 = vmatmul.mubr.bf16.gmra.mxu0 %v4320
      %v5079 = vpop.f32.mrf.mxu0
      %v5080 = vadd.f32 %v4919, %v5079
      %v5081 = vpop.f32.mrf.mxu0
      %v5082 = vpop.f32.mrf.mxu0
      %v5083 = vadd.f32 %v4922, %v5082
      %v5084 = vpop.f32.mrf.mxu0
      %5085 = vmatprep.mubr.bf16.mxu0 %v4328
      %5086 = vmatmul.mubr.bf16.gmra.mxu0 %v4327
      %v5087 = vpop.f32.mrf.mxu0
      %v5088 = vadd.f32 %v4927, %v5087
      %v5089 = vpop.f32.mrf.mxu0
      %v5090 = vpop.f32.mrf.mxu0
      %v5091 = vadd.f32 %v4930, %v5090
      %v5092 = vpop.f32.mrf.mxu0
      %5093 = vmatprep.mubr.bf16.mxu0 %v4335
      %5094 = vmatmul.mubr.bf16.gmra.mxu0 %v4334
      %v5095 = vpop.f32.mrf.mxu0
      %v5096 = vadd.f32 %v4935, %v5095
      %v5097 = vpop.f32.mrf.mxu0
      %v5098 = vpop.f32.mrf.mxu0
      %v5099 = vadd.f32 %v4938, %v5098
      %v5100 = vpop.f32.mrf.mxu0
      %5101 = vmatprep.mubr.bf16.mxu0 %v4342
      %5102 = vmatmul.mubr.bf16.gmra.mxu0 %v4341
      %v5103 = vpop.f32.mrf.mxu0
      %v5104 = vadd.f32 %v4943, %v5103
      %v5105 = vpop.f32.mrf.mxu0
      %v5106 = vpop.f32.mrf.mxu0
      %v5107 = vadd.f32 %v4946, %v5106
      %v5108 = vpop.f32.mrf.mxu0
      %5109 = vmatprep.mubr.bf16.mxu0 %v4349
      %5110 = vmatmul.mubr.bf16.gmra.mxu0 %v4348
      %v5111 = vpop.f32.mrf.mxu0
      %v5112 = vadd.f32 %v4951, %v5111
      %v5113 = vpop.f32.mrf.mxu0
      %v5114 = vpop.f32.mrf.mxu0
      %v5115 = vadd.f32 %v4954, %v5114
      %v5116 = vpop.f32.mrf.mxu0
      %5117 = vmatprep.mubr.bf16.mxu0 %v4356
      %5118 = vmatmul.mubr.bf16.gmra.mxu0 %v4355
      %v5119 = vpop.f32.mrf.mxu0
      %v5120 = vadd.f32 %v4959, %v5119
      %v5121 = vpop.f32.mrf.mxu0
      %v5122 = vpop.f32.mrf.mxu0
      %v5123 = vadd.f32 %v4962, %v5122
      %v5124 = vpop.f32.mrf.mxu0
      %5125 = vmatprep.mubr.bf16.mxu0 %v4363
      %5126 = vmatmul.mubr.bf16.gmra.mxu0 %v4362
      %v5127 = vpop.f32.mrf.mxu0
      %v5128 = vadd.f32 %v4967, %v5127
      %v5129 = vpop.f32.mrf.mxu0
      %v5130 = vpop.f32.mrf.mxu0
      %v5131 = vadd.f32 %v4970, %v5130
      %v5132 = vpop.f32.mrf.mxu0
      %5133 = vmatprep.mubr.bf16.mxu0 %v4370
      %5134 = vmatmul.mubr.bf16.gmra.mxu0 %v4369
      %v5135 = vpop.f32.mrf.mxu0
      %v5136 = vadd.f32 %v4975, %v5135
      %v5137 = vpop.f32.mrf.mxu0
      %v5138 = vpop.f32.mrf.mxu0
      %v5139 = vadd.f32 %v4978, %v5138
      %v5140 = vpop.f32.mrf.mxu0
      %5141 = vmatprep.mubr.bf16.mxu0 %v4377
      %5142 = vmatmul.mubr.bf16.gmra.mxu0 %v4376
      %v5143 = vpop.f32.mrf.mxu0
      %v5144 = vadd.f32 %v4983, %v5143
      %v5145 = vpop.f32.mrf.mxu0
      %v5146 = vpop.f32.mrf.mxu0
      %v5147 = vadd.f32 %v4986, %v5146
      %v5148 = vpop.f32.mrf.mxu0
      %5149 = vmatprep.mubr.bf16.mxu0 %v4384
      %5150 = vmatmul.mubr.bf16.gmra.mxu0 %v4383
      %v5151 = vpop.f32.mrf.mxu0
      %v5152 = vadd.f32 %v4991, %v5151
      %v5153 = vpop.f32.mrf.mxu0
      %v5154 = vpop.f32.mrf.mxu0
      %v5155 = vadd.f32 %v4994, %v5154
      %v5156 = vpop.f32.mrf.mxu0
      %5157 = vdwg.mxu0
      %5158 = vmatprep.subr.bf16.mxu0 0
      %5159 = vmatpush1.bf16.msra.mxu0 %v4727
      %5160 = vmatprep.subr.bf16.mxu0 0
      %5161 = vmatpush1.bf16.msra.mxu0 %v4726
      %5162 = vmatprep.subr.bf16.mxu0 0
      %5163 = vmatpush1.bf16.msra.mxu0 %v4725
      %5164 = vmatprep.subr.bf16.mxu0 0
      %5165 = vmatpush1.bf16.msra.mxu0 %v4724
      %5166 = vmatprep.subr.bf16.mxu0 0
      %5167 = vmatpush1.bf16.msra.mxu0 %v4723
      %5168 = vmatprep.subr.bf16.mxu0 0
      %5169 = vmatpush1.bf16.msra.mxu0 %v4722
      %5170 = vmatprep.subr.bf16.mxu0 0
      %5171 = vmatpush1.bf16.msra.mxu0 %v4721
      %5172 = vmatprep.subr.bf16.mxu0 0
      %5173 = vmatpush1.bf16.msra.mxu0 %v4720
      %5174 = vmatprep.subr.bf16.mxu0 0
      %5175 = vmatpush2.bf16.msra.mxu0 %v4735
      %5176 = vmatprep.subr.bf16.mxu0 0
      %5177 = vmatpush2.bf16.msra.mxu0 %v4734
      %5178 = vmatprep.subr.bf16.mxu0 0
      %5179 = vmatpush2.bf16.msra.mxu0 %v4733
      %5180 = vmatprep.subr.bf16.mxu0 0
      %5181 = vmatpush2.bf16.msra.mxu0 %v4732
      %5182 = vmatprep.subr.bf16.mxu0 0
      %5183 = vmatpush2.bf16.msra.mxu0 %v4731
      %5184 = vmatprep.subr.bf16.mxu0 0
      %5185 = vmatpush2.bf16.msra.mxu0 %v4730
      %5186 = vmatprep.subr.bf16.mxu0 0
      %5187 = vmatpush2.bf16.msra.mxu0 %v4729
      %5188 = vmatprep.subr.bf16.mxu0 0
      %5189 = vmatpush2.bf16.msra.mxu0 %v4728
      %5190 = vmatprep.mubr.bf16.mxu0 %v4281
      %5191 = vmatmul.mubr.bf16.gmra.mxu0 %v4280
      %v5192 = vpop.f32.mrf.mxu0
      %v5193 = vadd.f32 %v5032, %v5192
      %v5194 = vpop.f32.mrf.mxu0
      %v5195 = vpop.f32.mrf.mxu0
      %v5196 = vadd.f32 %v5035, %v5195
      %v5197 = vpop.f32.mrf.mxu0
      %5198 = vmatprep.mubr.bf16.mxu0 %v4288
      %5199 = vmatmul.mubr.bf16.gmra.mxu0 %v4287
      %v5200 = vpop.f32.mrf.mxu0
      %v5201 = vadd.f32 %v5040, %v5200
      %v5202 = vpop.f32.mrf.mxu0
      %v5203 = vpop.f32.mrf.mxu0
      %v5204 = vadd.f32 %v5043, %v5203
      %v5205 = vpop.f32.mrf.mxu0
      %5206 = vmatprep.mubr.bf16.mxu0 %v4295
      %5207 = vmatmul.mubr.bf16.gmra.mxu0 %v4294
      %v5208 = vpop.f32.mrf.mxu0
      %v5209 = vadd.f32 %v5048, %v5208
      %v5210 = vpop.f32.mrf.mxu0
      %v5211 = vpop.f32.mrf.mxu0
      %v5212 = vadd.f32 %v5051, %v5211
      %v5213 = vpop.f32.mrf.mxu0
      %5214 = vmatprep.mubr.bf16.mxu0 %v4302
      %5215 = vmatmul.mubr.bf16.gmra.mxu0 %v4301
      %v5216 = vpop.f32.mrf.mxu0
      %v5217 = vadd.f32 %v5056, %v5216
      %v5218 = vpop.f32.mrf.mxu0
      %v5219 = vpop.f32.mrf.mxu0
      %v5220 = vadd.f32 %v5059, %v5219
      %v5221 = vpop.f32.mrf.mxu0
      %5222 = vmatprep.mubr.bf16.mxu0 %v4309
      %5223 = vmatmul.mubr.bf16.gmra.mxu0 %v4308
      %v5224 = vpop.f32.mrf.mxu0
      %v5225 = vadd.f32 %v5064, %v5224
      %v5226 = vpop.f32.mrf.mxu0
      %v5227 = vpop.f32.mrf.mxu0
      %v5228 = vadd.f32 %v5067, %v5227
      %v5229 = vpop.f32.mrf.mxu0
      %5230 = vmatprep.mubr.bf16.mxu0 %v4316
      %5231 = vmatmul.mubr.bf16.gmra.mxu0 %v4315
      %v5232 = vpop.f32.mrf.mxu0
      %v5233 = vadd.f32 %v5072, %v5232
      %v5234 = vpop.f32.mrf.mxu0
      %v5235 = vpop.f32.mrf.mxu0
      %v5236 = vadd.f32 %v5075, %v5235
      %v5237 = vpop.f32.mrf.mxu0
      %5238 = vmatprep.mubr.bf16.mxu0 %v4323
      %5239 = vmatmul.mubr.bf16.gmra.mxu0 %v4322
      %v5240 = vpop.f32.mrf.mxu0
      %v5241 = vadd.f32 %v5080, %v5240
      %v5242 = vpop.f32.mrf.mxu0
      %v5243 = vpop.f32.mrf.mxu0
      %v5244 = vadd.f32 %v5083, %v5243
      %v5245 = vpop.f32.mrf.mxu0
      %5246 = vmatprep.mubr.bf16.mxu0 %v4330
      %5247 = vmatmul.mubr.bf16.gmra.mxu0 %v4329
      %v5248 = vpop.f32.mrf.mxu0
      %v5249 = vadd.f32 %v5088, %v5248
      %v5250 = vpop.f32.mrf.mxu0
      %v5251 = vpop.f32.mrf.mxu0
      %v5252 = vadd.f32 %v5091, %v5251
      %v5253 = vpop.f32.mrf.mxu0
      %5254 = vmatprep.mubr.bf16.mxu0 %v4337
      %5255 = vmatmul.mubr.bf16.gmra.mxu0 %v4336
      %v5256 = vpop.f32.mrf.mxu0
      %v5257 = vadd.f32 %v5096, %v5256
      %v5258 = vpop.f32.mrf.mxu0
      %v5259 = vpop.f32.mrf.mxu0
      %v5260 = vadd.f32 %v5099, %v5259
      %v5261 = vpop.f32.mrf.mxu0
      %5262 = vmatprep.mubr.bf16.mxu0 %v4344
      %5263 = vmatmul.mubr.bf16.gmra.mxu0 %v4343
      %v5264 = vpop.f32.mrf.mxu0
      %v5265 = vadd.f32 %v5104, %v5264
      %v5266 = vpop.f32.mrf.mxu0
      %v5267 = vpop.f32.mrf.mxu0
      %v5268 = vadd.f32 %v5107, %v5267
      %v5269 = vpop.f32.mrf.mxu0
      %5270 = vmatprep.mubr.bf16.mxu0 %v4351
      %5271 = vmatmul.mubr.bf16.gmra.mxu0 %v4350
      %v5272 = vpop.f32.mrf.mxu0
      %v5273 = vadd.f32 %v5112, %v5272
      %v5274 = vpop.f32.mrf.mxu0
      %v5275 = vpop.f32.mrf.mxu0
      %v5276 = vadd.f32 %v5115, %v5275
      %v5277 = vpop.f32.mrf.mxu0
      %5278 = vmatprep.mubr.bf16.mxu0 %v4358
      %5279 = vmatmul.mubr.bf16.gmra.mxu0 %v4357
      %v5280 = vpop.f32.mrf.mxu0
      %v5281 = vadd.f32 %v5120, %v5280
      %v5282 = vpop.f32.mrf.mxu0
      %v5283 = vpop.f32.mrf.mxu0
      %v5284 = vadd.f32 %v5123, %v5283
      %v5285 = vpop.f32.mrf.mxu0
      %5286 = vmatprep.mubr.bf16.mxu0 %v4365
      %5287 = vmatmul.mubr.bf16.gmra.mxu0 %v4364
      %v5288 = vpop.f32.mrf.mxu0
      %v5289 = vadd.f32 %v5128, %v5288
      %v5290 = vpop.f32.mrf.mxu0
      %v5291 = vpop.f32.mrf.mxu0
      %v5292 = vadd.f32 %v5131, %v5291
      %v5293 = vpop.f32.mrf.mxu0
      %5294 = vmatprep.mubr.bf16.mxu0 %v4372
      %5295 = vmatmul.mubr.bf16.gmra.mxu0 %v4371
      %v5296 = vpop.f32.mrf.mxu0
      %v5297 = vadd.f32 %v5136, %v5296
      %v5298 = vpop.f32.mrf.mxu0
      %v5299 = vpop.f32.mrf.mxu0
      %v5300 = vadd.f32 %v5139, %v5299
      %v5301 = vpop.f32.mrf.mxu0
      %5302 = vmatprep.mubr.bf16.mxu0 %v4379
      %5303 = vmatmul.mubr.bf16.gmra.mxu0 %v4378
      %v5304 = vpop.f32.mrf.mxu0
      %v5305 = vadd.f32 %v5144, %v5304
      %v5306 = vpop.f32.mrf.mxu0
      %v5307 = vpop.f32.mrf.mxu0
      %v5308 = vadd.f32 %v5147, %v5307
      %v5309 = vpop.f32.mrf.mxu0
      %5310 = vmatprep.mubr.bf16.mxu0 %v4386
      %5311 = vmatmul.mubr.bf16.gmra.mxu0 %v4385
      %v5312 = vpop.f32.mrf.mxu0
      %v5313 = vadd.f32 %v5152, %v5312
      %v5314 = vpop.f32.mrf.mxu0
      %v5315 = vpop.f32.mrf.mxu0
      %v5316 = vadd.f32 %v5155, %v5315
      %v5317 = vpop.f32.mrf.mxu0
      %5318 = vdwg.mxu0
      %5319 = vmatprep.subr.bf16.mxu0 0
      %5320 = vmatpush1.bf16.msra.mxu0 0
      %5321 = vmatprep.subr.bf16.mxu0 0
      %5322 = vmatpush1.bf16.msra.mxu0 0
      %5323 = vmatprep.subr.bf16.mxu0 0
      %5324 = vmatpush1.bf16.msra.mxu0 0
      %5325 = vmatprep.subr.bf16.mxu0 0
      %5326 = vmatpush1.bf16.msra.mxu0 0
      %5327 = vmatprep.subr.bf16.mxu0 0
      %5328 = vmatpush1.bf16.msra.mxu0 0
      %5329 = vmatprep.subr.bf16.mxu0 0
      %5330 = vmatpush1.bf16.msra.mxu0 0
      %5331 = vmatprep.subr.bf16.mxu0 0
      %5332 = vmatpush1.bf16.msra.mxu0 %v4737
      %5333 = vmatprep.subr.bf16.mxu0 0
      %5334 = vmatpush1.bf16.msra.mxu0 %v4736
      %5335 = vmatprep.subr.bf16.mxu0 0
      %5336 = vmatpush2.bf16.msra.mxu0 0
      %5337 = vmatprep.subr.bf16.mxu0 0
      %5338 = vmatpush2.bf16.msra.mxu0 0
      %5339 = vmatprep.subr.bf16.mxu0 0
      %5340 = vmatpush2.bf16.msra.mxu0 0
      %5341 = vmatprep.subr.bf16.mxu0 0
      %5342 = vmatpush2.bf16.msra.mxu0 0
      %5343 = vmatprep.subr.bf16.mxu0 0
      %5344 = vmatpush2.bf16.msra.mxu0 0
      %5345 = vmatprep.subr.bf16.mxu0 0
      %5346 = vmatpush2.bf16.msra.mxu0 0
      %5347 = vmatprep.subr.bf16.mxu0 0
      %5348 = vmatpush2.bf16.msra.mxu0 0
      %5349 = vmatprep.subr.bf16.mxu0 0
      %5350 = vmatpush2.bf16.msra.mxu0 0
      %5351 = vmatprep.mubr.bf16.mxu0 0
      %5352 = vmatmul.mubr.bf16.gmra.mxu0 %v4789
      %v5353 = vpop.f32.mrf.mxu0
      %v5354 = vadd.f32 %v5193, %v5353
      %v5355 = vpop.f32.mrf.mxu0
      %v5356 = vpop.f32.mrf.mxu0
      %v5357 = vadd.f32 %v5196, %v5356
      %v5358 = vpop.f32.mrf.mxu0
      %5359 = vmatprep.mubr.bf16.mxu0 0
      %5360 = vmatmul.mubr.bf16.gmra.mxu0 %v4792
      %v5361 = vpop.f32.mrf.mxu0
      %v5362 = vadd.f32 %v5201, %v5361
      %v5363 = vpop.f32.mrf.mxu0
      %v5364 = vpop.f32.mrf.mxu0
      %v5365 = vadd.f32 %v5204, %v5364
      %v5366 = vpop.f32.mrf.mxu0
      %5367 = vmatprep.mubr.bf16.mxu0 0
      %5368 = vmatmul.mubr.bf16.gmra.mxu0 %v4795
      %v5369 = vpop.f32.mrf.mxu0
      %v5370 = vadd.f32 %v5209, %v5369
      %v5371 = vpop.f32.mrf.mxu0
      %v5372 = vpop.f32.mrf.mxu0
      %v5373 = vadd.f32 %v5212, %v5372
      %v5374 = vpop.f32.mrf.mxu0
      %5375 = vmatprep.mubr.bf16.mxu0 0
      %5376 = vmatmul.mubr.bf16.gmra.mxu0 %v4798
      %v5377 = vpop.f32.mrf.mxu0
      %v5378 = vadd.f32 %v5217, %v5377
      %v5379 = vpop.f32.mrf.mxu0
      %v5380 = vpop.f32.mrf.mxu0
      %v5381 = vadd.f32 %v5220, %v5380
      %v5382 = vpop.f32.mrf.mxu0
      %5383 = vmatprep.mubr.bf16.mxu0 0
      %5384 = vmatmul.mubr.bf16.gmra.mxu0 %v4801
      %v5385 = vpop.f32.mrf.mxu0
      %v5386 = vadd.f32 %v5225, %v5385
      %v5387 = vpop.f32.mrf.mxu0
      %v5388 = vpop.f32.mrf.mxu0
      %v5389 = vadd.f32 %v5228, %v5388
      %v5390 = vpop.f32.mrf.mxu0
      %5391 = vmatprep.mubr.bf16.mxu0 0
      %5392 = vmatmul.mubr.bf16.gmra.mxu0 %v4804
      %v5393 = vpop.f32.mrf.mxu0
      %v5394 = vadd.f32 %v5233, %v5393
      %v5395 = vpop.f32.mrf.mxu0
      %v5396 = vpop.f32.mrf.mxu0
      %v5397 = vadd.f32 %v5236, %v5396
      %v5398 = vpop.f32.mrf.mxu0
      %5399 = vmatprep.mubr.bf16.mxu0 0
      %5400 = vmatmul.mubr.bf16.gmra.mxu0 %v4807
      %v5401 = vpop.f32.mrf.mxu0
      %v5402 = vadd.f32 %v5241, %v5401
      %v5403 = vpop.f32.mrf.mxu0
      %v5404 = vpop.f32.mrf.mxu0
      %v5405 = vadd.f32 %v5244, %v5404
      %v5406 = vpop.f32.mrf.mxu0
      %5407 = vmatprep.mubr.bf16.mxu0 0
      %5408 = vmatmul.mubr.bf16.gmra.mxu0 %v4810
      %v5409 = vpop.f32.mrf.mxu0
      %v5410 = vadd.f32 %v5249, %v5409
      %v5411 = vpop.f32.mrf.mxu0
      %v5412 = vpop.f32.mrf.mxu0
      %v5413 = vadd.f32 %v5252, %v5412
      %v5414 = vpop.f32.mrf.mxu0
      %5415 = vmatprep.mubr.bf16.mxu0 0
      %5416 = vmatmul.mubr.bf16.gmra.mxu0 %v4813
      %v5417 = vpop.f32.mrf.mxu0
      %v5418 = vadd.f32 %v5257, %v5417
      %v5419 = vpop.f32.mrf.mxu0
      %v5420 = vpop.f32.mrf.mxu0
      %v5421 = vadd.f32 %v5260, %v5420
      %v5422 = vpop.f32.mrf.mxu0
      %5423 = vmatprep.mubr.bf16.mxu0 0
      %5424 = vmatmul.mubr.bf16.gmra.mxu0 %v4816
      %v5425 = vpop.f32.mrf.mxu0
      %v5426 = vadd.f32 %v5265, %v5425
      %v5427 = vpop.f32.mrf.mxu0
      %v5428 = vpop.f32.mrf.mxu0
      %v5429 = vadd.f32 %v5268, %v5428
      %v5430 = vpop.f32.mrf.mxu0
      %5431 = vmatprep.mubr.bf16.mxu0 0
      %5432 = vmatmul.mubr.bf16.gmra.mxu0 %v4819
      %v5433 = vpop.f32.mrf.mxu0
      %v5434 = vadd.f32 %v5273, %v5433
      %v5435 = vpop.f32.mrf.mxu0
      %v5436 = vpop.f32.mrf.mxu0
      %v5437 = vadd.f32 %v5276, %v5436
      %v5438 = vpop.f32.mrf.mxu0
      %5439 = vmatprep.mubr.bf16.mxu0 0
      %5440 = vmatmul.mubr.bf16.gmra.mxu0 %v4822
      %v5441 = vpop.f32.mrf.mxu0
      %v5442 = vadd.f32 %v5281, %v5441
      %v5443 = vpop.f32.mrf.mxu0
      %v5444 = vpop.f32.mrf.mxu0
      %v5445 = vadd.f32 %v5284, %v5444
      %v5446 = vpop.f32.mrf.mxu0
      %5447 = vmatprep.mubr.bf16.mxu0 0
      %5448 = vmatmul.mubr.bf16.gmra.mxu0 %v4825
      %v5449 = vpop.f32.mrf.mxu0
      %v5450 = vadd.f32 %v5289, %v5449
      %v5451 = vpop.f32.mrf.mxu0
      %v5452 = vpop.f32.mrf.mxu0
      %v5453 = vadd.f32 %v5292, %v5452
      %v5454 = vpop.f32.mrf.mxu0
      %5455 = vmatprep.mubr.bf16.mxu0 0
      %5456 = vmatmul.mubr.bf16.gmra.mxu0 %v4828
      %v5457 = vpop.f32.mrf.mxu0
      %v5458 = vadd.f32 %v5297, %v5457
      %v5459 = vpop.f32.mrf.mxu0
      %v5460 = vpop.f32.mrf.mxu0
      %v5461 = vadd.f32 %v5300, %v5460
      %v5462 = vpop.f32.mrf.mxu0
      %5463 = vmatprep.mubr.bf16.mxu0 0
      %5464 = vmatmul.mubr.bf16.gmra.mxu0 %v4831
      %v5465 = vpop.f32.mrf.mxu0
      %v5466 = vadd.f32 %v5305, %v5465
      %v5467 = vpop.f32.mrf.mxu0
      %v5468 = vpop.f32.mrf.mxu0
      %v5469 = vadd.f32 %v5308, %v5468
      %v5470 = vpop.f32.mrf.mxu0
      %5471 = vmatprep.mubr.bf16.mxu0 0
      %5472 = vmatmul.mubr.bf16.gmra.mxu0 %v4834
      %v5473 = vpop.f32.mrf.mxu0
      %v5474 = vadd.f32 %v5313, %v5473
      %v5475 = vpop.f32.mrf.mxu0
      %v5476 = vpop.f32.mrf.mxu0
      %v5477 = vadd.f32 %v5316, %v5476
      %v5478 = vpop.f32.mrf.mxu0
      %5479 = vdwg.mxu0
      %v5480 = vmul.f32 %v5354, 0.25
      %v5481 = vmul.f32 %v5357, 0.25
      %v5482 = vmul.f32 %v5362, 0.25
      %v5483 = vmul.f32 %v5365, 0.25
      %v5484 = vmul.f32 %v5370, 0.25
      %v5485 = vmul.f32 %v5373, 0.25
      %v5486 = vmul.f32 %v5378, 0.25
      %v5487 = vmul.f32 %v5381, 0.25
      %v5488 = vmul.f32 %v5386, 0.25
      %v5489 = vmul.f32 %v5389, 0.25
      %v5490 = vmul.f32 %v5394, 0.25
      %v5491 = vmul.f32 %v5397, 0.25
      %v5492 = vmul.f32 %v5402, 0.25
      %v5493 = vmul.f32 %v5405, 0.25
      %v5494 = vmul.f32 %v5410, 0.25
      %v5495 = vmul.f32 %v5413, 0.25
      %v5496 = vmul.f32 %v5418, 0.25
      %v5497 = vmul.f32 %v5421, 0.25
      %v5498 = vmul.f32 %v5426, 0.25
      %v5499 = vmul.f32 %v5429, 0.25
      %v5500 = vmul.f32 %v5434, 0.25
      %v5501 = vmul.f32 %v5437, 0.25
      %v5502 = vmul.f32 %v5442, 0.25
      %v5503 = vmul.f32 %v5445, 0.25
      %v5504 = vmul.f32 %v5450, 0.25
      %v5505 = vmul.f32 %v5453, 0.25
      %v5506 = vmul.f32 %v5458, 0.25
      %v5507 = vmul.f32 %v5461, 0.25
      %v5508 = vmul.f32 %v5466, 0.25
      %v5509 = vmul.f32 %v5469, 0.25
      %v5510 = vmul.f32 %v5474, 0.25
      %v5511 = vmul.f32 %v5477, 0.25
      %vm5512 = vcmask 408576
      %v5513 = vsel %vm5512, %v5480, -inf
      %5514 = vmax.xlane.f32.xlu0 %v5513
      %v5515 = vpop.xlane.xlu0 %5514
      %v5516 = vsel %vm5512, %v5481, -inf
      %5517 = vmax.xlane.f32.xlu0 %v5516
      %v5518 = vpop.xlane.xlu0 %5517
      %v5519 = vsel %vm5512, %v5482, -inf
      %5520 = vmax.xlane.f32.xlu0 %v5519
      %v5521 = vpop.xlane.xlu0 %5520
      %v5522 = vsel %vm5512, %v5483, -inf
      %5523 = vmax.xlane.f32.xlu0 %v5522
      %v5524 = vpop.xlane.xlu0 %5523
      %v5525 = vsel %vm5512, %v5484, -inf
      %5526 = vmax.xlane.f32.xlu0 %v5525
      %v5527 = vpop.xlane.xlu0 %5526
      %v5528 = vsel %vm5512, %v5485, -inf
      %5529 = vmax.xlane.f32.xlu0 %v5528
      %v5530 = vpop.xlane.xlu0 %5529
      %v5531 = vsel %vm5512, %v5486, -inf
      %5532 = vmax.xlane.f32.xlu0 %v5531
      %v5533 = vpop.xlane.xlu0 %5532
      %v5534 = vsel %vm5512, %v5487, -inf
      %5535 = vmax.xlane.f32.xlu0 %v5534
      %v5536 = vpop.xlane.xlu0 %5535
      %v5537 = vsel %vm5512, %v5488, -inf
      %5538 = vmax.xlane.f32.xlu0 %v5537
      %v5539 = vpop.xlane.xlu0 %5538
      %v5540 = vsel %vm5512, %v5489, -inf
      %5541 = vmax.xlane.f32.xlu0 %v5540
      %v5542 = vpop.xlane.xlu0 %5541
      %v5543 = vsel %vm5512, %v5490, -inf
      %5544 = vmax.xlane.f32.xlu0 %v5543
      %v5545 = vpop.xlane.xlu0 %5544
      %v5546 = vsel %vm5512, %v5491, -inf
      %5547 = vmax.xlane.f32.xlu0 %v5546
      %v5548 = vpop.xlane.xlu0 %5547
      %v5549 = vsel %vm5512, %v5492, -inf
      %5550 = vmax.xlane.f32.xlu0 %v5549
      %v5551 = vpop.xlane.xlu0 %5550
      %v5552 = vsel %vm5512, %v5493, -inf
      %5553 = vmax.xlane.f32.xlu0 %v5552
      %v5554 = vpop.xlane.xlu0 %5553
      %v5555 = vsel %vm5512, %v5494, -inf
      %5556 = vmax.xlane.f32.xlu0 %v5555
      %v5557 = vpop.xlane.xlu0 %5556
      %v5558 = vsel %vm5512, %v5495, -inf
      %5559 = vmax.xlane.f32.xlu0 %v5558
      %v5560 = vpop.xlane.xlu0 %5559
      %v5561 = vsel %vm5512, %v5496, -inf
      %5562 = vmax.xlane.f32.xlu0 %v5561
      %v5563 = vpop.xlane.xlu0 %5562
      %v5564 = vsel %vm5512, %v5497, -inf
      %5565 = vmax.xlane.f32.xlu0 %v5564
      %v5566 = vpop.xlane.xlu0 %5565
      %v5567 = vsel %vm5512, %v5498, -inf
      %5568 = vmax.xlane.f32.xlu0 %v5567
      %v5569 = vpop.xlane.xlu0 %5568
      %v5570 = vsel %vm5512, %v5499, -inf
      %5571 = vmax.xlane.f32.xlu0 %v5570
      %v5572 = vpop.xlane.xlu0 %5571
      %v5573 = vsel %vm5512, %v5500, -inf
      %5574 = vmax.xlane.f32.xlu0 %v5573
      %v5575 = vpop.xlane.xlu0 %5574
      %v5576 = vsel %vm5512, %v5501, -inf
      %5577 = vmax.xlane.f32.xlu0 %v5576
      %v5578 = vpop.xlane.xlu0 %5577
      %v5579 = vsel %vm5512, %v5502, -inf
      %5580 = vmax.xlane.f32.xlu0 %v5579
      %v5581 = vpop.xlane.xlu0 %5580
      %v5582 = vsel %vm5512, %v5503, -inf
      %5583 = vmax.xlane.f32.xlu0 %v5582
      %v5584 = vpop.xlane.xlu0 %5583
      %v5585 = vsel %vm5512, %v5504, -inf
      %5586 = vmax.xlane.f32.xlu0 %v5585
      %v5587 = vpop.xlane.xlu0 %5586
      %v5588 = vsel %vm5512, %v5505, -inf
      %5589 = vmax.xlane.f32.xlu0 %v5588
      %v5590 = vpop.xlane.xlu0 %5589
      %v5591 = vsel %vm5512, %v5506, -inf
      %5592 = vmax.xlane.f32.xlu0 %v5591
      %v5593 = vpop.xlane.xlu0 %5592
      %v5594 = vsel %vm5512, %v5507, -inf
      %5595 = vmax.xlane.f32.xlu0 %v5594
      %v5596 = vpop.xlane.xlu0 %5595
      %v5597 = vsel %vm5512, %v5508, -inf
      %5598 = vmax.xlane.f32.xlu0 %v5597
      %v5599 = vpop.xlane.xlu0 %5598
      %v5600 = vsel %vm5512, %v5509, -inf
      %5601 = vmax.xlane.f32.xlu0 %v5600
      %v5602 = vpop.xlane.xlu0 %5601
      %v5603 = vsel %vm5512, %v5510, -inf
      %5604 = vmax.xlane.f32.xlu0 %v5603
      %v5605 = vpop.xlane.xlu0 %5604
      %v5606 = vsel %vm5512, %v5511, -inf
      %5607 = vmax.xlane.f32.xlu0 %v5606
      %v5608 = vpop.xlane.xlu0 %5607
      %v5609 = vsub.f32 %v5480, %v5515
      %v5610 = vsub.f32 %v5481, %v5518
      %v5611 = vsub.f32 %v5482, %v5521
      %v5612 = vsub.f32 %v5483, %v5524
      %v5613 = vsub.f32 %v5484, %v5527
      %v5614 = vsub.f32 %v5485, %v5530
      %v5615 = vsub.f32 %v5486, %v5533
      %v5616 = vsub.f32 %v5487, %v5536
      %v5617 = vsub.f32 %v5488, %v5539
      %v5618 = vsub.f32 %v5489, %v5542
      %v5619 = vsub.f32 %v5490, %v5545
      %v5620 = vsub.f32 %v5491, %v5548
      %v5621 = vsub.f32 %v5492, %v5551
      %v5622 = vsub.f32 %v5493, %v5554
      %v5623 = vsub.f32 %v5494, %v5557
      %v5624 = vsub.f32 %v5495, %v5560
      %v5625 = vsub.f32 %v5496, %v5563
      %v5626 = vsub.f32 %v5497, %v5566
      %v5627 = vsub.f32 %v5498, %v5569
      %v5628 = vsub.f32 %v5499, %v5572
      %v5629 = vsub.f32 %v5500, %v5575
      %v5630 = vsub.f32 %v5501, %v5578
      %v5631 = vsub.f32 %v5502, %v5581
      %v5632 = vsub.f32 %v5503, %v5584
      %v5633 = vsub.f32 %v5504, %v5587
      %v5634 = vsub.f32 %v5505, %v5590
      %v5635 = vsub.f32 %v5506, %v5593
      %v5636 = vsub.f32 %v5507, %v5596
      %v5637 = vsub.f32 %v5508, %v5599
      %v5638 = vsub.f32 %v5509, %v5602
      %v5639 = vsub.f32 %v5510, %v5605
      %v5640 = vsub.f32 %v5511, %v5608
      %v5641 = vmul.f32 %v5609, 1.442695
      %v5642 = vpow.pop %v5641
      %v5643 = vmul.f32 %v5610, 1.442695
      %v5644 = vpow.pop %v5643
      %v5645 = vmul.f32 %v5611, 1.442695
      %v5646 = vpow.pop %v5645
      %v5647 = vmul.f32 %v5612, 1.442695
      %v5648 = vpow.pop %v5647
      %v5649 = vmul.f32 %v5613, 1.442695
      %v5650 = vpow.pop %v5649
      %v5651 = vmul.f32 %v5614, 1.442695
      %v5652 = vpow.pop %v5651
      %v5653 = vmul.f32 %v5615, 1.442695
      %v5654 = vpow.pop %v5653
      %v5655 = vmul.f32 %v5616, 1.442695
      %v5656 = vpow.pop %v5655
      %v5657 = vmul.f32 %v5617, 1.442695
      %v5658 = vpow.pop %v5657
      %v5659 = vmul.f32 %v5618, 1.442695
      %v5660 = vpow.pop %v5659
      %v5661 = vmul.f32 %v5619, 1.442695
      %v5662 = vpow.pop %v5661
      %v5663 = vmul.f32 %v5620, 1.442695
      %v5664 = vpow.pop %v5663
      %v5665 = vmul.f32 %v5621, 1.442695
      %v5666 = vpow.pop %v5665
      %v5667 = vmul.f32 %v5622, 1.442695
      %v5668 = vpow.pop %v5667
      %v5669 = vmul.f32 %v5623, 1.442695
      %v5670 = vpow.pop %v5669
      %v5671 = vmul.f32 %v5624, 1.442695
      %v5672 = vpow.pop %v5671
      %v5673 = vmul.f32 %v5625, 1.442695
      %v5674 = vpow.pop %v5673
      %v5675 = vmul.f32 %v5626, 1.442695
      %v5676 = vpow.pop %v5675
      %v5677 = vmul.f32 %v5627, 1.442695
      %v5678 = vpow.pop %v5677
      %v5679 = vmul.f32 %v5628, 1.442695
      %v5680 = vpow.pop %v5679
      %v5681 = vmul.f32 %v5629, 1.442695
      %v5682 = vpow.pop %v5681
      %v5683 = vmul.f32 %v5630, 1.442695
      %v5684 = vpow.pop %v5683
      %v5685 = vmul.f32 %v5631, 1.442695
      %v5686 = vpow.pop %v5685
      %v5687 = vmul.f32 %v5632, 1.442695
      %v5688 = vpow.pop %v5687
      %v5689 = vmul.f32 %v5633, 1.442695
      %v5690 = vpow.pop %v5689
      %v5691 = vmul.f32 %v5634, 1.442695
      %v5692 = vpow.pop %v5691
      %v5693 = vmul.f32 %v5635, 1.442695
      %v5694 = vpow.pop %v5693
      %v5695 = vmul.f32 %v5636, 1.442695
      %v5696 = vpow.pop %v5695
      %v5697 = vmul.f32 %v5637, 1.442695
      %v5698 = vpow.pop %v5697
      %v5699 = vmul.f32 %v5638, 1.442695
      %v5700 = vpow.pop %v5699
      %v5701 = vmul.f32 %v5639, 1.442695
      %v5702 = vpow.pop %v5701
      %v5703 = vmul.f32 %v5640, 1.442695
      %v5704 = vpow.pop %v5703
      %v5705 = vld [vmem:[%s14] sm:$0xff]
      %v5706 = vld [vmem:[%s14 + $0x8] sm:$0xff]
      %v5707 = vld [vmem:[%s14 + $0x10] sm:$0xff]
      %v5708 = vld [vmem:[%s14 + $0x18] sm:$0xff]
      %v5709 = vld [vmem:[%s14 + $0x20] sm:$0xff]
      %v5710 = vld [vmem:[%s14 + $0x28] sm:$0xff]
      %v5711 = vld [vmem:[%s14 + $0x30] sm:$0x3]
      %v5713 = vsel %vm5512, %v5642, 0
      %v5716 = vsel %vm5512, %v5644, 0
      %v5719 = vsel %vm5512, %v5646, 0
      %v5722 = vsel %vm5512, %v5648, 0
      %v5725 = vsel %vm5512, %v5650, 0
      %v5728 = vsel %vm5512, %v5652, 0
      %v5731 = vsel %vm5512, %v5654, 0
      %v5734 = vsel %vm5512, %v5656, 0
      %v5737 = vsel %vm5512, %v5658, 0
      %v5740 = vsel %vm5512, %v5660, 0
      %v5743 = vsel %vm5512, %v5662, 0
      %v5746 = vsel %vm5512, %v5664, 0
      %v5749 = vsel %vm5512, %v5666, 0
      %v5752 = vsel %vm5512, %v5668, 0
      %v5755 = vsel %vm5512, %v5670, 0
      %v5758 = vsel %vm5512, %v5672, 0
      %v5761 = vsel %vm5512, %v5674, 0
      %v5764 = vsel %vm5512, %v5676, 0
      %v5767 = vsel %vm5512, %v5678, 0
      %v5770 = vsel %vm5512, %v5680, 0
      %v5773 = vsel %vm5512, %v5682, 0
      %v5776 = vsel %vm5512, %v5684, 0
      %v5779 = vsel %vm5512, %v5686, 0
      %v5782 = vsel %vm5512, %v5688, 0
      %v5785 = vsel %vm5512, %v5690, 0
      %v5788 = vsel %vm5512, %v5692, 0
      %v5791 = vsel %vm5512, %v5694, 0
      %v5794 = vsel %vm5512, %v5696, 0
      %v5797 = vsel %vm5512, %v5698, 0
      %v5800 = vsel %vm5512, %v5700, 0
      %v5803 = vsel %vm5512, %v5702, 0
      %v5806 = vsel %vm5512, %v5704, 0
      %vm5808 = vcmask 1041408
      %v5810 = vsel %vm5808, %v5711, 0
      %5812 = vmatprep.subr.mxu0 0.0
      %5813 = vmatpush1.msra.mxu0 0.0
      %5814 = vmatprep.subr.mxu0 0.0
      %5815 = vmatpush1.msra.mxu0 0.0
      %5816 = vmatprep.subr.mxu0 0.0
      %5817 = vmatpush1.msra.mxu0 0.0
      %5818 = vmatprep.subr.mxu0 0.0
      %5819 = vmatpush1.msra.mxu0 0.0
      %5820 = vmatprep.subr.mxu0 0.0
      %5821 = vmatpush1.msra.mxu0 0.0
      %5822 = vmatprep.subr.mxu0 0.0
      %5823 = vmatpush1.msra.mxu0 0.0
      %5824 = vmatprep.subr.mxu0 0.0
      %5825 = vmatpush1.msra.mxu0 0.0
      %5826 = vmatprep.subr.mxu0 0.0
      %5827 = vmatpush1.msra.mxu0 0.0
      %5828 = vmatprep.subr.mxu0 0.0
      %5829 = vmatpush1.msra.mxu0 0.0
      %5830 = vmatprep.subr.mxu0 0.0
      %5831 = vmatpush1.msra.mxu0 %v5810
      %5832 = vmatprep.subr.mxu0 0.0
      %5833 = vmatpush1.msra.mxu0 %v5710
      %5834 = vmatprep.subr.mxu0 0.0
      %5835 = vmatpush1.msra.mxu0 %v5709
      %5836 = vmatprep.subr.mxu0 0.0
      %5837 = vmatpush1.msra.mxu0 %v5708
      %5838 = vmatprep.subr.mxu0 0.0
      %5839 = vmatpush1.msra.mxu0 %v5707
      %5840 = vmatprep.subr.mxu0 0.0
      %5841 = vmatpush1.msra.mxu0 %v5706
      %5842 = vmatprep.subr.mxu0 0.0
      %5843 = vmatpush1.msra.mxu0 %v5705
      %5844 = vmatprep.subr.mxu0 0.0
      %5845 = vmatpush2.msra.mxu0 0.0
      %5846 = vmatprep.subr.mxu0 0.0
      %5847 = vmatpush2.msra.mxu0 0.0
      %5848 = vmatprep.subr.mxu0 0.0
      %5849 = vmatpush2.msra.mxu0 0.0
      %5850 = vmatprep.subr.mxu0 0.0
      %5851 = vmatpush2.msra.mxu0 0.0
      %5852 = vmatprep.subr.mxu0 0.0
      %5853 = vmatpush2.msra.mxu0 0.0
      %5854 = vmatprep.subr.mxu0 0.0
      %5855 = vmatpush2.msra.mxu0 0.0
      %5856 = vmatprep.subr.mxu0 0.0
      %5857 = vmatpush2.msra.mxu0 0.0
      %5858 = vmatprep.subr.mxu0 0.0
      %5859 = vmatpush2.msra.mxu0 0.0
      %5860 = vmatprep.subr.mxu0 0.0
      %5861 = vmatpush2.msra.mxu0 0.0
      %5862 = vmatprep.subr.mxu0 0.0
      %5863 = vmatpush2.msra.mxu0 0.0
      %5864 = vmatprep.subr.mxu0 0.0
      %5865 = vmatpush2.msra.mxu0 0.0
      %5866 = vmatprep.subr.mxu0 0.0
      %5867 = vmatpush2.msra.mxu0 0.0
      %5868 = vmatprep.subr.mxu0 0.0
      %5869 = vmatpush2.msra.mxu0 0.0
      %5870 = vmatprep.subr.mxu0 0.0
      %5871 = vmatpush2.msra.mxu0 0.0
      %5872 = vmatprep.subr.mxu0 0.0
      %5873 = vmatpush2.msra.mxu0 0.0
      %5874 = vmatprep.subr.mxu0 0.0
      %5875 = vmatpush2.msra.mxu0 0.0
      %5876 = vmatprep.mubr.f32.mxu0 0.0
      %5877 = vmatmul.mubr.f32.gmra.mxu0 %v5713
      %v5878 = vpop.f32.mrf.mxu0
      %v5879 = vadd.f32 0.0, %v5878
      %v5880 = vpop.f32.mrf.mxu0
      %5881 = vmatprep.mubr.f32.mxu0 0.0
      %5882 = vmatmul.mubr.f32.gmra.mxu0 %v5716
      %v5883 = vpop.f32.mrf.mxu0
      %v5884 = vadd.f32 0.0, %v5883
      %v5885 = vpop.f32.mrf.mxu0
      %5886 = vmatprep.mubr.f32.mxu0 0.0
      %5887 = vmatmul.mubr.f32.gmra.mxu0 %v5719
      %v5888 = vpop.f32.mrf.mxu0
      %v5889 = vadd.f32 0.0, %v5888
      %v5890 = vpop.f32.mrf.mxu0
      %5891 = vmatprep.mubr.f32.mxu0 0.0
      %5892 = vmatmul.mubr.f32.gmra.mxu0 %v5722
      %v5893 = vpop.f32.mrf.mxu0
      %v5894 = vadd.f32 0.0, %v5893
      %v5895 = vpop.f32.mrf.mxu0
      %5896 = vmatprep.mubr.f32.mxu0 0.0
      %5897 = vmatmul.mubr.f32.gmra.mxu0 %v5725
      %v5898 = vpop.f32.mrf.mxu0
      %v5899 = vadd.f32 0.0, %v5898
      %v5900 = vpop.f32.mrf.mxu0
      %5901 = vmatprep.mubr.f32.mxu0 0.0
      %5902 = vmatmul.mubr.f32.gmra.mxu0 %v5728
      %v5903 = vpop.f32.mrf.mxu0
      %v5904 = vadd.f32 0.0, %v5903
      %v5905 = vpop.f32.mrf.mxu0
      %5906 = vmatprep.mubr.f32.mxu0 0.0
      %5907 = vmatmul.mubr.f32.gmra.mxu0 %v5731
      %v5908 = vpop.f32.mrf.mxu0
      %v5909 = vadd.f32 0.0, %v5908
      %v5910 = vpop.f32.mrf.mxu0
      %5911 = vmatprep.mubr.f32.mxu0 0.0
      %5912 = vmatmul.mubr.f32.gmra.mxu0 %v5734
      %v5913 = vpop.f32.mrf.mxu0
      %v5914 = vadd.f32 0.0, %v5913
      %v5915 = vpop.f32.mrf.mxu0
      %5916 = vmatprep.mubr.f32.mxu0 0.0
      %5917 = vmatmul.mubr.f32.gmra.mxu0 %v5737
      %v5918 = vpop.f32.mrf.mxu0
      %v5919 = vadd.f32 0.0, %v5918
      %v5920 = vpop.f32.mrf.mxu0
      %5921 = vmatprep.mubr.f32.mxu0 0.0
      %5922 = vmatmul.mubr.f32.gmra.mxu0 %v5740
      %v5923 = vpop.f32.mrf.mxu0
      %v5924 = vadd.f32 0.0, %v5923
      %v5925 = vpop.f32.mrf.mxu0
      %5926 = vmatprep.mubr.f32.mxu0 0.0
      %5927 = vmatmul.mubr.f32.gmra.mxu0 %v5743
      %v5928 = vpop.f32.mrf.mxu0
      %v5929 = vadd.f32 0.0, %v5928
      %v5930 = vpop.f32.mrf.mxu0
      %5931 = vmatprep.mubr.f32.mxu0 0.0
      %5932 = vmatmul.mubr.f32.gmra.mxu0 %v5746
      %v5933 = vpop.f32.mrf.mxu0
      %v5934 = vadd.f32 0.0, %v5933
      %v5935 = vpop.f32.mrf.mxu0
      %5936 = vmatprep.mubr.f32.mxu0 0.0
      %5937 = vmatmul.mubr.f32.gmra.mxu0 %v5749
      %v5938 = vpop.f32.mrf.mxu0
      %v5939 = vadd.f32 0.0, %v5938
      %v5940 = vpop.f32.mrf.mxu0
      %5941 = vmatprep.mubr.f32.mxu0 0.0
      %5942 = vmatmul.mubr.f32.gmra.mxu0 %v5752
      %v5943 = vpop.f32.mrf.mxu0
      %v5944 = vadd.f32 0.0, %v5943
      %v5945 = vpop.f32.mrf.mxu0
      %5946 = vmatprep.mubr.f32.mxu0 0.0
      %5947 = vmatmul.mubr.f32.gmra.mxu0 %v5755
      %v5948 = vpop.f32.mrf.mxu0
      %v5949 = vadd.f32 0.0, %v5948
      %v5950 = vpop.f32.mrf.mxu0
      %5951 = vmatprep.mubr.f32.mxu0 0.0
      %5952 = vmatmul.mubr.f32.gmra.mxu0 %v5758
      %v5953 = vpop.f32.mrf.mxu0
      %v5954 = vadd.f32 0.0, %v5953
      %v5955 = vpop.f32.mrf.mxu0
      %5956 = vmatprep.mubr.f32.mxu0 0.0
      %5957 = vmatmul.mubr.f32.gmra.mxu0 %v5761
      %v5958 = vpop.f32.mrf.mxu0
      %v5959 = vadd.f32 0.0, %v5958
      %v5960 = vpop.f32.mrf.mxu0
      %5961 = vmatprep.mubr.f32.mxu0 0.0
      %5962 = vmatmul.mubr.f32.gmra.mxu0 %v5764
      %v5963 = vpop.f32.mrf.mxu0
      %v5964 = vadd.f32 0.0, %v5963
      %v5965 = vpop.f32.mrf.mxu0
      %5966 = vmatprep.mubr.f32.mxu0 0.0
      %5967 = vmatmul.mubr.f32.gmra.mxu0 %v5767
      %v5968 = vpop.f32.mrf.mxu0
      %v5969 = vadd.f32 0.0, %v5968
      %v5970 = vpop.f32.mrf.mxu0
      %5971 = vmatprep.mubr.f32.mxu0 0.0
      %5972 = vmatmul.mubr.f32.gmra.mxu0 %v5770
      %v5973 = vpop.f32.mrf.mxu0
      %v5974 = vadd.f32 0.0, %v5973
      %v5975 = vpop.f32.mrf.mxu0
      %5976 = vmatprep.mubr.f32.mxu0 0.0
      %5977 = vmatmul.mubr.f32.gmra.mxu0 %v5773
      %v5978 = vpop.f32.mrf.mxu0
      %v5979 = vadd.f32 0.0, %v5978
      %v5980 = vpop.f32.mrf.mxu0
      %5981 = vmatprep.mubr.f32.mxu0 0.0
      %5982 = vmatmul.mubr.f32.gmra.mxu0 %v5776
      %v5983 = vpop.f32.mrf.mxu0
      %v5984 = vadd.f32 0.0, %v5983
      %v5985 = vpop.f32.mrf.mxu0
      %5986 = vmatprep.mubr.f32.mxu0 0.0
      %5987 = vmatmul.mubr.f32.gmra.mxu0 %v5779
      %v5988 = vpop.f32.mrf.mxu0
      %v5989 = vadd.f32 0.0, %v5988
      %v5990 = vpop.f32.mrf.mxu0
      %5991 = vmatprep.mubr.f32.mxu0 0.0
      %5992 = vmatmul.mubr.f32.gmra.mxu0 %v5782
      %v5993 = vpop.f32.mrf.mxu0
      %v5994 = vadd.f32 0.0, %v5993
      %v5995 = vpop.f32.mrf.mxu0
      %5996 = vmatprep.mubr.f32.mxu0 0.0
      %5997 = vmatmul.mubr.f32.gmra.mxu0 %v5785
      %v5998 = vpop.f32.mrf.mxu0
      %v5999 = vadd.f32 0.0, %v5998
      %v6000 = vpop.f32.mrf.mxu0
      %6001 = vmatprep.mubr.f32.mxu0 0.0
      %6002 = vmatmul.mubr.f32.gmra.mxu0 %v5788
      %v6003 = vpop.f32.mrf.mxu0
      %v6004 = vadd.f32 0.0, %v6003
      %v6005 = vpop.f32.mrf.mxu0
      %6006 = vmatprep.mubr.f32.mxu0 0.0
      %6007 = vmatmul.mubr.f32.gmra.mxu0 %v5791
      %v6008 = vpop.f32.mrf.mxu0
      %v6009 = vadd.f32 0.0, %v6008
      %v6010 = vpop.f32.mrf.mxu0
      %6011 = vmatprep.mubr.f32.mxu0 0.0
      %6012 = vmatmul.mubr.f32.gmra.mxu0 %v5794
      %v6013 = vpop.f32.mrf.mxu0
      %v6014 = vadd.f32 0.0, %v6013
      %v6015 = vpop.f32.mrf.mxu0
      %6016 = vmatprep.mubr.f32.mxu0 0.0
      %6017 = vmatmul.mubr.f32.gmra.mxu0 %v5797
      %v6018 = vpop.f32.mrf.mxu0
      %v6019 = vadd.f32 0.0, %v6018
      %v6020 = vpop.f32.mrf.mxu0
      %6021 = vmatprep.mubr.f32.mxu0 0.0
      %6022 = vmatmul.mubr.f32.gmra.mxu0 %v5800
      %v6023 = vpop.f32.mrf.mxu0
      %v6024 = vadd.f32 0.0, %v6023
      %v6025 = vpop.f32.mrf.mxu0
      %6026 = vmatprep.mubr.f32.mxu0 0.0
      %6027 = vmatmul.mubr.f32.gmra.mxu0 %v5803
      %v6028 = vpop.f32.mrf.mxu0
      %v6029 = vadd.f32 0.0, %v6028
      %v6030 = vpop.f32.mrf.mxu0
      %6031 = vmatprep.mubr.f32.mxu0 0.0
      %6032 = vmatmul.mubr.f32.gmra.mxu0 %v5806
      %v6033 = vpop.f32.mrf.mxu0
      %v6034 = vadd.f32 0.0, %v6033
      %v6035 = vpop.f32.mrf.mxu0
      %6036 = vdwg.mxu0
      %v6037 = vmax.f32 %v5879, 1e-30
      %v6038 = vmax.f32 %v5884, 1e-30
      %v6039 = vmax.f32 %v5889, 1e-30
      %v6040 = vmax.f32 %v5894, 1e-30
      %v6041 = vmax.f32 %v5899, 1e-30
      %v6042 = vmax.f32 %v5904, 1e-30
      %v6043 = vmax.f32 %v5909, 1e-30
      %v6044 = vmax.f32 %v5914, 1e-30
      %v6045 = vmax.f32 %v5919, 1e-30
      %v6046 = vmax.f32 %v5924, 1e-30
      %v6047 = vmax.f32 %v5929, 1e-30
      %v6048 = vmax.f32 %v5934, 1e-30
      %v6049 = vmax.f32 %v5939, 1e-30
      %v6050 = vmax.f32 %v5944, 1e-30
      %v6051 = vmax.f32 %v5949, 1e-30
      %v6052 = vmax.f32 %v5954, 1e-30
      %v6053 = vmax.f32 %v5959, 1e-30
      %v6054 = vmax.f32 %v5964, 1e-30
      %v6055 = vmax.f32 %v5969, 1e-30
      %v6056 = vmax.f32 %v5974, 1e-30
      %v6057 = vmax.f32 %v5979, 1e-30
      %v6058 = vmax.f32 %v5984, 1e-30
      %v6059 = vmax.f32 %v5989, 1e-30
      %v6060 = vmax.f32 %v5994, 1e-30
      %v6061 = vmax.f32 %v5999, 1e-30
      %v6062 = vmax.f32 %v6004, 1e-30
      %v6063 = vmax.f32 %v6009, 1e-30
      %v6064 = vmax.f32 %v6014, 1e-30
      %v6065 = vmax.f32 %v6019, 1e-30
      %v6066 = vmax.f32 %v6024, 1e-30
      %v6067 = vmax.f32 %v6029, 1e-30
      %v6068 = vmax.f32 %v6034, 1e-30
      %v6069 = vrcp.pop %v6037
      %v6070 = vmul.f32 %v5642, %v6069
      %v6071 = vrcp.pop %v6038
      %v6072 = vmul.f32 %v5644, %v6071
      %v6073 = vrcp.pop %v6039
      %v6074 = vmul.f32 %v5646, %v6073
      %v6075 = vrcp.pop %v6040
      %v6076 = vmul.f32 %v5648, %v6075
      %v6077 = vrcp.pop %v6041
      %v6078 = vmul.f32 %v5650, %v6077
      %v6079 = vrcp.pop %v6042
      %v6080 = vmul.f32 %v5652, %v6079
      %v6081 = vrcp.pop %v6043
      %v6082 = vmul.f32 %v5654, %v6081
      %v6083 = vrcp.pop %v6044
      %v6084 = vmul.f32 %v5656, %v6083
      %v6085 = vrcp.pop %v6045
      %v6086 = vmul.f32 %v5658, %v6085
      %v6087 = vrcp.pop %v6046
      %v6088 = vmul.f32 %v5660, %v6087
      %v6089 = vrcp.pop %v6047
      %v6090 = vmul.f32 %v5662, %v6089
      %v6091 = vrcp.pop %v6048
      %v6092 = vmul.f32 %v5664, %v6091
      %v6093 = vrcp.pop %v6049
      %v6094 = vmul.f32 %v5666, %v6093
      %v6095 = vrcp.pop %v6050
      %v6096 = vmul.f32 %v5668, %v6095
      %v6097 = vrcp.pop %v6051
      %v6098 = vmul.f32 %v5670, %v6097
      %v6099 = vrcp.pop %v6052
      %v6100 = vmul.f32 %v5672, %v6099
      %v6101 = vrcp.pop %v6053
      %v6102 = vmul.f32 %v5674, %v6101
      %v6103 = vrcp.pop %v6054
      %v6104 = vmul.f32 %v5676, %v6103
      %v6105 = vrcp.pop %v6055
      %v6106 = vmul.f32 %v5678, %v6105
      %v6107 = vrcp.pop %v6056
      %v6108 = vmul.f32 %v5680, %v6107
      %v6109 = vrcp.pop %v6057
      %v6110 = vmul.f32 %v5682, %v6109
      %v6111 = vrcp.pop %v6058
      %v6112 = vmul.f32 %v5684, %v6111
      %v6113 = vrcp.pop %v6059
      %v6114 = vmul.f32 %v5686, %v6113
      %v6115 = vrcp.pop %v6060
      %v6116 = vmul.f32 %v5688, %v6115
      %v6117 = vrcp.pop %v6061
      %v6118 = vmul.f32 %v5690, %v6117
      %v6119 = vrcp.pop %v6062
      %v6120 = vmul.f32 %v5692, %v6119
      %v6121 = vrcp.pop %v6063
      %v6122 = vmul.f32 %v5694, %v6121
      %v6123 = vrcp.pop %v6064
      %v6124 = vmul.f32 %v5696, %v6123
      %v6125 = vrcp.pop %v6065
      %v6126 = vmul.f32 %v5698, %v6125
      %v6127 = vrcp.pop %v6066
      %v6128 = vmul.f32 %v5700, %v6127
      %v6129 = vrcp.pop %v6067
      %v6130 = vmul.f32 %v5702, %v6129
      %v6131 = vrcp.pop %v6068
      %v6132 = vmul.f32 %v5704, %v6131
      %v6133 = vpack.c.bf16 %v6072, %v6070
      %v6134 = vpack.c.bf16 %v6076, %v6074
      %v6135 = vpack.c.bf16 %v6080, %v6078
      %v6136 = vpack.c.bf16 %v6084, %v6082
      %v6137 = vpack.c.bf16 %v6088, %v6086
      %v6138 = vpack.c.bf16 %v6092, %v6090
      %v6139 = vpack.c.bf16 %v6096, %v6094
      %v6140 = vpack.c.bf16 %v6100, %v6098
      %v6141 = vpack.c.bf16 %v6104, %v6102
      %v6142 = vpack.c.bf16 %v6108, %v6106
      %v6143 = vpack.c.bf16 %v6112, %v6110
      %v6144 = vpack.c.bf16 %v6116, %v6114
      %v6145 = vpack.c.bf16 %v6120, %v6118
      %v6146 = vpack.c.bf16 %v6124, %v6122
      %v6147 = vpack.c.bf16 %v6128, %v6126
      %v6148 = vpack.c.bf16 %v6132, %v6130
      %v6149 = vld [vmem:[%s6] sm:$0xff]
      %v6150 = vld [vmem:[%s6 + $0x8] sm:$0xff]
      %v6151 = vld [vmem:[%s6 + $0x10] sm:$0xff]
      %v6152 = vld [vmem:[%s6 + $0x18] sm:$0xf]
      %v6153 = vld [vmem:[%s6 + $0x1c] sm:$0xff]
      %v6154 = vld [vmem:[%s6 + $0x24] sm:$0xff]
      %v6155 = vld [vmem:[%s6 + $0x2c] sm:$0xff]
      %v6156 = vld [vmem:[%s6 + $0x34] sm:$0xf]
      %v6157 = vld [vmem:[%s6 + $0x38] sm:$0xff]
      %v6158 = vld [vmem:[%s6 + $0x40] sm:$0xff]
      %v6159 = vld [vmem:[%s6 + $0x48] sm:$0xff]
      %v6160 = vld [vmem:[%s6 + $0x50] sm:$0xf]
      %v6161 = vld [vmem:[%s6 + $0x54] sm:$0xff]
      %v6162 = vld [vmem:[%s6 + $0x5c] sm:$0xff]
      %v6163 = vld [vmem:[%s6 + $0x64] sm:$0xff]
      %v6164 = vld [vmem:[%s6 + $0x6c] sm:$0xf]
      %v6165 = vld [vmem:[%s6 + $0x70] sm:$0xff]
      %v6166 = vld [vmem:[%s6 + $0x78] sm:$0xff]
      %v6167 = vld [vmem:[%s6 + $0x80] sm:$0xff]
      %v6168 = vld [vmem:[%s6 + $0x88] sm:$0xf]
      %v6169 = vld [vmem:[%s6 + $0x8c] sm:$0xff]
      %v6170 = vld [vmem:[%s6 + $0x94] sm:$0xff]
      %v6171 = vld [vmem:[%s6 + $0x9c] sm:$0xff]
      %v6172 = vld [vmem:[%s6 + $0xa4] sm:$0xf]
      %v6173 = vld [vmem:[%s6 + $0xa8] sm:$0x11]
      %v6174 = vld [vmem:[%s6 + $0xb0] sm:$0x11]
      %v6175 = vld [vmem:[%s6 + $0xb8] sm:$0x11]
      %v6176 = vld [vmem:[%s6 + $0xc0] sm:$0x1]
      %v6205 = vunpack.c.l.b16 %v6149
      %v6206 = vunpack.c.h.b16 %v6149
      %v6207 = vunpack.c.l.b16 %v6150
      %v6208 = vunpack.c.h.b16 %v6150
      %v6209 = vunpack.c.l.b16 %v6151
      %v6210 = vunpack.c.h.b16 %v6151
      %v6211 = vunpack.c.l.b16 %v6152
      %v6212 = vunpack.c.l.b16 %v6153
      %v6213 = vunpack.c.h.b16 %v6153
      %v6214 = vunpack.c.l.b16 %v6154
      %v6215 = vunpack.c.h.b16 %v6154
      %v6216 = vunpack.c.l.b16 %v6155
      %v6217 = vunpack.c.h.b16 %v6155
      %v6218 = vunpack.c.l.b16 %v6156
      %v6219 = vunpack.c.l.b16 %v6157
      %v6220 = vunpack.c.h.b16 %v6157
      %v6221 = vunpack.c.l.b16 %v6158
      %v6222 = vunpack.c.h.b16 %v6158
      %v6223 = vunpack.c.l.b16 %v6159
      %v6224 = vunpack.c.h.b16 %v6159
      %v6225 = vunpack.c.l.b16 %v6160
      %v6226 = vunpack.c.l.b16 %v6161
      %v6227 = vunpack.c.h.b16 %v6161
      %v6228 = vunpack.c.l.b16 %v6162
      %v6229 = vunpack.c.h.b16 %v6162
      %v6230 = vunpack.c.l.b16 %v6163
      %v6231 = vunpack.c.h.b16 %v6163
      %v6232 = vunpack.c.l.b16 %v6164
      %v6233 = vunpack.c.l.b16 %v6165
      %v6234 = vunpack.c.h.b16 %v6165
      %v6235 = vunpack.c.l.b16 %v6166
      %v6236 = vunpack.c.h.b16 %v6166
      %v6237 = vunpack.c.l.b16 %v6167
      %v6238 = vunpack.c.h.b16 %v6167
      %v6239 = vunpack.c.l.b16 %v6168
      %v6240 = vunpack.c.l.b16 %v6169
      %v6241 = vunpack.c.h.b16 %v6169
      %v6242 = vunpack.c.l.b16 %v6170
      %v6243 = vunpack.c.h.b16 %v6170
      %v6244 = vunpack.c.l.b16 %v6171
      %v6245 = vunpack.c.h.b16 %v6171
      %v6246 = vunpack.c.l.b16 %v6172
      %v6247 = vunpack.c.l.b16 %v6173
      %v6248 = vunpack.c.h.b16 %v6173
      %v6249 = vunpack.c.l.b16 %v6174
      %v6250 = vunpack.c.h.b16 %v6174
      %v6251 = vunpack.c.l.b16 %v6175
      %v6252 = vunpack.c.h.b16 %v6175
      %v6253 = vunpack.c.l.b16 %v6176
      %v6254 = vpack.c.b16 %v6212, %v6205
      %v6255 = vpack.c.b16 %v6213, %v6206
      %v6256 = vpack.c.b16 %v6214, %v6207
      %v6257 = vpack.c.b16 %v6215, %v6208
      %v6258 = vpack.c.b16 %v6216, %v6209
      %v6259 = vpack.c.b16 %v6217, %v6210
      %v6260 = vpack.c.b16 %v6218, %v6211
      %v6261 = vpack.c.b16 %v6226, %v6219
      %v6262 = vpack.c.b16 %v6227, %v6220
      %v6263 = vpack.c.b16 %v6228, %v6221
      %v6264 = vpack.c.b16 %v6229, %v6222
      %v6265 = vpack.c.b16 %v6230, %v6223
      %v6266 = vpack.c.b16 %v6231, %v6224
      %v6267 = vpack.c.b16 %v6232, %v6225
      %v6268 = vpack.c.b16 %v6240, %v6233
      %v6269 = vpack.c.b16 %v6241, %v6234
      %v6270 = vpack.c.b16 %v6242, %v6235
      %v6271 = vpack.c.b16 %v6243, %v6236
      %v6272 = vpack.c.b16 %v6244, %v6237
      %v6273 = vpack.c.b16 %v6245, %v6238
      %v6274 = vpack.c.b16 %v6246, %v6239
      %v6275 = vpack.c.b16 %v6247, %v6247
      %v6276 = vpack.c.b16 %v6248, %v6248
      %v6277 = vpack.c.b16 %v6249, %v6249
      %v6278 = vpack.c.b16 %v6250, %v6250
      %v6279 = vpack.c.b16 %v6251, %v6251
      %v6280 = vpack.c.b16 %v6252, %v6252
      %v6281 = vpack.c.b16 %v6253, %v6253
      %v6304 = vsel %vm5512, %v6133, 0
      %v6307 = vsel %vm5512, %v6134, 0
      %v6310 = vsel %vm5512, %v6135, 0
      %v6313 = vsel %vm5512, %v6136, 0
      %v6316 = vsel %vm5512, %v6137, 0
      %v6319 = vsel %vm5512, %v6138, 0
      %v6322 = vsel %vm5512, %v6139, 0
      %v6325 = vsel %vm5512, %v6140, 0
      %v6328 = vsel %vm5512, %v6141, 0
      %v6331 = vsel %vm5512, %v6142, 0
      %v6334 = vsel %vm5512, %v6143, 0
      %v6337 = vsel %vm5512, %v6144, 0
      %v6340 = vsel %vm5512, %v6145, 0
      %v6343 = vsel %vm5512, %v6146, 0
      %v6346 = vsel %vm5512, %v6147, 0
      %v6349 = vsel %vm5512, %v6148, 0
      %vm6351 = vcmask 1040384
      %v6353 = vsel %vm6351, %v6275, 0
      %v6356 = vsel %vm6351, %v6276, 0
      %v6359 = vsel %vm6351, %v6277, 0
      %v6362 = vsel %vm6351, %v6278, 0
      %v6365 = vsel %vm6351, %v6279, 0
      %v6368 = vsel %vm6351, %v6280, 0
      %v6371 = vsel %vm6351, %v6281, 0
      %6373 = vmatprep.subr.bf16.mxu0 0
      %6374 = vmatpush1.bf16.msra.mxu0 0
      %6375 = vmatprep.subr.bf16.mxu0 0
      %6376 = vmatpush1.bf16.msra.mxu0 0
      %6377 = vmatprep.subr.bf16.mxu0 0
      %6378 = vmatpush1.bf16.msra.mxu0 0
      %6379 = vmatprep.subr.bf16.mxu0 0
      %6380 = vmatpush1.bf16.msra.mxu0 0
      %6381 = vmatprep.subr.bf16.mxu0 %v6356
      %6382 = vmatpush1.bf16.msra.mxu0 %v6353
      %6383 = vmatprep.subr.bf16.mxu0 %v6269
      %6384 = vmatpush1.bf16.msra.mxu0 %v6268
      %6385 = vmatprep.subr.bf16.mxu0 %v6262
      %6386 = vmatpush1.bf16.msra.mxu0 %v6261
      %6387 = vmatprep.subr.bf16.mxu0 %v6255
      %6388 = vmatpush1.bf16.msra.mxu0 %v6254
      %6389 = vmatprep.subr.bf16.mxu0 0
      %6390 = vmatpush2.bf16.msra.mxu0 0
      %6391 = vmatprep.subr.bf16.mxu0 0
      %6392 = vmatpush2.bf16.msra.mxu0 0
      %6393 = vmatprep.subr.bf16.mxu0 0
      %6394 = vmatpush2.bf16.msra.mxu0 0
      %6395 = vmatprep.subr.bf16.mxu0 0
      %6396 = vmatpush2.bf16.msra.mxu0 0
      %6397 = vmatprep.subr.bf16.mxu0 0
      %6398 = vmatpush2.bf16.msra.mxu0 0
      %6399 = vmatprep.subr.bf16.mxu0 0
      %6400 = vmatpush2.bf16.msra.mxu0 0
      %6401 = vmatprep.subr.bf16.mxu0 0
      %6402 = vmatpush2.bf16.msra.mxu0 0
      %6403 = vmatprep.subr.bf16.mxu0 0
      %6404 = vmatpush2.bf16.msra.mxu0 0
      %6405 = vmatprep.mubr.bf16.mxu0 0
      %6406 = vmatmul.mubr.bf16.gmra.mxu0 %v6304
      %v6407 = vpop.f32.mrf.mxu0
      %v6408 = vadd.f32 0.0, %v6407
      %v6409 = vpop.f32.mrf.mxu0
      %v6410 = vadd.f32 0.0, %v6409
      %v6411 = vpop.f32.mrf.mxu0
      %v6412 = vadd.f32 0.0, %v6411
      %v6413 = vpop.f32.mrf.mxu0
      %v6414 = vadd.f32 0.0, %v6413
      %6415 = vmatprep.mubr.bf16.mxu0 0
      %6416 = vmatmul.mubr.bf16.gmra.mxu0 %v6307
      %v6417 = vpop.f32.mrf.mxu0
      %v6418 = vadd.f32 0.0, %v6417
      %v6419 = vpop.f32.mrf.mxu0
      %v6420 = vadd.f32 0.0, %v6419
      %v6421 = vpop.f32.mrf.mxu0
      %v6422 = vadd.f32 0.0, %v6421
      %v6423 = vpop.f32.mrf.mxu0
      %v6424 = vadd.f32 0.0, %v6423
      %6425 = vmatprep.mubr.bf16.mxu0 0
      %6426 = vmatmul.mubr.bf16.gmra.mxu0 %v6310
      %v6427 = vpop.f32.mrf.mxu0
      %v6428 = vadd.f32 0.0, %v6427
      %v6429 = vpop.f32.mrf.mxu0
      %v6430 = vadd.f32 0.0, %v6429
      %v6431 = vpop.f32.mrf.mxu0
      %v6432 = vadd.f32 0.0, %v6431
      %v6433 = vpop.f32.mrf.mxu0
      %v6434 = vadd.f32 0.0, %v6433
      %6435 = vmatprep.mubr.bf16.mxu0 0
      %6436 = vmatmul.mubr.bf16.gmra.mxu0 %v6313
      %v6437 = vpop.f32.mrf.mxu0
      %v6438 = vadd.f32 0.0, %v6437
      %v6439 = vpop.f32.mrf.mxu0
      %v6440 = vadd.f32 0.0, %v6439
      %v6441 = vpop.f32.mrf.mxu0
      %v6442 = vadd.f32 0.0, %v6441
      %v6443 = vpop.f32.mrf.mxu0
      %v6444 = vadd.f32 0.0, %v6443
      %6445 = vmatprep.mubr.bf16.mxu0 0
      %6446 = vmatmul.mubr.bf16.gmra.mxu0 %v6316
      %v6447 = vpop.f32.mrf.mxu0
      %v6448 = vadd.f32 0.0, %v6447
      %v6449 = vpop.f32.mrf.mxu0
      %v6450 = vadd.f32 0.0, %v6449
      %v6451 = vpop.f32.mrf.mxu0
      %v6452 = vadd.f32 0.0, %v6451
      %v6453 = vpop.f32.mrf.mxu0
      %v6454 = vadd.f32 0.0, %v6453
      %6455 = vmatprep.mubr.bf16.mxu0 0
      %6456 = vmatmul.mubr.bf16.gmra.mxu0 %v6319
      %v6457 = vpop.f32.mrf.mxu0
      %v6458 = vadd.f32 0.0, %v6457
      %v6459 = vpop.f32.mrf.mxu0
      %v6460 = vadd.f32 0.0, %v6459
      %v6461 = vpop.f32.mrf.mxu0
      %v6462 = vadd.f32 0.0, %v6461
      %v6463 = vpop.f32.mrf.mxu0
      %v6464 = vadd.f32 0.0, %v6463
      %6465 = vmatprep.mubr.bf16.mxu0 0
      %6466 = vmatmul.mubr.bf16.gmra.mxu0 %v6322
      %v6467 = vpop.f32.mrf.mxu0
      %v6468 = vadd.f32 0.0, %v6467
      %v6469 = vpop.f32.mrf.mxu0
      %v6470 = vadd.f32 0.0, %v6469
      %v6471 = vpop.f32.mrf.mxu0
      %v6472 = vadd.f32 0.0, %v6471
      %v6473 = vpop.f32.mrf.mxu0
      %v6474 = vadd.f32 0.0, %v6473
      %6475 = vmatprep.mubr.bf16.mxu0 0
      %6476 = vmatmul.mubr.bf16.gmra.mxu0 %v6325
      %v6477 = vpop.f32.mrf.mxu0
      %v6478 = vadd.f32 0.0, %v6477
      %v6479 = vpop.f32.mrf.mxu0
      %v6480 = vadd.f32 0.0, %v6479
      %v6481 = vpop.f32.mrf.mxu0
      %v6482 = vadd.f32 0.0, %v6481
      %v6483 = vpop.f32.mrf.mxu0
      %v6484 = vadd.f32 0.0, %v6483
      %6485 = vmatprep.mubr.bf16.mxu0 0
      %6486 = vmatmul.mubr.bf16.gmra.mxu0 %v6328
      %v6487 = vpop.f32.mrf.mxu0
      %v6488 = vadd.f32 0.0, %v6487
      %v6489 = vpop.f32.mrf.mxu0
      %v6490 = vadd.f32 0.0, %v6489
      %v6491 = vpop.f32.mrf.mxu0
      %v6492 = vadd.f32 0.0, %v6491
      %v6493 = vpop.f32.mrf.mxu0
      %v6494 = vadd.f32 0.0, %v6493
      %6495 = vmatprep.mubr.bf16.mxu0 0
      %6496 = vmatmul.mubr.bf16.gmra.mxu0 %v6331
      %v6497 = vpop.f32.mrf.mxu0
      %v6498 = vadd.f32 0.0, %v6497
      %v6499 = vpop.f32.mrf.mxu0
      %v6500 = vadd.f32 0.0, %v6499
      %v6501 = vpop.f32.mrf.mxu0
      %v6502 = vadd.f32 0.0, %v6501
      %v6503 = vpop.f32.mrf.mxu0
      %v6504 = vadd.f32 0.0, %v6503
      %6505 = vmatprep.mubr.bf16.mxu0 0
      %6506 = vmatmul.mubr.bf16.gmra.mxu0 %v6334
      %v6507 = vpop.f32.mrf.mxu0
      %v6508 = vadd.f32 0.0, %v6507
      %v6509 = vpop.f32.mrf.mxu0
      %v6510 = vadd.f32 0.0, %v6509
      %v6511 = vpop.f32.mrf.mxu0
      %v6512 = vadd.f32 0.0, %v6511
      %v6513 = vpop.f32.mrf.mxu0
      %v6514 = vadd.f32 0.0, %v6513
      %6515 = vmatprep.mubr.bf16.mxu0 0
      %6516 = vmatmul.mubr.bf16.gmra.mxu0 %v6337
      %v6517 = vpop.f32.mrf.mxu0
      %v6518 = vadd.f32 0.0, %v6517
      %v6519 = vpop.f32.mrf.mxu0
      %v6520 = vadd.f32 0.0, %v6519
      %v6521 = vpop.f32.mrf.mxu0
      %v6522 = vadd.f32 0.0, %v6521
      %v6523 = vpop.f32.mrf.mxu0
      %v6524 = vadd.f32 0.0, %v6523
      %6525 = vmatprep.mubr.bf16.mxu0 0
      %6526 = vmatmul.mubr.bf16.gmra.mxu0 %v6340
      %v6527 = vpop.f32.mrf.mxu0
      %v6528 = vadd.f32 0.0, %v6527
      %v6529 = vpop.f32.mrf.mxu0
      %v6530 = vadd.f32 0.0, %v6529
      %v6531 = vpop.f32.mrf.mxu0
      %v6532 = vadd.f32 0.0, %v6531
      %v6533 = vpop.f32.mrf.mxu0
      %v6534 = vadd.f32 0.0, %v6533
      %6535 = vmatprep.mubr.bf16.mxu0 0
      %6536 = vmatmul.mubr.bf16.gmra.mxu0 %v6343
      %v6537 = vpop.f32.mrf.mxu0
      %v6538 = vadd.f32 0.0, %v6537
      %v6539 = vpop.f32.mrf.mxu0
      %v6540 = vadd.f32 0.0, %v6539
      %v6541 = vpop.f32.mrf.mxu0
      %v6542 = vadd.f32 0.0, %v6541
      %v6543 = vpop.f32.mrf.mxu0
      %v6544 = vadd.f32 0.0, %v6543
      %6545 = vmatprep.mubr.bf16.mxu0 0
      %6546 = vmatmul.mubr.bf16.gmra.mxu0 %v6346
      %v6547 = vpop.f32.mrf.mxu0
      %v6548 = vadd.f32 0.0, %v6547
      %v6549 = vpop.f32.mrf.mxu0
      %v6550 = vadd.f32 0.0, %v6549
      %v6551 = vpop.f32.mrf.mxu0
      %v6552 = vadd.f32 0.0, %v6551
      %v6553 = vpop.f32.mrf.mxu0
      %v6554 = vadd.f32 0.0, %v6553
      %6555 = vmatprep.mubr.bf16.mxu0 0
      %6556 = vmatmul.mubr.bf16.gmra.mxu0 %v6349
      %v6557 = vpop.f32.mrf.mxu0
      %v6558 = vadd.f32 0.0, %v6557
      %v6559 = vpop.f32.mrf.mxu0
      %v6560 = vadd.f32 0.0, %v6559
      %v6561 = vpop.f32.mrf.mxu0
      %v6562 = vadd.f32 0.0, %v6561
      %v6563 = vpop.f32.mrf.mxu0
      %v6564 = vadd.f32 0.0, %v6563
      %6565 = vdwg.mxu0
      %6566 = vmatprep.subr.bf16.mxu0 0
      %6567 = vmatpush1.bf16.msra.mxu0 0
      %6568 = vmatprep.subr.bf16.mxu0 0
      %6569 = vmatpush1.bf16.msra.mxu0 0
      %6570 = vmatprep.subr.bf16.mxu0 0
      %6571 = vmatpush1.bf16.msra.mxu0 0
      %6572 = vmatprep.subr.bf16.mxu0 0
      %6573 = vmatpush1.bf16.msra.mxu0 0
      %6574 = vmatprep.subr.bf16.mxu0 %v6362
      %6575 = vmatpush1.bf16.msra.mxu0 %v6359
      %6576 = vmatprep.subr.bf16.mxu0 %v6271
      %6577 = vmatpush1.bf16.msra.mxu0 %v6270
      %6578 = vmatprep.subr.bf16.mxu0 %v6264
      %6579 = vmatpush1.bf16.msra.mxu0 %v6263
      %6580 = vmatprep.subr.bf16.mxu0 %v6257
      %6581 = vmatpush1.bf16.msra.mxu0 %v6256
      %6582 = vmatprep.subr.bf16.mxu0 0
      %6583 = vmatpush2.bf16.msra.mxu0 0
      %6584 = vmatprep.subr.bf16.mxu0 0
      %6585 = vmatpush2.bf16.msra.mxu0 0
      %6586 = vmatprep.subr.bf16.mxu0 0
      %6587 = vmatpush2.bf16.msra.mxu0 0
      %6588 = vmatprep.subr.bf16.mxu0 0
      %6589 = vmatpush2.bf16.msra.mxu0 0
      %6590 = vmatprep.subr.bf16.mxu0 0
      %6591 = vmatpush2.bf16.msra.mxu0 0
      %6592 = vmatprep.subr.bf16.mxu0 0
      %6593 = vmatpush2.bf16.msra.mxu0 0
      %6594 = vmatprep.subr.bf16.mxu0 0
      %6595 = vmatpush2.bf16.msra.mxu0 0
      %6596 = vmatprep.subr.bf16.mxu0 0
      %6597 = vmatpush2.bf16.msra.mxu0 0
      %6598 = vmatprep.mubr.bf16.mxu0 0
      %6599 = vmatmul.mubr.bf16.gmra.mxu0 %v6304
      %v6600 = vpop.f32.mrf.mxu0
      %v6601 = vadd.f32 0.0, %v6600
      %v6602 = vpop.f32.mrf.mxu0
      %v6603 = vadd.f32 0.0, %v6602
      %v6604 = vpop.f32.mrf.mxu0
      %v6605 = vadd.f32 0.0, %v6604
      %v6606 = vpop.f32.mrf.mxu0
      %v6607 = vadd.f32 0.0, %v6606
      %6608 = vmatprep.mubr.bf16.mxu0 0
      %6609 = vmatmul.mubr.bf16.gmra.mxu0 %v6307
      %v6610 = vpop.f32.mrf.mxu0
      %v6611 = vadd.f32 0.0, %v6610
      %v6612 = vpop.f32.mrf.mxu0
      %v6613 = vadd.f32 0.0, %v6612
      %v6614 = vpop.f32.mrf.mxu0
      %v6615 = vadd.f32 0.0, %v6614
      %v6616 = vpop.f32.mrf.mxu0
      %v6617 = vadd.f32 0.0, %v6616
      %6618 = vmatprep.mubr.bf16.mxu0 0
      %6619 = vmatmul.mubr.bf16.gmra.mxu0 %v6310
      %v6620 = vpop.f32.mrf.mxu0
      %v6621 = vadd.f32 0.0, %v6620
      %v6622 = vpop.f32.mrf.mxu0
      %v6623 = vadd.f32 0.0, %v6622
      %v6624 = vpop.f32.mrf.mxu0
      %v6625 = vadd.f32 0.0, %v6624
      %v6626 = vpop.f32.mrf.mxu0
      %v6627 = vadd.f32 0.0, %v6626
      %6628 = vmatprep.mubr.bf16.mxu0 0
      %6629 = vmatmul.mubr.bf16.gmra.mxu0 %v6313
      %v6630 = vpop.f32.mrf.mxu0
      %v6631 = vadd.f32 0.0, %v6630
      %v6632 = vpop.f32.mrf.mxu0
      %v6633 = vadd.f32 0.0, %v6632
      %v6634 = vpop.f32.mrf.mxu0
      %v6635 = vadd.f32 0.0, %v6634
      %v6636 = vpop.f32.mrf.mxu0
      %v6637 = vadd.f32 0.0, %v6636
      %6638 = vmatprep.mubr.bf16.mxu0 0
      %6639 = vmatmul.mubr.bf16.gmra.mxu0 %v6316
      %v6640 = vpop.f32.mrf.mxu0
      %v6641 = vadd.f32 0.0, %v6640
      %v6642 = vpop.f32.mrf.mxu0
      %v6643 = vadd.f32 0.0, %v6642
      %v6644 = vpop.f32.mrf.mxu0
      %v6645 = vadd.f32 0.0, %v6644
      %v6646 = vpop.f32.mrf.mxu0
      %v6647 = vadd.f32 0.0, %v6646
      %6648 = vmatprep.mubr.bf16.mxu0 0
      %6649 = vmatmul.mubr.bf16.gmra.mxu0 %v6319
      %v6650 = vpop.f32.mrf.mxu0
      %v6651 = vadd.f32 0.0, %v6650
      %v6652 = vpop.f32.mrf.mxu0
      %v6653 = vadd.f32 0.0, %v6652
      %v6654 = vpop.f32.mrf.mxu0
      %v6655 = vadd.f32 0.0, %v6654
      %v6656 = vpop.f32.mrf.mxu0
      %v6657 = vadd.f32 0.0, %v6656
      %6658 = vmatprep.mubr.bf16.mxu0 0
      %6659 = vmatmul.mubr.bf16.gmra.mxu0 %v6322
      %v6660 = vpop.f32.mrf.mxu0
      %v6661 = vadd.f32 0.0, %v6660
      %v6662 = vpop.f32.mrf.mxu0
      %v6663 = vadd.f32 0.0, %v6662
      %v6664 = vpop.f32.mrf.mxu0
      %v6665 = vadd.f32 0.0, %v6664
      %v6666 = vpop.f32.mrf.mxu0
      %v6667 = vadd.f32 0.0, %v6666
      %6668 = vmatprep.mubr.bf16.mxu0 0
      %6669 = vmatmul.mubr.bf16.gmra.mxu0 %v6325
      %v6670 = vpop.f32.mrf.mxu0
      %v6671 = vadd.f32 0.0, %v6670
      %v6672 = vpop.f32.mrf.mxu0
      %v6673 = vadd.f32 0.0, %v6672
      %v6674 = vpop.f32.mrf.mxu0
      %v6675 = vadd.f32 0.0, %v6674
      %v6676 = vpop.f32.mrf.mxu0
      %v6677 = vadd.f32 0.0, %v6676
      %6678 = vmatprep.mubr.bf16.mxu0 0
      %6679 = vmatmul.mubr.bf16.gmra.mxu0 %v6328
      %v6680 = vpop.f32.mrf.mxu0
      %v6681 = vadd.f32 0.0, %v6680
      %v6682 = vpop.f32.mrf.mxu0
      %v6683 = vadd.f32 0.0, %v6682
      %v6684 = vpop.f32.mrf.mxu0
      %v6685 = vadd.f32 0.0, %v6684
      %v6686 = vpop.f32.mrf.mxu0
      %v6687 = vadd.f32 0.0, %v6686
      %6688 = vmatprep.mubr.bf16.mxu0 0
      %6689 = vmatmul.mubr.bf16.gmra.mxu0 %v6331
      %v6690 = vpop.f32.mrf.mxu0
      %v6691 = vadd.f32 0.0, %v6690
      %v6692 = vpop.f32.mrf.mxu0
      %v6693 = vadd.f32 0.0, %v6692
      %v6694 = vpop.f32.mrf.mxu0
      %v6695 = vadd.f32 0.0, %v6694
      %v6696 = vpop.f32.mrf.mxu0
      %v6697 = vadd.f32 0.0, %v6696
      %6698 = vmatprep.mubr.bf16.mxu0 0
      %6699 = vmatmul.mubr.bf16.gmra.mxu0 %v6334
      %v6700 = vpop.f32.mrf.mxu0
      %v6701 = vadd.f32 0.0, %v6700
      %v6702 = vpop.f32.mrf.mxu0
      %v6703 = vadd.f32 0.0, %v6702
      %v6704 = vpop.f32.mrf.mxu0
      %v6705 = vadd.f32 0.0, %v6704
      %v6706 = vpop.f32.mrf.mxu0
      %v6707 = vadd.f32 0.0, %v6706
      %6708 = vmatprep.mubr.bf16.mxu0 0
      %6709 = vmatmul.mubr.bf16.gmra.mxu0 %v6337
      %v6710 = vpop.f32.mrf.mxu0
      %v6711 = vadd.f32 0.0, %v6710
      %v6712 = vpop.f32.mrf.mxu0
      %v6713 = vadd.f32 0.0, %v6712
      %v6714 = vpop.f32.mrf.mxu0
      %v6715 = vadd.f32 0.0, %v6714
      %v6716 = vpop.f32.mrf.mxu0
      %v6717 = vadd.f32 0.0, %v6716
      %6718 = vmatprep.mubr.bf16.mxu0 0
      %6719 = vmatmul.mubr.bf16.gmra.mxu0 %v6340
      %v6720 = vpop.f32.mrf.mxu0
      %v6721 = vadd.f32 0.0, %v6720
      %v6722 = vpop.f32.mrf.mxu0
      %v6723 = vadd.f32 0.0, %v6722
      %v6724 = vpop.f32.mrf.mxu0
      %v6725 = vadd.f32 0.0, %v6724
      %v6726 = vpop.f32.mrf.mxu0
      %v6727 = vadd.f32 0.0, %v6726
      %6728 = vmatprep.mubr.bf16.mxu0 0
      %6729 = vmatmul.mubr.bf16.gmra.mxu0 %v6343
      %v6730 = vpop.f32.mrf.mxu0
      %v6731 = vadd.f32 0.0, %v6730
      %v6732 = vpop.f32.mrf.mxu0
      %v6733 = vadd.f32 0.0, %v6732
      %v6734 = vpop.f32.mrf.mxu0
      %v6735 = vadd.f32 0.0, %v6734
      %v6736 = vpop.f32.mrf.mxu0
      %v6737 = vadd.f32 0.0, %v6736
      %6738 = vmatprep.mubr.bf16.mxu0 0
      %6739 = vmatmul.mubr.bf16.gmra.mxu0 %v6346
      %v6740 = vpop.f32.mrf.mxu0
      %v6741 = vadd.f32 0.0, %v6740
      %v6742 = vpop.f32.mrf.mxu0
      %v6743 = vadd.f32 0.0, %v6742
      %v6744 = vpop.f32.mrf.mxu0
      %v6745 = vadd.f32 0.0, %v6744
      %v6746 = vpop.f32.mrf.mxu0
      %v6747 = vadd.f32 0.0, %v6746
      %6748 = vmatprep.mubr.bf16.mxu0 0
      %6749 = vmatmul.mubr.bf16.gmra.mxu0 %v6349
      %v6750 = vpop.f32.mrf.mxu0
      %v6751 = vadd.f32 0.0, %v6750
      %v6752 = vpop.f32.mrf.mxu0
      %v6753 = vadd.f32 0.0, %v6752
      %v6754 = vpop.f32.mrf.mxu0
      %v6755 = vadd.f32 0.0, %v6754
      %v6756 = vpop.f32.mrf.mxu0
      %v6757 = vadd.f32 0.0, %v6756
      %6758 = vdwg.mxu0
      %6759 = vmatprep.subr.bf16.mxu0 0
      %6760 = vmatpush1.bf16.msra.mxu0 0
      %6761 = vmatprep.subr.bf16.mxu0 0
      %6762 = vmatpush1.bf16.msra.mxu0 0
      %6763 = vmatprep.subr.bf16.mxu0 0
      %6764 = vmatpush1.bf16.msra.mxu0 0
      %6765 = vmatprep.subr.bf16.mxu0 0
      %6766 = vmatpush1.bf16.msra.mxu0 0
      %6767 = vmatprep.subr.bf16.mxu0 %v6368
      %6768 = vmatpush1.bf16.msra.mxu0 %v6365
      %6769 = vmatprep.subr.bf16.mxu0 %v6273
      %6770 = vmatpush1.bf16.msra.mxu0 %v6272
      %6771 = vmatprep.subr.bf16.mxu0 %v6266
      %6772 = vmatpush1.bf16.msra.mxu0 %v6265
      %6773 = vmatprep.subr.bf16.mxu0 %v6259
      %6774 = vmatpush1.bf16.msra.mxu0 %v6258
      %6775 = vmatprep.subr.bf16.mxu0 0
      %6776 = vmatpush2.bf16.msra.mxu0 0
      %6777 = vmatprep.subr.bf16.mxu0 0
      %6778 = vmatpush2.bf16.msra.mxu0 0
      %6779 = vmatprep.subr.bf16.mxu0 0
      %6780 = vmatpush2.bf16.msra.mxu0 0
      %6781 = vmatprep.subr.bf16.mxu0 0
      %6782 = vmatpush2.bf16.msra.mxu0 0
      %6783 = vmatprep.subr.bf16.mxu0 0
      %6784 = vmatpush2.bf16.msra.mxu0 0
      %6785 = vmatprep.subr.bf16.mxu0 0
      %6786 = vmatpush2.bf16.msra.mxu0 0
      %6787 = vmatprep.subr.bf16.mxu0 0
      %6788 = vmatpush2.bf16.msra.mxu0 0
      %6789 = vmatprep.subr.bf16.mxu0 0
      %6790 = vmatpush2.bf16.msra.mxu0 0
      %6791 = vmatprep.mubr.bf16.mxu0 0
      %6792 = vmatmul.mubr.bf16.gmra.mxu0 %v6304
      %v6793 = vpop.f32.mrf.mxu0
      %v6794 = vadd.f32 0.0, %v6793
      %v6795 = vpop.f32.mrf.mxu0
      %v6796 = vadd.f32 0.0, %v6795
      %v6797 = vpop.f32.mrf.mxu0
      %v6798 = vadd.f32 0.0, %v6797
      %v6799 = vpop.f32.mrf.mxu0
      %v6800 = vadd.f32 0.0, %v6799
      %6801 = vmatprep.mubr.bf16.mxu0 0
      %6802 = vmatmul.mubr.bf16.gmra.mxu0 %v6307
      %v6803 = vpop.f32.mrf.mxu0
      %v6804 = vadd.f32 0.0, %v6803
      %v6805 = vpop.f32.mrf.mxu0
      %v6806 = vadd.f32 0.0, %v6805
      %v6807 = vpop.f32.mrf.mxu0
      %v6808 = vadd.f32 0.0, %v6807
      %v6809 = vpop.f32.mrf.mxu0
      %v6810 = vadd.f32 0.0, %v6809
      %6811 = vmatprep.mubr.bf16.mxu0 0
      %6812 = vmatmul.mubr.bf16.gmra.mxu0 %v6310
      %v6813 = vpop.f32.mrf.mxu0
      %v6814 = vadd.f32 0.0, %v6813
      %v6815 = vpop.f32.mrf.mxu0
      %v6816 = vadd.f32 0.0, %v6815
      %v6817 = vpop.f32.mrf.mxu0
      %v6818 = vadd.f32 0.0, %v6817
      %v6819 = vpop.f32.mrf.mxu0
      %v6820 = vadd.f32 0.0, %v6819
      %6821 = vmatprep.mubr.bf16.mxu0 0
      %6822 = vmatmul.mubr.bf16.gmra.mxu0 %v6313
      %v6823 = vpop.f32.mrf.mxu0
      %v6824 = vadd.f32 0.0, %v6823
      %v6825 = vpop.f32.mrf.mxu0
      %v6826 = vadd.f32 0.0, %v6825
      %v6827 = vpop.f32.mrf.mxu0
      %v6828 = vadd.f32 0.0, %v6827
      %v6829 = vpop.f32.mrf.mxu0
      %v6830 = vadd.f32 0.0, %v6829
      %6831 = vmatprep.mubr.bf16.mxu0 0
      %6832 = vmatmul.mubr.bf16.gmra.mxu0 %v6316
      %v6833 = vpop.f32.mrf.mxu0
      %v6834 = vadd.f32 0.0, %v6833
      %v6835 = vpop.f32.mrf.mxu0
      %v6836 = vadd.f32 0.0, %v6835
      %v6837 = vpop.f32.mrf.mxu0
      %v6838 = vadd.f32 0.0, %v6837
      %v6839 = vpop.f32.mrf.mxu0
      %v6840 = vadd.f32 0.0, %v6839
      %6841 = vmatprep.mubr.bf16.mxu0 0
      %6842 = vmatmul.mubr.bf16.gmra.mxu0 %v6319
      %v6843 = vpop.f32.mrf.mxu0
      %v6844 = vadd.f32 0.0, %v6843
      %v6845 = vpop.f32.mrf.mxu0
      %v6846 = vadd.f32 0.0, %v6845
      %v6847 = vpop.f32.mrf.mxu0
      %v6848 = vadd.f32 0.0, %v6847
      %v6849 = vpop.f32.mrf.mxu0
      %v6850 = vadd.f32 0.0, %v6849
      %6851 = vmatprep.mubr.bf16.mxu0 0
      %6852 = vmatmul.mubr.bf16.gmra.mxu0 %v6322
      %v6853 = vpop.f32.mrf.mxu0
      %v6854 = vadd.f32 0.0, %v6853
      %v6855 = vpop.f32.mrf.mxu0
      %v6856 = vadd.f32 0.0, %v6855
      %v6857 = vpop.f32.mrf.mxu0
      %v6858 = vadd.f32 0.0, %v6857
      %v6859 = vpop.f32.mrf.mxu0
      %v6860 = vadd.f32 0.0, %v6859
      %6861 = vmatprep.mubr.bf16.mxu0 0
      %6862 = vmatmul.mubr.bf16.gmra.mxu0 %v6325
      %v6863 = vpop.f32.mrf.mxu0
      %v6864 = vadd.f32 0.0, %v6863
      %v6865 = vpop.f32.mrf.mxu0
      %v6866 = vadd.f32 0.0, %v6865
      %v6867 = vpop.f32.mrf.mxu0
      %v6868 = vadd.f32 0.0, %v6867
      %v6869 = vpop.f32.mrf.mxu0
      %v6870 = vadd.f32 0.0, %v6869
      %6871 = vmatprep.mubr.bf16.mxu0 0
      %6872 = vmatmul.mubr.bf16.gmra.mxu0 %v6328
      %v6873 = vpop.f32.mrf.mxu0
      %v6874 = vadd.f32 0.0, %v6873
      %v6875 = vpop.f32.mrf.mxu0
      %v6876 = vadd.f32 0.0, %v6875
      %v6877 = vpop.f32.mrf.mxu0
      %v6878 = vadd.f32 0.0, %v6877
      %v6879 = vpop.f32.mrf.mxu0
      %v6880 = vadd.f32 0.0, %v6879
      %6881 = vmatprep.mubr.bf16.mxu0 0
      %6882 = vmatmul.mubr.bf16.gmra.mxu0 %v6331
      %v6883 = vpop.f32.mrf.mxu0
      %v6884 = vadd.f32 0.0, %v6883
      %v6885 = vpop.f32.mrf.mxu0
      %v6886 = vadd.f32 0.0, %v6885
      %v6887 = vpop.f32.mrf.mxu0
      %v6888 = vadd.f32 0.0, %v6887
      %v6889 = vpop.f32.mrf.mxu0
      %v6890 = vadd.f32 0.0, %v6889
      %6891 = vmatprep.mubr.bf16.mxu0 0
      %6892 = vmatmul.mubr.bf16.gmra.mxu0 %v6334
      %v6893 = vpop.f32.mrf.mxu0
      %v6894 = vadd.f32 0.0, %v6893
      %v6895 = vpop.f32.mrf.mxu0
      %v6896 = vadd.f32 0.0, %v6895
      %v6897 = vpop.f32.mrf.mxu0
      %v6898 = vadd.f32 0.0, %v6897
      %v6899 = vpop.f32.mrf.mxu0
      %v6900 = vadd.f32 0.0, %v6899
      %6901 = vmatprep.mubr.bf16.mxu0 0
      %6902 = vmatmul.mubr.bf16.gmra.mxu0 %v6337
      %v6903 = vpop.f32.mrf.mxu0
      %v6904 = vadd.f32 0.0, %v6903
      %v6905 = vpop.f32.mrf.mxu0
      %v6906 = vadd.f32 0.0, %v6905
      %v6907 = vpop.f32.mrf.mxu0
      %v6908 = vadd.f32 0.0, %v6907
      %v6909 = vpop.f32.mrf.mxu0
      %v6910 = vadd.f32 0.0, %v6909
      %6911 = vmatprep.mubr.bf16.mxu0 0
      %6912 = vmatmul.mubr.bf16.gmra.mxu0 %v6340
      %v6913 = vpop.f32.mrf.mxu0
      %v6914 = vadd.f32 0.0, %v6913
      %v6915 = vpop.f32.mrf.mxu0
      %v6916 = vadd.f32 0.0, %v6915
      %v6917 = vpop.f32.mrf.mxu0
      %v6918 = vadd.f32 0.0, %v6917
      %v6919 = vpop.f32.mrf.mxu0
      %v6920 = vadd.f32 0.0, %v6919
      %6921 = vmatprep.mubr.bf16.mxu0 0
      %6922 = vmatmul.mubr.bf16.gmra.mxu0 %v6343
      %v6923 = vpop.f32.mrf.mxu0
      %v6924 = vadd.f32 0.0, %v6923
      %v6925 = vpop.f32.mrf.mxu0
      %v6926 = vadd.f32 0.0, %v6925
      %v6927 = vpop.f32.mrf.mxu0
      %v6928 = vadd.f32 0.0, %v6927
      %v6929 = vpop.f32.mrf.mxu0
      %v6930 = vadd.f32 0.0, %v6929
      %6931 = vmatprep.mubr.bf16.mxu0 0
      %6932 = vmatmul.mubr.bf16.gmra.mxu0 %v6346
      %v6933 = vpop.f32.mrf.mxu0
      %v6934 = vadd.f32 0.0, %v6933
      %v6935 = vpop.f32.mrf.mxu0
      %v6936 = vadd.f32 0.0, %v6935
      %v6937 = vpop.f32.mrf.mxu0
      %v6938 = vadd.f32 0.0, %v6937
      %v6939 = vpop.f32.mrf.mxu0
      %v6940 = vadd.f32 0.0, %v6939
      %6941 = vmatprep.mubr.bf16.mxu0 0
      %6942 = vmatmul.mubr.bf16.gmra.mxu0 %v6349
      %v6943 = vpop.f32.mrf.mxu0
      %v6944 = vadd.f32 0.0, %v6943
      %v6945 = vpop.f32.mrf.mxu0
      %v6946 = vadd.f32 0.0, %v6945
      %v6947 = vpop.f32.mrf.mxu0
      %v6948 = vadd.f32 0.0, %v6947
      %v6949 = vpop.f32.mrf.mxu0
      %v6950 = vadd.f32 0.0, %v6949
      %6951 = vdwg.mxu0
      %6952 = vmatprep.subr.bf16.mxu0 0
      %6953 = vmatpush1.bf16.msra.mxu0 0
      %6954 = vmatprep.subr.bf16.mxu0 0
      %6955 = vmatpush1.bf16.msra.mxu0 0
      %6956 = vmatprep.subr.bf16.mxu0 0
      %6957 = vmatpush1.bf16.msra.mxu0 0
      %6958 = vmatprep.subr.bf16.mxu0 0
      %6959 = vmatpush1.bf16.msra.mxu0 0
      %6960 = vmatprep.subr.bf16.mxu0 0
      %6961 = vmatpush1.bf16.msra.mxu0 %v6371
      %6962 = vmatprep.subr.bf16.mxu0 0
      %6963 = vmatpush1.bf16.msra.mxu0 %v6274
      %6964 = vmatprep.subr.bf16.mxu0 0
      %6965 = vmatpush1.bf16.msra.mxu0 %v6267
      %6966 = vmatprep.subr.bf16.mxu0 0
      %6967 = vmatpush1.bf16.msra.mxu0 %v6260
      %6968 = vmatprep.subr.bf16.mxu0 0
      %6969 = vmatpush2.bf16.msra.mxu0 0
      %6970 = vmatprep.subr.bf16.mxu0 0
      %6971 = vmatpush2.bf16.msra.mxu0 0
      %6972 = vmatprep.subr.bf16.mxu0 0
      %6973 = vmatpush2.bf16.msra.mxu0 0
      %6974 = vmatprep.subr.bf16.mxu0 0
      %6975 = vmatpush2.bf16.msra.mxu0 0
      %6976 = vmatprep.subr.bf16.mxu0 0
      %6977 = vmatpush2.bf16.msra.mxu0 0
      %6978 = vmatprep.subr.bf16.mxu0 0
      %6979 = vmatpush2.bf16.msra.mxu0 0
      %6980 = vmatprep.subr.bf16.mxu0 0
      %6981 = vmatpush2.bf16.msra.mxu0 0
      %6982 = vmatprep.subr.bf16.mxu0 0
      %6983 = vmatpush2.bf16.msra.mxu0 0
      %6984 = vmatprep.mubr.bf16.mxu0 0
      %6985 = vmatmul.mubr.bf16.gmra.mxu0 %v6304
      %v6986 = vpop.f32.mrf.mxu0
      %v6987 = vadd.f32 0.0, %v6986
      %v6988 = vpop.f32.mrf.mxu0
      %v6989 = vpop.f32.mrf.mxu0
      %v6990 = vadd.f32 0.0, %v6989
      %v6991 = vpop.f32.mrf.mxu0
      %6992 = vmatprep.mubr.bf16.mxu0 0
      %6993 = vmatmul.mubr.bf16.gmra.mxu0 %v6307
      %v6994 = vpop.f32.mrf.mxu0
      %v6995 = vadd.f32 0.0, %v6994
      %v6996 = vpop.f32.mrf.mxu0
      %v6997 = vpop.f32.mrf.mxu0
      %v6998 = vadd.f32 0.0, %v6997
      %v6999 = vpop.f32.mrf.mxu0
      %7000 = vmatprep.mubr.bf16.mxu0 0
      %7001 = vmatmul.mubr.bf16.gmra.mxu0 %v6310
      %v7002 = vpop.f32.mrf.mxu0
      %v7003 = vadd.f32 0.0, %v7002
      %v7004 = vpop.f32.mrf.mxu0
      %v7005 = vpop.f32.mrf.mxu0
      %v7006 = vadd.f32 0.0, %v7005
      %v7007 = vpop.f32.mrf.mxu0
      %7008 = vmatprep.mubr.bf16.mxu0 0
      %7009 = vmatmul.mubr.bf16.gmra.mxu0 %v6313
      %v7010 = vpop.f32.mrf.mxu0
      %v7011 = vadd.f32 0.0, %v7010
      %v7012 = vpop.f32.mrf.mxu0
      %v7013 = vpop.f32.mrf.mxu0
      %v7014 = vadd.f32 0.0, %v7013
      %v7015 = vpop.f32.mrf.mxu0
      %7016 = vmatprep.mubr.bf16.mxu0 0
      %7017 = vmatmul.mubr.bf16.gmra.mxu0 %v6316
      %v7018 = vpop.f32.mrf.mxu0
      %v7019 = vadd.f32 0.0, %v7018
      %v7020 = vpop.f32.mrf.mxu0
      %v7021 = vpop.f32.mrf.mxu0
      %v7022 = vadd.f32 0.0, %v7021
      %v7023 = vpop.f32.mrf.mxu0
      %7024 = vmatprep.mubr.bf16.mxu0 0
      %7025 = vmatmul.mubr.bf16.gmra.mxu0 %v6319
      %v7026 = vpop.f32.mrf.mxu0
      %v7027 = vadd.f32 0.0, %v7026
      %v7028 = vpop.f32.mrf.mxu0
      %v7029 = vpop.f32.mrf.mxu0
      %v7030 = vadd.f32 0.0, %v7029
      %v7031 = vpop.f32.mrf.mxu0
      %7032 = vmatprep.mubr.bf16.mxu0 0
      %7033 = vmatmul.mubr.bf16.gmra.mxu0 %v6322
      %v7034 = vpop.f32.mrf.mxu0
      %v7035 = vadd.f32 0.0, %v7034
      %v7036 = vpop.f32.mrf.mxu0
      %v7037 = vpop.f32.mrf.mxu0
      %v7038 = vadd.f32 0.0, %v7037
      %v7039 = vpop.f32.mrf.mxu0
      %7040 = vmatprep.mubr.bf16.mxu0 0
      %7041 = vmatmul.mubr.bf16.gmra.mxu0 %v6325
      %v7042 = vpop.f32.mrf.mxu0
      %v7043 = vadd.f32 0.0, %v7042
      %v7044 = vpop.f32.mrf.mxu0
      %v7045 = vpop.f32.mrf.mxu0
      %v7046 = vadd.f32 0.0, %v7045
      %v7047 = vpop.f32.mrf.mxu0
      %7048 = vmatprep.mubr.bf16.mxu0 0
      %7049 = vmatmul.mubr.bf16.gmra.mxu0 %v6328
      %v7050 = vpop.f32.mrf.mxu0
      %v7051 = vadd.f32 0.0, %v7050
      %v7052 = vpop.f32.mrf.mxu0
      %v7053 = vpop.f32.mrf.mxu0
      %v7054 = vadd.f32 0.0, %v7053
      %v7055 = vpop.f32.mrf.mxu0
      %7056 = vmatprep.mubr.bf16.mxu0 0
      %7057 = vmatmul.mubr.bf16.gmra.mxu0 %v6331
      %v7058 = vpop.f32.mrf.mxu0
      %v7059 = vadd.f32 0.0, %v7058
      %v7060 = vpop.f32.mrf.mxu0
      %v7061 = vpop.f32.mrf.mxu0
      %v7062 = vadd.f32 0.0, %v7061
      %v7063 = vpop.f32.mrf.mxu0
      %7064 = vmatprep.mubr.bf16.mxu0 0
      %7065 = vmatmul.mubr.bf16.gmra.mxu0 %v6334
      %v7066 = vpop.f32.mrf.mxu0
      %v7067 = vadd.f32 0.0, %v7066
      %v7068 = vpop.f32.mrf.mxu0
      %v7069 = vpop.f32.mrf.mxu0
      %v7070 = vadd.f32 0.0, %v7069
      %v7071 = vpop.f32.mrf.mxu0
      %7072 = vmatprep.mubr.bf16.mxu0 0
      %7073 = vmatmul.mubr.bf16.gmra.mxu0 %v6337
      %v7074 = vpop.f32.mrf.mxu0
      %v7075 = vadd.f32 0.0, %v7074
      %v7076 = vpop.f32.mrf.mxu0
      %v7077 = vpop.f32.mrf.mxu0
      %v7078 = vadd.f32 0.0, %v7077
      %v7079 = vpop.f32.mrf.mxu0
      %7080 = vmatprep.mubr.bf16.mxu0 0
      %7081 = vmatmul.mubr.bf16.gmra.mxu0 %v6340
      %v7082 = vpop.f32.mrf.mxu0
      %v7083 = vadd.f32 0.0, %v7082
      %v7084 = vpop.f32.mrf.mxu0
      %v7085 = vpop.f32.mrf.mxu0
      %v7086 = vadd.f32 0.0, %v7085
      %v7087 = vpop.f32.mrf.mxu0
      %7088 = vmatprep.mubr.bf16.mxu0 0
      %7089 = vmatmul.mubr.bf16.gmra.mxu0 %v6343
      %v7090 = vpop.f32.mrf.mxu0
      %v7091 = vadd.f32 0.0, %v7090
      %v7092 = vpop.f32.mrf.mxu0
      %v7093 = vpop.f32.mrf.mxu0
      %v7094 = vadd.f32 0.0, %v7093
      %v7095 = vpop.f32.mrf.mxu0
      %7096 = vmatprep.mubr.bf16.mxu0 0
      %7097 = vmatmul.mubr.bf16.gmra.mxu0 %v6346
      %v7098 = vpop.f32.mrf.mxu0
      %v7099 = vadd.f32 0.0, %v7098
      %v7100 = vpop.f32.mrf.mxu0
      %v7101 = vpop.f32.mrf.mxu0
      %v7102 = vadd.f32 0.0, %v7101
      %v7103 = vpop.f32.mrf.mxu0
      %7104 = vmatprep.mubr.bf16.mxu0 0
      %7105 = vmatmul.mubr.bf16.gmra.mxu0 %v6349
      %v7106 = vpop.f32.mrf.mxu0
      %v7107 = vadd.f32 0.0, %v7106
      %v7108 = vpop.f32.mrf.mxu0
      %v7109 = vpop.f32.mrf.mxu0
      %v7110 = vadd.f32 0.0, %v7109
      %v7111 = vpop.f32.mrf.mxu0
      %7112 = vdwg.mxu0
      %v7113 = vmul.f32 %v6408, %v3347
      %v7114 = vmul.f32 %v6410, %v3349
      %v7115 = vmul.f32 %v6601, %v3540
      %v7116 = vmul.f32 %v6603, %v3542
      %v7117 = vmul.f32 %v6794, %v3733
      %v7118 = vmul.f32 %v6796, %v3735
      %v7119 = vmul.f32 %v6987, %v3926
      %v7120 = vmul.f32 %v6412, %v3351
      %v7121 = vmul.f32 %v6414, %v3353
      %v7122 = vmul.f32 %v6605, %v3544
      %v7123 = vmul.f32 %v6607, %v3546
      %v7124 = vmul.f32 %v6798, %v3737
      %v7125 = vmul.f32 %v6800, %v3739
      %v7126 = vmul.f32 %v6990, %v3929
      %v7127 = vmul.f32 %v6418, %v3357
      %v7128 = vmul.f32 %v6420, %v3359
      %v7129 = vmul.f32 %v6611, %v3550
      %v7130 = vmul.f32 %v6613, %v3552
      %v7131 = vmul.f32 %v6804, %v3743
      %v7132 = vmul.f32 %v6806, %v3745
      %v7133 = vmul.f32 %v6995, %v3934
      %v7134 = vmul.f32 %v6422, %v3361
      %v7135 = vmul.f32 %v6424, %v3363
      %v7136 = vmul.f32 %v6615, %v3554
      %v7137 = vmul.f32 %v6617, %v3556
      %v7138 = vmul.f32 %v6808, %v3747
      %v7139 = vmul.f32 %v6810, %v3749
      %v7140 = vmul.f32 %v6998, %v3937
      %v7141 = vmul.f32 %v6428, %v3367
      %v7142 = vmul.f32 %v6430, %v3369
      %v7143 = vmul.f32 %v6621, %v3560
      %v7144 = vmul.f32 %v6623, %v3562
      %v7145 = vmul.f32 %v6814, %v3753
      %v7146 = vmul.f32 %v6816, %v3755
      %v7147 = vmul.f32 %v7003, %v3942
      %v7148 = vmul.f32 %v6432, %v3371
      %v7149 = vmul.f32 %v6434, %v3373
      %v7150 = vmul.f32 %v6625, %v3564
      %v7151 = vmul.f32 %v6627, %v3566
      %v7152 = vmul.f32 %v6818, %v3757
      %v7153 = vmul.f32 %v6820, %v3759
      %v7154 = vmul.f32 %v7006, %v3945
      %v7155 = vmul.f32 %v6438, %v3377
      %v7156 = vmul.f32 %v6440, %v3379
      %v7157 = vmul.f32 %v6631, %v3570
      %v7158 = vmul.f32 %v6633, %v3572
      %v7159 = vmul.f32 %v6824, %v3763
      %v7160 = vmul.f32 %v6826, %v3765
      %v7161 = vmul.f32 %v7011, %v3950
      %v7162 = vmul.f32 %v6442, %v3381
      %v7163 = vmul.f32 %v6444, %v3383
      %v7164 = vmul.f32 %v6635, %v3574
      %v7165 = vmul.f32 %v6637, %v3576
      %v7166 = vmul.f32 %v6828, %v3767
      %v7167 = vmul.f32 %v6830, %v3769
      %v7168 = vmul.f32 %v7014, %v3953
      %v7169 = vmul.f32 %v6448, %v3387
      %v7170 = vmul.f32 %v6450, %v3389
      %v7171 = vmul.f32 %v6641, %v3580
      %v7172 = vmul.f32 %v6643, %v3582
      %v7173 = vmul.f32 %v6834, %v3773
      %v7174 = vmul.f32 %v6836, %v3775
      %v7175 = vmul.f32 %v7019, %v3958
      %v7176 = vmul.f32 %v6452, %v3391
      %v7177 = vmul.f32 %v6454, %v3393
      %v7178 = vmul.f32 %v6645, %v3584
      %v7179 = vmul.f32 %v6647, %v3586
      %v7180 = vmul.f32 %v6838, %v3777
      %v7181 = vmul.f32 %v6840, %v3779
      %v7182 = vmul.f32 %v7022, %v3961
      %v7183 = vmul.f32 %v6458, %v3397
      %v7184 = vmul.f32 %v6460, %v3399
      %v7185 = vmul.f32 %v6651, %v3590
      %v7186 = vmul.f32 %v6653, %v3592
      %v7187 = vmul.f32 %v6844, %v3783
      %v7188 = vmul.f32 %v6846, %v3785
      %v7189 = vmul.f32 %v7027, %v3966
      %v7190 = vmul.f32 %v6462, %v3401
      %v7191 = vmul.f32 %v6464, %v3403
      %v7192 = vmul.f32 %v6655, %v3594
      %v7193 = vmul.f32 %v6657, %v3596
      %v7194 = vmul.f32 %v6848, %v3787
      %v7195 = vmul.f32 %v6850, %v3789
      %v7196 = vmul.f32 %v7030, %v3969
      %v7197 = vmul.f32 %v6468, %v3407
      %v7198 = vmul.f32 %v6470, %v3409
      %v7199 = vmul.f32 %v6661, %v3600
      %v7200 = vmul.f32 %v6663, %v3602
      %v7201 = vmul.f32 %v6854, %v3793
      %v7202 = vmul.f32 %v6856, %v3795
      %v7203 = vmul.f32 %v7035, %v3974
      %v7204 = vmul.f32 %v6472, %v3411
      %v7205 = vmul.f32 %v6474, %v3413
      %v7206 = vmul.f32 %v6665, %v3604
      %v7207 = vmul.f32 %v6667, %v3606
      %v7208 = vmul.f32 %v6858, %v3797
      %v7209 = vmul.f32 %v6860, %v3799
      %v7210 = vmul.f32 %v7038, %v3977
      %v7211 = vmul.f32 %v6478, %v3417
      %v7212 = vmul.f32 %v6480, %v3419
      %v7213 = vmul.f32 %v6671, %v3610
      %v7214 = vmul.f32 %v6673, %v3612
      %v7215 = vmul.f32 %v6864, %v3803
      %v7216 = vmul.f32 %v6866, %v3805
      %v7217 = vmul.f32 %v7043, %v3982
      %v7218 = vmul.f32 %v6482, %v3421
      %v7219 = vmul.f32 %v6484, %v3423
      %v7220 = vmul.f32 %v6675, %v3614
      %v7221 = vmul.f32 %v6677, %v3616
      %v7222 = vmul.f32 %v6868, %v3807
      %v7223 = vmul.f32 %v6870, %v3809
      %v7224 = vmul.f32 %v7046, %v3985
      %v7225 = vmul.f32 %v6488, %v3427
      %v7226 = vmul.f32 %v6490, %v3429
      %v7227 = vmul.f32 %v6681, %v3620
      %v7228 = vmul.f32 %v6683, %v3622
      %v7229 = vmul.f32 %v6874, %v3813
      %v7230 = vmul.f32 %v6876, %v3815
      %v7231 = vmul.f32 %v7051, %v3990
      %v7232 = vmul.f32 %v6492, %v3431
      %v7233 = vmul.f32 %v6494, %v3433
      %v7234 = vmul.f32 %v6685, %v3624
      %v7235 = vmul.f32 %v6687, %v3626
      %v7236 = vmul.f32 %v6878, %v3817
      %v7237 = vmul.f32 %v6880, %v3819
      %v7238 = vmul.f32 %v7054, %v3993
      %v7239 = vmul.f32 %v6498, %v3437
      %v7240 = vmul.f32 %v6500, %v3439
      %v7241 = vmul.f32 %v6691, %v3630
      %v7242 = vmul.f32 %v6693, %v3632
      %v7243 = vmul.f32 %v6884, %v3823
      %v7244 = vmul.f32 %v6886, %v3825
      %v7245 = vmul.f32 %v7059, %v3998
      %v7246 = vmul.f32 %v6502, %v3441
      %v7247 = vmul.f32 %v6504, %v3443
      %v7248 = vmul.f32 %v6695, %v3634
      %v7249 = vmul.f32 %v6697, %v3636
      %v7250 = vmul.f32 %v6888, %v3827
      %v7251 = vmul.f32 %v6890, %v3829
      %v7252 = vmul.f32 %v7062, %v4001
      %v7253 = vmul.f32 %v6508, %v3447
      %v7254 = vmul.f32 %v6510, %v3449
      %v7255 = vmul.f32 %v6701, %v3640
      %v7256 = vmul.f32 %v6703, %v3642
      %v7257 = vmul.f32 %v6894, %v3833
      %v7258 = vmul.f32 %v6896, %v3835
      %v7259 = vmul.f32 %v7067, %v4006
      %v7260 = vmul.f32 %v6512, %v3451
      %v7261 = vmul.f32 %v6514, %v3453
      %v7262 = vmul.f32 %v6705, %v3644
      %v7263 = vmul.f32 %v6707, %v3646
      %v7264 = vmul.f32 %v6898, %v3837
      %v7265 = vmul.f32 %v6900, %v3839
      %v7266 = vmul.f32 %v7070, %v4009
      %v7267 = vmul.f32 %v6518, %v3457
      %v7268 = vmul.f32 %v6520, %v3459
      %v7269 = vmul.f32 %v6711, %v3650
      %v7270 = vmul.f32 %v6713, %v3652
      %v7271 = vmul.f32 %v6904, %v3843
      %v7272 = vmul.f32 %v6906, %v3845
      %v7273 = vmul.f32 %v7075, %v4014
      %v7274 = vmul.f32 %v6522, %v3461
      %v7275 = vmul.f32 %v6524, %v3463
      %v7276 = vmul.f32 %v6715, %v3654
      %v7277 = vmul.f32 %v6717, %v3656
      %v7278 = vmul.f32 %v6908, %v3847
      %v7279 = vmul.f32 %v6910, %v3849
      %v7280 = vmul.f32 %v7078, %v4017
      %v7281 = vmul.f32 %v6528, %v3467
      %v7282 = vmul.f32 %v6530, %v3469
      %v7283 = vmul.f32 %v6721, %v3660
      %v7284 = vmul.f32 %v6723, %v3662
      %v7285 = vmul.f32 %v6914, %v3853
      %v7286 = vmul.f32 %v6916, %v3855
      %v7287 = vmul.f32 %v7083, %v4022
      %v7288 = vmul.f32 %v6532, %v3471
      %v7289 = vmul.f32 %v6534, %v3473
      %v7290 = vmul.f32 %v6725, %v3664
      %v7291 = vmul.f32 %v6727, %v3666
      %v7292 = vmul.f32 %v6918, %v3857
      %v7293 = vmul.f32 %v6920, %v3859
      %v7294 = vmul.f32 %v7086, %v4025
      %v7295 = vmul.f32 %v6538, %v3477
      %v7296 = vmul.f32 %v6540, %v3479
      %v7297 = vmul.f32 %v6731, %v3670
      %v7298 = vmul.f32 %v6733, %v3672
      %v7299 = vmul.f32 %v6924, %v3863
      %v7300 = vmul.f32 %v6926, %v3865
      %v7301 = vmul.f32 %v7091, %v4030
      %v7302 = vmul.f32 %v6542, %v3481
      %v7303 = vmul.f32 %v6544, %v3483
      %v7304 = vmul.f32 %v6735, %v3674
      %v7305 = vmul.f32 %v6737, %v3676
      %v7306 = vmul.f32 %v6928, %v3867
      %v7307 = vmul.f32 %v6930, %v3869
      %v7308 = vmul.f32 %v7094, %v4033
      %v7309 = vmul.f32 %v6548, %v3487
      %v7310 = vmul.f32 %v6550, %v3489
      %v7311 = vmul.f32 %v6741, %v3680
      %v7312 = vmul.f32 %v6743, %v3682
      %v7313 = vmul.f32 %v6934, %v3873
      %v7314 = vmul.f32 %v6936, %v3875
      %v7315 = vmul.f32 %v7099, %v4038
      %v7316 = vmul.f32 %v6552, %v3491
      %v7317 = vmul.f32 %v6554, %v3493
      %v7318 = vmul.f32 %v6745, %v3684
      %v7319 = vmul.f32 %v6747, %v3686
      %v7320 = vmul.f32 %v6938, %v3877
      %v7321 = vmul.f32 %v6940, %v3879
      %v7322 = vmul.f32 %v7102, %v4041
      %v7323 = vmul.f32 %v6558, %v3497
      %v7324 = vmul.f32 %v6560, %v3499
      %v7325 = vmul.f32 %v6751, %v3690
      %v7326 = vmul.f32 %v6753, %v3692
      %v7327 = vmul.f32 %v6944, %v3883
      %v7328 = vmul.f32 %v6946, %v3885
      %v7329 = vmul.f32 %v7107, %v4046
      %v7330 = vmul.f32 %v6562, %v3501
      %v7331 = vmul.f32 %v6564, %v3503
      %v7332 = vmul.f32 %v6755, %v3694
      %v7333 = vmul.f32 %v6757, %v3696
      %v7334 = vmul.f32 %v6948, %v3887
      %v7335 = vmul.f32 %v6950, %v3889
      %v7336 = vmul.f32 %v7110, %v4049
      %v7337 = vpack.c.bf16 %v7120, %v7113
      %v7338 = vpack.c.bf16 %v7121, %v7114
      %v7339 = vpack.c.bf16 %v7122, %v7115
      %v7340 = vpack.c.bf16 %v7123, %v7116
      %v7341 = vpack.c.bf16 %v7124, %v7117
      %v7342 = vpack.c.bf16 %v7125, %v7118
      %v7343 = vpack.c.bf16 %v7126, %v7119
      %v7344 = vpack.c.bf16 %v7134, %v7127
      %v7345 = vpack.c.bf16 %v7135, %v7128
      %v7346 = vpack.c.bf16 %v7136, %v7129
      %v7347 = vpack.c.bf16 %v7137, %v7130
      %v7348 = vpack.c.bf16 %v7138, %v7131
      %v7349 = vpack.c.bf16 %v7139, %v7132
      %v7350 = vpack.c.bf16 %v7140, %v7133
      %v7351 = vpack.c.bf16 %v7148, %v7141
      %v7352 = vpack.c.bf16 %v7149, %v7142
      %v7353 = vpack.c.bf16 %v7150, %v7143
      %v7354 = vpack.c.bf16 %v7151, %v7144
      %v7355 = vpack.c.bf16 %v7152, %v7145
      %v7356 = vpack.c.bf16 %v7153, %v7146
      %v7357 = vpack.c.bf16 %v7154, %v7147
      %v7358 = vpack.c.bf16 %v7162, %v7155
      %v7359 = vpack.c.bf16 %v7163, %v7156
      %v7360 = vpack.c.bf16 %v7164, %v7157
      %v7361 = vpack.c.bf16 %v7165, %v7158
      %v7362 = vpack.c.bf16 %v7166, %v7159
      %v7363 = vpack.c.bf16 %v7167, %v7160
      %v7364 = vpack.c.bf16 %v7168, %v7161
      %v7365 = vpack.c.bf16 %v7176, %v7169
      %v7366 = vpack.c.bf16 %v7177, %v7170
      %v7367 = vpack.c.bf16 %v7178, %v7171
      %v7368 = vpack.c.bf16 %v7179, %v7172
      %v7369 = vpack.c.bf16 %v7180, %v7173
      %v7370 = vpack.c.bf16 %v7181, %v7174
      %v7371 = vpack.c.bf16 %v7182, %v7175
      %v7372 = vpack.c.bf16 %v7190, %v7183
      %v7373 = vpack.c.bf16 %v7191, %v7184
      %v7374 = vpack.c.bf16 %v7192, %v7185
      %v7375 = vpack.c.bf16 %v7193, %v7186
      %v7376 = vpack.c.bf16 %v7194, %v7187
      %v7377 = vpack.c.bf16 %v7195, %v7188
      %v7378 = vpack.c.bf16 %v7196, %v7189
      %v7379 = vpack.c.bf16 %v7204, %v7197
      %v7380 = vpack.c.bf16 %v7205, %v7198
      %v7381 = vpack.c.bf16 %v7206, %v7199
      %v7382 = vpack.c.bf16 %v7207, %v7200
      %v7383 = vpack.c.bf16 %v7208, %v7201
      %v7384 = vpack.c.bf16 %v7209, %v7202
      %v7385 = vpack.c.bf16 %v7210, %v7203
      %v7386 = vpack.c.bf16 %v7218, %v7211
      %v7387 = vpack.c.bf16 %v7219, %v7212
      %v7388 = vpack.c.bf16 %v7220, %v7213
      %v7389 = vpack.c.bf16 %v7221, %v7214
      %v7390 = vpack.c.bf16 %v7222, %v7215
      %v7391 = vpack.c.bf16 %v7223, %v7216
      %v7392 = vpack.c.bf16 %v7224, %v7217
      %v7393 = vpack.c.bf16 %v7232, %v7225
      %v7394 = vpack.c.bf16 %v7233, %v7226
      %v7395 = vpack.c.bf16 %v7234, %v7227
      %v7396 = vpack.c.bf16 %v7235, %v7228
      %v7397 = vpack.c.bf16 %v7236, %v7229
      %v7398 = vpack.c.bf16 %v7237, %v7230
      %v7399 = vpack.c.bf16 %v7238, %v7231
      %v7400 = vpack.c.bf16 %v7246, %v7239
      %v7401 = vpack.c.bf16 %v7247, %v7240
      %v7402 = vpack.c.bf16 %v7248, %v7241
      %v7403 = vpack.c.bf16 %v7249, %v7242
      %v7404 = vpack.c.bf16 %v7250, %v7243
      %v7405 = vpack.c.bf16 %v7251, %v7244
      %v7406 = vpack.c.bf16 %v7252, %v7245
      %v7407 = vpack.c.bf16 %v7260, %v7253
      %v7408 = vpack.c.bf16 %v7261, %v7254
      %v7409 = vpack.c.bf16 %v7262, %v7255
      %v7410 = vpack.c.bf16 %v7263, %v7256
      %v7411 = vpack.c.bf16 %v7264, %v7257
      %v7412 = vpack.c.bf16 %v7265, %v7258
      %v7413 = vpack.c.bf16 %v7266, %v7259
      %v7414 = vpack.c.bf16 %v7274, %v7267
      %v7415 = vpack.c.bf16 %v7275, %v7268
      %v7416 = vpack.c.bf16 %v7276, %v7269
      %v7417 = vpack.c.bf16 %v7277, %v7270
      %v7418 = vpack.c.bf16 %v7278, %v7271
      %v7419 = vpack.c.bf16 %v7279, %v7272
      %v7420 = vpack.c.bf16 %v7280, %v7273
      %v7421 = vpack.c.bf16 %v7288, %v7281
      %v7422 = vpack.c.bf16 %v7289, %v7282
      %v7423 = vpack.c.bf16 %v7290, %v7283
      %v7424 = vpack.c.bf16 %v7291, %v7284
      %v7425 = vpack.c.bf16 %v7292, %v7285
      %v7426 = vpack.c.bf16 %v7293, %v7286
      %v7427 = vpack.c.bf16 %v7294, %v7287
      %v7428 = vpack.c.bf16 %v7302, %v7295
      %v7429 = vpack.c.bf16 %v7303, %v7296
      %v7430 = vpack.c.bf16 %v7304, %v7297
      %v7431 = vpack.c.bf16 %v7305, %v7298
      %v7432 = vpack.c.bf16 %v7306, %v7299
      %v7433 = vpack.c.bf16 %v7307, %v7300
      %v7434 = vpack.c.bf16 %v7308, %v7301
      %v7435 = vpack.c.bf16 %v7316, %v7309
      %v7436 = vpack.c.bf16 %v7317, %v7310
      %v7437 = vpack.c.bf16 %v7318, %v7311
      %v7438 = vpack.c.bf16 %v7319, %v7312
      %v7439 = vpack.c.bf16 %v7320, %v7313
      %v7440 = vpack.c.bf16 %v7321, %v7314
      %v7441 = vpack.c.bf16 %v7322, %v7315
      %v7442 = vpack.c.bf16 %v7330, %v7323
      %v7443 = vpack.c.bf16 %v7331, %v7324
      %v7444 = vpack.c.bf16 %v7332, %v7325
      %v7445 = vpack.c.bf16 %v7333, %v7326
      %v7446 = vpack.c.bf16 %v7334, %v7327
      %v7447 = vpack.c.bf16 %v7335, %v7328
      %v7448 = vpack.c.bf16 %v7336, %v7329
      %v7449 = vld [vmem:[%s7] sm:$0xf]
      %v7450 = vld [vmem:[%s7 + $0x4] sm:$0xf]
      %v7451 = vld [vmem:[%s7 + $0x8] sm:$0xf]
      %v7452 = vld [vmem:[%s7 + $0xc] sm:$0xf]
      %v7453 = vld [vmem:[%s7 + $0x10] sm:$0xf]
      %v7454 = vld [vmem:[%s7 + $0x14] sm:$0xf]
      %v7455 = vld [vmem:[%s7 + $0x18] sm:$0xf]
      %v7456 = vld [vmem:[%s7 + $0x1c] sm:$0xf]
      %v7457 = vld [vmem:[%s7 + $0x20] sm:$0xf]
      %v7458 = vld [vmem:[%s7 + $0x24] sm:$0xf]
      %v7459 = vld [vmem:[%s7 + $0x28] sm:$0xf]
      %v7460 = vld [vmem:[%s7 + $0x2c] sm:$0xf]
      %v7461 = vld [vmem:[%s7 + $0x30] sm:$0xf]
      %v7462 = vld [vmem:[%s7 + $0x34] sm:$0xf]
      %v7463 = vld [vmem:[%s7 + $0x38] sm:$0xf]
      %v7464 = vld [vmem:[%s7 + $0x3c] sm:$0xf]
      %v7465 = vld [vmem:[%s7 + $0x40] sm:$0xf]
      %v7466 = vld [vmem:[%s7 + $0x44] sm:$0xf]
      %v7467 = vld [vmem:[%s7 + $0x48] sm:$0xf]
      %v7468 = vld [vmem:[%s7 + $0x4c] sm:$0xf]
      %v7469 = vld [vmem:[%s7 + $0x50] sm:$0xf]
      %v7470 = vld [vmem:[%s7 + $0x54] sm:$0xf]
      %v7471 = vld [vmem:[%s7 + $0x58] sm:$0xf]
      %v7472 = vld [vmem:[%s7 + $0x5c] sm:$0xf]
      %v7473 = vld [vmem:[%s7 + $0x60] sm:$0xf]
      %v7474 = vld [vmem:[%s7 + $0x64] sm:$0xf]
      %v7475 = vld [vmem:[%s7 + $0x68] sm:$0xf]
      %v7476 = vld [vmem:[%s7 + $0x6c] sm:$0xf]
      %v7477 = vld [vmem:[%s7 + $0x70] sm:$0xf]
      %v7478 = vld [vmem:[%s7 + $0x74] sm:$0xf]
      %v7479 = vld [vmem:[%s7 + $0x78] sm:$0xf]
      %v7480 = vld [vmem:[%s7 + $0x7c] sm:$0xf]
      %v7481 = vld [vmem:[%s7 + $0x80] sm:$0xf]
      %v7482 = vld [vmem:[%s7 + $0x84] sm:$0xf]
      %v7483 = vld [vmem:[%s7 + $0x88] sm:$0xf]
      %v7484 = vld [vmem:[%s7 + $0x8c] sm:$0xf]
      %v7485 = vld [vmem:[%s7 + $0x90] sm:$0xf]
      %v7486 = vld [vmem:[%s7 + $0x94] sm:$0xf]
      %v7487 = vld [vmem:[%s7 + $0x98] sm:$0xf]
      %v7488 = vld [vmem:[%s7 + $0x9c] sm:$0xf]
      %v7489 = vld [vmem:[%s7 + $0xa0] sm:$0xf]
      %v7490 = vld [vmem:[%s7 + $0xa4] sm:$0xf]
      %v7491 = vld [vmem:[%s7 + $0xa8] sm:$0xf]
      %v7492 = vld [vmem:[%s7 + $0xac] sm:$0xf]
      %v7493 = vld [vmem:[%s7 + $0xb0] sm:$0xf]
      %v7494 = vld [vmem:[%s7 + $0xb4] sm:$0xf]
      %v7495 = vld [vmem:[%s7 + $0xb8] sm:$0xf]
      %v7496 = vld [vmem:[%s7 + $0xbc] sm:$0xf]
      %v7497 = vld [vmem:[%s7 + $0xc0] sm:$0xf]
      %v7498 = vld [vmem:[%s7 + $0xc4] sm:$0xf]
      %v7499 = vld [vmem:[%s7 + $0xc8] sm:$0xf]
      %v7500 = vld [vmem:[%s7 + $0xcc] sm:$0xf]
      %v7501 = vld [vmem:[%s7 + $0xd0] sm:$0xf]
      %v7502 = vld [vmem:[%s7 + $0xd4] sm:$0xf]
      %v7503 = vld [vmem:[%s7 + $0xd8] sm:$0xf]
      %v7504 = vld [vmem:[%s7 + $0xdc] sm:$0xf]
      %v7505 = vld [vmem:[%s7 + $0xe0] sm:$0xf]
      %v7506 = vld [vmem:[%s7 + $0xe4] sm:$0xf]
      %v7507 = vld [vmem:[%s7 + $0xe8] sm:$0xf]
      %v7508 = vld [vmem:[%s7 + $0xec] sm:$0xf]
      %v7509 = vld [vmem:[%s7 + $0xf0] sm:$0xf]
      %v7510 = vld [vmem:[%s7 + $0xf4] sm:$0xf]
      %v7511 = vld [vmem:[%s7 + $0xf8] sm:$0xf]
      %v7512 = vld [vmem:[%s7 + $0xfc] sm:$0xf]
      %v7513 = vld [vmem:[%s7 + $0x100] sm:$0xf]
      %v7514 = vld [vmem:[%s7 + $0x104] sm:$0xf]
      %v7515 = vld [vmem:[%s7 + $0x108] sm:$0xf]
      %v7516 = vld [vmem:[%s7 + $0x10c] sm:$0xf]
      %v7517 = vld [vmem:[%s7 + $0x110] sm:$0xf]
      %v7518 = vld [vmem:[%s7 + $0x114] sm:$0xf]
      %v7519 = vld [vmem:[%s7 + $0x118] sm:$0xf]
      %v7520 = vld [vmem:[%s7 + $0x11c] sm:$0xf]
      %v7521 = vld [vmem:[%s7 + $0x120] sm:$0xf]
      %v7522 = vld [vmem:[%s7 + $0x124] sm:$0xf]
      %v7523 = vld [vmem:[%s7 + $0x128] sm:$0xf]
      %v7524 = vld [vmem:[%s7 + $0x12c] sm:$0xf]
      %v7525 = vld [vmem:[%s7 + $0x130] sm:$0xf]
      %v7526 = vld [vmem:[%s7 + $0x134] sm:$0xf]
      %v7527 = vld [vmem:[%s7 + $0x138] sm:$0xf]
      %v7528 = vld [vmem:[%s7 + $0x13c] sm:$0xf]
      %v7529 = vld [vmem:[%s7 + $0x140] sm:$0xf]
      %v7530 = vld [vmem:[%s7 + $0x144] sm:$0xf]
      %v7531 = vld [vmem:[%s7 + $0x148] sm:$0xf]
      %v7532 = vld [vmem:[%s7 + $0x14c] sm:$0xf]
      %v7533 = vld [vmem:[%s7 + $0x150] sm:$0xf]
      %v7534 = vld [vmem:[%s7 + $0x154] sm:$0xf]
      %v7535 = vld [vmem:[%s7 + $0x158] sm:$0xf]
      %v7536 = vld [vmem:[%s7 + $0x15c] sm:$0xf]
      %v7537 = vld [vmem:[%s7 + $0x160] sm:$0xf]
      %v7538 = vld [vmem:[%s7 + $0x164] sm:$0xf]
      %v7539 = vld [vmem:[%s7 + $0x168] sm:$0xf]
      %v7540 = vld [vmem:[%s7 + $0x16c] sm:$0xf]
      %v7541 = vld [vmem:[%s7 + $0x170] sm:$0xf]
      %v7542 = vld [vmem:[%s7 + $0x174] sm:$0xf]
      %v7543 = vld [vmem:[%s7 + $0x178] sm:$0xf]
      %v7544 = vld [vmem:[%s7 + $0x17c] sm:$0xf]
      %v7545 = vld [vmem:[%s7 + $0x180] sm:$0xf]
      %v7546 = vld [vmem:[%s7 + $0x184] sm:$0xf]
      %v7547 = vld [vmem:[%s7 + $0x188] sm:$0xf]
      %v7548 = vld [vmem:[%s7 + $0x18c] sm:$0xf]
      %v7549 = vld [vmem:[%s17 + $0x1] sm:$0x1]
      %v7550 = vlaneseq
      %v7551 = vshrl.u32 %v7550, 7
      %v7552 = vsub.s32 0, %v7551
      %v7553 = vrot.slane %v7549, %v7552
      %v7654 = vunpack.c.l.b16 %v7449
      %v7655 = vunpack.c.l.b16 %v7450
      %v7656 = vunpack.c.l.b16 %v7451
      %v7657 = vunpack.c.l.b16 %v7452
      %v7658 = vunpack.c.l.b16 %v7453
      %v7659 = vunpack.c.l.b16 %v7454
      %v7660 = vunpack.c.l.b16 %v7455
      %v7661 = vunpack.c.l.b16 %v7456
      %v7662 = vunpack.c.l.b16 %v7457
      %v7663 = vunpack.c.l.b16 %v7458
      %v7664 = vunpack.c.l.b16 %v7459
      %v7665 = vunpack.c.l.b16 %v7460
      %v7666 = vunpack.c.l.b16 %v7461
      %v7667 = vunpack.c.l.b16 %v7462
      %v7668 = vunpack.c.l.b16 %v7463
      %v7669 = vunpack.c.l.b16 %v7464
      %v7670 = vunpack.c.l.b16 %v7465
      %v7671 = vunpack.c.l.b16 %v7466
      %v7672 = vunpack.c.l.b16 %v7467
      %v7673 = vunpack.c.l.b16 %v7468
      %v7674 = vunpack.c.l.b16 %v7469
      %v7675 = vunpack.c.l.b16 %v7470
      %v7676 = vunpack.c.l.b16 %v7471
      %v7677 = vunpack.c.l.b16 %v7472
      %v7678 = vunpack.c.l.b16 %v7473
      %v7679 = vunpack.c.l.b16 %v7474
      %v7680 = vunpack.c.l.b16 %v7475
      %v7681 = vunpack.c.l.b16 %v7476
      %v7682 = vunpack.c.l.b16 %v7477
      %v7683 = vunpack.c.l.b16 %v7478
      %v7684 = vunpack.c.l.b16 %v7479
      %v7685 = vunpack.c.l.b16 %v7480
      %v7686 = vunpack.c.l.b16 %v7481
      %v7687 = vunpack.c.l.b16 %v7482
      %v7688 = vunpack.c.l.b16 %v7483
      %v7689 = vunpack.c.l.b16 %v7484
      %v7690 = vunpack.c.l.b16 %v7485
      %v7691 = vunpack.c.l.b16 %v7486
      %v7692 = vunpack.c.l.b16 %v7487
      %v7693 = vunpack.c.l.b16 %v7488
      %v7694 = vunpack.c.l.b16 %v7489
      %v7695 = vunpack.c.l.b16 %v7490
      %v7696 = vunpack.c.l.b16 %v7491
      %v7697 = vunpack.c.l.b16 %v7492
      %v7698 = vunpack.c.l.b16 %v7493
      %v7699 = vunpack.c.l.b16 %v7494
      %v7700 = vunpack.c.l.b16 %v7495
      %v7701 = vunpack.c.l.b16 %v7496
      %v7702 = vunpack.c.l.b16 %v7497
      %v7703 = vunpack.c.l.b16 %v7498
      %v7704 = vunpack.c.l.b16 %v7499
      %v7705 = vunpack.c.l.b16 %v7500
      %v7706 = vunpack.c.l.b16 %v7501
      %v7707 = vunpack.c.l.b16 %v7502
      %v7708 = vunpack.c.l.b16 %v7503
      %v7709 = vunpack.c.l.b16 %v7504
      %v7710 = vunpack.c.l.b16 %v7505
      %v7711 = vunpack.c.l.b16 %v7506
      %v7712 = vunpack.c.l.b16 %v7507
      %v7713 = vunpack.c.l.b16 %v7508
      %v7714 = vunpack.c.l.b16 %v7509
      %v7715 = vunpack.c.l.b16 %v7510
      %v7716 = vunpack.c.l.b16 %v7511
      %v7717 = vunpack.c.l.b16 %v7512
      %v7718 = vunpack.c.l.b16 %v7513
      %v7719 = vunpack.c.l.b16 %v7514
      %v7720 = vunpack.c.l.b16 %v7515
      %v7721 = vunpack.c.l.b16 %v7516
      %v7722 = vunpack.c.l.b16 %v7517
      %v7723 = vunpack.c.l.b16 %v7518
      %v7724 = vunpack.c.l.b16 %v7519
      %v7725 = vunpack.c.l.b16 %v7520
      %v7726 = vunpack.c.l.b16 %v7521
      %v7727 = vunpack.c.l.b16 %v7522
      %v7728 = vunpack.c.l.b16 %v7523
      %v7729 = vunpack.c.l.b16 %v7524
      %v7730 = vunpack.c.l.b16 %v7525
      %v7731 = vunpack.c.l.b16 %v7526
      %v7732 = vunpack.c.l.b16 %v7527
      %v7733 = vunpack.c.l.b16 %v7528
      %v7734 = vunpack.c.l.b16 %v7529
      %v7735 = vunpack.c.l.b16 %v7530
      %v7736 = vunpack.c.l.b16 %v7531
      %v7737 = vunpack.c.l.b16 %v7532
      %v7738 = vunpack.c.l.b16 %v7533
      %v7739 = vunpack.c.l.b16 %v7534
      %v7740 = vunpack.c.l.b16 %v7535
      %v7741 = vunpack.c.l.b16 %v7536
      %v7742 = vunpack.c.l.b16 %v7537
      %v7743 = vunpack.c.l.b16 %v7538
      %v7744 = vunpack.c.l.b16 %v7539
      %v7745 = vunpack.c.l.b16 %v7540
      %v7746 = vunpack.c.l.b16 %v7541
      %v7747 = vunpack.c.l.b16 %v7542
      %v7748 = vunpack.c.l.b16 %v7543
      %v7749 = vunpack.c.l.b16 %v7544
      %v7750 = vunpack.c.l.b16 %v7545
      %v7751 = vunpack.c.l.b16 %v7546
      %v7752 = vunpack.c.l.b16 %v7547
      %v7753 = vunpack.c.l.b16 %v7548
      %v7754 = vpack.c.b16 %v7655, %v7654
      %v7755 = vpack.c.b16 %v7657, %v7656
      %v7756 = vpack.c.b16 %v7659, %v7658
      %v7757 = vpack.c.b16 %v7661, %v7660
      %v7758 = vpack.c.b16 %v7663, %v7662
      %v7759 = vpack.c.b16 %v7665, %v7664
      %v7760 = vpack.c.b16 %v7667, %v7666
      %v7761 = vpack.c.b16 %v7669, %v7668
      %v7762 = vpack.c.b16 %v7671, %v7670
      %v7763 = vpack.c.b16 %v7673, %v7672
      %v7764 = vpack.c.b16 %v7675, %v7674
      %v7765 = vpack.c.b16 %v7677, %v7676
      %v7766 = vpack.c.b16 %v7679, %v7678
      %v7767 = vpack.c.b16 %v7681, %v7680
      %v7768 = vpack.c.b16 %v7683, %v7682
      %v7769 = vpack.c.b16 %v7685, %v7684
      %v7770 = vpack.c.b16 %v7687, %v7686
      %v7771 = vpack.c.b16 %v7689, %v7688
      %v7772 = vpack.c.b16 %v7691, %v7690
      %v7773 = vpack.c.b16 %v7693, %v7692
      %v7774 = vpack.c.b16 %v7695, %v7694
      %v7775 = vpack.c.b16 %v7697, %v7696
      %v7776 = vpack.c.b16 %v7699, %v7698
      %v7777 = vpack.c.b16 %v7701, %v7700
      %v7778 = vpack.c.b16 %v7703, %v7702
      %v7779 = vpack.c.b16 %v7705, %v7704
      %v7780 = vpack.c.b16 %v7707, %v7706
      %v7781 = vpack.c.b16 %v7709, %v7708
      %v7782 = vpack.c.b16 %v7711, %v7710
      %v7783 = vpack.c.b16 %v7713, %v7712
      %v7784 = vpack.c.b16 %v7715, %v7714
      %v7785 = vpack.c.b16 %v7717, %v7716
      %v7786 = vpack.c.b16 %v7719, %v7718
      %v7787 = vpack.c.b16 %v7721, %v7720
      %v7788 = vpack.c.b16 %v7723, %v7722
      %v7789 = vpack.c.b16 %v7725, %v7724
      %v7790 = vpack.c.b16 %v7727, %v7726
      %v7791 = vpack.c.b16 %v7729, %v7728
      %v7792 = vpack.c.b16 %v7731, %v7730
      %v7793 = vpack.c.b16 %v7733, %v7732
      %v7794 = vpack.c.b16 %v7735, %v7734
      %v7795 = vpack.c.b16 %v7737, %v7736
      %v7796 = vpack.c.b16 %v7739, %v7738
      %v7797 = vpack.c.b16 %v7741, %v7740
      %v7798 = vpack.c.b16 %v7743, %v7742
      %v7799 = vpack.c.b16 %v7745, %v7744
      %v7800 = vpack.c.b16 %v7747, %v7746
      %v7801 = vpack.c.b16 %v7749, %v7748
      %v7802 = vpack.c.b16 %v7751, %v7750
      %v7803 = vpack.c.b16 %v7753, %v7752
      %v7855 = vsel %vm784, %v7343, 0
      %v7858 = vsel %vm784, %v7350, 0
      %v7861 = vsel %vm784, %v7357, 0
      %v7864 = vsel %vm784, %v7364, 0
      %v7867 = vsel %vm784, %v7371, 0
      %v7870 = vsel %vm784, %v7378, 0
      %v7873 = vsel %vm784, %v7385, 0
      %v7876 = vsel %vm784, %v7392, 0
      %v7879 = vsel %vm784, %v7399, 0
      %v7882 = vsel %vm784, %v7406, 0
      %v7885 = vsel %vm784, %v7413, 0
      %v7888 = vsel %vm784, %v7420, 0
      %v7891 = vsel %vm784, %v7427, 0
      %v7894 = vsel %vm784, %v7434, 0
      %v7897 = vsel %vm784, %v7441, 0
      %v7900 = vsel %vm784, %v7448, 0
      %7902 = vmatprep.subr.bf16.mxu0 0
      %7903 = vmatpush1.bf16.msra.mxu0 %v7761
      %7904 = vmatprep.subr.bf16.mxu0 0
      %7905 = vmatpush1.bf16.msra.mxu0 %v7760
      %7906 = vmatprep.subr.bf16.mxu0 0
      %7907 = vmatpush1.bf16.msra.mxu0 %v7759
      %7908 = vmatprep.subr.bf16.mxu0 0
      %7909 = vmatpush1.bf16.msra.mxu0 %v7758
      %7910 = vmatprep.subr.bf16.mxu0 0
      %7911 = vmatpush1.bf16.msra.mxu0 %v7757
      %7912 = vmatprep.subr.bf16.mxu0 0
      %7913 = vmatpush1.bf16.msra.mxu0 %v7756
      %7914 = vmatprep.subr.bf16.mxu0 0
      %7915 = vmatpush1.bf16.msra.mxu0 %v7755
      %7916 = vmatprep.subr.bf16.mxu0 0
      %7917 = vmatpush1.bf16.msra.mxu0 %v7754
      %7918 = vmatprep.subr.bf16.mxu0 0
      %7919 = vmatpush2.bf16.msra.mxu0 %v7769
      %7920 = vmatprep.subr.bf16.mxu0 0
      %7921 = vmatpush2.bf16.msra.mxu0 %v7768
      %7922 = vmatprep.subr.bf16.mxu0 0
      %7923 = vmatpush2.bf16.msra.mxu0 %v7767
      %7924 = vmatprep.subr.bf16.mxu0 0
      %7925 = vmatpush2.bf16.msra.mxu0 %v7766
      %7926 = vmatprep.subr.bf16.mxu0 0
      %7927 = vmatpush2.bf16.msra.mxu0 %v7765
      %7928 = vmatprep.subr.bf16.mxu0 0
      %7929 = vmatpush2.bf16.msra.mxu0 %v7764
      %7930 = vmatprep.subr.bf16.mxu0 0
      %7931 = vmatpush2.bf16.msra.mxu0 %v7763
      %7932 = vmatprep.subr.bf16.mxu0 0
      %7933 = vmatpush2.bf16.msra.mxu0 %v7762
      %7934 = vmatprep.mubr.bf16.mxu0 %v7338
      %7935 = vmatmul.mubr.bf16.gmra.mxu0 %v7337
      %v7936 = vpop.f32.mrf.mxu0
      %v7937 = vadd.f32 %v7553, %v7936
      %v7938 = vpop.f32.mrf.mxu0
      %v7939 = vpop.f32.mrf.mxu0
      %v7940 = vadd.f32 %v7553, %v7939
      %v7941 = vpop.f32.mrf.mxu0
      %7942 = vmatprep.mubr.bf16.mxu0 %v7345
      %7943 = vmatmul.mubr.bf16.gmra.mxu0 %v7344
      %v7944 = vpop.f32.mrf.mxu0
      %v7945 = vadd.f32 %v7553, %v7944
      %v7946 = vpop.f32.mrf.mxu0
      %v7947 = vpop.f32.mrf.mxu0
      %v7948 = vadd.f32 %v7553, %v7947
      %v7949 = vpop.f32.mrf.mxu0
      %7950 = vmatprep.mubr.bf16.mxu0 %v7352
      %7951 = vmatmul.mubr.bf16.gmra.mxu0 %v7351
      %v7952 = vpop.f32.mrf.mxu0
      %v7953 = vadd.f32 %v7553, %v7952
      %v7954 = vpop.f32.mrf.mxu0
      %v7955 = vpop.f32.mrf.mxu0
      %v7956 = vadd.f32 %v7553, %v7955
      %v7957 = vpop.f32.mrf.mxu0
      %7958 = vmatprep.mubr.bf16.mxu0 %v7359
      %7959 = vmatmul.mubr.bf16.gmra.mxu0 %v7358
      %v7960 = vpop.f32.mrf.mxu0
      %v7961 = vadd.f32 %v7553, %v7960
      %v7962 = vpop.f32.mrf.mxu0
      %v7963 = vpop.f32.mrf.mxu0
      %v7964 = vadd.f32 %v7553, %v7963
      %v7965 = vpop.f32.mrf.mxu0
      %7966 = vmatprep.mubr.bf16.mxu0 %v7366
      %7967 = vmatmul.mubr.bf16.gmra.mxu0 %v7365
      %v7968 = vpop.f32.mrf.mxu0
      %v7969 = vadd.f32 %v7553, %v7968
      %v7970 = vpop.f32.mrf.mxu0
      %v7971 = vpop.f32.mrf.mxu0
      %v7972 = vadd.f32 %v7553, %v7971
      %v7973 = vpop.f32.mrf.mxu0
      %7974 = vmatprep.mubr.bf16.mxu0 %v7373
      %7975 = vmatmul.mubr.bf16.gmra.mxu0 %v7372
      %v7976 = vpop.f32.mrf.mxu0
      %v7977 = vadd.f32 %v7553, %v7976
      %v7978 = vpop.f32.mrf.mxu0
      %v7979 = vpop.f32.mrf.mxu0
      %v7980 = vadd.f32 %v7553, %v7979
      %v7981 = vpop.f32.mrf.mxu0
      %7982 = vmatprep.mubr.bf16.mxu0 %v7380
      %7983 = vmatmul.mubr.bf16.gmra.mxu0 %v7379
      %v7984 = vpop.f32.mrf.mxu0
      %v7985 = vadd.f32 %v7553, %v7984
      %v7986 = vpop.f32.mrf.mxu0
      %v7987 = vpop.f32.mrf.mxu0
      %v7988 = vadd.f32 %v7553, %v7987
      %v7989 = vpop.f32.mrf.mxu0
      %7990 = vmatprep.mubr.bf16.mxu0 %v7387
      %7991 = vmatmul.mubr.bf16.gmra.mxu0 %v7386
      %v7992 = vpop.f32.mrf.mxu0
      %v7993 = vadd.f32 %v7553, %v7992
      %v7994 = vpop.f32.mrf.mxu0
      %v7995 = vpop.f32.mrf.mxu0
      %v7996 = vadd.f32 %v7553, %v7995
      %v7997 = vpop.f32.mrf.mxu0
      %7998 = vmatprep.mubr.bf16.mxu0 %v7394
      %7999 = vmatmul.mubr.bf16.gmra.mxu0 %v7393
      %v8000 = vpop.f32.mrf.mxu0
      %v8001 = vadd.f32 %v7553, %v8000
      %v8002 = vpop.f32.mrf.mxu0
      %v8003 = vpop.f32.mrf.mxu0
      %v8004 = vadd.f32 %v7553, %v8003
      %v8005 = vpop.f32.mrf.mxu0
      %8006 = vmatprep.mubr.bf16.mxu0 %v7401
      %8007 = vmatmul.mubr.bf16.gmra.mxu0 %v7400
      %v8008 = vpop.f32.mrf.mxu0
      %v8009 = vadd.f32 %v7553, %v8008
      %v8010 = vpop.f32.mrf.mxu0
      %v8011 = vpop.f32.mrf.mxu0
      %v8012 = vadd.f32 %v7553, %v8011
      %v8013 = vpop.f32.mrf.mxu0
      %8014 = vmatprep.mubr.bf16.mxu0 %v7408
      %8015 = vmatmul.mubr.bf16.gmra.mxu0 %v7407
      %v8016 = vpop.f32.mrf.mxu0
      %v8017 = vadd.f32 %v7553, %v8016
      %v8018 = vpop.f32.mrf.mxu0
      %v8019 = vpop.f32.mrf.mxu0
      %v8020 = vadd.f32 %v7553, %v8019
      %v8021 = vpop.f32.mrf.mxu0
      %8022 = vmatprep.mubr.bf16.mxu0 %v7415
      %8023 = vmatmul.mubr.bf16.gmra.mxu0 %v7414
      %v8024 = vpop.f32.mrf.mxu0
      %v8025 = vadd.f32 %v7553, %v8024
      %v8026 = vpop.f32.mrf.mxu0
      %v8027 = vpop.f32.mrf.mxu0
      %v8028 = vadd.f32 %v7553, %v8027
      %v8029 = vpop.f32.mrf.mxu0
      %8030 = vmatprep.mubr.bf16.mxu0 %v7422
      %8031 = vmatmul.mubr.bf16.gmra.mxu0 %v7421
      %v8032 = vpop.f32.mrf.mxu0
      %v8033 = vadd.f32 %v7553, %v8032
      %v8034 = vpop.f32.mrf.mxu0
      %v8035 = vpop.f32.mrf.mxu0
      %v8036 = vadd.f32 %v7553, %v8035
      %v8037 = vpop.f32.mrf.mxu0
      %8038 = vmatprep.mubr.bf16.mxu0 %v7429
      %8039 = vmatmul.mubr.bf16.gmra.mxu0 %v7428
      %v8040 = vpop.f32.mrf.mxu0
      %v8041 = vadd.f32 %v7553, %v8040
      %v8042 = vpop.f32.mrf.mxu0
      %v8043 = vpop.f32.mrf.mxu0
      %v8044 = vadd.f32 %v7553, %v8043
      %v8045 = vpop.f32.mrf.mxu0
      %8046 = vmatprep.mubr.bf16.mxu0 %v7436
      %8047 = vmatmul.mubr.bf16.gmra.mxu0 %v7435
      %v8048 = vpop.f32.mrf.mxu0
      %v8049 = vadd.f32 %v7553, %v8048
      %v8050 = vpop.f32.mrf.mxu0
      %v8051 = vpop.f32.mrf.mxu0
      %v8052 = vadd.f32 %v7553, %v8051
      %v8053 = vpop.f32.mrf.mxu0
      %8054 = vmatprep.mubr.bf16.mxu0 %v7443
      %8055 = vmatmul.mubr.bf16.gmra.mxu0 %v7442
      %v8056 = vpop.f32.mrf.mxu0
      %v8057 = vadd.f32 %v7553, %v8056
      %v8058 = vpop.f32.mrf.mxu0
      %v8059 = vpop.f32.mrf.mxu0
      %v8060 = vadd.f32 %v7553, %v8059
      %v8061 = vpop.f32.mrf.mxu0
      %8062 = vdwg.mxu0
      %8063 = vmatprep.subr.bf16.mxu0 0
      %8064 = vmatpush1.bf16.msra.mxu0 %v7777
      %8065 = vmatprep.subr.bf16.mxu0 0
      %8066 = vmatpush1.bf16.msra.mxu0 %v7776
      %8067 = vmatprep.subr.bf16.mxu0 0
      %8068 = vmatpush1.bf16.msra.mxu0 %v7775
      %8069 = vmatprep.subr.bf16.mxu0 0
      %8070 = vmatpush1.bf16.msra.mxu0 %v7774
      %8071 = vmatprep.subr.bf16.mxu0 0
      %8072 = vmatpush1.bf16.msra.mxu0 %v7773
      %8073 = vmatprep.subr.bf16.mxu0 0
      %8074 = vmatpush1.bf16.msra.mxu0 %v7772
      %8075 = vmatprep.subr.bf16.mxu0 0
      %8076 = vmatpush1.bf16.msra.mxu0 %v7771
      %8077 = vmatprep.subr.bf16.mxu0 0
      %8078 = vmatpush1.bf16.msra.mxu0 %v7770
      %8079 = vmatprep.subr.bf16.mxu0 0
      %8080 = vmatpush2.bf16.msra.mxu0 %v7785
      %8081 = vmatprep.subr.bf16.mxu0 0
      %8082 = vmatpush2.bf16.msra.mxu0 %v7784
      %8083 = vmatprep.subr.bf16.mxu0 0
      %8084 = vmatpush2.bf16.msra.mxu0 %v7783
      %8085 = vmatprep.subr.bf16.mxu0 0
      %8086 = vmatpush2.bf16.msra.mxu0 %v7782
      %8087 = vmatprep.subr.bf16.mxu0 0
      %8088 = vmatpush2.bf16.msra.mxu0 %v7781
      %8089 = vmatprep.subr.bf16.mxu0 0
      %8090 = vmatpush2.bf16.msra.mxu0 %v7780
      %8091 = vmatprep.subr.bf16.mxu0 0
      %8092 = vmatpush2.bf16.msra.mxu0 %v7779
      %8093 = vmatprep.subr.bf16.mxu0 0
      %8094 = vmatpush2.bf16.msra.mxu0 %v7778
      %8095 = vmatprep.mubr.bf16.mxu0 %v7340
      %8096 = vmatmul.mubr.bf16.gmra.mxu0 %v7339
      %v8097 = vpop.f32.mrf.mxu0
      %v8098 = vadd.f32 %v7937, %v8097
      %v8099 = vpop.f32.mrf.mxu0
      %v8100 = vpop.f32.mrf.mxu0
      %v8101 = vadd.f32 %v7940, %v8100
      %v8102 = vpop.f32.mrf.mxu0
      %8103 = vmatprep.mubr.bf16.mxu0 %v7347
      %8104 = vmatmul.mubr.bf16.gmra.mxu0 %v7346
      %v8105 = vpop.f32.mrf.mxu0
      %v8106 = vadd.f32 %v7945, %v8105
      %v8107 = vpop.f32.mrf.mxu0
      %v8108 = vpop.f32.mrf.mxu0
      %v8109 = vadd.f32 %v7948, %v8108
      %v8110 = vpop.f32.mrf.mxu0
      %8111 = vmatprep.mubr.bf16.mxu0 %v7354
      %8112 = vmatmul.mubr.bf16.gmra.mxu0 %v7353
      %v8113 = vpop.f32.mrf.mxu0
      %v8114 = vadd.f32 %v7953, %v8113
      %v8115 = vpop.f32.mrf.mxu0
      %v8116 = vpop.f32.mrf.mxu0
      %v8117 = vadd.f32 %v7956, %v8116
      %v8118 = vpop.f32.mrf.mxu0
      %8119 = vmatprep.mubr.bf16.mxu0 %v7361
      %8120 = vmatmul.mubr.bf16.gmra.mxu0 %v7360
      %v8121 = vpop.f32.mrf.mxu0
      %v8122 = vadd.f32 %v7961, %v8121
      %v8123 = vpop.f32.mrf.mxu0
      %v8124 = vpop.f32.mrf.mxu0
      %v8125 = vadd.f32 %v7964, %v8124
      %v8126 = vpop.f32.mrf.mxu0
      %8127 = vmatprep.mubr.bf16.mxu0 %v7368
      %8128 = vmatmul.mubr.bf16.gmra.mxu0 %v7367
      %v8129 = vpop.f32.mrf.mxu0
      %v8130 = vadd.f32 %v7969, %v8129
      %v8131 = vpop.f32.mrf.mxu0
      %v8132 = vpop.f32.mrf.mxu0
      %v8133 = vadd.f32 %v7972, %v8132
      %v8134 = vpop.f32.mrf.mxu0
      %8135 = vmatprep.mubr.bf16.mxu0 %v7375
      %8136 = vmatmul.mubr.bf16.gmra.mxu0 %v7374
      %v8137 = vpop.f32.mrf.mxu0
      %v8138 = vadd.f32 %v7977, %v8137
      %v8139 = vpop.f32.mrf.mxu0
      %v8140 = vpop.f32.mrf.mxu0
      %v8141 = vadd.f32 %v7980, %v8140
      %v8142 = vpop.f32.mrf.mxu0
      %8143 = vmatprep.mubr.bf16.mxu0 %v7382
      %8144 = vmatmul.mubr.bf16.gmra.mxu0 %v7381
      %v8145 = vpop.f32.mrf.mxu0
      %v8146 = vadd.f32 %v7985, %v8145
      %v8147 = vpop.f32.mrf.mxu0
      %v8148 = vpop.f32.mrf.mxu0
      %v8149 = vadd.f32 %v7988, %v8148
      %v8150 = vpop.f32.mrf.mxu0
      %8151 = vmatprep.mubr.bf16.mxu0 %v7389
      %8152 = vmatmul.mubr.bf16.gmra.mxu0 %v7388
      %v8153 = vpop.f32.mrf.mxu0
      %v8154 = vadd.f32 %v7993, %v8153
      %v8155 = vpop.f32.mrf.mxu0
      %v8156 = vpop.f32.mrf.mxu0
      %v8157 = vadd.f32 %v7996, %v8156
      %v8158 = vpop.f32.mrf.mxu0
      %8159 = vmatprep.mubr.bf16.mxu0 %v7396
      %8160 = vmatmul.mubr.bf16.gmra.mxu0 %v7395
      %v8161 = vpop.f32.mrf.mxu0
      %v8162 = vadd.f32 %v8001, %v8161
      %v8163 = vpop.f32.mrf.mxu0
      %v8164 = vpop.f32.mrf.mxu0
      %v8165 = vadd.f32 %v8004, %v8164
      %v8166 = vpop.f32.mrf.mxu0
      %8167 = vmatprep.mubr.bf16.mxu0 %v7403
      %8168 = vmatmul.mubr.bf16.gmra.mxu0 %v7402
      %v8169 = vpop.f32.mrf.mxu0
      %v8170 = vadd.f32 %v8009, %v8169
      %v8171 = vpop.f32.mrf.mxu0
      %v8172 = vpop.f32.mrf.mxu0
      %v8173 = vadd.f32 %v8012, %v8172
      %v8174 = vpop.f32.mrf.mxu0
      %8175 = vmatprep.mubr.bf16.mxu0 %v7410
      %8176 = vmatmul.mubr.bf16.gmra.mxu0 %v7409
      %v8177 = vpop.f32.mrf.mxu0
      %v8178 = vadd.f32 %v8017, %v8177
      %v8179 = vpop.f32.mrf.mxu0
      %v8180 = vpop.f32.mrf.mxu0
      %v8181 = vadd.f32 %v8020, %v8180
      %v8182 = vpop.f32.mrf.mxu0
      %8183 = vmatprep.mubr.bf16.mxu0 %v7417
      %8184 = vmatmul.mubr.bf16.gmra.mxu0 %v7416
      %v8185 = vpop.f32.mrf.mxu0
      %v8186 = vadd.f32 %v8025, %v8185
      %v8187 = vpop.f32.mrf.mxu0
      %v8188 = vpop.f32.mrf.mxu0
      %v8189 = vadd.f32 %v8028, %v8188
      %v8190 = vpop.f32.mrf.mxu0
      %8191 = vmatprep.mubr.bf16.mxu0 %v7424
      %8192 = vmatmul.mubr.bf16.gmra.mxu0 %v7423
      %v8193 = vpop.f32.mrf.mxu0
      %v8194 = vadd.f32 %v8033, %v8193
      %v8195 = vpop.f32.mrf.mxu0
      %v8196 = vpop.f32.mrf.mxu0
      %v8197 = vadd.f32 %v8036, %v8196
      %v8198 = vpop.f32.mrf.mxu0
      %8199 = vmatprep.mubr.bf16.mxu0 %v7431
      %8200 = vmatmul.mubr.bf16.gmra.mxu0 %v7430
      %v8201 = vpop.f32.mrf.mxu0
      %v8202 = vadd.f32 %v8041, %v8201
      %v8203 = vpop.f32.mrf.mxu0
      %v8204 = vpop.f32.mrf.mxu0
      %v8205 = vadd.f32 %v8044, %v8204
      %v8206 = vpop.f32.mrf.mxu0
      %8207 = vmatprep.mubr.bf16.mxu0 %v7438
      %8208 = vmatmul.mubr.bf16.gmra.mxu0 %v7437
      %v8209 = vpop.f32.mrf.mxu0
      %v8210 = vadd.f32 %v8049, %v8209
      %v8211 = vpop.f32.mrf.mxu0
      %v8212 = vpop.f32.mrf.mxu0
      %v8213 = vadd.f32 %v8052, %v8212
      %v8214 = vpop.f32.mrf.mxu0
      %8215 = vmatprep.mubr.bf16.mxu0 %v7445
      %8216 = vmatmul.mubr.bf16.gmra.mxu0 %v7444
      %v8217 = vpop.f32.mrf.mxu0
      %v8218 = vadd.f32 %v8057, %v8217
      %v8219 = vpop.f32.mrf.mxu0
      %v8220 = vpop.f32.mrf.mxu0
      %v8221 = vadd.f32 %v8060, %v8220
      %v8222 = vpop.f32.mrf.mxu0
      %8223 = vdwg.mxu0
      %8224 = vmatprep.subr.bf16.mxu0 0
      %8225 = vmatpush1.bf16.msra.mxu0 %v7793
      %8226 = vmatprep.subr.bf16.mxu0 0
      %8227 = vmatpush1.bf16.msra.mxu0 %v7792
      %8228 = vmatprep.subr.bf16.mxu0 0
      %8229 = vmatpush1.bf16.msra.mxu0 %v7791
      %8230 = vmatprep.subr.bf16.mxu0 0
      %8231 = vmatpush1.bf16.msra.mxu0 %v7790
      %8232 = vmatprep.subr.bf16.mxu0 0
      %8233 = vmatpush1.bf16.msra.mxu0 %v7789
      %8234 = vmatprep.subr.bf16.mxu0 0
      %8235 = vmatpush1.bf16.msra.mxu0 %v7788
      %8236 = vmatprep.subr.bf16.mxu0 0
      %8237 = vmatpush1.bf16.msra.mxu0 %v7787
      %8238 = vmatprep.subr.bf16.mxu0 0
      %8239 = vmatpush1.bf16.msra.mxu0 %v7786
      %8240 = vmatprep.subr.bf16.mxu0 0
      %8241 = vmatpush2.bf16.msra.mxu0 %v7801
      %8242 = vmatprep.subr.bf16.mxu0 0
      %8243 = vmatpush2.bf16.msra.mxu0 %v7800
      %8244 = vmatprep.subr.bf16.mxu0 0
      %8245 = vmatpush2.bf16.msra.mxu0 %v7799
      %8246 = vmatprep.subr.bf16.mxu0 0
      %8247 = vmatpush2.bf16.msra.mxu0 %v7798
      %8248 = vmatprep.subr.bf16.mxu0 0
      %8249 = vmatpush2.bf16.msra.mxu0 %v7797
      %8250 = vmatprep.subr.bf16.mxu0 0
      %8251 = vmatpush2.bf16.msra.mxu0 %v7796
      %8252 = vmatprep.subr.bf16.mxu0 0
      %8253 = vmatpush2.bf16.msra.mxu0 %v7795
      %8254 = vmatprep.subr.bf16.mxu0 0
      %8255 = vmatpush2.bf16.msra.mxu0 %v7794
      %8256 = vmatprep.mubr.bf16.mxu0 %v7342
      %8257 = vmatmul.mubr.bf16.gmra.mxu0 %v7341
      %v8258 = vpop.f32.mrf.mxu0
      %v8259 = vadd.f32 %v8098, %v8258
      %v8260 = vpop.f32.mrf.mxu0
      %v8261 = vpop.f32.mrf.mxu0
      %v8262 = vadd.f32 %v8101, %v8261
      %v8263 = vpop.f32.mrf.mxu0
      %8264 = vmatprep.mubr.bf16.mxu0 %v7349
      %8265 = vmatmul.mubr.bf16.gmra.mxu0 %v7348
      %v8266 = vpop.f32.mrf.mxu0
      %v8267 = vadd.f32 %v8106, %v8266
      %v8268 = vpop.f32.mrf.mxu0
      %v8269 = vpop.f32.mrf.mxu0
      %v8270 = vadd.f32 %v8109, %v8269
      %v8271 = vpop.f32.mrf.mxu0
      %8272 = vmatprep.mubr.bf16.mxu0 %v7356
      %8273 = vmatmul.mubr.bf16.gmra.mxu0 %v7355
      %v8274 = vpop.f32.mrf.mxu0
      %v8275 = vadd.f32 %v8114, %v8274
      %v8276 = vpop.f32.mrf.mxu0
      %v8277 = vpop.f32.mrf.mxu0
      %v8278 = vadd.f32 %v8117, %v8277
      %v8279 = vpop.f32.mrf.mxu0
      %8280 = vmatprep.mubr.bf16.mxu0 %v7363
      %8281 = vmatmul.mubr.bf16.gmra.mxu0 %v7362
      %v8282 = vpop.f32.mrf.mxu0
      %v8283 = vadd.f32 %v8122, %v8282
      %v8284 = vpop.f32.mrf.mxu0
      %v8285 = vpop.f32.mrf.mxu0
      %v8286 = vadd.f32 %v8125, %v8285
      %v8287 = vpop.f32.mrf.mxu0
      %8288 = vmatprep.mubr.bf16.mxu0 %v7370
      %8289 = vmatmul.mubr.bf16.gmra.mxu0 %v7369
      %v8290 = vpop.f32.mrf.mxu0
      %v8291 = vadd.f32 %v8130, %v8290
      %v8292 = vpop.f32.mrf.mxu0
      %v8293 = vpop.f32.mrf.mxu0
      %v8294 = vadd.f32 %v8133, %v8293
      %v8295 = vpop.f32.mrf.mxu0
      %8296 = vmatprep.mubr.bf16.mxu0 %v7377
      %8297 = vmatmul.mubr.bf16.gmra.mxu0 %v7376
      %v8298 = vpop.f32.mrf.mxu0
      %v8299 = vadd.f32 %v8138, %v8298
      %v8300 = vpop.f32.mrf.mxu0
      %v8301 = vpop.f32.mrf.mxu0
      %v8302 = vadd.f32 %v8141, %v8301
      %v8303 = vpop.f32.mrf.mxu0
      %8304 = vmatprep.mubr.bf16.mxu0 %v7384
      %8305 = vmatmul.mubr.bf16.gmra.mxu0 %v7383
      %v8306 = vpop.f32.mrf.mxu0
      %v8307 = vadd.f32 %v8146, %v8306
      %v8308 = vpop.f32.mrf.mxu0
      %v8309 = vpop.f32.mrf.mxu0
      %v8310 = vadd.f32 %v8149, %v8309
      %v8311 = vpop.f32.mrf.mxu0
      %8312 = vmatprep.mubr.bf16.mxu0 %v7391
      %8313 = vmatmul.mubr.bf16.gmra.mxu0 %v7390
      %v8314 = vpop.f32.mrf.mxu0
      %v8315 = vadd.f32 %v8154, %v8314
      %v8316 = vpop.f32.mrf.mxu0
      %v8317 = vpop.f32.mrf.mxu0
      %v8318 = vadd.f32 %v8157, %v8317
      %v8319 = vpop.f32.mrf.mxu0
      %8320 = vmatprep.mubr.bf16.mxu0 %v7398
      %8321 = vmatmul.mubr.bf16.gmra.mxu0 %v7397
      %v8322 = vpop.f32.mrf.mxu0
      %v8323 = vadd.f32 %v8162, %v8322
      %v8324 = vpop.f32.mrf.mxu0
      %v8325 = vpop.f32.mrf.mxu0
      %v8326 = vadd.f32 %v8165, %v8325
      %v8327 = vpop.f32.mrf.mxu0
      %8328 = vmatprep.mubr.bf16.mxu0 %v7405
      %8329 = vmatmul.mubr.bf16.gmra.mxu0 %v7404
      %v8330 = vpop.f32.mrf.mxu0
      %v8331 = vadd.f32 %v8170, %v8330
      %v8332 = vpop.f32.mrf.mxu0
      %v8333 = vpop.f32.mrf.mxu0
      %v8334 = vadd.f32 %v8173, %v8333
      %v8335 = vpop.f32.mrf.mxu0
      %8336 = vmatprep.mubr.bf16.mxu0 %v7412
      %8337 = vmatmul.mubr.bf16.gmra.mxu0 %v7411
      %v8338 = vpop.f32.mrf.mxu0
      %v8339 = vadd.f32 %v8178, %v8338
      %v8340 = vpop.f32.mrf.mxu0
      %v8341 = vpop.f32.mrf.mxu0
      %v8342 = vadd.f32 %v8181, %v8341
      %v8343 = vpop.f32.mrf.mxu0
      %8344 = vmatprep.mubr.bf16.mxu0 %v7419
      %8345 = vmatmul.mubr.bf16.gmra.mxu0 %v7418
      %v8346 = vpop.f32.mrf.mxu0
      %v8347 = vadd.f32 %v8186, %v8346
      %v8348 = vpop.f32.mrf.mxu0
      %v8349 = vpop.f32.mrf.mxu0
      %v8350 = vadd.f32 %v8189, %v8349
      %v8351 = vpop.f32.mrf.mxu0
      %8352 = vmatprep.mubr.bf16.mxu0 %v7426
      %8353 = vmatmul.mubr.bf16.gmra.mxu0 %v7425
      %v8354 = vpop.f32.mrf.mxu0
      %v8355 = vadd.f32 %v8194, %v8354
      %v8356 = vpop.f32.mrf.mxu0
      %v8357 = vpop.f32.mrf.mxu0
      %v8358 = vadd.f32 %v8197, %v8357
      %v8359 = vpop.f32.mrf.mxu0
      %8360 = vmatprep.mubr.bf16.mxu0 %v7433
      %8361 = vmatmul.mubr.bf16.gmra.mxu0 %v7432
      %v8362 = vpop.f32.mrf.mxu0
      %v8363 = vadd.f32 %v8202, %v8362
      %v8364 = vpop.f32.mrf.mxu0
      %v8365 = vpop.f32.mrf.mxu0
      %v8366 = vadd.f32 %v8205, %v8365
      %v8367 = vpop.f32.mrf.mxu0
      %8368 = vmatprep.mubr.bf16.mxu0 %v7440
      %8369 = vmatmul.mubr.bf16.gmra.mxu0 %v7439
      %v8370 = vpop.f32.mrf.mxu0
      %v8371 = vadd.f32 %v8210, %v8370
      %v8372 = vpop.f32.mrf.mxu0
      %v8373 = vpop.f32.mrf.mxu0
      %v8374 = vadd.f32 %v8213, %v8373
      %v8375 = vpop.f32.mrf.mxu0
      %8376 = vmatprep.mubr.bf16.mxu0 %v7447
      %8377 = vmatmul.mubr.bf16.gmra.mxu0 %v7446
      %v8378 = vpop.f32.mrf.mxu0
      %v8379 = vadd.f32 %v8218, %v8378
      %v8380 = vpop.f32.mrf.mxu0
      %v8381 = vpop.f32.mrf.mxu0
      %v8382 = vadd.f32 %v8221, %v8381
      %v8383 = vpop.f32.mrf.mxu0
      %8384 = vdwg.mxu0
      %8385 = vmatprep.subr.bf16.mxu0 0
      %8386 = vmatpush1.bf16.msra.mxu0 0
      %8387 = vmatprep.subr.bf16.mxu0 0
      %8388 = vmatpush1.bf16.msra.mxu0 0
      %8389 = vmatprep.subr.bf16.mxu0 0
      %8390 = vmatpush1.bf16.msra.mxu0 0
      %8391 = vmatprep.subr.bf16.mxu0 0
      %8392 = vmatpush1.bf16.msra.mxu0 0
      %8393 = vmatprep.subr.bf16.mxu0 0
      %8394 = vmatpush1.bf16.msra.mxu0 0
      %8395 = vmatprep.subr.bf16.mxu0 0
      %8396 = vmatpush1.bf16.msra.mxu0 0
      %8397 = vmatprep.subr.bf16.mxu0 0
      %8398 = vmatpush1.bf16.msra.mxu0 %v7803
      %8399 = vmatprep.subr.bf16.mxu0 0
      %8400 = vmatpush1.bf16.msra.mxu0 %v7802
      %8401 = vmatprep.subr.bf16.mxu0 0
      %8402 = vmatpush2.bf16.msra.mxu0 0
      %8403 = vmatprep.subr.bf16.mxu0 0
      %8404 = vmatpush2.bf16.msra.mxu0 0
      %8405 = vmatprep.subr.bf16.mxu0 0
      %8406 = vmatpush2.bf16.msra.mxu0 0
      %8407 = vmatprep.subr.bf16.mxu0 0
      %8408 = vmatpush2.bf16.msra.mxu0 0
      %8409 = vmatprep.subr.bf16.mxu0 0
      %8410 = vmatpush2.bf16.msra.mxu0 0
      %8411 = vmatprep.subr.bf16.mxu0 0
      %8412 = vmatpush2.bf16.msra.mxu0 0
      %8413 = vmatprep.subr.bf16.mxu0 0
      %8414 = vmatpush2.bf16.msra.mxu0 0
      %8415 = vmatprep.subr.bf16.mxu0 0
      %8416 = vmatpush2.bf16.msra.mxu0 0
      %8417 = vmatprep.mubr.bf16.mxu0 0
      %8418 = vmatmul.mubr.bf16.gmra.mxu0 %v7855
      %v8419 = vpop.f32.mrf.mxu0
      %v8420 = vadd.f32 %v8259, %v8419
      %v8421 = vpop.f32.mrf.mxu0
      %v8422 = vpop.f32.mrf.mxu0
      %v8423 = vadd.f32 %v8262, %v8422
      %v8424 = vpop.f32.mrf.mxu0
      %8425 = vmatprep.mubr.bf16.mxu0 0
      %8426 = vmatmul.mubr.bf16.gmra.mxu0 %v7858
      %v8427 = vpop.f32.mrf.mxu0
      %v8428 = vadd.f32 %v8267, %v8427
      %v8429 = vpop.f32.mrf.mxu0
      %v8430 = vpop.f32.mrf.mxu0
      %v8431 = vadd.f32 %v8270, %v8430
      %v8432 = vpop.f32.mrf.mxu0
      %8433 = vmatprep.mubr.bf16.mxu0 0
      %8434 = vmatmul.mubr.bf16.gmra.mxu0 %v7861
      %v8435 = vpop.f32.mrf.mxu0
      %v8436 = vadd.f32 %v8275, %v8435
      %v8437 = vpop.f32.mrf.mxu0
      %v8438 = vpop.f32.mrf.mxu0
      %v8439 = vadd.f32 %v8278, %v8438
      %v8440 = vpop.f32.mrf.mxu0
      %8441 = vmatprep.mubr.bf16.mxu0 0
      %8442 = vmatmul.mubr.bf16.gmra.mxu0 %v7864
      %v8443 = vpop.f32.mrf.mxu0
      %v8444 = vadd.f32 %v8283, %v8443
      %v8445 = vpop.f32.mrf.mxu0
      %v8446 = vpop.f32.mrf.mxu0
      %v8447 = vadd.f32 %v8286, %v8446
      %v8448 = vpop.f32.mrf.mxu0
      %8449 = vmatprep.mubr.bf16.mxu0 0
      %8450 = vmatmul.mubr.bf16.gmra.mxu0 %v7867
      %v8451 = vpop.f32.mrf.mxu0
      %v8452 = vadd.f32 %v8291, %v8451
      %v8453 = vpop.f32.mrf.mxu0
      %v8454 = vpop.f32.mrf.mxu0
      %v8455 = vadd.f32 %v8294, %v8454
      %v8456 = vpop.f32.mrf.mxu0
      %8457 = vmatprep.mubr.bf16.mxu0 0
      %8458 = vmatmul.mubr.bf16.gmra.mxu0 %v7870
      %v8459 = vpop.f32.mrf.mxu0
      %v8460 = vadd.f32 %v8299, %v8459
      %v8461 = vpop.f32.mrf.mxu0
      %v8462 = vpop.f32.mrf.mxu0
      %v8463 = vadd.f32 %v8302, %v8462
      %v8464 = vpop.f32.mrf.mxu0
      %8465 = vmatprep.mubr.bf16.mxu0 0
      %8466 = vmatmul.mubr.bf16.gmra.mxu0 %v7873
      %v8467 = vpop.f32.mrf.mxu0
      %v8468 = vadd.f32 %v8307, %v8467
      %v8469 = vpop.f32.mrf.mxu0
      %v8470 = vpop.f32.mrf.mxu0
      %v8471 = vadd.f32 %v8310, %v8470
      %v8472 = vpop.f32.mrf.mxu0
      %8473 = vmatprep.mubr.bf16.mxu0 0
      %8474 = vmatmul.mubr.bf16.gmra.mxu0 %v7876
      %v8475 = vpop.f32.mrf.mxu0
      %v8476 = vadd.f32 %v8315, %v8475
      %v8477 = vpop.f32.mrf.mxu0
      %v8478 = vpop.f32.mrf.mxu0
      %v8479 = vadd.f32 %v8318, %v8478
      %v8480 = vpop.f32.mrf.mxu0
      %8481 = vmatprep.mubr.bf16.mxu0 0
      %8482 = vmatmul.mubr.bf16.gmra.mxu0 %v7879
      %v8483 = vpop.f32.mrf.mxu0
      %v8484 = vadd.f32 %v8323, %v8483
      %v8485 = vpop.f32.mrf.mxu0
      %v8486 = vpop.f32.mrf.mxu0
      %v8487 = vadd.f32 %v8326, %v8486
      %v8488 = vpop.f32.mrf.mxu0
      %8489 = vmatprep.mubr.bf16.mxu0 0
      %8490 = vmatmul.mubr.bf16.gmra.mxu0 %v7882
      %v8491 = vpop.f32.mrf.mxu0
      %v8492 = vadd.f32 %v8331, %v8491
      %v8493 = vpop.f32.mrf.mxu0
      %v8494 = vpop.f32.mrf.mxu0
      %v8495 = vadd.f32 %v8334, %v8494
      %v8496 = vpop.f32.mrf.mxu0
      %8497 = vmatprep.mubr.bf16.mxu0 0
      %8498 = vmatmul.mubr.bf16.gmra.mxu0 %v7885
      %v8499 = vpop.f32.mrf.mxu0
      %v8500 = vadd.f32 %v8339, %v8499
      %v8501 = vpop.f32.mrf.mxu0
      %v8502 = vpop.f32.mrf.mxu0
      %v8503 = vadd.f32 %v8342, %v8502
      %v8504 = vpop.f32.mrf.mxu0
      %8505 = vmatprep.mubr.bf16.mxu0 0
      %8506 = vmatmul.mubr.bf16.gmra.mxu0 %v7888
      %v8507 = vpop.f32.mrf.mxu0
      %v8508 = vadd.f32 %v8347, %v8507
      %v8509 = vpop.f32.mrf.mxu0
      %v8510 = vpop.f32.mrf.mxu0
      %v8511 = vadd.f32 %v8350, %v8510
      %v8512 = vpop.f32.mrf.mxu0
      %8513 = vmatprep.mubr.bf16.mxu0 0
      %8514 = vmatmul.mubr.bf16.gmra.mxu0 %v7891
      %v8515 = vpop.f32.mrf.mxu0
      %v8516 = vadd.f32 %v8355, %v8515
      %v8517 = vpop.f32.mrf.mxu0
      %v8518 = vpop.f32.mrf.mxu0
      %v8519 = vadd.f32 %v8358, %v8518
      %v8520 = vpop.f32.mrf.mxu0
      %8521 = vmatprep.mubr.bf16.mxu0 0
      %8522 = vmatmul.mubr.bf16.gmra.mxu0 %v7894
      %v8523 = vpop.f32.mrf.mxu0
      %v8524 = vadd.f32 %v8363, %v8523
      %v8525 = vpop.f32.mrf.mxu0
      %v8526 = vpop.f32.mrf.mxu0
      %v8527 = vadd.f32 %v8366, %v8526
      %v8528 = vpop.f32.mrf.mxu0
      %8529 = vmatprep.mubr.bf16.mxu0 0
      %8530 = vmatmul.mubr.bf16.gmra.mxu0 %v7897
      %v8531 = vpop.f32.mrf.mxu0
      %v8532 = vadd.f32 %v8371, %v8531
      %v8533 = vpop.f32.mrf.mxu0
      %v8534 = vpop.f32.mrf.mxu0
      %v8535 = vadd.f32 %v8374, %v8534
      %v8536 = vpop.f32.mrf.mxu0
      %8537 = vmatprep.mubr.bf16.mxu0 0
      %8538 = vmatmul.mubr.bf16.gmra.mxu0 %v7900
      %v8539 = vpop.f32.mrf.mxu0
      %v8540 = vadd.f32 %v8379, %v8539
      %v8541 = vpop.f32.mrf.mxu0
      %v8542 = vpop.f32.mrf.mxu0
      %v8543 = vadd.f32 %v8382, %v8542
      %v8544 = vpop.f32.mrf.mxu0
      %8545 = vdwg.mxu0
      %v8546 = vadd.f32 %v8420, %v868
      %v8547 = vadd.f32 %v8423, %v871
      %v8548 = vadd.f32 %v8428, %v876
      %v8549 = vadd.f32 %v8431, %v879
      %v8550 = vadd.f32 %v8436, %v884
      %v8551 = vadd.f32 %v8439, %v887
      %v8552 = vadd.f32 %v8444, %v892
      %v8553 = vadd.f32 %v8447, %v895
      %v8554 = vadd.f32 %v8452, %v900
      %v8555 = vadd.f32 %v8455, %v903
      %v8556 = vadd.f32 %v8460, %v908
      %v8557 = vadd.f32 %v8463, %v911
      %v8558 = vadd.f32 %v8468, %v916
      %v8559 = vadd.f32 %v8471, %v919
      %v8560 = vadd.f32 %v8476, %v924
      %v8561 = vadd.f32 %v8479, %v927
      %v8562 = vadd.f32 %v8484, %v932
      %v8563 = vadd.f32 %v8487, %v935
      %v8564 = vadd.f32 %v8492, %v940
      %v8565 = vadd.f32 %v8495, %v943
      %v8566 = vadd.f32 %v8500, %v948
      %v8567 = vadd.f32 %v8503, %v951
      %v8568 = vadd.f32 %v8508, %v956
      %v8569 = vadd.f32 %v8511, %v959
      %v8570 = vadd.f32 %v8516, %v964
      %v8571 = vadd.f32 %v8519, %v967
      %v8572 = vadd.f32 %v8524, %v972
      %v8573 = vadd.f32 %v8527, %v975
      %v8574 = vadd.f32 %v8532, %v980
      %v8575 = vadd.f32 %v8535, %v983
      %v8576 = vadd.f32 %v8540, %v988
      %v8577 = vadd.f32 %v8543, %v991
      %v8578 = vld [vmem:[%s15] sm:$0xff]
      %v8579 = vld [vmem:[%s15 + $0x8] sm:$0xff]
      %v8580 = vld [vmem:[%s15 + $0x10] sm:$0xff]
      %v8581 = vld [vmem:[%s15 + $0x18] sm:$0xff]
      %v8582 = vld [vmem:[%s15 + $0x20] sm:$0xff]
      %v8583 = vld [vmem:[%s15 + $0x28] sm:$0xff]
      %v8584 = vld [vmem:[%s15 + $0x30] sm:$0xff]
      %v8585 = vld [vmem:[%s15 + $0x38] sm:$0xff]
      %v8586 = vld [vmem:[%s15 + $0x40] sm:$0xff]
      %v8587 = vld [vmem:[%s15 + $0x48] sm:$0xff]
      %v8589 = vsel %vm1267, %v8546, 0
      %v8592 = vsel %vm1267, %v8547, 0
      %v8595 = vsel %vm1267, %v8548, 0
      %v8598 = vsel %vm1267, %v8549, 0
      %v8601 = vsel %vm1267, %v8550, 0
      %v8604 = vsel %vm1267, %v8551, 0
      %v8607 = vsel %vm1267, %v8552, 0
      %v8610 = vsel %vm1267, %v8553, 0
      %v8613 = vsel %vm1267, %v8554, 0
      %v8616 = vsel %vm1267, %v8555, 0
      %v8619 = vsel %vm1267, %v8556, 0
      %v8622 = vsel %vm1267, %v8557, 0
      %v8625 = vsel %vm1267, %v8558, 0
      %v8628 = vsel %vm1267, %v8559, 0
      %v8631 = vsel %vm1267, %v8560, 0
      %v8634 = vsel %vm1267, %v8561, 0
      %v8637 = vsel %vm1267, %v8562, 0
      %v8640 = vsel %vm1267, %v8563, 0
      %v8643 = vsel %vm1267, %v8564, 0
      %v8646 = vsel %vm1267, %v8565, 0
      %v8649 = vsel %vm1267, %v8566, 0
      %v8652 = vsel %vm1267, %v8567, 0
      %v8655 = vsel %vm1267, %v8568, 0
      %v8658 = vsel %vm1267, %v8569, 0
      %v8661 = vsel %vm1267, %v8570, 0
      %v8664 = vsel %vm1267, %v8571, 0
      %v8667 = vsel %vm1267, %v8572, 0
      %v8670 = vsel %vm1267, %v8573, 0
      %v8673 = vsel %vm1267, %v8574, 0
      %v8676 = vsel %vm1267, %v8575, 0
      %v8679 = vsel %vm1267, %v8576, 0
      %v8682 = vsel %vm1267, %v8577, 0
      %8684 = vmatprep.subr.mxu0 0.0
      %8685 = vmatpush1.msra.mxu0 0.0
      %8686 = vmatprep.subr.mxu0 0.0
      %8687 = vmatpush1.msra.mxu0 0.0
      %8688 = vmatprep.subr.mxu0 0.0
      %8689 = vmatpush1.msra.mxu0 0.0
      %8690 = vmatprep.subr.mxu0 0.0
      %8691 = vmatpush1.msra.mxu0 0.0
      %8692 = vmatprep.subr.mxu0 0.0
      %8693 = vmatpush1.msra.mxu0 0.0
      %8694 = vmatprep.subr.mxu0 0.0
      %8695 = vmatpush1.msra.mxu0 0.0
      %8696 = vmatprep.subr.mxu0 0.0
      %8697 = vmatpush1.msra.mxu0 %v8587
      %8698 = vmatprep.subr.mxu0 0.0
      %8699 = vmatpush1.msra.mxu0 %v8586
      %8700 = vmatprep.subr.mxu0 0.0
      %8701 = vmatpush1.msra.mxu0 %v8585
      %8702 = vmatprep.subr.mxu0 0.0
      %8703 = vmatpush1.msra.mxu0 %v8584
      %8704 = vmatprep.subr.mxu0 0.0
      %8705 = vmatpush1.msra.mxu0 %v8583
      %8706 = vmatprep.subr.mxu0 0.0
      %8707 = vmatpush1.msra.mxu0 %v8582
      %8708 = vmatprep.subr.mxu0 0.0
      %8709 = vmatpush1.msra.mxu0 %v8581
      %8710 = vmatprep.subr.mxu0 0.0
      %8711 = vmatpush1.msra.mxu0 %v8580
      %8712 = vmatprep.subr.mxu0 0.0
      %8713 = vmatpush1.msra.mxu0 %v8579
      %8714 = vmatprep.subr.mxu0 0.0
      %8715 = vmatpush1.msra.mxu0 %v8578
      %8716 = vmatprep.subr.mxu0 0.0
      %8717 = vmatpush2.msra.mxu0 0.0
      %8718 = vmatprep.subr.mxu0 0.0
      %8719 = vmatpush2.msra.mxu0 0.0
      %8720 = vmatprep.subr.mxu0 0.0
      %8721 = vmatpush2.msra.mxu0 0.0
      %8722 = vmatprep.subr.mxu0 0.0
      %8723 = vmatpush2.msra.mxu0 0.0
      %8724 = vmatprep.subr.mxu0 0.0
      %8725 = vmatpush2.msra.mxu0 0.0
      %8726 = vmatprep.subr.mxu0 0.0
      %8727 = vmatpush2.msra.mxu0 0.0
      %8728 = vmatprep.subr.mxu0 0.0
      %8729 = vmatpush2.msra.mxu0 0.0
      %8730 = vmatprep.subr.mxu0 0.0
      %8731 = vmatpush2.msra.mxu0 0.0
      %8732 = vmatprep.subr.mxu0 0.0
      %8733 = vmatpush2.msra.mxu0 0.0
      %8734 = vmatprep.subr.mxu0 0.0
      %8735 = vmatpush2.msra.mxu0 0.0
      %8736 = vmatprep.subr.mxu0 0.0
      %8737 = vmatpush2.msra.mxu0 0.0
      %8738 = vmatprep.subr.mxu0 0.0
      %8739 = vmatpush2.msra.mxu0 0.0
      %8740 = vmatprep.subr.mxu0 0.0
      %8741 = vmatpush2.msra.mxu0 0.0
      %8742 = vmatprep.subr.mxu0 0.0
      %8743 = vmatpush2.msra.mxu0 0.0
      %8744 = vmatprep.subr.mxu0 0.0
      %8745 = vmatpush2.msra.mxu0 0.0
      %8746 = vmatprep.subr.mxu0 0.0
      %8747 = vmatpush2.msra.mxu0 0.0
      %8748 = vmatprep.mubr.f32.mxu0 0.0
      %8749 = vmatmul.mubr.f32.gmra.mxu0 %v8589
      %v8750 = vpop.f32.mrf.mxu0
      %v8751 = vadd.f32 0.0, %v8750
      %v8752 = vpop.f32.mrf.mxu0
      %8753 = vmatprep.mubr.f32.mxu0 0.0
      %8754 = vmatmul.mubr.f32.gmra.mxu0 %v8592
      %v8755 = vpop.f32.mrf.mxu0
      %v8756 = vadd.f32 0.0, %v8755
      %v8757 = vpop.f32.mrf.mxu0
      %8758 = vmatprep.mubr.f32.mxu0 0.0
      %8759 = vmatmul.mubr.f32.gmra.mxu0 %v8595
      %v8760 = vpop.f32.mrf.mxu0
      %v8761 = vadd.f32 0.0, %v8760
      %v8762 = vpop.f32.mrf.mxu0
      %8763 = vmatprep.mubr.f32.mxu0 0.0
      %8764 = vmatmul.mubr.f32.gmra.mxu0 %v8598
      %v8765 = vpop.f32.mrf.mxu0
      %v8766 = vadd.f32 0.0, %v8765
      %v8767 = vpop.f32.mrf.mxu0
      %8768 = vmatprep.mubr.f32.mxu0 0.0
      %8769 = vmatmul.mubr.f32.gmra.mxu0 %v8601
      %v8770 = vpop.f32.mrf.mxu0
      %v8771 = vadd.f32 0.0, %v8770
      %v8772 = vpop.f32.mrf.mxu0
      %8773 = vmatprep.mubr.f32.mxu0 0.0
      %8774 = vmatmul.mubr.f32.gmra.mxu0 %v8604
      %v8775 = vpop.f32.mrf.mxu0
      %v8776 = vadd.f32 0.0, %v8775
      %v8777 = vpop.f32.mrf.mxu0
      %8778 = vmatprep.mubr.f32.mxu0 0.0
      %8779 = vmatmul.mubr.f32.gmra.mxu0 %v8607
      %v8780 = vpop.f32.mrf.mxu0
      %v8781 = vadd.f32 0.0, %v8780
      %v8782 = vpop.f32.mrf.mxu0
      %8783 = vmatprep.mubr.f32.mxu0 0.0
      %8784 = vmatmul.mubr.f32.gmra.mxu0 %v8610
      %v8785 = vpop.f32.mrf.mxu0
      %v8786 = vadd.f32 0.0, %v8785
      %v8787 = vpop.f32.mrf.mxu0
      %8788 = vmatprep.mubr.f32.mxu0 0.0
      %8789 = vmatmul.mubr.f32.gmra.mxu0 %v8613
      %v8790 = vpop.f32.mrf.mxu0
      %v8791 = vadd.f32 0.0, %v8790
      %v8792 = vpop.f32.mrf.mxu0
      %8793 = vmatprep.mubr.f32.mxu0 0.0
      %8794 = vmatmul.mubr.f32.gmra.mxu0 %v8616
      %v8795 = vpop.f32.mrf.mxu0
      %v8796 = vadd.f32 0.0, %v8795
      %v8797 = vpop.f32.mrf.mxu0
      %8798 = vmatprep.mubr.f32.mxu0 0.0
      %8799 = vmatmul.mubr.f32.gmra.mxu0 %v8619
      %v8800 = vpop.f32.mrf.mxu0
      %v8801 = vadd.f32 0.0, %v8800
      %v8802 = vpop.f32.mrf.mxu0
      %8803 = vmatprep.mubr.f32.mxu0 0.0
      %8804 = vmatmul.mubr.f32.gmra.mxu0 %v8622
      %v8805 = vpop.f32.mrf.mxu0
      %v8806 = vadd.f32 0.0, %v8805
      %v8807 = vpop.f32.mrf.mxu0
      %8808 = vmatprep.mubr.f32.mxu0 0.0
      %8809 = vmatmul.mubr.f32.gmra.mxu0 %v8625
      %v8810 = vpop.f32.mrf.mxu0
      %v8811 = vadd.f32 0.0, %v8810
      %v8812 = vpop.f32.mrf.mxu0
      %8813 = vmatprep.mubr.f32.mxu0 0.0
      %8814 = vmatmul.mubr.f32.gmra.mxu0 %v8628
      %v8815 = vpop.f32.mrf.mxu0
      %v8816 = vadd.f32 0.0, %v8815
      %v8817 = vpop.f32.mrf.mxu0
      %8818 = vmatprep.mubr.f32.mxu0 0.0
      %8819 = vmatmul.mubr.f32.gmra.mxu0 %v8631
      %v8820 = vpop.f32.mrf.mxu0
      %v8821 = vadd.f32 0.0, %v8820
      %v8822 = vpop.f32.mrf.mxu0
      %8823 = vmatprep.mubr.f32.mxu0 0.0
      %8824 = vmatmul.mubr.f32.gmra.mxu0 %v8634
      %v8825 = vpop.f32.mrf.mxu0
      %v8826 = vadd.f32 0.0, %v8825
      %v8827 = vpop.f32.mrf.mxu0
      %8828 = vmatprep.mubr.f32.mxu0 0.0
      %8829 = vmatmul.mubr.f32.gmra.mxu0 %v8637
      %v8830 = vpop.f32.mrf.mxu0
      %v8831 = vadd.f32 0.0, %v8830
      %v8832 = vpop.f32.mrf.mxu0
      %8833 = vmatprep.mubr.f32.mxu0 0.0
      %8834 = vmatmul.mubr.f32.gmra.mxu0 %v8640
      %v8835 = vpop.f32.mrf.mxu0
      %v8836 = vadd.f32 0.0, %v8835
      %v8837 = vpop.f32.mrf.mxu0
      %8838 = vmatprep.mubr.f32.mxu0 0.0
      %8839 = vmatmul.mubr.f32.gmra.mxu0 %v8643
      %v8840 = vpop.f32.mrf.mxu0
      %v8841 = vadd.f32 0.0, %v8840
      %v8842 = vpop.f32.mrf.mxu0
      %8843 = vmatprep.mubr.f32.mxu0 0.0
      %8844 = vmatmul.mubr.f32.gmra.mxu0 %v8646
      %v8845 = vpop.f32.mrf.mxu0
      %v8846 = vadd.f32 0.0, %v8845
      %v8847 = vpop.f32.mrf.mxu0
      %8848 = vmatprep.mubr.f32.mxu0 0.0
      %8849 = vmatmul.mubr.f32.gmra.mxu0 %v8649
      %v8850 = vpop.f32.mrf.mxu0
      %v8851 = vadd.f32 0.0, %v8850
      %v8852 = vpop.f32.mrf.mxu0
      %8853 = vmatprep.mubr.f32.mxu0 0.0
      %8854 = vmatmul.mubr.f32.gmra.mxu0 %v8652
      %v8855 = vpop.f32.mrf.mxu0
      %v8856 = vadd.f32 0.0, %v8855
      %v8857 = vpop.f32.mrf.mxu0
      %8858 = vmatprep.mubr.f32.mxu0 0.0
      %8859 = vmatmul.mubr.f32.gmra.mxu0 %v8655
      %v8860 = vpop.f32.mrf.mxu0
      %v8861 = vadd.f32 0.0, %v8860
      %v8862 = vpop.f32.mrf.mxu0
      %8863 = vmatprep.mubr.f32.mxu0 0.0
      %8864 = vmatmul.mubr.f32.gmra.mxu0 %v8658
      %v8865 = vpop.f32.mrf.mxu0
      %v8866 = vadd.f32 0.0, %v8865
      %v8867 = vpop.f32.mrf.mxu0
      %8868 = vmatprep.mubr.f32.mxu0 0.0
      %8869 = vmatmul.mubr.f32.gmra.mxu0 %v8661
      %v8870 = vpop.f32.mrf.mxu0
      %v8871 = vadd.f32 0.0, %v8870
      %v8872 = vpop.f32.mrf.mxu0
      %8873 = vmatprep.mubr.f32.mxu0 0.0
      %8874 = vmatmul.mubr.f32.gmra.mxu0 %v8664
      %v8875 = vpop.f32.mrf.mxu0
      %v8876 = vadd.f32 0.0, %v8875
      %v8877 = vpop.f32.mrf.mxu0
      %8878 = vmatprep.mubr.f32.mxu0 0.0
      %8879 = vmatmul.mubr.f32.gmra.mxu0 %v8667
      %v8880 = vpop.f32.mrf.mxu0
      %v8881 = vadd.f32 0.0, %v8880
      %v8882 = vpop.f32.mrf.mxu0
      %8883 = vmatprep.mubr.f32.mxu0 0.0
      %8884 = vmatmul.mubr.f32.gmra.mxu0 %v8670
      %v8885 = vpop.f32.mrf.mxu0
      %v8886 = vadd.f32 0.0, %v8885
      %v8887 = vpop.f32.mrf.mxu0
      %8888 = vmatprep.mubr.f32.mxu0 0.0
      %8889 = vmatmul.mubr.f32.gmra.mxu0 %v8673
      %v8890 = vpop.f32.mrf.mxu0
      %v8891 = vadd.f32 0.0, %v8890
      %v8892 = vpop.f32.mrf.mxu0
      %8893 = vmatprep.mubr.f32.mxu0 0.0
      %8894 = vmatmul.mubr.f32.gmra.mxu0 %v8676
      %v8895 = vpop.f32.mrf.mxu0
      %v8896 = vadd.f32 0.0, %v8895
      %v8897 = vpop.f32.mrf.mxu0
      %8898 = vmatprep.mubr.f32.mxu0 0.0
      %8899 = vmatmul.mubr.f32.gmra.mxu0 %v8679
      %v8900 = vpop.f32.mrf.mxu0
      %v8901 = vadd.f32 0.0, %v8900
      %v8902 = vpop.f32.mrf.mxu0
      %8903 = vmatprep.mubr.f32.mxu0 0.0
      %8904 = vmatmul.mubr.f32.gmra.mxu0 %v8682
      %v8905 = vpop.f32.mrf.mxu0
      %v8906 = vadd.f32 0.0, %v8905
      %v8907 = vpop.f32.mrf.mxu0
      %8908 = vdwg.mxu0
      %v8909 = vsub.f32 %v8546, %v8751
      %v8910 = vsub.f32 %v8547, %v8756
      %v8911 = vsub.f32 %v8548, %v8761
      %v8912 = vsub.f32 %v8549, %v8766
      %v8913 = vsub.f32 %v8550, %v8771
      %v8914 = vsub.f32 %v8551, %v8776
      %v8915 = vsub.f32 %v8552, %v8781
      %v8916 = vsub.f32 %v8553, %v8786
      %v8917 = vsub.f32 %v8554, %v8791
      %v8918 = vsub.f32 %v8555, %v8796
      %v8919 = vsub.f32 %v8556, %v8801
      %v8920 = vsub.f32 %v8557, %v8806
      %v8921 = vsub.f32 %v8558, %v8811
      %v8922 = vsub.f32 %v8559, %v8816
      %v8923 = vsub.f32 %v8560, %v8821
      %v8924 = vsub.f32 %v8561, %v8826
      %v8925 = vsub.f32 %v8562, %v8831
      %v8926 = vsub.f32 %v8563, %v8836
      %v8927 = vsub.f32 %v8564, %v8841
      %v8928 = vsub.f32 %v8565, %v8846
      %v8929 = vsub.f32 %v8566, %v8851
      %v8930 = vsub.f32 %v8567, %v8856
      %v8931 = vsub.f32 %v8568, %v8861
      %v8932 = vsub.f32 %v8569, %v8866
      %v8933 = vsub.f32 %v8570, %v8871
      %v8934 = vsub.f32 %v8571, %v8876
      %v8935 = vsub.f32 %v8572, %v8881
      %v8936 = vsub.f32 %v8573, %v8886
      %v8937 = vsub.f32 %v8574, %v8891
      %v8938 = vsub.f32 %v8575, %v8896
      %v8939 = vsub.f32 %v8576, %v8901
      %v8940 = vsub.f32 %v8577, %v8906
      %v8941 = vmul.f32 %v8909, %v8909
      %v8942 = vmul.f32 %v8910, %v8910
      %v8943 = vmul.f32 %v8911, %v8911
      %v8944 = vmul.f32 %v8912, %v8912
      %v8945 = vmul.f32 %v8913, %v8913
      %v8946 = vmul.f32 %v8914, %v8914
      %v8947 = vmul.f32 %v8915, %v8915
      %v8948 = vmul.f32 %v8916, %v8916
      %v8949 = vmul.f32 %v8917, %v8917
      %v8950 = vmul.f32 %v8918, %v8918
      %v8951 = vmul.f32 %v8919, %v8919
      %v8952 = vmul.f32 %v8920, %v8920
      %v8953 = vmul.f32 %v8921, %v8921
      %v8954 = vmul.f32 %v8922, %v8922
      %v8955 = vmul.f32 %v8923, %v8923
      %v8956 = vmul.f32 %v8924, %v8924
      %v8957 = vmul.f32 %v8925, %v8925
      %v8958 = vmul.f32 %v8926, %v8926
      %v8959 = vmul.f32 %v8927, %v8927
      %v8960 = vmul.f32 %v8928, %v8928
      %v8961 = vmul.f32 %v8929, %v8929
      %v8962 = vmul.f32 %v8930, %v8930
      %v8963 = vmul.f32 %v8931, %v8931
      %v8964 = vmul.f32 %v8932, %v8932
      %v8965 = vmul.f32 %v8933, %v8933
      %v8966 = vmul.f32 %v8934, %v8934
      %v8967 = vmul.f32 %v8935, %v8935
      %v8968 = vmul.f32 %v8936, %v8936
      %v8969 = vmul.f32 %v8937, %v8937
      %v8970 = vmul.f32 %v8938, %v8938
      %v8971 = vmul.f32 %v8939, %v8939
      %v8972 = vmul.f32 %v8940, %v8940
      %v8974 = vsel %vm1267, %v8941, 0
      %v8977 = vsel %vm1267, %v8942, 0
      %v8980 = vsel %vm1267, %v8943, 0
      %v8983 = vsel %vm1267, %v8944, 0
      %v8986 = vsel %vm1267, %v8945, 0
      %v8989 = vsel %vm1267, %v8946, 0
      %v8992 = vsel %vm1267, %v8947, 0
      %v8995 = vsel %vm1267, %v8948, 0
      %v8998 = vsel %vm1267, %v8949, 0
      %v9001 = vsel %vm1267, %v8950, 0
      %v9004 = vsel %vm1267, %v8951, 0
      %v9007 = vsel %vm1267, %v8952, 0
      %v9010 = vsel %vm1267, %v8953, 0
      %v9013 = vsel %vm1267, %v8954, 0
      %v9016 = vsel %vm1267, %v8955, 0
      %v9019 = vsel %vm1267, %v8956, 0
      %v9022 = vsel %vm1267, %v8957, 0
      %v9025 = vsel %vm1267, %v8958, 0
      %v9028 = vsel %vm1267, %v8959, 0
      %v9031 = vsel %vm1267, %v8960, 0
      %v9034 = vsel %vm1267, %v8961, 0
      %v9037 = vsel %vm1267, %v8962, 0
      %v9040 = vsel %vm1267, %v8963, 0
      %v9043 = vsel %vm1267, %v8964, 0
      %v9046 = vsel %vm1267, %v8965, 0
      %v9049 = vsel %vm1267, %v8966, 0
      %v9052 = vsel %vm1267, %v8967, 0
      %v9055 = vsel %vm1267, %v8968, 0
      %v9058 = vsel %vm1267, %v8969, 0
      %v9061 = vsel %vm1267, %v8970, 0
      %v9064 = vsel %vm1267, %v8971, 0
      %v9067 = vsel %vm1267, %v8972, 0
      %9069 = vmatprep.subr.mxu0 0.0
      %9070 = vmatpush1.msra.mxu0 0.0
      %9071 = vmatprep.subr.mxu0 0.0
      %9072 = vmatpush1.msra.mxu0 0.0
      %9073 = vmatprep.subr.mxu0 0.0
      %9074 = vmatpush1.msra.mxu0 0.0
      %9075 = vmatprep.subr.mxu0 0.0
      %9076 = vmatpush1.msra.mxu0 0.0
      %9077 = vmatprep.subr.mxu0 0.0
      %9078 = vmatpush1.msra.mxu0 0.0
      %9079 = vmatprep.subr.mxu0 0.0
      %9080 = vmatpush1.msra.mxu0 0.0
      %9081 = vmatprep.subr.mxu0 0.0
      %9082 = vmatpush1.msra.mxu0 %v8587
      %9083 = vmatprep.subr.mxu0 0.0
      %9084 = vmatpush1.msra.mxu0 %v8586
      %9085 = vmatprep.subr.mxu0 0.0
      %9086 = vmatpush1.msra.mxu0 %v8585
      %9087 = vmatprep.subr.mxu0 0.0
      %9088 = vmatpush1.msra.mxu0 %v8584
      %9089 = vmatprep.subr.mxu0 0.0
      %9090 = vmatpush1.msra.mxu0 %v8583
      %9091 = vmatprep.subr.mxu0 0.0
      %9092 = vmatpush1.msra.mxu0 %v8582
      %9093 = vmatprep.subr.mxu0 0.0
      %9094 = vmatpush1.msra.mxu0 %v8581
      %9095 = vmatprep.subr.mxu0 0.0
      %9096 = vmatpush1.msra.mxu0 %v8580
      %9097 = vmatprep.subr.mxu0 0.0
      %9098 = vmatpush1.msra.mxu0 %v8579
      %9099 = vmatprep.subr.mxu0 0.0
      %9100 = vmatpush1.msra.mxu0 %v8578
      %9101 = vmatprep.subr.mxu0 0.0
      %9102 = vmatpush2.msra.mxu0 0.0
      %9103 = vmatprep.subr.mxu0 0.0
      %9104 = vmatpush2.msra.mxu0 0.0
      %9105 = vmatprep.subr.mxu0 0.0
      %9106 = vmatpush2.msra.mxu0 0.0
      %9107 = vmatprep.subr.mxu0 0.0
      %9108 = vmatpush2.msra.mxu0 0.0
      %9109 = vmatprep.subr.mxu0 0.0
      %9110 = vmatpush2.msra.mxu0 0.0
      %9111 = vmatprep.subr.mxu0 0.0
      %9112 = vmatpush2.msra.mxu0 0.0
      %9113 = vmatprep.subr.mxu0 0.0
      %9114 = vmatpush2.msra.mxu0 0.0
      %9115 = vmatprep.subr.mxu0 0.0
      %9116 = vmatpush2.msra.mxu0 0.0
      %9117 = vmatprep.subr.mxu0 0.0
      %9118 = vmatpush2.msra.mxu0 0.0
      %9119 = vmatprep.subr.mxu0 0.0
      %9120 = vmatpush2.msra.mxu0 0.0
      %9121 = vmatprep.subr.mxu0 0.0
      %9122 = vmatpush2.msra.mxu0 0.0
      %9123 = vmatprep.subr.mxu0 0.0
      %9124 = vmatpush2.msra.mxu0 0.0
      %9125 = vmatprep.subr.mxu0 0.0
      %9126 = vmatpush2.msra.mxu0 0.0
      %9127 = vmatprep.subr.mxu0 0.0
      %9128 = vmatpush2.msra.mxu0 0.0
      %9129 = vmatprep.subr.mxu0 0.0
      %9130 = vmatpush2.msra.mxu0 0.0
      %9131 = vmatprep.subr.mxu0 0.0
      %9132 = vmatpush2.msra.mxu0 0.0
      %9133 = vmatprep.mubr.f32.mxu0 0.0
      %9134 = vmatmul.mubr.f32.gmra.mxu0 %v8974
      %v9135 = vpop.f32.mrf.mxu0
      %v9136 = vadd.f32 1e-05, %v9135
      %v9137 = vpop.f32.mrf.mxu0
      %9138 = vmatprep.mubr.f32.mxu0 0.0
      %9139 = vmatmul.mubr.f32.gmra.mxu0 %v8977
      %v9140 = vpop.f32.mrf.mxu0
      %v9141 = vadd.f32 1e-05, %v9140
      %v9142 = vpop.f32.mrf.mxu0
      %9143 = vmatprep.mubr.f32.mxu0 0.0
      %9144 = vmatmul.mubr.f32.gmra.mxu0 %v8980
      %v9145 = vpop.f32.mrf.mxu0
      %v9146 = vadd.f32 1e-05, %v9145
      %v9147 = vpop.f32.mrf.mxu0
      %9148 = vmatprep.mubr.f32.mxu0 0.0
      %9149 = vmatmul.mubr.f32.gmra.mxu0 %v8983
      %v9150 = vpop.f32.mrf.mxu0
      %v9151 = vadd.f32 1e-05, %v9150
      %v9152 = vpop.f32.mrf.mxu0
      %9153 = vmatprep.mubr.f32.mxu0 0.0
      %9154 = vmatmul.mubr.f32.gmra.mxu0 %v8986
      %v9155 = vpop.f32.mrf.mxu0
      %v9156 = vadd.f32 1e-05, %v9155
      %v9157 = vpop.f32.mrf.mxu0
      %9158 = vmatprep.mubr.f32.mxu0 0.0
      %9159 = vmatmul.mubr.f32.gmra.mxu0 %v8989
      %v9160 = vpop.f32.mrf.mxu0
      %v9161 = vadd.f32 1e-05, %v9160
      %v9162 = vpop.f32.mrf.mxu0
      %9163 = vmatprep.mubr.f32.mxu0 0.0
      %9164 = vmatmul.mubr.f32.gmra.mxu0 %v8992
      %v9165 = vpop.f32.mrf.mxu0
      %v9166 = vadd.f32 1e-05, %v9165
      %v9167 = vpop.f32.mrf.mxu0
      %9168 = vmatprep.mubr.f32.mxu0 0.0
      %9169 = vmatmul.mubr.f32.gmra.mxu0 %v8995
      %v9170 = vpop.f32.mrf.mxu0
      %v9171 = vadd.f32 1e-05, %v9170
      %v9172 = vpop.f32.mrf.mxu0
      %9173 = vmatprep.mubr.f32.mxu0 0.0
      %9174 = vmatmul.mubr.f32.gmra.mxu0 %v8998
      %v9175 = vpop.f32.mrf.mxu0
      %v9176 = vadd.f32 1e-05, %v9175
      %v9177 = vpop.f32.mrf.mxu0
      %9178 = vmatprep.mubr.f32.mxu0 0.0
      %9179 = vmatmul.mubr.f32.gmra.mxu0 %v9001
      %v9180 = vpop.f32.mrf.mxu0
      %v9181 = vadd.f32 1e-05, %v9180
      %v9182 = vpop.f32.mrf.mxu0
      %9183 = vmatprep.mubr.f32.mxu0 0.0
      %9184 = vmatmul.mubr.f32.gmra.mxu0 %v9004
      %v9185 = vpop.f32.mrf.mxu0
      %v9186 = vadd.f32 1e-05, %v9185
      %v9187 = vpop.f32.mrf.mxu0
      %9188 = vmatprep.mubr.f32.mxu0 0.0
      %9189 = vmatmul.mubr.f32.gmra.mxu0 %v9007
      %v9190 = vpop.f32.mrf.mxu0
      %v9191 = vadd.f32 1e-05, %v9190
      %v9192 = vpop.f32.mrf.mxu0
      %9193 = vmatprep.mubr.f32.mxu0 0.0
      %9194 = vmatmul.mubr.f32.gmra.mxu0 %v9010
      %v9195 = vpop.f32.mrf.mxu0
      %v9196 = vadd.f32 1e-05, %v9195
      %v9197 = vpop.f32.mrf.mxu0
      %9198 = vmatprep.mubr.f32.mxu0 0.0
      %9199 = vmatmul.mubr.f32.gmra.mxu0 %v9013
      %v9200 = vpop.f32.mrf.mxu0
      %v9201 = vadd.f32 1e-05, %v9200
      %v9202 = vpop.f32.mrf.mxu0
      %9203 = vmatprep.mubr.f32.mxu0 0.0
      %9204 = vmatmul.mubr.f32.gmra.mxu0 %v9016
      %v9205 = vpop.f32.mrf.mxu0
      %v9206 = vadd.f32 1e-05, %v9205
      %v9207 = vpop.f32.mrf.mxu0
      %9208 = vmatprep.mubr.f32.mxu0 0.0
      %9209 = vmatmul.mubr.f32.gmra.mxu0 %v9019
      %v9210 = vpop.f32.mrf.mxu0
      %v9211 = vadd.f32 1e-05, %v9210
      %v9212 = vpop.f32.mrf.mxu0
      %9213 = vmatprep.mubr.f32.mxu0 0.0
      %9214 = vmatmul.mubr.f32.gmra.mxu0 %v9022
      %v9215 = vpop.f32.mrf.mxu0
      %v9216 = vadd.f32 1e-05, %v9215
      %v9217 = vpop.f32.mrf.mxu0
      %9218 = vmatprep.mubr.f32.mxu0 0.0
      %9219 = vmatmul.mubr.f32.gmra.mxu0 %v9025
      %v9220 = vpop.f32.mrf.mxu0
      %v9221 = vadd.f32 1e-05, %v9220
      %v9222 = vpop.f32.mrf.mxu0
      %9223 = vmatprep.mubr.f32.mxu0 0.0
      %9224 = vmatmul.mubr.f32.gmra.mxu0 %v9028
      %v9225 = vpop.f32.mrf.mxu0
      %v9226 = vadd.f32 1e-05, %v9225
      %v9227 = vpop.f32.mrf.mxu0
      %9228 = vmatprep.mubr.f32.mxu0 0.0
      %9229 = vmatmul.mubr.f32.gmra.mxu0 %v9031
      %v9230 = vpop.f32.mrf.mxu0
      %v9231 = vadd.f32 1e-05, %v9230
      %v9232 = vpop.f32.mrf.mxu0
      %9233 = vmatprep.mubr.f32.mxu0 0.0
      %9234 = vmatmul.mubr.f32.gmra.mxu0 %v9034
      %v9235 = vpop.f32.mrf.mxu0
      %v9236 = vadd.f32 1e-05, %v9235
      %v9237 = vpop.f32.mrf.mxu0
      %9238 = vmatprep.mubr.f32.mxu0 0.0
      %9239 = vmatmul.mubr.f32.gmra.mxu0 %v9037
      %v9240 = vpop.f32.mrf.mxu0
      %v9241 = vadd.f32 1e-05, %v9240
      %v9242 = vpop.f32.mrf.mxu0
      %9243 = vmatprep.mubr.f32.mxu0 0.0
      %9244 = vmatmul.mubr.f32.gmra.mxu0 %v9040
      %v9245 = vpop.f32.mrf.mxu0
      %v9246 = vadd.f32 1e-05, %v9245
      %v9247 = vpop.f32.mrf.mxu0
      %9248 = vmatprep.mubr.f32.mxu0 0.0
      %9249 = vmatmul.mubr.f32.gmra.mxu0 %v9043
      %v9250 = vpop.f32.mrf.mxu0
      %v9251 = vadd.f32 1e-05, %v9250
      %v9252 = vpop.f32.mrf.mxu0
      %9253 = vmatprep.mubr.f32.mxu0 0.0
      %9254 = vmatmul.mubr.f32.gmra.mxu0 %v9046
      %v9255 = vpop.f32.mrf.mxu0
      %v9256 = vadd.f32 1e-05, %v9255
      %v9257 = vpop.f32.mrf.mxu0
      %9258 = vmatprep.mubr.f32.mxu0 0.0
      %9259 = vmatmul.mubr.f32.gmra.mxu0 %v9049
      %v9260 = vpop.f32.mrf.mxu0
      %v9261 = vadd.f32 1e-05, %v9260
      %v9262 = vpop.f32.mrf.mxu0
      %9263 = vmatprep.mubr.f32.mxu0 0.0
      %9264 = vmatmul.mubr.f32.gmra.mxu0 %v9052
      %v9265 = vpop.f32.mrf.mxu0
      %v9266 = vadd.f32 1e-05, %v9265
      %v9267 = vpop.f32.mrf.mxu0
      %9268 = vmatprep.mubr.f32.mxu0 0.0
      %9269 = vmatmul.mubr.f32.gmra.mxu0 %v9055
      %v9270 = vpop.f32.mrf.mxu0
      %v9271 = vadd.f32 1e-05, %v9270
      %v9272 = vpop.f32.mrf.mxu0
      %9273 = vmatprep.mubr.f32.mxu0 0.0
      %9274 = vmatmul.mubr.f32.gmra.mxu0 %v9058
      %v9275 = vpop.f32.mrf.mxu0
      %v9276 = vadd.f32 1e-05, %v9275
      %v9277 = vpop.f32.mrf.mxu0
      %9278 = vmatprep.mubr.f32.mxu0 0.0
      %9279 = vmatmul.mubr.f32.gmra.mxu0 %v9061
      %v9280 = vpop.f32.mrf.mxu0
      %v9281 = vadd.f32 1e-05, %v9280
      %v9282 = vpop.f32.mrf.mxu0
      %9283 = vmatprep.mubr.f32.mxu0 0.0
      %9284 = vmatmul.mubr.f32.gmra.mxu0 %v9064
      %v9285 = vpop.f32.mrf.mxu0
      %v9286 = vadd.f32 1e-05, %v9285
      %v9287 = vpop.f32.mrf.mxu0
      %9288 = vmatprep.mubr.f32.mxu0 0.0
      %9289 = vmatmul.mubr.f32.gmra.mxu0 %v9067
      %v9290 = vpop.f32.mrf.mxu0
      %v9291 = vadd.f32 1e-05, %v9290
      %v9292 = vpop.f32.mrf.mxu0
      %9293 = vdwg.mxu0
      %v9294 = vrsqrt.pop %v9136
      %v9295 = vrsqrt.pop %v9141
      %v9296 = vrsqrt.pop %v9146
      %v9297 = vrsqrt.pop %v9151
      %v9298 = vrsqrt.pop %v9156
      %v9299 = vrsqrt.pop %v9161
      %v9300 = vrsqrt.pop %v9166
      %v9301 = vrsqrt.pop %v9171
      %v9302 = vrsqrt.pop %v9176
      %v9303 = vrsqrt.pop %v9181
      %v9304 = vrsqrt.pop %v9186
      %v9305 = vrsqrt.pop %v9191
      %v9306 = vrsqrt.pop %v9196
      %v9307 = vrsqrt.pop %v9201
      %v9308 = vrsqrt.pop %v9206
      %v9309 = vrsqrt.pop %v9211
      %v9310 = vrsqrt.pop %v9216
      %v9311 = vrsqrt.pop %v9221
      %v9312 = vrsqrt.pop %v9226
      %v9313 = vrsqrt.pop %v9231
      %v9314 = vrsqrt.pop %v9236
      %v9315 = vrsqrt.pop %v9241
      %v9316 = vrsqrt.pop %v9246
      %v9317 = vrsqrt.pop %v9251
      %v9318 = vrsqrt.pop %v9256
      %v9319 = vrsqrt.pop %v9261
      %v9320 = vrsqrt.pop %v9266
      %v9321 = vrsqrt.pop %v9271
      %v9322 = vrsqrt.pop %v9276
      %v9323 = vrsqrt.pop %v9281
      %v9324 = vrsqrt.pop %v9286
      %v9325 = vrsqrt.pop %v9291
      %v9326 = vmul.f32 %v8909, %v9294
      %v9327 = vmul.f32 %v8910, %v9295
      %v9328 = vmul.f32 %v8911, %v9296
      %v9329 = vmul.f32 %v8912, %v9297
      %v9330 = vmul.f32 %v8913, %v9298
      %v9331 = vmul.f32 %v8914, %v9299
      %v9332 = vmul.f32 %v8915, %v9300
      %v9333 = vmul.f32 %v8916, %v9301
      %v9334 = vmul.f32 %v8917, %v9302
      %v9335 = vmul.f32 %v8918, %v9303
      %v9336 = vmul.f32 %v8919, %v9304
      %v9337 = vmul.f32 %v8920, %v9305
      %v9338 = vmul.f32 %v8921, %v9306
      %v9339 = vmul.f32 %v8922, %v9307
      %v9340 = vmul.f32 %v8923, %v9308
      %v9341 = vmul.f32 %v8924, %v9309
      %v9342 = vmul.f32 %v8925, %v9310
      %v9343 = vmul.f32 %v8926, %v9311
      %v9344 = vmul.f32 %v8927, %v9312
      %v9345 = vmul.f32 %v8928, %v9313
      %v9346 = vmul.f32 %v8929, %v9314
      %v9347 = vmul.f32 %v8930, %v9315
      %v9348 = vmul.f32 %v8931, %v9316
      %v9349 = vmul.f32 %v8932, %v9317
      %v9350 = vmul.f32 %v8933, %v9318
      %v9351 = vmul.f32 %v8934, %v9319
      %v9352 = vmul.f32 %v8935, %v9320
      %v9353 = vmul.f32 %v8936, %v9321
      %v9354 = vmul.f32 %v8937, %v9322
      %v9355 = vmul.f32 %v8938, %v9323
      %v9356 = vmul.f32 %v8939, %v9324
      %v9357 = vmul.f32 %v8940, %v9325
      %v9358 = vld [vmem:[%s17 + $0x2] sm:$0x1]
      %v9359 = vlaneseq
      %v9360 = vshrl.u32 %v9359, 7
      %v9361 = vsub.s32 0, %v9360
      %v9362 = vrot.slane %v9358, %v9361
      %v9363 = vmul.f32 %v9326, %v9362
      %v9364 = vmul.f32 %v9327, %v9362
      %v9365 = vmul.f32 %v9328, %v9362
      %v9366 = vmul.f32 %v9329, %v9362
      %v9367 = vmul.f32 %v9330, %v9362
      %v9368 = vmul.f32 %v9331, %v9362
      %v9369 = vmul.f32 %v9332, %v9362
      %v9370 = vmul.f32 %v9333, %v9362
      %v9371 = vmul.f32 %v9334, %v9362
      %v9372 = vmul.f32 %v9335, %v9362
      %v9373 = vmul.f32 %v9336, %v9362
      %v9374 = vmul.f32 %v9337, %v9362
      %v9375 = vmul.f32 %v9338, %v9362
      %v9376 = vmul.f32 %v9339, %v9362
      %v9377 = vmul.f32 %v9340, %v9362
      %v9378 = vmul.f32 %v9341, %v9362
      %v9379 = vmul.f32 %v9342, %v9362
      %v9380 = vmul.f32 %v9343, %v9362
      %v9381 = vmul.f32 %v9344, %v9362
      %v9382 = vmul.f32 %v9345, %v9362
      %v9383 = vmul.f32 %v9346, %v9362
      %v9384 = vmul.f32 %v9347, %v9362
      %v9385 = vmul.f32 %v9348, %v9362
      %v9386 = vmul.f32 %v9349, %v9362
      %v9387 = vmul.f32 %v9350, %v9362
      %v9388 = vmul.f32 %v9351, %v9362
      %v9389 = vmul.f32 %v9352, %v9362
      %v9390 = vmul.f32 %v9353, %v9362
      %v9391 = vmul.f32 %v9354, %v9362
      %v9392 = vmul.f32 %v9355, %v9362
      %v9393 = vmul.f32 %v9356, %v9362
      %v9394 = vmul.f32 %v9357, %v9362
      %v9395 = vld [vmem:[%s17 + $0x3] sm:$0x1]
      %v9396 = vlaneseq
      %v9397 = vshrl.u32 %v9396, 7
      %v9398 = vsub.s32 0, %v9397
      %v9399 = vrot.slane %v9395, %v9398
      %v9400 = vadd.f32 %v9363, %v9399
      %v9401 = vadd.f32 %v9364, %v9399
      %v9402 = vadd.f32 %v9365, %v9399
      %v9403 = vadd.f32 %v9366, %v9399
      %v9404 = vadd.f32 %v9367, %v9399
      %v9405 = vadd.f32 %v9368, %v9399
      %v9406 = vadd.f32 %v9369, %v9399
      %v9407 = vadd.f32 %v9370, %v9399
      %v9408 = vadd.f32 %v9371, %v9399
      %v9409 = vadd.f32 %v9372, %v9399
      %v9410 = vadd.f32 %v9373, %v9399
      %v9411 = vadd.f32 %v9374, %v9399
      %v9412 = vadd.f32 %v9375, %v9399
      %v9413 = vadd.f32 %v9376, %v9399
      %v9414 = vadd.f32 %v9377, %v9399
      %v9415 = vadd.f32 %v9378, %v9399
      %v9416 = vadd.f32 %v9379, %v9399
      %v9417 = vadd.f32 %v9380, %v9399
      %v9418 = vadd.f32 %v9381, %v9399
      %v9419 = vadd.f32 %v9382, %v9399
      %v9420 = vadd.f32 %v9383, %v9399
      %v9421 = vadd.f32 %v9384, %v9399
      %v9422 = vadd.f32 %v9385, %v9399
      %v9423 = vadd.f32 %v9386, %v9399
      %v9424 = vadd.f32 %v9387, %v9399
      %v9425 = vadd.f32 %v9388, %v9399
      %v9426 = vadd.f32 %v9389, %v9399
      %v9427 = vadd.f32 %v9390, %v9399
      %v9428 = vadd.f32 %v9391, %v9399
      %v9429 = vadd.f32 %v9392, %v9399
      %v9430 = vadd.f32 %v9393, %v9399
      %v9431 = vadd.f32 %v9394, %v9399
      %v9432 = vld [vmem:[%s16] sm:$0xff]
      %v9433 = vld [vmem:[%s16 + $0x8] sm:$0xff]
      %v9434 = vld [vmem:[%s16 + $0x10] sm:$0xff]
      %v9435 = vld [vmem:[%s16 + $0x18] sm:$0xff]
      %v9436 = vld [vmem:[%s16 + $0x20] sm:$0xff]
      %v9437 = vld [vmem:[%s16 + $0x28] sm:$0xff]
      %v9438 = vld [vmem:[%s16 + $0x30] sm:$0xff]
      %v9439 = vld [vmem:[%s16 + $0x38] sm:$0xff]
      %v9440 = vld [vmem:[%s16 + $0x40] sm:$0xff]
      %v9441 = vld [vmem:[%s16 + $0x48] sm:$0xff]
      %v9443 = vsel %vm1267, %v9400, 0
      %v9446 = vsel %vm1267, %v9401, 0
      %v9449 = vsel %vm1267, %v9402, 0
      %v9452 = vsel %vm1267, %v9403, 0
      %v9455 = vsel %vm1267, %v9404, 0
      %v9458 = vsel %vm1267, %v9405, 0
      %v9461 = vsel %vm1267, %v9406, 0
      %v9464 = vsel %vm1267, %v9407, 0
      %v9467 = vsel %vm1267, %v9408, 0
      %v9470 = vsel %vm1267, %v9409, 0
      %v9473 = vsel %vm1267, %v9410, 0
      %v9476 = vsel %vm1267, %v9411, 0
      %v9479 = vsel %vm1267, %v9412, 0
      %v9482 = vsel %vm1267, %v9413, 0
      %v9485 = vsel %vm1267, %v9414, 0
      %v9488 = vsel %vm1267, %v9415, 0
      %v9491 = vsel %vm1267, %v9416, 0
      %v9494 = vsel %vm1267, %v9417, 0
      %v9497 = vsel %vm1267, %v9418, 0
      %v9500 = vsel %vm1267, %v9419, 0
      %v9503 = vsel %vm1267, %v9420, 0
      %v9506 = vsel %vm1267, %v9421, 0
      %v9509 = vsel %vm1267, %v9422, 0
      %v9512 = vsel %vm1267, %v9423, 0
      %v9515 = vsel %vm1267, %v9424, 0
      %v9518 = vsel %vm1267, %v9425, 0
      %v9521 = vsel %vm1267, %v9426, 0
      %v9524 = vsel %vm1267, %v9427, 0
      %v9527 = vsel %vm1267, %v9428, 0
      %v9530 = vsel %vm1267, %v9429, 0
      %v9533 = vsel %vm1267, %v9430, 0
      %v9536 = vsel %vm1267, %v9431, 0
      %9538 = vmatprep.subr.mxu0 0.0
      %9539 = vmatpush1.msra.mxu0 0.0
      %9540 = vmatprep.subr.mxu0 0.0
      %9541 = vmatpush1.msra.mxu0 0.0
      %9542 = vmatprep.subr.mxu0 0.0
      %9543 = vmatpush1.msra.mxu0 0.0
      %9544 = vmatprep.subr.mxu0 0.0
      %9545 = vmatpush1.msra.mxu0 0.0
      %9546 = vmatprep.subr.mxu0 0.0
      %9547 = vmatpush1.msra.mxu0 0.0
      %9548 = vmatprep.subr.mxu0 0.0
      %9549 = vmatpush1.msra.mxu0 0.0
      %9550 = vmatprep.subr.mxu0 0.0
      %9551 = vmatpush1.msra.mxu0 %v9441
      %9552 = vmatprep.subr.mxu0 0.0
      %9553 = vmatpush1.msra.mxu0 %v9440
      %9554 = vmatprep.subr.mxu0 0.0
      %9555 = vmatpush1.msra.mxu0 %v9439
      %9556 = vmatprep.subr.mxu0 0.0
      %9557 = vmatpush1.msra.mxu0 %v9438
      %9558 = vmatprep.subr.mxu0 0.0
      %9559 = vmatpush1.msra.mxu0 %v9437
      %9560 = vmatprep.subr.mxu0 0.0
      %9561 = vmatpush1.msra.mxu0 %v9436
      %9562 = vmatprep.subr.mxu0 0.0
      %9563 = vmatpush1.msra.mxu0 %v9435
      %9564 = vmatprep.subr.mxu0 0.0
      %9565 = vmatpush1.msra.mxu0 %v9434
      %9566 = vmatprep.subr.mxu0 0.0
      %9567 = vmatpush1.msra.mxu0 %v9433
      %9568 = vmatprep.subr.mxu0 0.0
      %9569 = vmatpush1.msra.mxu0 %v9432
      %9570 = vmatprep.subr.mxu0 0.0
      %9571 = vmatpush2.msra.mxu0 0.0
      %9572 = vmatprep.subr.mxu0 0.0
      %9573 = vmatpush2.msra.mxu0 0.0
      %9574 = vmatprep.subr.mxu0 0.0
      %9575 = vmatpush2.msra.mxu0 0.0
      %9576 = vmatprep.subr.mxu0 0.0
      %9577 = vmatpush2.msra.mxu0 0.0
      %9578 = vmatprep.subr.mxu0 0.0
      %9579 = vmatpush2.msra.mxu0 0.0
      %9580 = vmatprep.subr.mxu0 0.0
      %9581 = vmatpush2.msra.mxu0 0.0
      %9582 = vmatprep.subr.mxu0 0.0
      %9583 = vmatpush2.msra.mxu0 0.0
      %9584 = vmatprep.subr.mxu0 0.0
      %9585 = vmatpush2.msra.mxu0 0.0
      %9586 = vmatprep.subr.mxu0 0.0
      %9587 = vmatpush2.msra.mxu0 0.0
      %9588 = vmatprep.subr.mxu0 0.0
      %9589 = vmatpush2.msra.mxu0 0.0
      %9590 = vmatprep.subr.mxu0 0.0
      %9591 = vmatpush2.msra.mxu0 0.0
      %9592 = vmatprep.subr.mxu0 0.0
      %9593 = vmatpush2.msra.mxu0 0.0
      %9594 = vmatprep.subr.mxu0 0.0
      %9595 = vmatpush2.msra.mxu0 0.0
      %9596 = vmatprep.subr.mxu0 0.0
      %9597 = vmatpush2.msra.mxu0 0.0
      %9598 = vmatprep.subr.mxu0 0.0
      %9599 = vmatpush2.msra.mxu0 0.0
      %9600 = vmatprep.subr.mxu0 0.0
      %9601 = vmatpush2.msra.mxu0 0.0
      %9602 = vmatprep.mubr.f32.mxu0 0.0
      %9603 = vmatmul.mubr.f32.gmra.mxu0 %v9443
      %v9604 = vpop.f32.mrf.mxu0
      %v9605 = vadd.f32 0.0, %v9604
      %v9606 = vpop.f32.mrf.mxu0
      %9607 = vmatprep.mubr.f32.mxu0 0.0
      %9608 = vmatmul.mubr.f32.gmra.mxu0 %v9446
      %v9609 = vpop.f32.mrf.mxu0
      %v9610 = vadd.f32 0.0, %v9609
      %v9611 = vpop.f32.mrf.mxu0
      %9612 = vmatprep.mubr.f32.mxu0 0.0
      %9613 = vmatmul.mubr.f32.gmra.mxu0 %v9449
      %v9614 = vpop.f32.mrf.mxu0
      %v9615 = vadd.f32 0.0, %v9614
      %v9616 = vpop.f32.mrf.mxu0
      %9617 = vmatprep.mubr.f32.mxu0 0.0
      %9618 = vmatmul.mubr.f32.gmra.mxu0 %v9452
      %v9619 = vpop.f32.mrf.mxu0
      %v9620 = vadd.f32 0.0, %v9619
      %v9621 = vpop.f32.mrf.mxu0
      %9622 = vmatprep.mubr.f32.mxu0 0.0
      %9623 = vmatmul.mubr.f32.gmra.mxu0 %v9455
      %v9624 = vpop.f32.mrf.mxu0
      %v9625 = vadd.f32 0.0, %v9624
      %v9626 = vpop.f32.mrf.mxu0
      %9627 = vmatprep.mubr.f32.mxu0 0.0
      %9628 = vmatmul.mubr.f32.gmra.mxu0 %v9458
      %v9629 = vpop.f32.mrf.mxu0
      %v9630 = vadd.f32 0.0, %v9629
      %v9631 = vpop.f32.mrf.mxu0
      %9632 = vmatprep.mubr.f32.mxu0 0.0
      %9633 = vmatmul.mubr.f32.gmra.mxu0 %v9461
      %v9634 = vpop.f32.mrf.mxu0
      %v9635 = vadd.f32 0.0, %v9634
      %v9636 = vpop.f32.mrf.mxu0
      %9637 = vmatprep.mubr.f32.mxu0 0.0
      %9638 = vmatmul.mubr.f32.gmra.mxu0 %v9464
      %v9639 = vpop.f32.mrf.mxu0
      %v9640 = vadd.f32 0.0, %v9639
      %v9641 = vpop.f32.mrf.mxu0
      %9642 = vmatprep.mubr.f32.mxu0 0.0
      %9643 = vmatmul.mubr.f32.gmra.mxu0 %v9467
      %v9644 = vpop.f32.mrf.mxu0
      %v9645 = vadd.f32 0.0, %v9644
      %v9646 = vpop.f32.mrf.mxu0
      %9647 = vmatprep.mubr.f32.mxu0 0.0
      %9648 = vmatmul.mubr.f32.gmra.mxu0 %v9470
      %v9649 = vpop.f32.mrf.mxu0
      %v9650 = vadd.f32 0.0, %v9649
      %v9651 = vpop.f32.mrf.mxu0
      %9652 = vmatprep.mubr.f32.mxu0 0.0
      %9653 = vmatmul.mubr.f32.gmra.mxu0 %v9473
      %v9654 = vpop.f32.mrf.mxu0
      %v9655 = vadd.f32 0.0, %v9654
      %v9656 = vpop.f32.mrf.mxu0
      %9657 = vmatprep.mubr.f32.mxu0 0.0
      %9658 = vmatmul.mubr.f32.gmra.mxu0 %v9476
      %v9659 = vpop.f32.mrf.mxu0
      %v9660 = vadd.f32 0.0, %v9659
      %v9661 = vpop.f32.mrf.mxu0
      %9662 = vmatprep.mubr.f32.mxu0 0.0
      %9663 = vmatmul.mubr.f32.gmra.mxu0 %v9479
      %v9664 = vpop.f32.mrf.mxu0
      %v9665 = vadd.f32 0.0, %v9664
      %v9666 = vpop.f32.mrf.mxu0
      %9667 = vmatprep.mubr.f32.mxu0 0.0
      %9668 = vmatmul.mubr.f32.gmra.mxu0 %v9482
      %v9669 = vpop.f32.mrf.mxu0
      %v9670 = vadd.f32 0.0, %v9669
      %v9671 = vpop.f32.mrf.mxu0
      %9672 = vmatprep.mubr.f32.mxu0 0.0
      %9673 = vmatmul.mubr.f32.gmra.mxu0 %v9485
      %v9674 = vpop.f32.mrf.mxu0
      %v9675 = vadd.f32 0.0, %v9674
      %v9676 = vpop.f32.mrf.mxu0
      %9677 = vmatprep.mubr.f32.mxu0 0.0
      %9678 = vmatmul.mubr.f32.gmra.mxu0 %v9488
      %v9679 = vpop.f32.mrf.mxu0
      %v9680 = vadd.f32 0.0, %v9679
      %v9681 = vpop.f32.mrf.mxu0
      %9682 = vmatprep.mubr.f32.mxu0 0.0
      %9683 = vmatmul.mubr.f32.gmra.mxu0 %v9491
      %v9684 = vpop.f32.mrf.mxu0
      %v9685 = vadd.f32 0.0, %v9684
      %v9686 = vpop.f32.mrf.mxu0
      %9687 = vmatprep.mubr.f32.mxu0 0.0
      %9688 = vmatmul.mubr.f32.gmra.mxu0 %v9494
      %v9689 = vpop.f32.mrf.mxu0
      %v9690 = vadd.f32 0.0, %v9689
      %v9691 = vpop.f32.mrf.mxu0
      %9692 = vmatprep.mubr.f32.mxu0 0.0
      %9693 = vmatmul.mubr.f32.gmra.mxu0 %v9497
      %v9694 = vpop.f32.mrf.mxu0
      %v9695 = vadd.f32 0.0, %v9694
      %v9696 = vpop.f32.mrf.mxu0
      %9697 = vmatprep.mubr.f32.mxu0 0.0
      %9698 = vmatmul.mubr.f32.gmra.mxu0 %v9500
      %v9699 = vpop.f32.mrf.mxu0
      %v9700 = vadd.f32 0.0, %v9699
      %v9701 = vpop.f32.mrf.mxu0
      %9702 = vmatprep.mubr.f32.mxu0 0.0
      %9703 = vmatmul.mubr.f32.gmra.mxu0 %v9503
      %v9704 = vpop.f32.mrf.mxu0
      %v9705 = vadd.f32 0.0, %v9704
      %v9706 = vpop.f32.mrf.mxu0
      %9707 = vmatprep.mubr.f32.mxu0 0.0
      %9708 = vmatmul.mubr.f32.gmra.mxu0 %v9506
      %v9709 = vpop.f32.mrf.mxu0
      %v9710 = vadd.f32 0.0, %v9709
      %v9711 = vpop.f32.mrf.mxu0
      %9712 = vmatprep.mubr.f32.mxu0 0.0
      %9713 = vmatmul.mubr.f32.gmra.mxu0 %v9509
      %v9714 = vpop.f32.mrf.mxu0
      %v9715 = vadd.f32 0.0, %v9714
      %v9716 = vpop.f32.mrf.mxu0
      %9717 = vmatprep.mubr.f32.mxu0 0.0
      %9718 = vmatmul.mubr.f32.gmra.mxu0 %v9512
      %v9719 = vpop.f32.mrf.mxu0
      %v9720 = vadd.f32 0.0, %v9719
      %v9721 = vpop.f32.mrf.mxu0
      %9722 = vmatprep.mubr.f32.mxu0 0.0
      %9723 = vmatmul.mubr.f32.gmra.mxu0 %v9515
      %v9724 = vpop.f32.mrf.mxu0
      %v9725 = vadd.f32 0.0, %v9724
      %v9726 = vpop.f32.mrf.mxu0
      %9727 = vmatprep.mubr.f32.mxu0 0.0
      %9728 = vmatmul.mubr.f32.gmra.mxu0 %v9518
      %v9729 = vpop.f32.mrf.mxu0
      %v9730 = vadd.f32 0.0, %v9729
      %v9731 = vpop.f32.mrf.mxu0
      %9732 = vmatprep.mubr.f32.mxu0 0.0
      %9733 = vmatmul.mubr.f32.gmra.mxu0 %v9521
      %v9734 = vpop.f32.mrf.mxu0
      %v9735 = vadd.f32 0.0, %v9734
      %v9736 = vpop.f32.mrf.mxu0
      %9737 = vmatprep.mubr.f32.mxu0 0.0
      %9738 = vmatmul.mubr.f32.gmra.mxu0 %v9524
      %v9739 = vpop.f32.mrf.mxu0
      %v9740 = vadd.f32 0.0, %v9739
      %v9741 = vpop.f32.mrf.mxu0
      %9742 = vmatprep.mubr.f32.mxu0 0.0
      %9743 = vmatmul.mubr.f32.gmra.mxu0 %v9527
      %v9744 = vpop.f32.mrf.mxu0
      %v9745 = vadd.f32 0.0, %v9744
      %v9746 = vpop.f32.mrf.mxu0
      %9747 = vmatprep.mubr.f32.mxu0 0.0
      %9748 = vmatmul.mubr.f32.gmra.mxu0 %v9530
      %v9749 = vpop.f32.mrf.mxu0
      %v9750 = vadd.f32 0.0, %v9749
      %v9751 = vpop.f32.mrf.mxu0
      %9752 = vmatprep.mubr.f32.mxu0 0.0
      %9753 = vmatmul.mubr.f32.gmra.mxu0 %v9533
      %v9754 = vpop.f32.mrf.mxu0
      %v9755 = vadd.f32 0.0, %v9754
      %v9756 = vpop.f32.mrf.mxu0
      %9757 = vmatprep.mubr.f32.mxu0 0.0
      %9758 = vmatmul.mubr.f32.gmra.mxu0 %v9536
      %v9759 = vpop.f32.mrf.mxu0
      %v9760 = vadd.f32 0.0, %v9759
      %v9761 = vpop.f32.mrf.mxu0
      %9762 = vdwg.mxu0
      %v9763 = vpack.c.bf16 %v9610, %v9605
      %v9764 = vpack.c.bf16 %v9620, %v9615
      %v9765 = vpack.c.bf16 %v9630, %v9625
      %v9766 = vpack.c.bf16 %v9640, %v9635
      %v9767 = vpack.c.bf16 %v9650, %v9645
      %v9768 = vpack.c.bf16 %v9660, %v9655
      %v9769 = vpack.c.bf16 %v9670, %v9665
      %v9770 = vpack.c.bf16 %v9680, %v9675
      %v9771 = vpack.c.bf16 %v9690, %v9685
      %v9772 = vpack.c.bf16 %v9700, %v9695
      %v9773 = vpack.c.bf16 %v9710, %v9705
      %v9774 = vpack.c.bf16 %v9720, %v9715
      %v9775 = vpack.c.bf16 %v9730, %v9725
      %v9776 = vpack.c.bf16 %v9740, %v9735
      %v9777 = vpack.c.bf16 %v9750, %v9745
      %v9778 = vpack.c.bf16 %v9760, %v9755
      %v9779 = vld [vmem:[%s8] sm:$0xf]
      %v9780 = vld [vmem:[%s8 + $0x4] sm:$0xf]
      %v9781 = vld [vmem:[%s19] sm:$0x1]
      %v9783 = vlaneseq
      %v9784 = vshrl.u32 %v9783, 7
      %v9785 = vsub.s32 0, %v9784
      %v9786 = vrot.slane %v9781, %v9785
      %v9790 = vunpack.c.l.b16 %v9779
      %v9791 = vunpack.c.l.b16 %v9780
      %v9792 = vpack.c.b16 %v9791, %v9790
      %vm9794 = vcmask 130048
      %v9796 = vsel %vm9794, %v9763, 0
      %v9799 = vsel %vm9794, %v9764, 0
      %v9802 = vsel %vm9794, %v9765, 0
      %v9805 = vsel %vm9794, %v9766, 0
      %v9808 = vsel %vm9794, %v9767, 0
      %v9811 = vsel %vm9794, %v9768, 0
      %v9814 = vsel %vm9794, %v9769, 0
      %v9817 = vsel %vm9794, %v9770, 0
      %v9820 = vsel %vm9794, %v9771, 0
      %v9823 = vsel %vm9794, %v9772, 0
      %v9826 = vsel %vm9794, %v9773, 0
      %v9829 = vsel %vm9794, %v9774, 0
      %v9832 = vsel %vm9794, %v9775, 0
      %v9835 = vsel %vm9794, %v9776, 0
      %v9838 = vsel %vm9794, %v9777, 0
      %v9841 = vsel %vm9794, %v9778, 0
      %9843 = vmatprep.subr.bf16.mxu0 0
      %9844 = vmatpush1.bf16.msra.mxu0 0
      %9845 = vmatprep.subr.bf16.mxu0 0
      %9846 = vmatpush1.bf16.msra.mxu0 0
      %9847 = vmatprep.subr.bf16.mxu0 0
      %9848 = vmatpush1.bf16.msra.mxu0 0
      %9849 = vmatprep.subr.bf16.mxu0 0
      %9850 = vmatpush1.bf16.msra.mxu0 0
      %9851 = vmatprep.subr.bf16.mxu0 0
      %9852 = vmatpush1.bf16.msra.mxu0 0
      %9853 = vmatprep.subr.bf16.mxu0 0
      %9854 = vmatpush1.bf16.msra.mxu0 0
      %9855 = vmatprep.subr.bf16.mxu0 0
      %9856 = vmatpush1.bf16.msra.mxu0 0
      %9857 = vmatprep.subr.bf16.mxu0 0
      %9858 = vmatpush1.bf16.msra.mxu0 %v9792
      %9859 = vmatprep.subr.bf16.mxu0 0
      %9860 = vmatpush2.bf16.msra.mxu0 0
      %9861 = vmatprep.subr.bf16.mxu0 0
      %9862 = vmatpush2.bf16.msra.mxu0 0
      %9863 = vmatprep.subr.bf16.mxu0 0
      %9864 = vmatpush2.bf16.msra.mxu0 0
      %9865 = vmatprep.subr.bf16.mxu0 0
      %9866 = vmatpush2.bf16.msra.mxu0 0
      %9867 = vmatprep.subr.bf16.mxu0 0
      %9868 = vmatpush2.bf16.msra.mxu0 0
      %9869 = vmatprep.subr.bf16.mxu0 0
      %9870 = vmatpush2.bf16.msra.mxu0 0
      %9871 = vmatprep.subr.bf16.mxu0 0
      %9872 = vmatpush2.bf16.msra.mxu0 0
      %9873 = vmatprep.subr.bf16.mxu0 0
      %9874 = vmatpush2.bf16.msra.mxu0 0
      %9875 = vmatprep.mubr.bf16.mxu0 0
      %9876 = vmatmul.mubr.bf16.gmra.mxu0 %v9796
      %v9877 = vpop.f32.mrf.mxu0
      %v9878 = vadd.f32 %v9786, %v9877
      %v9879 = vpop.f32.mrf.mxu0
      %v9880 = vpop.f32.mrf.mxu0
      %v9881 = vadd.f32 %v9786, %v9880
      %v9882 = vpop.f32.mrf.mxu0
      %9883 = vmatprep.mubr.bf16.mxu0 0
      %9884 = vmatmul.mubr.bf16.gmra.mxu0 %v9799
      %v9885 = vpop.f32.mrf.mxu0
      %v9886 = vadd.f32 %v9786, %v9885
      %v9887 = vpop.f32.mrf.mxu0
      %v9888 = vpop.f32.mrf.mxu0
      %v9889 = vadd.f32 %v9786, %v9888
      %v9890 = vpop.f32.mrf.mxu0
      %9891 = vmatprep.mubr.bf16.mxu0 0
      %9892 = vmatmul.mubr.bf16.gmra.mxu0 %v9802
      %v9893 = vpop.f32.mrf.mxu0
      %v9894 = vadd.f32 %v9786, %v9893
      %v9895 = vpop.f32.mrf.mxu0
      %v9896 = vpop.f32.mrf.mxu0
      %v9897 = vadd.f32 %v9786, %v9896
      %v9898 = vpop.f32.mrf.mxu0
      %9899 = vmatprep.mubr.bf16.mxu0 0
      %9900 = vmatmul.mubr.bf16.gmra.mxu0 %v9805
      %v9901 = vpop.f32.mrf.mxu0
      %v9902 = vadd.f32 %v9786, %v9901
      %v9903 = vpop.f32.mrf.mxu0
      %v9904 = vpop.f32.mrf.mxu0
      %v9905 = vadd.f32 %v9786, %v9904
      %v9906 = vpop.f32.mrf.mxu0
      %9907 = vmatprep.mubr.bf16.mxu0 0
      %9908 = vmatmul.mubr.bf16.gmra.mxu0 %v9808
      %v9909 = vpop.f32.mrf.mxu0
      %v9910 = vadd.f32 %v9786, %v9909
      %v9911 = vpop.f32.mrf.mxu0
      %v9912 = vpop.f32.mrf.mxu0
      %v9913 = vadd.f32 %v9786, %v9912
      %v9914 = vpop.f32.mrf.mxu0
      %9915 = vmatprep.mubr.bf16.mxu0 0
      %9916 = vmatmul.mubr.bf16.gmra.mxu0 %v9811
      %v9917 = vpop.f32.mrf.mxu0
      %v9918 = vadd.f32 %v9786, %v9917
      %v9919 = vpop.f32.mrf.mxu0
      %v9920 = vpop.f32.mrf.mxu0
      %v9921 = vadd.f32 %v9786, %v9920
      %v9922 = vpop.f32.mrf.mxu0
      %9923 = vmatprep.mubr.bf16.mxu0 0
      %9924 = vmatmul.mubr.bf16.gmra.mxu0 %v9814
      %v9925 = vpop.f32.mrf.mxu0
      %v9926 = vadd.f32 %v9786, %v9925
      %v9927 = vpop.f32.mrf.mxu0
      %v9928 = vpop.f32.mrf.mxu0
      %v9929 = vadd.f32 %v9786, %v9928
      %v9930 = vpop.f32.mrf.mxu0
      %9931 = vmatprep.mubr.bf16.mxu0 0
      %9932 = vmatmul.mubr.bf16.gmra.mxu0 %v9817
      %v9933 = vpop.f32.mrf.mxu0
      %v9934 = vadd.f32 %v9786, %v9933
      %v9935 = vpop.f32.mrf.mxu0
      %v9936 = vpop.f32.mrf.mxu0
      %v9937 = vadd.f32 %v9786, %v9936
      %v9938 = vpop.f32.mrf.mxu0
      %9939 = vmatprep.mubr.bf16.mxu0 0
      %9940 = vmatmul.mubr.bf16.gmra.mxu0 %v9820
      %v9941 = vpop.f32.mrf.mxu0
      %v9942 = vadd.f32 %v9786, %v9941
      %v9943 = vpop.f32.mrf.mxu0
      %v9944 = vpop.f32.mrf.mxu0
      %v9945 = vadd.f32 %v9786, %v9944
      %v9946 = vpop.f32.mrf.mxu0
      %9947 = vmatprep.mubr.bf16.mxu0 0
      %9948 = vmatmul.mubr.bf16.gmra.mxu0 %v9823
      %v9949 = vpop.f32.mrf.mxu0
      %v9950 = vadd.f32 %v9786, %v9949
      %v9951 = vpop.f32.mrf.mxu0
      %v9952 = vpop.f32.mrf.mxu0
      %v9953 = vadd.f32 %v9786, %v9952
      %v9954 = vpop.f32.mrf.mxu0
      %9955 = vmatprep.mubr.bf16.mxu0 0
      %9956 = vmatmul.mubr.bf16.gmra.mxu0 %v9826
      %v9957 = vpop.f32.mrf.mxu0
      %v9958 = vadd.f32 %v9786, %v9957
      %v9959 = vpop.f32.mrf.mxu0
      %v9960 = vpop.f32.mrf.mxu0
      %v9961 = vadd.f32 %v9786, %v9960
      %v9962 = vpop.f32.mrf.mxu0
      %9963 = vmatprep.mubr.bf16.mxu0 0
      %9964 = vmatmul.mubr.bf16.gmra.mxu0 %v9829
      %v9965 = vpop.f32.mrf.mxu0
      %v9966 = vadd.f32 %v9786, %v9965
      %v9967 = vpop.f32.mrf.mxu0
      %v9968 = vpop.f32.mrf.mxu0
      %v9969 = vadd.f32 %v9786, %v9968
      %v9970 = vpop.f32.mrf.mxu0
      %9971 = vmatprep.mubr.bf16.mxu0 0
      %9972 = vmatmul.mubr.bf16.gmra.mxu0 %v9832
      %v9973 = vpop.f32.mrf.mxu0
      %v9974 = vadd.f32 %v9786, %v9973
      %v9975 = vpop.f32.mrf.mxu0
      %v9976 = vpop.f32.mrf.mxu0
      %v9977 = vadd.f32 %v9786, %v9976
      %v9978 = vpop.f32.mrf.mxu0
      %9979 = vmatprep.mubr.bf16.mxu0 0
      %9980 = vmatmul.mubr.bf16.gmra.mxu0 %v9835
      %v9981 = vpop.f32.mrf.mxu0
      %v9982 = vadd.f32 %v9786, %v9981
      %v9983 = vpop.f32.mrf.mxu0
      %v9984 = vpop.f32.mrf.mxu0
      %v9985 = vadd.f32 %v9786, %v9984
      %v9986 = vpop.f32.mrf.mxu0
      %9987 = vmatprep.mubr.bf16.mxu0 0
      %9988 = vmatmul.mubr.bf16.gmra.mxu0 %v9838
      %v9989 = vpop.f32.mrf.mxu0
      %v9990 = vadd.f32 %v9786, %v9989
      %v9991 = vpop.f32.mrf.mxu0
      %v9992 = vpop.f32.mrf.mxu0
      %v9993 = vadd.f32 %v9786, %v9992
      %v9994 = vpop.f32.mrf.mxu0
      %9995 = vmatprep.mubr.bf16.mxu0 0
      %9996 = vmatmul.mubr.bf16.gmra.mxu0 %v9841
      %v9997 = vpop.f32.mrf.mxu0
      %v9998 = vadd.f32 %v9786, %v9997
      %v9999 = vpop.f32.mrf.mxu0
      %v10000 = vpop.f32.mrf.mxu0
      %v10001 = vadd.f32 %v9786, %v10000
      %v10002 = vpop.f32.mrf.mxu0
      %10003 = vdwg.mxu0
      %v10004 = vmax.f32 %v9878, 0.0
      %v10005 = vmax.f32 %v9881, 0.0
      %v10006 = vmax.f32 %v9886, 0.0
      %v10007 = vmax.f32 %v9889, 0.0
      %v10008 = vmax.f32 %v9894, 0.0
      %v10009 = vmax.f32 %v9897, 0.0
      %v10010 = vmax.f32 %v9902, 0.0
      %v10011 = vmax.f32 %v9905, 0.0
      %v10012 = vmax.f32 %v9910, 0.0
      %v10013 = vmax.f32 %v9913, 0.0
      %v10014 = vmax.f32 %v9918, 0.0
      %v10015 = vmax.f32 %v9921, 0.0
      %v10016 = vmax.f32 %v9926, 0.0
      %v10017 = vmax.f32 %v9929, 0.0
      %v10018 = vmax.f32 %v9934, 0.0
      %v10019 = vmax.f32 %v9937, 0.0
      %v10020 = vmax.f32 %v9942, 0.0
      %v10021 = vmax.f32 %v9945, 0.0
      %v10022 = vmax.f32 %v9950, 0.0
      %v10023 = vmax.f32 %v9953, 0.0
      %v10024 = vmax.f32 %v9958, 0.0
      %v10025 = vmax.f32 %v9961, 0.0
      %v10026 = vmax.f32 %v9966, 0.0
      %v10027 = vmax.f32 %v9969, 0.0
      %v10028 = vmax.f32 %v9974, 0.0
      %v10029 = vmax.f32 %v9977, 0.0
      %v10030 = vmax.f32 %v9982, 0.0
      %v10031 = vmax.f32 %v9985, 0.0
      %v10032 = vmax.f32 %v9990, 0.0
      %v10033 = vmax.f32 %v9993, 0.0
      %v10034 = vmax.f32 %v9998, 0.0
      %v10035 = vmax.f32 %v10001, 0.0
      %v10036 = vpack.c.bf16 %v10005, %v10004
      %v10037 = vpack.c.bf16 %v10007, %v10006
      %v10038 = vpack.c.bf16 %v10009, %v10008
      %v10039 = vpack.c.bf16 %v10011, %v10010
      %v10040 = vpack.c.bf16 %v10013, %v10012
      %v10041 = vpack.c.bf16 %v10015, %v10014
      %v10042 = vpack.c.bf16 %v10017, %v10016
      %v10043 = vpack.c.bf16 %v10019, %v10018
      %v10044 = vpack.c.bf16 %v10021, %v10020
      %v10045 = vpack.c.bf16 %v10023, %v10022
      %v10046 = vpack.c.bf16 %v10025, %v10024
      %v10047 = vpack.c.bf16 %v10027, %v10026
      %v10048 = vpack.c.bf16 %v10029, %v10028
      %v10049 = vpack.c.bf16 %v10031, %v10030
      %v10050 = vpack.c.bf16 %v10033, %v10032
      %v10051 = vpack.c.bf16 %v10035, %v10034
      %v10052 = vld [vmem:[%s9] sm:$0xf]
      %v10053 = vld [vmem:[%s9 + $0x4] sm:$0xf]
      %v10054 = vld [vmem:[%s20] sm:$0x1]
      %v10056 = vlaneseq
      %v10057 = vshrl.u32 %v10056, 7
      %v10058 = vsub.s32 0, %v10057
      %v10059 = vrot.slane %v10054, %v10058
      %v10063 = vunpack.c.l.b16 %v10052
      %v10064 = vunpack.c.l.b16 %v10053
      %v10065 = vpack.c.b16 %v10064, %v10063
      %v10068 = vsel %vm9794, %v10036, 0
      %v10071 = vsel %vm9794, %v10037, 0
      %v10074 = vsel %vm9794, %v10038, 0
      %v10077 = vsel %vm9794, %v10039, 0
      %v10080 = vsel %vm9794, %v10040, 0
      %v10083 = vsel %vm9794, %v10041, 0
      %v10086 = vsel %vm9794, %v10042, 0
      %v10089 = vsel %vm9794, %v10043, 0
      %v10092 = vsel %vm9794, %v10044, 0
      %v10095 = vsel %vm9794, %v10045, 0
      %v10098 = vsel %vm9794, %v10046, 0
      %v10101 = vsel %vm9794, %v10047, 0
      %v10104 = vsel %vm9794, %v10048, 0
      %v10107 = vsel %vm9794, %v10049, 0
      %v10110 = vsel %vm9794, %v10050, 0
      %v10113 = vsel %vm9794, %v10051, 0
      %10115 = vmatprep.subr.bf16.mxu0 0
      %10116 = vmatpush1.bf16.msra.mxu0 0
      %10117 = vmatprep.subr.bf16.mxu0 0
      %10118 = vmatpush1.bf16.msra.mxu0 0
      %10119 = vmatprep.subr.bf16.mxu0 0
      %10120 = vmatpush1.bf16.msra.mxu0 0
      %10121 = vmatprep.subr.bf16.mxu0 0
      %10122 = vmatpush1.bf16.msra.mxu0 0
      %10123 = vmatprep.subr.bf16.mxu0 0
      %10124 = vmatpush1.bf16.msra.mxu0 0
      %10125 = vmatprep.subr.bf16.mxu0 0
      %10126 = vmatpush1.bf16.msra.mxu0 0
      %10127 = vmatprep.subr.bf16.mxu0 0
      %10128 = vmatpush1.bf16.msra.mxu0 0
      %10129 = vmatprep.subr.bf16.mxu0 0
      %10130 = vmatpush1.bf16.msra.mxu0 %v10065
      %10131 = vmatprep.subr.bf16.mxu0 0
      %10132 = vmatpush2.bf16.msra.mxu0 0
      %10133 = vmatprep.subr.bf16.mxu0 0
      %10134 = vmatpush2.bf16.msra.mxu0 0
      %10135 = vmatprep.subr.bf16.mxu0 0
      %10136 = vmatpush2.bf16.msra.mxu0 0
      %10137 = vmatprep.subr.bf16.mxu0 0
      %10138 = vmatpush2.bf16.msra.mxu0 0
      %10139 = vmatprep.subr.bf16.mxu0 0
      %10140 = vmatpush2.bf16.msra.mxu0 0
      %10141 = vmatprep.subr.bf16.mxu0 0
      %10142 = vmatpush2.bf16.msra.mxu0 0
      %10143 = vmatprep.subr.bf16.mxu0 0
      %10144 = vmatpush2.bf16.msra.mxu0 0
      %10145 = vmatprep.subr.bf16.mxu0 0
      %10146 = vmatpush2.bf16.msra.mxu0 0
      %10147 = vmatprep.mubr.bf16.mxu0 0
      %10148 = vmatmul.mubr.bf16.gmra.mxu0 %v10068
      %v10149 = vpop.f32.mrf.mxu0
      %v10150 = vadd.f32 %v10059, %v10149
      %v10151 = vpop.f32.mrf.mxu0
      %v10152 = vpop.f32.mrf.mxu0
      %v10153 = vadd.f32 %v10059, %v10152
      %v10154 = vpop.f32.mrf.mxu0
      %10155 = vmatprep.mubr.bf16.mxu0 0
      %10156 = vmatmul.mubr.bf16.gmra.mxu0 %v10071
      %v10157 = vpop.f32.mrf.mxu0
      %v10158 = vadd.f32 %v10059, %v10157
      %v10159 = vpop.f32.mrf.mxu0
      %v10160 = vpop.f32.mrf.mxu0
      %v10161 = vadd.f32 %v10059, %v10160
      %v10162 = vpop.f32.mrf.mxu0
      %10163 = vmatprep.mubr.bf16.mxu0 0
      %10164 = vmatmul.mubr.bf16.gmra.mxu0 %v10074
      %v10165 = vpop.f32.mrf.mxu0
      %v10166 = vadd.f32 %v10059, %v10165
      %v10167 = vpop.f32.mrf.mxu0
      %v10168 = vpop.f32.mrf.mxu0
      %v10169 = vadd.f32 %v10059, %v10168
      %v10170 = vpop.f32.mrf.mxu0
      %10171 = vmatprep.mubr.bf16.mxu0 0
      %10172 = vmatmul.mubr.bf16.gmra.mxu0 %v10077
      %v10173 = vpop.f32.mrf.mxu0
      %v10174 = vadd.f32 %v10059, %v10173
      %v10175 = vpop.f32.mrf.mxu0
      %v10176 = vpop.f32.mrf.mxu0
      %v10177 = vadd.f32 %v10059, %v10176
      %v10178 = vpop.f32.mrf.mxu0
      %10179 = vmatprep.mubr.bf16.mxu0 0
      %10180 = vmatmul.mubr.bf16.gmra.mxu0 %v10080
      %v10181 = vpop.f32.mrf.mxu0
      %v10182 = vadd.f32 %v10059, %v10181
      %v10183 = vpop.f32.mrf.mxu0
      %v10184 = vpop.f32.mrf.mxu0
      %v10185 = vadd.f32 %v10059, %v10184
      %v10186 = vpop.f32.mrf.mxu0
      %10187 = vmatprep.mubr.bf16.mxu0 0
      %10188 = vmatmul.mubr.bf16.gmra.mxu0 %v10083
      %v10189 = vpop.f32.mrf.mxu0
      %v10190 = vadd.f32 %v10059, %v10189
      %v10191 = vpop.f32.mrf.mxu0
      %v10192 = vpop.f32.mrf.mxu0
      %v10193 = vadd.f32 %v10059, %v10192
      %v10194 = vpop.f32.mrf.mxu0
      %10195 = vmatprep.mubr.bf16.mxu0 0
      %10196 = vmatmul.mubr.bf16.gmra.mxu0 %v10086
      %v10197 = vpop.f32.mrf.mxu0
      %v10198 = vadd.f32 %v10059, %v10197
      %v10199 = vpop.f32.mrf.mxu0
      %v10200 = vpop.f32.mrf.mxu0
      %v10201 = vadd.f32 %v10059, %v10200
      %v10202 = vpop.f32.mrf.mxu0
      %10203 = vmatprep.mubr.bf16.mxu0 0
      %10204 = vmatmul.mubr.bf16.gmra.mxu0 %v10089
      %v10205 = vpop.f32.mrf.mxu0
      %v10206 = vadd.f32 %v10059, %v10205
      %v10207 = vpop.f32.mrf.mxu0
      %v10208 = vpop.f32.mrf.mxu0
      %v10209 = vadd.f32 %v10059, %v10208
      %v10210 = vpop.f32.mrf.mxu0
      %10211 = vmatprep.mubr.bf16.mxu0 0
      %10212 = vmatmul.mubr.bf16.gmra.mxu0 %v10092
      %v10213 = vpop.f32.mrf.mxu0
      %v10214 = vadd.f32 %v10059, %v10213
      %v10215 = vpop.f32.mrf.mxu0
      %v10216 = vpop.f32.mrf.mxu0
      %v10217 = vadd.f32 %v10059, %v10216
      %v10218 = vpop.f32.mrf.mxu0
      %10219 = vmatprep.mubr.bf16.mxu0 0
      %10220 = vmatmul.mubr.bf16.gmra.mxu0 %v10095
      %v10221 = vpop.f32.mrf.mxu0
      %v10222 = vadd.f32 %v10059, %v10221
      %v10223 = vpop.f32.mrf.mxu0
      %v10224 = vpop.f32.mrf.mxu0
      %v10225 = vadd.f32 %v10059, %v10224
      %v10226 = vpop.f32.mrf.mxu0
      %10227 = vmatprep.mubr.bf16.mxu0 0
      %10228 = vmatmul.mubr.bf16.gmra.mxu0 %v10098
      %v10229 = vpop.f32.mrf.mxu0
      %v10230 = vadd.f32 %v10059, %v10229
      %v10231 = vpop.f32.mrf.mxu0
      %v10232 = vpop.f32.mrf.mxu0
      %v10233 = vadd.f32 %v10059, %v10232
      %v10234 = vpop.f32.mrf.mxu0
      %10235 = vmatprep.mubr.bf16.mxu0 0
      %10236 = vmatmul.mubr.bf16.gmra.mxu0 %v10101
      %v10237 = vpop.f32.mrf.mxu0
      %v10238 = vadd.f32 %v10059, %v10237
      %v10239 = vpop.f32.mrf.mxu0
      %v10240 = vpop.f32.mrf.mxu0
      %v10241 = vadd.f32 %v10059, %v10240
      %v10242 = vpop.f32.mrf.mxu0
      %10243 = vmatprep.mubr.bf16.mxu0 0
      %10244 = vmatmul.mubr.bf16.gmra.mxu0 %v10104
      %v10245 = vpop.f32.mrf.mxu0
      %v10246 = vadd.f32 %v10059, %v10245
      %v10247 = vpop.f32.mrf.mxu0
      %v10248 = vpop.f32.mrf.mxu0
      %v10249 = vadd.f32 %v10059, %v10248
      %v10250 = vpop.f32.mrf.mxu0
      %10251 = vmatprep.mubr.bf16.mxu0 0
      %10252 = vmatmul.mubr.bf16.gmra.mxu0 %v10107
      %v10253 = vpop.f32.mrf.mxu0
      %v10254 = vadd.f32 %v10059, %v10253
      %v10255 = vpop.f32.mrf.mxu0
      %v10256 = vpop.f32.mrf.mxu0
      %v10257 = vadd.f32 %v10059, %v10256
      %v10258 = vpop.f32.mrf.mxu0
      %10259 = vmatprep.mubr.bf16.mxu0 0
      %10260 = vmatmul.mubr.bf16.gmra.mxu0 %v10110
      %v10261 = vpop.f32.mrf.mxu0
      %v10262 = vadd.f32 %v10059, %v10261
      %v10263 = vpop.f32.mrf.mxu0
      %v10264 = vpop.f32.mrf.mxu0
      %v10265 = vadd.f32 %v10059, %v10264
      %v10266 = vpop.f32.mrf.mxu0
      %10267 = vmatprep.mubr.bf16.mxu0 0
      %10268 = vmatmul.mubr.bf16.gmra.mxu0 %v10113
      %v10269 = vpop.f32.mrf.mxu0
      %v10270 = vadd.f32 %v10059, %v10269
      %v10271 = vpop.f32.mrf.mxu0
      %v10272 = vpop.f32.mrf.mxu0
      %v10273 = vadd.f32 %v10059, %v10272
      %v10274 = vpop.f32.mrf.mxu0
      %10275 = vdwg.mxu0
      %v10276 = vadd.f32 %v10150, %v9605
      %v10277 = vadd.f32 %v10153, %v9610
      %v10278 = vadd.f32 %v10158, %v9615
      %v10279 = vadd.f32 %v10161, %v9620
      %v10280 = vadd.f32 %v10166, %v9625
      %v10281 = vadd.f32 %v10169, %v9630
      %v10282 = vadd.f32 %v10174, %v9635
      %v10283 = vadd.f32 %v10177, %v9640
      %v10284 = vadd.f32 %v10182, %v9645
      %v10285 = vadd.f32 %v10185, %v9650
      %v10286 = vadd.f32 %v10190, %v9655
      %v10287 = vadd.f32 %v10193, %v9660
      %v10288 = vadd.f32 %v10198, %v9665
      %v10289 = vadd.f32 %v10201, %v9670
      %v10290 = vadd.f32 %v10206, %v9675
      %v10291 = vadd.f32 %v10209, %v9680
      %v10292 = vadd.f32 %v10214, %v9685
      %v10293 = vadd.f32 %v10217, %v9690
      %v10294 = vadd.f32 %v10222, %v9695
      %v10295 = vadd.f32 %v10225, %v9700
      %v10296 = vadd.f32 %v10230, %v9705
      %v10297 = vadd.f32 %v10233, %v9710
      %v10298 = vadd.f32 %v10238, %v9715
      %v10299 = vadd.f32 %v10241, %v9720
      %v10300 = vadd.f32 %v10246, %v9725
      %v10301 = vadd.f32 %v10249, %v9730
      %v10302 = vadd.f32 %v10254, %v9735
      %v10303 = vadd.f32 %v10257, %v9740
      %v10304 = vadd.f32 %v10262, %v9745
      %v10305 = vadd.f32 %v10265, %v9750
      %v10306 = vadd.f32 %v10270, %v9755
      %v10307 = vadd.f32 %v10273, %v9760
      %v10308 = vpack.c.bf16 %v10277, %v10276
      %v10309 = vpack.c.bf16 %v10279, %v10278
      %v10310 = vpack.c.bf16 %v10281, %v10280
      %v10311 = vpack.c.bf16 %v10283, %v10282
      %v10312 = vpack.c.bf16 %v10285, %v10284
      %v10313 = vpack.c.bf16 %v10287, %v10286
      %v10314 = vpack.c.bf16 %v10289, %v10288
      %v10315 = vpack.c.bf16 %v10291, %v10290
      %v10316 = vpack.c.bf16 %v10293, %v10292
      %v10317 = vpack.c.bf16 %v10295, %v10294
      %v10318 = vpack.c.bf16 %v10297, %v10296
      %v10319 = vpack.c.bf16 %v10299, %v10298
      %v10320 = vpack.c.bf16 %v10301, %v10300
      %v10321 = vpack.c.bf16 %v10303, %v10302
      %v10322 = vpack.c.bf16 %v10305, %v10304
      %v10323 = vpack.c.bf16 %v10307, %v10306
      %v10324 = vld [vmem:[%s10] sm:$0xf]
      %v10325 = vld [vmem:[%s10 + $0x4] sm:$0xf]
      %v10326 = vld [vmem:[%s11] sm:$0xf]
      %v10327 = vld [vmem:[%s11 + $0x4] sm:$0xf]
      %v10328 = vld [vmem:[%s11 + $0x8] sm:$0xf]
      %v10329 = vld [vmem:[%s11 + $0xc] sm:$0xf]
      %v10334 = vunpack.c.l.b16 %v10326
      %v10335 = vunpack.c.l.b16 %v10327
      %v10336 = vunpack.c.l.b16 %v10328
      %v10337 = vunpack.c.l.b16 %v10329
      %v10338 = vpack.c.b16 %v10335, %v10334
      %v10339 = vpack.c.b16 %v10337, %v10336
      %10342 = vmatprep.subr.bf16.mxu0 0
      %10343 = vmatpush1.bf16.msra.mxu0 0
      %10344 = vmatprep.subr.bf16.mxu0 0
      %10345 = vmatpush1.bf16.msra.mxu0 0
      %10346 = vmatprep.subr.bf16.mxu0 0
      %10347 = vmatpush1.bf16.msra.mxu0 0
      %10348 = vmatprep.subr.bf16.mxu0 0
      %10349 = vmatpush1.bf16.msra.mxu0 0
      %10350 = vmatprep.subr.bf16.mxu0 0
      %10351 = vmatpush1.bf16.msra.mxu0 0
      %10352 = vmatprep.subr.bf16.mxu0 0
      %10353 = vmatpush1.bf16.msra.mxu0 0
      %10354 = vmatprep.subr.bf16.mxu0 0
      %10355 = vmatpush1.bf16.msra.mxu0 %v10339
      %10356 = vmatprep.subr.bf16.mxu0 0
      %10357 = vmatpush1.bf16.msra.mxu0 %v10338
      %10358 = vmatprep.subr.bf16.mxu0 0
      %10359 = vmatpush2.bf16.msra.mxu0 0
      %10360 = vmatprep.subr.bf16.mxu0 0
      %10361 = vmatpush2.bf16.msra.mxu0 0
      %10362 = vmatprep.subr.bf16.mxu0 0
      %10363 = vmatpush2.bf16.msra.mxu0 0
      %10364 = vmatprep.subr.bf16.mxu0 0
      %10365 = vmatpush2.bf16.msra.mxu0 0
      %10366 = vmatprep.subr.bf16.mxu0 0
      %10367 = vmatpush2.bf16.msra.mxu0 0
      %10368 = vmatprep.subr.bf16.mxu0 0
      %10369 = vmatpush2.bf16.msra.mxu0 0
      %10370 = vmatprep.subr.bf16.mxu0 0
      %10371 = vmatpush2.bf16.msra.mxu0 0
      %10372 = vmatprep.subr.bf16.mxu0 0
      %10373 = vmatpush2.bf16.msra.mxu0 0
      %10374 = vmatprep.mubr.bf16.mxu0 0
      %10375 = vmatmul.mubr.bf16.gmra.mxu0 %v786
      %v10376 = vpop.f32.mrf.mxu0
      %v10377 = vadd.f32 0.0, %v10376
      %v10378 = vpop.f32.mrf.mxu0
      %v10379 = vpop.f32.mrf.mxu0
      %v10380 = vadd.f32 0.0, %v10379
      %v10381 = vpop.f32.mrf.mxu0
      %10382 = vmatprep.mubr.bf16.mxu0 0
      %10383 = vmatmul.mubr.bf16.gmra.mxu0 %v789
      %v10384 = vpop.f32.mrf.mxu0
      %v10385 = vadd.f32 0.0, %v10384
      %v10386 = vpop.f32.mrf.mxu0
      %v10387 = vpop.f32.mrf.mxu0
      %v10388 = vadd.f32 0.0, %v10387
      %v10389 = vpop.f32.mrf.mxu0
      %10390 = vmatprep.mubr.bf16.mxu0 0
      %10391 = vmatmul.mubr.bf16.gmra.mxu0 %v792
      %v10392 = vpop.f32.mrf.mxu0
      %v10393 = vadd.f32 0.0, %v10392
      %v10394 = vpop.f32.mrf.mxu0
      %v10395 = vpop.f32.mrf.mxu0
      %v10396 = vadd.f32 0.0, %v10395
      %v10397 = vpop.f32.mrf.mxu0
      %10398 = vmatprep.mubr.bf16.mxu0 0
      %10399 = vmatmul.mubr.bf16.gmra.mxu0 %v795
      %v10400 = vpop.f32.mrf.mxu0
      %v10401 = vadd.f32 0.0, %v10400
      %v10402 = vpop.f32.mrf.mxu0
      %v10403 = vpop.f32.mrf.mxu0
      %v10404 = vadd.f32 0.0, %v10403
      %v10405 = vpop.f32.mrf.mxu0
      %10406 = vmatprep.mubr.bf16.mxu0 0
      %10407 = vmatmul.mubr.bf16.gmra.mxu0 %v798
      %v10408 = vpop.f32.mrf.mxu0
      %v10409 = vadd.f32 0.0, %v10408
      %v10410 = vpop.f32.mrf.mxu0
      %v10411 = vpop.f32.mrf.mxu0
      %v10412 = vadd.f32 0.0, %v10411
      %v10413 = vpop.f32.mrf.mxu0
      %10414 = vmatprep.mubr.bf16.mxu0 0
      %10415 = vmatmul.mubr.bf16.gmra.mxu0 %v801
      %v10416 = vpop.f32.mrf.mxu0
      %v10417 = vadd.f32 0.0, %v10416
      %v10418 = vpop.f32.mrf.mxu0
      %v10419 = vpop.f32.mrf.mxu0
      %v10420 = vadd.f32 0.0, %v10419
      %v10421 = vpop.f32.mrf.mxu0
      %10422 = vmatprep.mubr.bf16.mxu0 0
      %10423 = vmatmul.mubr.bf16.gmra.mxu0 %v804
      %v10424 = vpop.f32.mrf.mxu0
      %v10425 = vadd.f32 0.0, %v10424
      %v10426 = vpop.f32.mrf.mxu0
      %v10427 = vpop.f32.mrf.mxu0
      %v10428 = vadd.f32 0.0, %v10427
      %v10429 = vpop.f32.mrf.mxu0
      %10430 = vmatprep.mubr.bf16.mxu0 0
      %10431 = vmatmul.mubr.bf16.gmra.mxu0 %v807
      %v10432 = vpop.f32.mrf.mxu0
      %v10433 = vadd.f32 0.0, %v10432
      %v10434 = vpop.f32.mrf.mxu0
      %v10435 = vpop.f32.mrf.mxu0
      %v10436 = vadd.f32 0.0, %v10435
      %v10437 = vpop.f32.mrf.mxu0
      %10438 = vmatprep.mubr.bf16.mxu0 0
      %10439 = vmatmul.mubr.bf16.gmra.mxu0 %v810
      %v10440 = vpop.f32.mrf.mxu0
      %v10441 = vadd.f32 0.0, %v10440
      %v10442 = vpop.f32.mrf.mxu0
      %v10443 = vpop.f32.mrf.mxu0
      %v10444 = vadd.f32 0.0, %v10443
      %v10445 = vpop.f32.mrf.mxu0
      %10446 = vmatprep.mubr.bf16.mxu0 0
      %10447 = vmatmul.mubr.bf16.gmra.mxu0 %v813
      %v10448 = vpop.f32.mrf.mxu0
      %v10449 = vadd.f32 0.0, %v10448
      %v10450 = vpop.f32.mrf.mxu0
      %v10451 = vpop.f32.mrf.mxu0
      %v10452 = vadd.f32 0.0, %v10451
      %v10453 = vpop.f32.mrf.mxu0
      %10454 = vmatprep.mubr.bf16.mxu0 0
      %10455 = vmatmul.mubr.bf16.gmra.mxu0 %v816
      %v10456 = vpop.f32.mrf.mxu0
      %v10457 = vadd.f32 0.0, %v10456
      %v10458 = vpop.f32.mrf.mxu0
      %v10459 = vpop.f32.mrf.mxu0
      %v10460 = vadd.f32 0.0, %v10459
      %v10461 = vpop.f32.mrf.mxu0
      %10462 = vmatprep.mubr.bf16.mxu0 0
      %10463 = vmatmul.mubr.bf16.gmra.mxu0 %v819
      %v10464 = vpop.f32.mrf.mxu0
      %v10465 = vadd.f32 0.0, %v10464
      %v10466 = vpop.f32.mrf.mxu0
      %v10467 = vpop.f32.mrf.mxu0
      %v10468 = vadd.f32 0.0, %v10467
      %v10469 = vpop.f32.mrf.mxu0
      %10470 = vmatprep.mubr.bf16.mxu0 0
      %10471 = vmatmul.mubr.bf16.gmra.mxu0 %v822
      %v10472 = vpop.f32.mrf.mxu0
      %v10473 = vadd.f32 0.0, %v10472
      %v10474 = vpop.f32.mrf.mxu0
      %v10475 = vpop.f32.mrf.mxu0
      %v10476 = vadd.f32 0.0, %v10475
      %v10477 = vpop.f32.mrf.mxu0
      %10478 = vmatprep.mubr.bf16.mxu0 0
      %10479 = vmatmul.mubr.bf16.gmra.mxu0 %v825
      %v10480 = vpop.f32.mrf.mxu0
      %v10481 = vadd.f32 0.0, %v10480
      %v10482 = vpop.f32.mrf.mxu0
      %v10483 = vpop.f32.mrf.mxu0
      %v10484 = vadd.f32 0.0, %v10483
      %v10485 = vpop.f32.mrf.mxu0
      %10486 = vmatprep.mubr.bf16.mxu0 0
      %10487 = vmatmul.mubr.bf16.gmra.mxu0 %v828
      %v10488 = vpop.f32.mrf.mxu0
      %v10489 = vadd.f32 0.0, %v10488
      %v10490 = vpop.f32.mrf.mxu0
      %v10491 = vpop.f32.mrf.mxu0
      %v10492 = vadd.f32 0.0, %v10491
      %v10493 = vpop.f32.mrf.mxu0
      %10494 = vmatprep.mubr.bf16.mxu0 0
      %10495 = vmatmul.mubr.bf16.gmra.mxu0 %v831
      %v10496 = vpop.f32.mrf.mxu0
      %v10497 = vadd.f32 0.0, %v10496
      %v10498 = vpop.f32.mrf.mxu0
      %v10499 = vpop.f32.mrf.mxu0
      %v10500 = vadd.f32 0.0, %v10499
      %v10501 = vpop.f32.mrf.mxu0
      %10502 = vdwg.mxu0
      %v10505 = vunpack.c.l.b16 %v10324
      %v10506 = vunpack.c.l.b16 %v10325
      %v10507 = vpack.c.b16 %v10506, %v10505
      %v10510 = vsel %vm9794, %v10308, 0
      %v10513 = vsel %vm9794, %v10309, 0
      %v10516 = vsel %vm9794, %v10310, 0
      %v10519 = vsel %vm9794, %v10311, 0
      %v10522 = vsel %vm9794, %v10312, 0
      %v10525 = vsel %vm9794, %v10313, 0
      %v10528 = vsel %vm9794, %v10314, 0
      %v10531 = vsel %vm9794, %v10315, 0
      %v10534 = vsel %vm9794, %v10316, 0
      %v10537 = vsel %vm9794, %v10317, 0
      %v10540 = vsel %vm9794, %v10318, 0
      %v10543 = vsel %vm9794, %v10319, 0
      %v10546 = vsel %vm9794, %v10320, 0
      %v10549 = vsel %vm9794, %v10321, 0
      %v10552 = vsel %vm9794, %v10322, 0
      %v10555 = vsel %vm9794, %v10323, 0
      %10557 = vmatprep.subr.bf16.mxu0 0
      %10558 = vmatpush1.bf16.msra.mxu0 0
      %10559 = vmatprep.subr.bf16.mxu0 0
      %10560 = vmatpush1.bf16.msra.mxu0 0
      %10561 = vmatprep.subr.bf16.mxu0 0
      %10562 = vmatpush1.bf16.msra.mxu0 0
      %10563 = vmatprep.subr.bf16.mxu0 0
      %10564 = vmatpush1.bf16.msra.mxu0 0
      %10565 = vmatprep.subr.bf16.mxu0 0
      %10566 = vmatpush1.bf16.msra.mxu0 0
      %10567 = vmatprep.subr.bf16.mxu0 0
      %10568 = vmatpush1.bf16.msra.mxu0 0
      %10569 = vmatprep.subr.bf16.mxu0 0
      %10570 = vmatpush1.bf16.msra.mxu0 0
      %10571 = vmatprep.subr.bf16.mxu0 0
      %10572 = vmatpush1.bf16.msra.mxu0 %v10507
      %10573 = vmatprep.subr.bf16.mxu0 0
      %10574 = vmatpush2.bf16.msra.mxu0 0
      %10575 = vmatprep.subr.bf16.mxu0 0
      %10576 = vmatpush2.bf16.msra.mxu0 0
      %10577 = vmatprep.subr.bf16.mxu0 0
      %10578 = vmatpush2.bf16.msra.mxu0 0
      %10579 = vmatprep.subr.bf16.mxu0 0
      %10580 = vmatpush2.bf16.msra.mxu0 0
      %10581 = vmatprep.subr.bf16.mxu0 0
      %10582 = vmatpush2.bf16.msra.mxu0 0
      %10583 = vmatprep.subr.bf16.mxu0 0
      %10584 = vmatpush2.bf16.msra.mxu0 0
      %10585 = vmatprep.subr.bf16.mxu0 0
      %10586 = vmatpush2.bf16.msra.mxu0 0
      %10587 = vmatprep.subr.bf16.mxu0 0
      %10588 = vmatpush2.bf16.msra.mxu0 0
      %10589 = vmatprep.mubr.bf16.mxu0 0
      %10590 = vmatmul.mubr.bf16.gmra.mxu0 %v10510
      %v10591 = vpop.f32.mrf.mxu0
      %v10592 = vadd.f32 %v10377, %v10591
      %v10593 = vpop.f32.mrf.mxu0
      %v10594 = vpop.f32.mrf.mxu0
      %v10595 = vadd.f32 %v10380, %v10594
      %v10596 = vpop.f32.mrf.mxu0
      %10597 = vmatprep.mubr.bf16.mxu0 0
      %10598 = vmatmul.mubr.bf16.gmra.mxu0 %v10513
      %v10599 = vpop.f32.mrf.mxu0
      %v10600 = vadd.f32 %v10385, %v10599
      %v10601 = vpop.f32.mrf.mxu0
      %v10602 = vpop.f32.mrf.mxu0
      %v10603 = vadd.f32 %v10388, %v10602
      %v10604 = vpop.f32.mrf.mxu0
      %10605 = vmatprep.mubr.bf16.mxu0 0
      %10606 = vmatmul.mubr.bf16.gmra.mxu0 %v10516
      %v10607 = vpop.f32.mrf.mxu0
      %v10608 = vadd.f32 %v10393, %v10607
      %v10609 = vpop.f32.mrf.mxu0
      %v10610 = vpop.f32.mrf.mxu0
      %v10611 = vadd.f32 %v10396, %v10610
      %v10612 = vpop.f32.mrf.mxu0
      %10613 = vmatprep.mubr.bf16.mxu0 0
      %10614 = vmatmul.mubr.bf16.gmra.mxu0 %v10519
      %v10615 = vpop.f32.mrf.mxu0
      %v10616 = vadd.f32 %v10401, %v10615
      %v10617 = vpop.f32.mrf.mxu0
      %v10618 = vpop.f32.mrf.mxu0
      %v10619 = vadd.f32 %v10404, %v10618
      %v10620 = vpop.f32.mrf.mxu0
      %10621 = vmatprep.mubr.bf16.mxu0 0
      %10622 = vmatmul.mubr.bf16.gmra.mxu0 %v10522
      %v10623 = vpop.f32.mrf.mxu0
      %v10624 = vadd.f32 %v10409, %v10623
      %v10625 = vpop.f32.mrf.mxu0
      %v10626 = vpop.f32.mrf.mxu0
      %v10627 = vadd.f32 %v10412, %v10626
      %v10628 = vpop.f32.mrf.mxu0
      %10629 = vmatprep.mubr.bf16.mxu0 0
      %10630 = vmatmul.mubr.bf16.gmra.mxu0 %v10525
      %v10631 = vpop.f32.mrf.mxu0
      %v10632 = vadd.f32 %v10417, %v10631
      %v10633 = vpop.f32.mrf.mxu0
      %v10634 = vpop.f32.mrf.mxu0
      %v10635 = vadd.f32 %v10420, %v10634
      %v10636 = vpop.f32.mrf.mxu0
      %10637 = vmatprep.mubr.bf16.mxu0 0
      %10638 = vmatmul.mubr.bf16.gmra.mxu0 %v10528
      %v10639 = vpop.f32.mrf.mxu0
      %v10640 = vadd.f32 %v10425, %v10639
      %v10641 = vpop.f32.mrf.mxu0
      %v10642 = vpop.f32.mrf.mxu0
      %v10643 = vadd.f32 %v10428, %v10642
      %v10644 = vpop.f32.mrf.mxu0
      %10645 = vmatprep.mubr.bf16.mxu0 0
      %10646 = vmatmul.mubr.bf16.gmra.mxu0 %v10531
      %v10647 = vpop.f32.mrf.mxu0
      %v10648 = vadd.f32 %v10433, %v10647
      %v10649 = vpop.f32.mrf.mxu0
      %v10650 = vpop.f32.mrf.mxu0
      %v10651 = vadd.f32 %v10436, %v10650
      %v10652 = vpop.f32.mrf.mxu0
      %10653 = vmatprep.mubr.bf16.mxu0 0
      %10654 = vmatmul.mubr.bf16.gmra.mxu0 %v10534
      %v10655 = vpop.f32.mrf.mxu0
      %v10656 = vadd.f32 %v10441, %v10655
      %v10657 = vpop.f32.mrf.mxu0
      %v10658 = vpop.f32.mrf.mxu0
      %v10659 = vadd.f32 %v10444, %v10658
      %v10660 = vpop.f32.mrf.mxu0
      %10661 = vmatprep.mubr.bf16.mxu0 0
      %10662 = vmatmul.mubr.bf16.gmra.mxu0 %v10537
      %v10663 = vpop.f32.mrf.mxu0
      %v10664 = vadd.f32 %v10449, %v10663
      %v10665 = vpop.f32.mrf.mxu0
      %v10666 = vpop.f32.mrf.mxu0
      %v10667 = vadd.f32 %v10452, %v10666
      %v10668 = vpop.f32.mrf.mxu0
      %10669 = vmatprep.mubr.bf16.mxu0 0
      %10670 = vmatmul.mubr.bf16.gmra.mxu0 %v10540
      %v10671 = vpop.f32.mrf.mxu0
      %v10672 = vadd.f32 %v10457, %v10671
      %v10673 = vpop.f32.mrf.mxu0
      %v10674 = vpop.f32.mrf.mxu0
      %v10675 = vadd.f32 %v10460, %v10674
      %v10676 = vpop.f32.mrf.mxu0
      %10677 = vmatprep.mubr.bf16.mxu0 0
      %10678 = vmatmul.mubr.bf16.gmra.mxu0 %v10543
      %v10679 = vpop.f32.mrf.mxu0
      %v10680 = vadd.f32 %v10465, %v10679
      %v10681 = vpop.f32.mrf.mxu0
      %v10682 = vpop.f32.mrf.mxu0
      %v10683 = vadd.f32 %v10468, %v10682
      %v10684 = vpop.f32.mrf.mxu0
      %10685 = vmatprep.mubr.bf16.mxu0 0
      %10686 = vmatmul.mubr.bf16.gmra.mxu0 %v10546
      %v10687 = vpop.f32.mrf.mxu0
      %v10688 = vadd.f32 %v10473, %v10687
      %v10689 = vpop.f32.mrf.mxu0
      %v10690 = vpop.f32.mrf.mxu0
      %v10691 = vadd.f32 %v10476, %v10690
      %v10692 = vpop.f32.mrf.mxu0
      %10693 = vmatprep.mubr.bf16.mxu0 0
      %10694 = vmatmul.mubr.bf16.gmra.mxu0 %v10549
      %v10695 = vpop.f32.mrf.mxu0
      %v10696 = vadd.f32 %v10481, %v10695
      %v10697 = vpop.f32.mrf.mxu0
      %v10698 = vpop.f32.mrf.mxu0
      %v10699 = vadd.f32 %v10484, %v10698
      %v10700 = vpop.f32.mrf.mxu0
      %10701 = vmatprep.mubr.bf16.mxu0 0
      %10702 = vmatmul.mubr.bf16.gmra.mxu0 %v10552
      %v10703 = vpop.f32.mrf.mxu0
      %v10704 = vadd.f32 %v10489, %v10703
      %v10705 = vpop.f32.mrf.mxu0
      %v10706 = vpop.f32.mrf.mxu0
      %v10707 = vadd.f32 %v10492, %v10706
      %v10708 = vpop.f32.mrf.mxu0
      %10709 = vmatprep.mubr.bf16.mxu0 0
      %10710 = vmatmul.mubr.bf16.gmra.mxu0 %v10555
      %v10711 = vpop.f32.mrf.mxu0
      %v10712 = vadd.f32 %v10497, %v10711
      %v10713 = vpop.f32.mrf.mxu0
      %v10714 = vpop.f32.mrf.mxu0
      %v10715 = vadd.f32 %v10500, %v10714
      %v10716 = vpop.f32.mrf.mxu0
      %10717 = vdwg.mxu0
      %v10718 = vld [vmem:[%s21] sm:$0x1]
      %v10720 = vlaneseq
      %v10721 = vshrl.u32 %v10720, 7
      %v10722 = vsub.s32 0, %v10721
      %v10723 = vrot.slane %v10718, %v10722
      %v10725 = vadd.f32 %v10592, %v10723
      %v10726 = vadd.f32 %v10595, %v10723
      %v10727 = vadd.f32 %v10600, %v10723
      %v10728 = vadd.f32 %v10603, %v10723
      %v10729 = vadd.f32 %v10608, %v10723
      %v10730 = vadd.f32 %v10611, %v10723
      %v10731 = vadd.f32 %v10616, %v10723
      %v10732 = vadd.f32 %v10619, %v10723
      %v10733 = vadd.f32 %v10624, %v10723
      %v10734 = vadd.f32 %v10627, %v10723
      %v10735 = vadd.f32 %v10632, %v10723
      %v10736 = vadd.f32 %v10635, %v10723
      %v10737 = vadd.f32 %v10640, %v10723
      %v10738 = vadd.f32 %v10643, %v10723
      %v10739 = vadd.f32 %v10648, %v10723
      %v10740 = vadd.f32 %v10651, %v10723
      %v10741 = vadd.f32 %v10656, %v10723
      %v10742 = vadd.f32 %v10659, %v10723
      %v10743 = vadd.f32 %v10664, %v10723
      %v10744 = vadd.f32 %v10667, %v10723
      %v10745 = vadd.f32 %v10672, %v10723
      %v10746 = vadd.f32 %v10675, %v10723
      %v10747 = vadd.f32 %v10680, %v10723
      %v10748 = vadd.f32 %v10683, %v10723
      %v10749 = vadd.f32 %v10688, %v10723
      %v10750 = vadd.f32 %v10691, %v10723
      %v10751 = vadd.f32 %v10696, %v10723
      %v10752 = vadd.f32 %v10699, %v10723
      %v10753 = vadd.f32 %v10704, %v10723
      %v10754 = vadd.f32 %v10707, %v10723
      %v10755 = vadd.f32 %v10712, %v10723
      %v10756 = vadd.f32 %v10715, %v10723
      %v10757 = vxor.u32 %v10725, 2147483648
      %v10758 = vxor.u32 %v10726, 2147483648
      %v10759 = vxor.u32 %v10727, 2147483648
      %v10760 = vxor.u32 %v10728, 2147483648
      %v10761 = vxor.u32 %v10729, 2147483648
      %v10762 = vxor.u32 %v10730, 2147483648
      %v10763 = vxor.u32 %v10731, 2147483648
      %v10764 = vxor.u32 %v10732, 2147483648
      %v10765 = vxor.u32 %v10733, 2147483648
      %v10766 = vxor.u32 %v10734, 2147483648
      %v10767 = vxor.u32 %v10735, 2147483648
      %v10768 = vxor.u32 %v10736, 2147483648
      %v10769 = vxor.u32 %v10737, 2147483648
      %v10770 = vxor.u32 %v10738, 2147483648
      %v10771 = vxor.u32 %v10739, 2147483648
      %v10772 = vxor.u32 %v10740, 2147483648
      %v10773 = vxor.u32 %v10741, 2147483648
      %v10774 = vxor.u32 %v10742, 2147483648
      %v10775 = vxor.u32 %v10743, 2147483648
      %v10776 = vxor.u32 %v10744, 2147483648
      %v10777 = vxor.u32 %v10745, 2147483648
      %v10778 = vxor.u32 %v10746, 2147483648
      %v10779 = vxor.u32 %v10747, 2147483648
      %v10780 = vxor.u32 %v10748, 2147483648
      %v10781 = vxor.u32 %v10749, 2147483648
      %v10782 = vxor.u32 %v10750, 2147483648
      %v10783 = vxor.u32 %v10751, 2147483648
      %v10784 = vxor.u32 %v10752, 2147483648
      %v10785 = vxor.u32 %v10753, 2147483648
      %v10786 = vxor.u32 %v10754, 2147483648
      %v10787 = vxor.u32 %v10755, 2147483648
      %v10788 = vxor.u32 %v10756, 2147483648
      %v10789 = vmul.f32 %v10757, 1.442695
      %v10790 = vpow.pop %v10789
      %v10791 = vmul.f32 %v10758, 1.442695
      %v10792 = vpow.pop %v10791
      %v10793 = vmul.f32 %v10759, 1.442695
      %v10794 = vpow.pop %v10793
      %v10795 = vmul.f32 %v10760, 1.442695
      %v10796 = vpow.pop %v10795
      %v10797 = vmul.f32 %v10761, 1.442695
      %v10798 = vpow.pop %v10797
      %v10799 = vmul.f32 %v10762, 1.442695
      %v10800 = vpow.pop %v10799
      %v10801 = vmul.f32 %v10763, 1.442695
      %v10802 = vpow.pop %v10801
      %v10803 = vmul.f32 %v10764, 1.442695
      %v10804 = vpow.pop %v10803
      %v10805 = vmul.f32 %v10765, 1.442695
      %v10806 = vpow.pop %v10805
      %v10807 = vmul.f32 %v10766, 1.442695
      %v10808 = vpow.pop %v10807
      %v10809 = vmul.f32 %v10767, 1.442695
      %v10810 = vpow.pop %v10809
      %v10811 = vmul.f32 %v10768, 1.442695
      %v10812 = vpow.pop %v10811
      %v10813 = vmul.f32 %v10769, 1.442695
      %v10814 = vpow.pop %v10813
      %v10815 = vmul.f32 %v10770, 1.442695
      %v10816 = vpow.pop %v10815
      %v10817 = vmul.f32 %v10771, 1.442695
      %v10818 = vpow.pop %v10817
      %v10819 = vmul.f32 %v10772, 1.442695
      %v10820 = vpow.pop %v10819
      %v10821 = vmul.f32 %v10773, 1.442695
      %v10822 = vpow.pop %v10821
      %v10823 = vmul.f32 %v10774, 1.442695
      %v10824 = vpow.pop %v10823
      %v10825 = vmul.f32 %v10775, 1.442695
      %v10826 = vpow.pop %v10825
      %v10827 = vmul.f32 %v10776, 1.442695
      %v10828 = vpow.pop %v10827
      %v10829 = vmul.f32 %v10777, 1.442695
      %v10830 = vpow.pop %v10829
      %v10831 = vmul.f32 %v10778, 1.442695
      %v10832 = vpow.pop %v10831
      %v10833 = vmul.f32 %v10779, 1.442695
      %v10834 = vpow.pop %v10833
      %v10835 = vmul.f32 %v10780, 1.442695
      %v10836 = vpow.pop %v10835
      %v10837 = vmul.f32 %v10781, 1.442695
      %v10838 = vpow.pop %v10837
      %v10839 = vmul.f32 %v10782, 1.442695
      %v10840 = vpow.pop %v10839
      %v10841 = vmul.f32 %v10783, 1.442695
      %v10842 = vpow.pop %v10841
      %v10843 = vmul.f32 %v10784, 1.442695
      %v10844 = vpow.pop %v10843
      %v10845 = vmul.f32 %v10785, 1.442695
      %v10846 = vpow.pop %v10845
      %v10847 = vmul.f32 %v10786, 1.442695
      %v10848 = vpow.pop %v10847
      %v10849 = vmul.f32 %v10787, 1.442695
      %v10850 = vpow.pop %v10849
      %v10851 = vmul.f32 %v10788, 1.442695
      %v10852 = vpow.pop %v10851
      %v10853 = vadd.f32 %v10790, 1.0
      %v10854 = vadd.f32 %v10792, 1.0
      %v10855 = vadd.f32 %v10794, 1.0
      %v10856 = vadd.f32 %v10796, 1.0
      %v10857 = vadd.f32 %v10798, 1.0
      %v10858 = vadd.f32 %v10800, 1.0
      %v10859 = vadd.f32 %v10802, 1.0
      %v10860 = vadd.f32 %v10804, 1.0
      %v10861 = vadd.f32 %v10806, 1.0
      %v10862 = vadd.f32 %v10808, 1.0
      %v10863 = vadd.f32 %v10810, 1.0
      %v10864 = vadd.f32 %v10812, 1.0
      %v10865 = vadd.f32 %v10814, 1.0
      %v10866 = vadd.f32 %v10816, 1.0
      %v10867 = vadd.f32 %v10818, 1.0
      %v10868 = vadd.f32 %v10820, 1.0
      %v10869 = vadd.f32 %v10822, 1.0
      %v10870 = vadd.f32 %v10824, 1.0
      %v10871 = vadd.f32 %v10826, 1.0
      %v10872 = vadd.f32 %v10828, 1.0
      %v10873 = vadd.f32 %v10830, 1.0
      %v10874 = vadd.f32 %v10832, 1.0
      %v10875 = vadd.f32 %v10834, 1.0
      %v10876 = vadd.f32 %v10836, 1.0
      %v10877 = vadd.f32 %v10838, 1.0
      %v10878 = vadd.f32 %v10840, 1.0
      %v10879 = vadd.f32 %v10842, 1.0
      %v10880 = vadd.f32 %v10844, 1.0
      %v10881 = vadd.f32 %v10846, 1.0
      %v10882 = vadd.f32 %v10848, 1.0
      %v10883 = vadd.f32 %v10850, 1.0
      %v10884 = vadd.f32 %v10852, 1.0
      %v10885 = vrcp.pop %v10853
      %v10886 = vmul.f32 1.0, %v10885
      %v10887 = vrcp.pop %v10854
      %v10888 = vmul.f32 1.0, %v10887
      %v10889 = vrcp.pop %v10855
      %v10890 = vmul.f32 1.0, %v10889
      %v10891 = vrcp.pop %v10856
      %v10892 = vmul.f32 1.0, %v10891
      %v10893 = vrcp.pop %v10857
      %v10894 = vmul.f32 1.0, %v10893
      %v10895 = vrcp.pop %v10858
      %v10896 = vmul.f32 1.0, %v10895
      %v10897 = vrcp.pop %v10859
      %v10898 = vmul.f32 1.0, %v10897
      %v10899 = vrcp.pop %v10860
      %v10900 = vmul.f32 1.0, %v10899
      %v10901 = vrcp.pop %v10861
      %v10902 = vmul.f32 1.0, %v10901
      %v10903 = vrcp.pop %v10862
      %v10904 = vmul.f32 1.0, %v10903
      %v10905 = vrcp.pop %v10863
      %v10906 = vmul.f32 1.0, %v10905
      %v10907 = vrcp.pop %v10864
      %v10908 = vmul.f32 1.0, %v10907
      %v10909 = vrcp.pop %v10865
      %v10910 = vmul.f32 1.0, %v10909
      %v10911 = vrcp.pop %v10866
      %v10912 = vmul.f32 1.0, %v10911
      %v10913 = vrcp.pop %v10867
      %v10914 = vmul.f32 1.0, %v10913
      %v10915 = vrcp.pop %v10868
      %v10916 = vmul.f32 1.0, %v10915
      %v10917 = vrcp.pop %v10869
      %v10918 = vmul.f32 1.0, %v10917
      %v10919 = vrcp.pop %v10870
      %v10920 = vmul.f32 1.0, %v10919
      %v10921 = vrcp.pop %v10871
      %v10922 = vmul.f32 1.0, %v10921
      %v10923 = vrcp.pop %v10872
      %v10924 = vmul.f32 1.0, %v10923
      %v10925 = vrcp.pop %v10873
      %v10926 = vmul.f32 1.0, %v10925
      %v10927 = vrcp.pop %v10874
      %v10928 = vmul.f32 1.0, %v10927
      %v10929 = vrcp.pop %v10875
      %v10930 = vmul.f32 1.0, %v10929
      %v10931 = vrcp.pop %v10876
      %v10932 = vmul.f32 1.0, %v10931
      %v10933 = vrcp.pop %v10877
      %v10934 = vmul.f32 1.0, %v10933
      %v10935 = vrcp.pop %v10878
      %v10936 = vmul.f32 1.0, %v10935
      %v10937 = vrcp.pop %v10879
      %v10938 = vmul.f32 1.0, %v10937
      %v10939 = vrcp.pop %v10880
      %v10940 = vmul.f32 1.0, %v10939
      %v10941 = vrcp.pop %v10881
      %v10942 = vmul.f32 1.0, %v10941
      %v10943 = vrcp.pop %v10882
      %v10944 = vmul.f32 1.0, %v10943
      %v10945 = vrcp.pop %v10883
      %v10946 = vmul.f32 1.0, %v10945
      %v10947 = vrcp.pop %v10884
      %v10948 = vmul.f32 1.0, %v10947
      %v10949 = vld [vmem:[%s12] sm:$0xf]
      %v10950 = vld [vmem:[%s12 + $0x4] sm:$0xf]
      %v10951 = vld [vmem:[%s12 + $0x8] sm:$0xf]
      %v10952 = vld [vmem:[%s12 + $0xc] sm:$0xf]
      %10985 = vrot.lane.b32.xlu0 %v10886, 32
      %v10986 = vpop.permute.xlu0 %10985
      %10987 = vrot.lane.b32.xlu0 %v10888, 32
      %v10988 = vpop.permute.xlu0 %10987
      %10989 = vrot.lane.b32.xlu0 %v10890, 32
      %v10990 = vpop.permute.xlu0 %10989
      %10991 = vrot.lane.b32.xlu0 %v10892, 32
      %v10992 = vpop.permute.xlu0 %10991
      %10993 = vrot.lane.b32.xlu0 %v10894, 32
      %v10994 = vpop.permute.xlu0 %10993
      %10995 = vrot.lane.b32.xlu0 %v10896, 32
      %v10996 = vpop.permute.xlu0 %10995
      %10997 = vrot.lane.b32.xlu0 %v10898, 32
      %v10998 = vpop.permute.xlu0 %10997
      %10999 = vrot.lane.b32.xlu0 %v10900, 32
      %v11000 = vpop.permute.xlu0 %10999
      %11001 = vrot.lane.b32.xlu0 %v10902, 32
      %v11002 = vpop.permute.xlu0 %11001
      %11003 = vrot.lane.b32.xlu0 %v10904, 32
      %v11004 = vpop.permute.xlu0 %11003
      %11005 = vrot.lane.b32.xlu0 %v10906, 32
      %v11006 = vpop.permute.xlu0 %11005
      %11007 = vrot.lane.b32.xlu0 %v10908, 32
      %v11008 = vpop.permute.xlu0 %11007
      %11009 = vrot.lane.b32.xlu0 %v10910, 32
      %v11010 = vpop.permute.xlu0 %11009
      %11011 = vrot.lane.b32.xlu0 %v10912, 32
      %v11012 = vpop.permute.xlu0 %11011
      %11013 = vrot.lane.b32.xlu0 %v10914, 32
      %v11014 = vpop.permute.xlu0 %11013
      %11015 = vrot.lane.b32.xlu0 %v10916, 32
      %v11016 = vpop.permute.xlu0 %11015
      %11017 = vrot.lane.b32.xlu0 %v10918, 32
      %v11018 = vpop.permute.xlu0 %11017
      %11019 = vrot.lane.b32.xlu0 %v10920, 32
      %v11020 = vpop.permute.xlu0 %11019
      %11021 = vrot.lane.b32.xlu0 %v10922, 32
      %v11022 = vpop.permute.xlu0 %11021
      %11023 = vrot.lane.b32.xlu0 %v10924, 32
      %v11024 = vpop.permute.xlu0 %11023
      %11025 = vrot.lane.b32.xlu0 %v10926, 32
      %v11026 = vpop.permute.xlu0 %11025
      %11027 = vrot.lane.b32.xlu0 %v10928, 32
      %v11028 = vpop.permute.xlu0 %11027
      %11029 = vrot.lane.b32.xlu0 %v10930, 32
      %v11030 = vpop.permute.xlu0 %11029
      %11031 = vrot.lane.b32.xlu0 %v10932, 32
      %v11032 = vpop.permute.xlu0 %11031
      %11033 = vrot.lane.b32.xlu0 %v10934, 32
      %v11034 = vpop.permute.xlu0 %11033
      %11035 = vrot.lane.b32.xlu0 %v10936, 32
      %v11036 = vpop.permute.xlu0 %11035
      %11037 = vrot.lane.b32.xlu0 %v10938, 32
      %v11038 = vpop.permute.xlu0 %11037
      %11039 = vrot.lane.b32.xlu0 %v10940, 32
      %v11040 = vpop.permute.xlu0 %11039
      %11041 = vrot.lane.b32.xlu0 %v10942, 32
      %v11042 = vpop.permute.xlu0 %11041
      %11043 = vrot.lane.b32.xlu0 %v10944, 32
      %v11044 = vpop.permute.xlu0 %11043
      %11045 = vrot.lane.b32.xlu0 %v10946, 32
      %v11046 = vpop.permute.xlu0 %11045
      %11047 = vrot.lane.b32.xlu0 %v10948, 32
      %v11048 = vpop.permute.xlu0 %11047
      %v11081 = vmul.f32 %v10725, %v10986
      %v11082 = vmul.f32 %v10726, %v10988
      %v11083 = vmul.f32 %v10727, %v10990
      %v11084 = vmul.f32 %v10728, %v10992
      %v11085 = vmul.f32 %v10729, %v10994
      %v11086 = vmul.f32 %v10730, %v10996
      %v11087 = vmul.f32 %v10731, %v10998
      %v11088 = vmul.f32 %v10732, %v11000
      %v11089 = vmul.f32 %v10733, %v11002
      %v11090 = vmul.f32 %v10734, %v11004
      %v11091 = vmul.f32 %v10735, %v11006
      %v11092 = vmul.f32 %v10736, %v11008
      %v11093 = vmul.f32 %v10737, %v11010
      %v11094 = vmul.f32 %v10738, %v11012
      %v11095 = vmul.f32 %v10739, %v11014
      %v11096 = vmul.f32 %v10740, %v11016
      %v11097 = vmul.f32 %v10741, %v11018
      %v11098 = vmul.f32 %v10742, %v11020
      %v11099 = vmul.f32 %v10743, %v11022
      %v11100 = vmul.f32 %v10744, %v11024
      %v11101 = vmul.f32 %v10745, %v11026
      %v11102 = vmul.f32 %v10746, %v11028
      %v11103 = vmul.f32 %v10747, %v11030
      %v11104 = vmul.f32 %v10748, %v11032
      %v11105 = vmul.f32 %v10749, %v11034
      %v11106 = vmul.f32 %v10750, %v11036
      %v11107 = vmul.f32 %v10751, %v11038
      %v11108 = vmul.f32 %v10752, %v11040
      %v11109 = vmul.f32 %v10753, %v11042
      %v11110 = vmul.f32 %v10754, %v11044
      %v11111 = vmul.f32 %v10755, %v11046
      %v11112 = vmul.f32 %v10756, %v11048
      %v11113 = vpack.c.bf16 %v11082, %v11081
      %v11114 = vpack.c.bf16 %v11084, %v11083
      %v11115 = vpack.c.bf16 %v11086, %v11085
      %v11116 = vpack.c.bf16 %v11088, %v11087
      %v11117 = vpack.c.bf16 %v11090, %v11089
      %v11118 = vpack.c.bf16 %v11092, %v11091
      %v11119 = vpack.c.bf16 %v11094, %v11093
      %v11120 = vpack.c.bf16 %v11096, %v11095
      %v11121 = vpack.c.bf16 %v11098, %v11097
      %v11122 = vpack.c.bf16 %v11100, %v11099
      %v11123 = vpack.c.bf16 %v11102, %v11101
      %v11124 = vpack.c.bf16 %v11104, %v11103
      %v11125 = vpack.c.bf16 %v11106, %v11105
      %v11126 = vpack.c.bf16 %v11108, %v11107
      %v11127 = vpack.c.bf16 %v11110, %v11109
      %v11128 = vpack.c.bf16 %v11112, %v11111
      %v11129 = vld [vmem:[%s13] sm:$0xf]
      %v11130 = vld [vmem:[%s13 + $0x4] sm:$0xf]
      %11147 = vrot.lane.b32.xlu0 %v11113, 96
      %v11148 = vpop.permute.xlu0 %11147
      %11149 = vrot.lane.b32.xlu0 %v11114, 96
      %v11150 = vpop.permute.xlu0 %11149
      %11151 = vrot.lane.b32.xlu0 %v11115, 96
      %v11152 = vpop.permute.xlu0 %11151
      %11153 = vrot.lane.b32.xlu0 %v11116, 96
      %v11154 = vpop.permute.xlu0 %11153
      %11155 = vrot.lane.b32.xlu0 %v11117, 96
      %v11156 = vpop.permute.xlu0 %11155
      %11157 = vrot.lane.b32.xlu0 %v11118, 96
      %v11158 = vpop.permute.xlu0 %11157
      %11159 = vrot.lane.b32.xlu0 %v11119, 96
      %v11160 = vpop.permute.xlu0 %11159
      %11161 = vrot.lane.b32.xlu0 %v11120, 96
      %v11162 = vpop.permute.xlu0 %11161
      %11163 = vrot.lane.b32.xlu0 %v11121, 96
      %v11164 = vpop.permute.xlu0 %11163
      %11165 = vrot.lane.b32.xlu0 %v11122, 96
      %v11166 = vpop.permute.xlu0 %11165
      %11167 = vrot.lane.b32.xlu0 %v11123, 96
      %v11168 = vpop.permute.xlu0 %11167
      %11169 = vrot.lane.b32.xlu0 %v11124, 96
      %v11170 = vpop.permute.xlu0 %11169
      %11171 = vrot.lane.b32.xlu0 %v11125, 96
      %v11172 = vpop.permute.xlu0 %11171
      %11173 = vrot.lane.b32.xlu0 %v11126, 96
      %v11174 = vpop.permute.xlu0 %11173
      %11175 = vrot.lane.b32.xlu0 %v11127, 96
      %v11176 = vpop.permute.xlu0 %11175
      %11177 = vrot.lane.b32.xlu0 %v11128, 96
      %v11178 = vpop.permute.xlu0 %11177
      %v11181 = vunpack.c.l.b16 %v11129
      %v11182 = vunpack.c.l.b16 %v11130
      %v11183 = vpack.c.b16 %v11182, %v11181
      %v11186 = vsel %vm9794, %v11148, 0
      %v11189 = vsel %vm9794, %v11150, 0
      %v11192 = vsel %vm9794, %v11152, 0
      %v11195 = vsel %vm9794, %v11154, 0
      %v11198 = vsel %vm9794, %v11156, 0
      %v11201 = vsel %vm9794, %v11158, 0
      %v11204 = vsel %vm9794, %v11160, 0
      %v11207 = vsel %vm9794, %v11162, 0
      %v11210 = vsel %vm9794, %v11164, 0
      %v11213 = vsel %vm9794, %v11166, 0
      %v11216 = vsel %vm9794, %v11168, 0
      %v11219 = vsel %vm9794, %v11170, 0
      %v11222 = vsel %vm9794, %v11172, 0
      %v11225 = vsel %vm9794, %v11174, 0
      %v11228 = vsel %vm9794, %v11176, 0
      %v11231 = vsel %vm9794, %v11178, 0
      %11233 = vmatprep.subr.bf16.mxu0 0
      %11234 = vmatpush1.bf16.msra.mxu0 0
      %11235 = vmatprep.subr.bf16.mxu0 0
      %11236 = vmatpush1.bf16.msra.mxu0 0
      %11237 = vmatprep.subr.bf16.mxu0 0
      %11238 = vmatpush1.bf16.msra.mxu0 0
      %11239 = vmatprep.subr.bf16.mxu0 0
      %11240 = vmatpush1.bf16.msra.mxu0 0
      %11241 = vmatprep.subr.bf16.mxu0 0
      %11242 = vmatpush1.bf16.msra.mxu0 0
      %11243 = vmatprep.subr.bf16.mxu0 0
      %11244 = vmatpush1.bf16.msra.mxu0 0
      %11245 = vmatprep.subr.bf16.mxu0 0
      %11246 = vmatpush1.bf16.msra.mxu0 0
      %11247 = vmatprep.subr.bf16.mxu0 0
      %11248 = vmatpush1.bf16.msra.mxu0 %v11183
      %11249 = vmatprep.subr.bf16.mxu0 0
      %11250 = vmatpush2.bf16.msra.mxu0 0
      %11251 = vmatprep.subr.bf16.mxu0 0
      %11252 = vmatpush2.bf16.msra.mxu0 0
      %11253 = vmatprep.subr.bf16.mxu0 0
      %11254 = vmatpush2.bf16.msra.mxu0 0
      %11255 = vmatprep.subr.bf16.mxu0 0
      %11256 = vmatpush2.bf16.msra.mxu0 0
      %11257 = vmatprep.subr.bf16.mxu0 0
      %11258 = vmatpush2.bf16.msra.mxu0 0
      %11259 = vmatprep.subr.bf16.mxu0 0
      %11260 = vmatpush2.bf16.msra.mxu0 0
      %11261 = vmatprep.subr.bf16.mxu0 0
      %11262 = vmatpush2.bf16.msra.mxu0 0
      %11263 = vmatprep.subr.bf16.mxu0 0
      %11264 = vmatpush2.bf16.msra.mxu0 0
      %11265 = vmatprep.mubr.bf16.mxu0 0
      %11266 = vmatmul.mubr.bf16.gmra.mxu0 %v11186
      %v11267 = vpop.f32.mrf.mxu0
      %v11268 = vadd.f32 0.0, %v11267
      %v11269 = vpop.f32.mrf.mxu0
      %v11270 = vpop.f32.mrf.mxu0
      %v11271 = vadd.f32 0.0, %v11270
      %v11272 = vpop.f32.mrf.mxu0
      %11273 = vmatprep.mubr.bf16.mxu0 0
      %11274 = vmatmul.mubr.bf16.gmra.mxu0 %v11189
      %v11275 = vpop.f32.mrf.mxu0
      %v11276 = vadd.f32 0.0, %v11275
      %v11277 = vpop.f32.mrf.mxu0
      %v11278 = vpop.f32.mrf.mxu0
      %v11279 = vadd.f32 0.0, %v11278
      %v11280 = vpop.f32.mrf.mxu0
      %11281 = vmatprep.mubr.bf16.mxu0 0
      %11282 = vmatmul.mubr.bf16.gmra.mxu0 %v11192
      %v11283 = vpop.f32.mrf.mxu0
      %v11284 = vadd.f32 0.0, %v11283
      %v11285 = vpop.f32.mrf.mxu0
      %v11286 = vpop.f32.mrf.mxu0
      %v11287 = vadd.f32 0.0, %v11286
      %v11288 = vpop.f32.mrf.mxu0
      %11289 = vmatprep.mubr.bf16.mxu0 0
      %11290 = vmatmul.mubr.bf16.gmra.mxu0 %v11195
      %v11291 = vpop.f32.mrf.mxu0
      %v11292 = vadd.f32 0.0, %v11291
      %v11293 = vpop.f32.mrf.mxu0
      %v11294 = vpop.f32.mrf.mxu0
      %v11295 = vadd.f32 0.0, %v11294
      %v11296 = vpop.f32.mrf.mxu0
      %11297 = vmatprep.mubr.bf16.mxu0 0
      %11298 = vmatmul.mubr.bf16.gmra.mxu0 %v11198
      %v11299 = vpop.f32.mrf.mxu0
      %v11300 = vadd.f32 0.0, %v11299
      %v11301 = vpop.f32.mrf.mxu0
      %v11302 = vpop.f32.mrf.mxu0
      %v11303 = vadd.f32 0.0, %v11302
      %v11304 = vpop.f32.mrf.mxu0
      %11305 = vmatprep.mubr.bf16.mxu0 0
      %11306 = vmatmul.mubr.bf16.gmra.mxu0 %v11201
      %v11307 = vpop.f32.mrf.mxu0
      %v11308 = vadd.f32 0.0, %v11307
      %v11309 = vpop.f32.mrf.mxu0
      %v11310 = vpop.f32.mrf.mxu0
      %v11311 = vadd.f32 0.0, %v11310
      %v11312 = vpop.f32.mrf.mxu0
      %11313 = vmatprep.mubr.bf16.mxu0 0
      %11314 = vmatmul.mubr.bf16.gmra.mxu0 %v11204
      %v11315 = vpop.f32.mrf.mxu0
      %v11316 = vadd.f32 0.0, %v11315
      %v11317 = vpop.f32.mrf.mxu0
      %v11318 = vpop.f32.mrf.mxu0
      %v11319 = vadd.f32 0.0, %v11318
      %v11320 = vpop.f32.mrf.mxu0
      %11321 = vmatprep.mubr.bf16.mxu0 0
      %11322 = vmatmul.mubr.bf16.gmra.mxu0 %v11207
      %v11323 = vpop.f32.mrf.mxu0
      %v11324 = vadd.f32 0.0, %v11323
      %v11325 = vpop.f32.mrf.mxu0
      %v11326 = vpop.f32.mrf.mxu0
      %v11327 = vadd.f32 0.0, %v11326
      %v11328 = vpop.f32.mrf.mxu0
      %11329 = vmatprep.mubr.bf16.mxu0 0
      %11330 = vmatmul.mubr.bf16.gmra.mxu0 %v11210
      %v11331 = vpop.f32.mrf.mxu0
      %v11332 = vadd.f32 0.0, %v11331
      %v11333 = vpop.f32.mrf.mxu0
      %v11334 = vpop.f32.mrf.mxu0
      %v11335 = vadd.f32 0.0, %v11334
      %v11336 = vpop.f32.mrf.mxu0
      %11337 = vmatprep.mubr.bf16.mxu0 0
      %11338 = vmatmul.mubr.bf16.gmra.mxu0 %v11213
      %v11339 = vpop.f32.mrf.mxu0
      %v11340 = vadd.f32 0.0, %v11339
      %v11341 = vpop.f32.mrf.mxu0
      %v11342 = vpop.f32.mrf.mxu0
      %v11343 = vadd.f32 0.0, %v11342
      %v11344 = vpop.f32.mrf.mxu0
      %11345 = vmatprep.mubr.bf16.mxu0 0
      %11346 = vmatmul.mubr.bf16.gmra.mxu0 %v11216
      %v11347 = vpop.f32.mrf.mxu0
      %v11348 = vadd.f32 0.0, %v11347
      %v11349 = vpop.f32.mrf.mxu0
      %v11350 = vpop.f32.mrf.mxu0
      %v11351 = vadd.f32 0.0, %v11350
      %v11352 = vpop.f32.mrf.mxu0
      %11353 = vmatprep.mubr.bf16.mxu0 0
      %11354 = vmatmul.mubr.bf16.gmra.mxu0 %v11219
      %v11355 = vpop.f32.mrf.mxu0
      %v11356 = vadd.f32 0.0, %v11355
      %v11357 = vpop.f32.mrf.mxu0
      %v11358 = vpop.f32.mrf.mxu0
      %v11359 = vadd.f32 0.0, %v11358
      %v11360 = vpop.f32.mrf.mxu0
      %11361 = vmatprep.mubr.bf16.mxu0 0
      %11362 = vmatmul.mubr.bf16.gmra.mxu0 %v11222
      %v11363 = vpop.f32.mrf.mxu0
      %v11364 = vadd.f32 0.0, %v11363
      %v11365 = vpop.f32.mrf.mxu0
      %v11366 = vpop.f32.mrf.mxu0
      %v11367 = vadd.f32 0.0, %v11366
      %v11368 = vpop.f32.mrf.mxu0
      %11369 = vmatprep.mubr.bf16.mxu0 0
      %11370 = vmatmul.mubr.bf16.gmra.mxu0 %v11225
      %v11371 = vpop.f32.mrf.mxu0
      %v11372 = vadd.f32 0.0, %v11371
      %v11373 = vpop.f32.mrf.mxu0
      %v11374 = vpop.f32.mrf.mxu0
      %v11375 = vadd.f32 0.0, %v11374
      %v11376 = vpop.f32.mrf.mxu0
      %11377 = vmatprep.mubr.bf16.mxu0 0
      %11378 = vmatmul.mubr.bf16.gmra.mxu0 %v11228
      %v11379 = vpop.f32.mrf.mxu0
      %v11380 = vadd.f32 0.0, %v11379
      %v11381 = vpop.f32.mrf.mxu0
      %v11382 = vpop.f32.mrf.mxu0
      %v11383 = vadd.f32 0.0, %v11382
      %v11384 = vpop.f32.mrf.mxu0
      %11385 = vmatprep.mubr.bf16.mxu0 0
      %11386 = vmatmul.mubr.bf16.gmra.mxu0 %v11231
      %v11387 = vpop.f32.mrf.mxu0
      %v11388 = vadd.f32 0.0, %v11387
      %v11389 = vpop.f32.mrf.mxu0
      %v11390 = vpop.f32.mrf.mxu0
      %v11391 = vadd.f32 0.0, %v11390
      %v11392 = vpop.f32.mrf.mxu0
      %11393 = vdwg.mxu0
      %v11398 = vunpack.c.l.b16 %v10949
      %v11399 = vunpack.c.l.b16 %v10950
      %v11400 = vunpack.c.l.b16 %v10951
      %v11401 = vunpack.c.l.b16 %v10952
      %v11402 = vpack.c.b16 %v11399, %v11398
      %v11403 = vpack.c.b16 %v11401, %v11400
      %11406 = vmatprep.subr.bf16.mxu0 0
      %11407 = vmatpush1.bf16.msra.mxu0 0
      %11408 = vmatprep.subr.bf16.mxu0 0
      %11409 = vmatpush1.bf16.msra.mxu0 0
      %11410 = vmatprep.subr.bf16.mxu0 0
      %11411 = vmatpush1.bf16.msra.mxu0 0
      %11412 = vmatprep.subr.bf16.mxu0 0
      %11413 = vmatpush1.bf16.msra.mxu0 0
      %11414 = vmatprep.subr.bf16.mxu0 0
      %11415 = vmatpush1.bf16.msra.mxu0 0
      %11416 = vmatprep.subr.bf16.mxu0 0
      %11417 = vmatpush1.bf16.msra.mxu0 0
      %11418 = vmatprep.subr.bf16.mxu0 0
      %11419 = vmatpush1.bf16.msra.mxu0 %v11403
      %11420 = vmatprep.subr.bf16.mxu0 0
      %11421 = vmatpush1.bf16.msra.mxu0 %v11402
      %11422 = vmatprep.subr.bf16.mxu0 0
      %11423 = vmatpush2.bf16.msra.mxu0 0
      %11424 = vmatprep.subr.bf16.mxu0 0
      %11425 = vmatpush2.bf16.msra.mxu0 0
      %11426 = vmatprep.subr.bf16.mxu0 0
      %11427 = vmatpush2.bf16.msra.mxu0 0
      %11428 = vmatprep.subr.bf16.mxu0 0
      %11429 = vmatpush2.bf16.msra.mxu0 0
      %11430 = vmatprep.subr.bf16.mxu0 0
      %11431 = vmatpush2.bf16.msra.mxu0 0
      %11432 = vmatprep.subr.bf16.mxu0 0
      %11433 = vmatpush2.bf16.msra.mxu0 0
      %11434 = vmatprep.subr.bf16.mxu0 0
      %11435 = vmatpush2.bf16.msra.mxu0 0
      %11436 = vmatprep.subr.bf16.mxu0 0
      %11437 = vmatpush2.bf16.msra.mxu0 0
      %11438 = vmatprep.mubr.bf16.mxu0 0
      %11439 = vmatmul.mubr.bf16.gmra.mxu0 %v786
      %v11440 = vpop.f32.mrf.mxu0
      %v11441 = vadd.f32 %v11268, %v11440
      %v11442 = vpop.f32.mrf.mxu0
      %v11443 = vpop.f32.mrf.mxu0
      %v11444 = vadd.f32 %v11271, %v11443
      %v11445 = vpop.f32.mrf.mxu0
      %11446 = vmatprep.mubr.bf16.mxu0 0
      %11447 = vmatmul.mubr.bf16.gmra.mxu0 %v789
      %v11448 = vpop.f32.mrf.mxu0
      %v11449 = vadd.f32 %v11276, %v11448
      %v11450 = vpop.f32.mrf.mxu0
      %v11451 = vpop.f32.mrf.mxu0
      %v11452 = vadd.f32 %v11279, %v11451
      %v11453 = vpop.f32.mrf.mxu0
      %11454 = vmatprep.mubr.bf16.mxu0 0
      %11455 = vmatmul.mubr.bf16.gmra.mxu0 %v792
      %v11456 = vpop.f32.mrf.mxu0
      %v11457 = vadd.f32 %v11284, %v11456
      %v11458 = vpop.f32.mrf.mxu0
      %v11459 = vpop.f32.mrf.mxu0
      %v11460 = vadd.f32 %v11287, %v11459
      %v11461 = vpop.f32.mrf.mxu0
      %11462 = vmatprep.mubr.bf16.mxu0 0
      %11463 = vmatmul.mubr.bf16.gmra.mxu0 %v795
      %v11464 = vpop.f32.mrf.mxu0
      %v11465 = vadd.f32 %v11292, %v11464
      %v11466 = vpop.f32.mrf.mxu0
      %v11467 = vpop.f32.mrf.mxu0
      %v11468 = vadd.f32 %v11295, %v11467
      %v11469 = vpop.f32.mrf.mxu0
      %11470 = vmatprep.mubr.bf16.mxu0 0
      %11471 = vmatmul.mubr.bf16.gmra.mxu0 %v798
      %v11472 = vpop.f32.mrf.mxu0
      %v11473 = vadd.f32 %v11300, %v11472
      %v11474 = vpop.f32.mrf.mxu0
      %v11475 = vpop.f32.mrf.mxu0
      %v11476 = vadd.f32 %v11303, %v11475
      %v11477 = vpop.f32.mrf.mxu0
      %11478 = vmatprep.mubr.bf16.mxu0 0
      %11479 = vmatmul.mubr.bf16.gmra.mxu0 %v801
      %v11480 = vpop.f32.mrf.mxu0
      %v11481 = vadd.f32 %v11308, %v11480
      %v11482 = vpop.f32.mrf.mxu0
      %v11483 = vpop.f32.mrf.mxu0
      %v11484 = vadd.f32 %v11311, %v11483
      %v11485 = vpop.f32.mrf.mxu0
      %11486 = vmatprep.mubr.bf16.mxu0 0
      %11487 = vmatmul.mubr.bf16.gmra.mxu0 %v804
      %v11488 = vpop.f32.mrf.mxu0
      %v11489 = vadd.f32 %v11316, %v11488
      %v11490 = vpop.f32.mrf.mxu0
      %v11491 = vpop.f32.mrf.mxu0
      %v11492 = vadd.f32 %v11319, %v11491
      %v11493 = vpop.f32.mrf.mxu0
      %11494 = vmatprep.mubr.bf16.mxu0 0
      %11495 = vmatmul.mubr.bf16.gmra.mxu0 %v807
      %v11496 = vpop.f32.mrf.mxu0
      %v11497 = vadd.f32 %v11324, %v11496
      %v11498 = vpop.f32.mrf.mxu0
      %v11499 = vpop.f32.mrf.mxu0
      %v11500 = vadd.f32 %v11327, %v11499
      %v11501 = vpop.f32.mrf.mxu0
      %11502 = vmatprep.mubr.bf16.mxu0 0
      %11503 = vmatmul.mubr.bf16.gmra.mxu0 %v810
      %v11504 = vpop.f32.mrf.mxu0
      %v11505 = vadd.f32 %v11332, %v11504
      %v11506 = vpop.f32.mrf.mxu0
      %v11507 = vpop.f32.mrf.mxu0
      %v11508 = vadd.f32 %v11335, %v11507
      %v11509 = vpop.f32.mrf.mxu0
      %11510 = vmatprep.mubr.bf16.mxu0 0
      %11511 = vmatmul.mubr.bf16.gmra.mxu0 %v813
      %v11512 = vpop.f32.mrf.mxu0
      %v11513 = vadd.f32 %v11340, %v11512
      %v11514 = vpop.f32.mrf.mxu0
      %v11515 = vpop.f32.mrf.mxu0
      %v11516 = vadd.f32 %v11343, %v11515
      %v11517 = vpop.f32.mrf.mxu0
      %11518 = vmatprep.mubr.bf16.mxu0 0
      %11519 = vmatmul.mubr.bf16.gmra.mxu0 %v816
      %v11520 = vpop.f32.mrf.mxu0
      %v11521 = vadd.f32 %v11348, %v11520
      %v11522 = vpop.f32.mrf.mxu0
      %v11523 = vpop.f32.mrf.mxu0
      %v11524 = vadd.f32 %v11351, %v11523
      %v11525 = vpop.f32.mrf.mxu0
      %11526 = vmatprep.mubr.bf16.mxu0 0
      %11527 = vmatmul.mubr.bf16.gmra.mxu0 %v819
      %v11528 = vpop.f32.mrf.mxu0
      %v11529 = vadd.f32 %v11356, %v11528
      %v11530 = vpop.f32.mrf.mxu0
      %v11531 = vpop.f32.mrf.mxu0
      %v11532 = vadd.f32 %v11359, %v11531
      %v11533 = vpop.f32.mrf.mxu0
      %11534 = vmatprep.mubr.bf16.mxu0 0
      %11535 = vmatmul.mubr.bf16.gmra.mxu0 %v822
      %v11536 = vpop.f32.mrf.mxu0
      %v11537 = vadd.f32 %v11364, %v11536
      %v11538 = vpop.f32.mrf.mxu0
      %v11539 = vpop.f32.mrf.mxu0
      %v11540 = vadd.f32 %v11367, %v11539
      %v11541 = vpop.f32.mrf.mxu0
      %11542 = vmatprep.mubr.bf16.mxu0 0
      %11543 = vmatmul.mubr.bf16.gmra.mxu0 %v825
      %v11544 = vpop.f32.mrf.mxu0
      %v11545 = vadd.f32 %v11372, %v11544
      %v11546 = vpop.f32.mrf.mxu0
      %v11547 = vpop.f32.mrf.mxu0
      %v11548 = vadd.f32 %v11375, %v11547
      %v11549 = vpop.f32.mrf.mxu0
      %11550 = vmatprep.mubr.bf16.mxu0 0
      %11551 = vmatmul.mubr.bf16.gmra.mxu0 %v828
      %v11552 = vpop.f32.mrf.mxu0
      %v11553 = vadd.f32 %v11380, %v11552
      %v11554 = vpop.f32.mrf.mxu0
      %v11555 = vpop.f32.mrf.mxu0
      %v11556 = vadd.f32 %v11383, %v11555
      %v11557 = vpop.f32.mrf.mxu0
      %11558 = vmatprep.mubr.bf16.mxu0 0
      %11559 = vmatmul.mubr.bf16.gmra.mxu0 %v831
      %v11560 = vpop.f32.mrf.mxu0
      %v11561 = vadd.f32 %v11388, %v11560
      %v11562 = vpop.f32.mrf.mxu0
      %v11563 = vpop.f32.mrf.mxu0
      %v11564 = vadd.f32 %v11391, %v11563
      %v11565 = vpop.f32.mrf.mxu0
      %11566 = vdwg.mxu0
      %v11567 = vld [vmem:[%s22] sm:$0x1]
      %v11569 = vlaneseq
      %v11570 = vshrl.u32 %v11569, 7
      %v11571 = vsub.s32 0, %v11570
      %v11572 = vrot.slane %v11567, %v11571
      %v11574 = vadd.f32 %v11441, %v11572
      %v11575 = vadd.f32 %v11444, %v11572
      %v11576 = vadd.f32 %v11449, %v11572
      %v11577 = vadd.f32 %v11452, %v11572
      %v11578 = vadd.f32 %v11457, %v11572
      %v11579 = vadd.f32 %v11460, %v11572
      %v11580 = vadd.f32 %v11465, %v11572
      %v11581 = vadd.f32 %v11468, %v11572
      %v11582 = vadd.f32 %v11473, %v11572
      %v11583 = vadd.f32 %v11476, %v11572
      %v11584 = vadd.f32 %v11481, %v11572
      %v11585 = vadd.f32 %v11484, %v11572
      %v11586 = vadd.f32 %v11489, %v11572
      %v11587 = vadd.f32 %v11492, %v11572
      %v11588 = vadd.f32 %v11497, %v11572
      %v11589 = vadd.f32 %v11500, %v11572
      %v11590 = vadd.f32 %v11505, %v11572
      %v11591 = vadd.f32 %v11508, %v11572
      %v11592 = vadd.f32 %v11513, %v11572
      %v11593 = vadd.f32 %v11516, %v11572
      %v11594 = vadd.f32 %v11521, %v11572
      %v11595 = vadd.f32 %v11524, %v11572
      %v11596 = vadd.f32 %v11529, %v11572
      %v11597 = vadd.f32 %v11532, %v11572
      %v11598 = vadd.f32 %v11537, %v11572
      %v11599 = vadd.f32 %v11540, %v11572
      %v11600 = vadd.f32 %v11545, %v11572
      %v11601 = vadd.f32 %v11548, %v11572
      %v11602 = vadd.f32 %v11553, %v11572
      %v11603 = vadd.f32 %v11556, %v11572
      %v11604 = vadd.f32 %v11561, %v11572
      %v11605 = vadd.f32 %v11564, %v11572
      %v11606 = vtanh.pop %v11574
      %v11607 = vtanh.pop %v11575
      %v11608 = vtanh.pop %v11576
      %v11609 = vtanh.pop %v11577
      %v11610 = vtanh.pop %v11578
      %v11611 = vtanh.pop %v11579
      %v11612 = vtanh.pop %v11580
      %v11613 = vtanh.pop %v11581
      %v11614 = vtanh.pop %v11582
      %v11615 = vtanh.pop %v11583
      %v11616 = vtanh.pop %v11584
      %v11617 = vtanh.pop %v11585
      %v11618 = vtanh.pop %v11586
      %v11619 = vtanh.pop %v11587
      %v11620 = vtanh.pop %v11588
      %v11621 = vtanh.pop %v11589
      %v11622 = vtanh.pop %v11590
      %v11623 = vtanh.pop %v11591
      %v11624 = vtanh.pop %v11592
      %v11625 = vtanh.pop %v11593
      %v11626 = vtanh.pop %v11594
      %v11627 = vtanh.pop %v11595
      %v11628 = vtanh.pop %v11596
      %v11629 = vtanh.pop %v11597
      %v11630 = vtanh.pop %v11598
      %v11631 = vtanh.pop %v11599
      %v11632 = vtanh.pop %v11600
      %v11633 = vtanh.pop %v11601
      %v11634 = vtanh.pop %v11602
      %v11635 = vtanh.pop %v11603
      %v11636 = vtanh.pop %v11604
      %v11637 = vtanh.pop %v11605
      %v11638 = vsub.f32 1.0, %v10886
      %v11639 = vsub.f32 1.0, %v10888
      %v11640 = vsub.f32 1.0, %v10890
      %v11641 = vsub.f32 1.0, %v10892
      %v11642 = vsub.f32 1.0, %v10894
      %v11643 = vsub.f32 1.0, %v10896
      %v11644 = vsub.f32 1.0, %v10898
      %v11645 = vsub.f32 1.0, %v10900
      %v11646 = vsub.f32 1.0, %v10902
      %v11647 = vsub.f32 1.0, %v10904
      %v11648 = vsub.f32 1.0, %v10906
      %v11649 = vsub.f32 1.0, %v10908
      %v11650 = vsub.f32 1.0, %v10910
      %v11651 = vsub.f32 1.0, %v10912
      %v11652 = vsub.f32 1.0, %v10914
      %v11653 = vsub.f32 1.0, %v10916
      %v11654 = vsub.f32 1.0, %v10918
      %v11655 = vsub.f32 1.0, %v10920
      %v11656 = vsub.f32 1.0, %v10922
      %v11657 = vsub.f32 1.0, %v10924
      %v11658 = vsub.f32 1.0, %v10926
      %v11659 = vsub.f32 1.0, %v10928
      %v11660 = vsub.f32 1.0, %v10930
      %v11661 = vsub.f32 1.0, %v10932
      %v11662 = vsub.f32 1.0, %v10934
      %v11663 = vsub.f32 1.0, %v10936
      %v11664 = vsub.f32 1.0, %v10938
      %v11665 = vsub.f32 1.0, %v10940
      %v11666 = vsub.f32 1.0, %v10942
      %v11667 = vsub.f32 1.0, %v10944
      %v11668 = vsub.f32 1.0, %v10946
      %v11669 = vsub.f32 1.0, %v10948
      %11702 = vrot.lane.b32.xlu0 %v10276, 16
      %v11703 = vpop.permute.xlu0 %11702
      %11704 = vrot.lane.b32.xlu0 %v10277, 16
      %v11705 = vpop.permute.xlu0 %11704
      %11706 = vrot.lane.b32.xlu0 %v10278, 16
      %v11707 = vpop.permute.xlu0 %11706
      %11708 = vrot.lane.b32.xlu0 %v10279, 16
      %v11709 = vpop.permute.xlu0 %11708
      %11710 = vrot.lane.b32.xlu0 %v10280, 16
      %v11711 = vpop.permute.xlu0 %11710
      %11712 = vrot.lane.b32.xlu0 %v10281, 16
      %v11713 = vpop.permute.xlu0 %11712
      %11714 = vrot.lane.b32.xlu0 %v10282, 16
      %v11715 = vpop.permute.xlu0 %11714
      %11716 = vrot.lane.b32.xlu0 %v10283, 16
      %v11717 = vpop.permute.xlu0 %11716
      %11718 = vrot.lane.b32.xlu0 %v10284, 16
      %v11719 = vpop.permute.xlu0 %11718
      %11720 = vrot.lane.b32.xlu0 %v10285, 16
      %v11721 = vpop.permute.xlu0 %11720
      %11722 = vrot.lane.b32.xlu0 %v10286, 16
      %v11723 = vpop.permute.xlu0 %11722
      %11724 = vrot.lane.b32.xlu0 %v10287, 16
      %v11725 = vpop.permute.xlu0 %11724
      %11726 = vrot.lane.b32.xlu0 %v10288, 16
      %v11727 = vpop.permute.xlu0 %11726
      %11728 = vrot.lane.b32.xlu0 %v10289, 16
      %v11729 = vpop.permute.xlu0 %11728
      %11730 = vrot.lane.b32.xlu0 %v10290, 16
      %v11731 = vpop.permute.xlu0 %11730
      %11732 = vrot.lane.b32.xlu0 %v10291, 16
      %v11733 = vpop.permute.xlu0 %11732
      %11734 = vrot.lane.b32.xlu0 %v10292, 16
      %v11735 = vpop.permute.xlu0 %11734
      %11736 = vrot.lane.b32.xlu0 %v10293, 16
      %v11737 = vpop.permute.xlu0 %11736
      %11738 = vrot.lane.b32.xlu0 %v10294, 16
      %v11739 = vpop.permute.xlu0 %11738
      %11740 = vrot.lane.b32.xlu0 %v10295, 16
      %v11741 = vpop.permute.xlu0 %11740
      %11742 = vrot.lane.b32.xlu0 %v10296, 16
      %v11743 = vpop.permute.xlu0 %11742
      %11744 = vrot.lane.b32.xlu0 %v10297, 16
      %v11745 = vpop.permute.xlu0 %11744
      %11746 = vrot.lane.b32.xlu0 %v10298, 16
      %v11747 = vpop.permute.xlu0 %11746
      %11748 = vrot.lane.b32.xlu0 %v10299, 16
      %v11749 = vpop.permute.xlu0 %11748
      %11750 = vrot.lane.b32.xlu0 %v10300, 16
      %v11751 = vpop.permute.xlu0 %11750
      %11752 = vrot.lane.b32.xlu0 %v10301, 16
      %v11753 = vpop.permute.xlu0 %11752
      %11754 = vrot.lane.b32.xlu0 %v10302, 16
      %v11755 = vpop.permute.xlu0 %11754
      %11756 = vrot.lane.b32.xlu0 %v10303, 16
      %v11757 = vpop.permute.xlu0 %11756
      %11758 = vrot.lane.b32.xlu0 %v10304, 16
      %v11759 = vpop.permute.xlu0 %11758
      %11760 = vrot.lane.b32.xlu0 %v10305, 16
      %v11761 = vpop.permute.xlu0 %11760
      %11762 = vrot.lane.b32.xlu0 %v10306, 16
      %v11763 = vpop.permute.xlu0 %11762
      %11764 = vrot.lane.b32.xlu0 %v10307, 16
      %v11765 = vpop.permute.xlu0 %11764
      %v11798 = vmul.f32 %v11638, %v11703
      %v11799 = vmul.f32 %v11639, %v11705
      %v11800 = vmul.f32 %v11640, %v11707
      %v11801 = vmul.f32 %v11641, %v11709
      %v11802 = vmul.f32 %v11642, %v11711
      %v11803 = vmul.f32 %v11643, %v11713
      %v11804 = vmul.f32 %v11644, %v11715
      %v11805 = vmul.f32 %v11645, %v11717
      %v11806 = vmul.f32 %v11646, %v11719
      %v11807 = vmul.f32 %v11647, %v11721
      %v11808 = vmul.f32 %v11648, %v11723
      %v11809 = vmul.f32 %v11649, %v11725
      %v11810 = vmul.f32 %v11650, %v11727
      %v11811 = vmul.f32 %v11651, %v11729
      %v11812 = vmul.f32 %v11652, %v11731
      %v11813 = vmul.f32 %v11653, %v11733
      %v11814 = vmul.f32 %v11654, %v11735
      %v11815 = vmul.f32 %v11655, %v11737
      %v11816 = vmul.f32 %v11656, %v11739
      %v11817 = vmul.f32 %v11657, %v11741
      %v11818 = vmul.f32 %v11658, %v11743
      %v11819 = vmul.f32 %v11659, %v11745
      %v11820 = vmul.f32 %v11660, %v11747
      %v11821 = vmul.f32 %v11661, %v11749
      %v11822 = vmul.f32 %v11662, %v11751
      %v11823 = vmul.f32 %v11663, %v11753
      %v11824 = vmul.f32 %v11664, %v11755
      %v11825 = vmul.f32 %v11665, %v11757
      %v11826 = vmul.f32 %v11666, %v11759
      %v11827 = vmul.f32 %v11667, %v11761
      %v11828 = vmul.f32 %v11668, %v11763
      %v11829 = vmul.f32 %v11669, %v11765
      %11862 = vrot.lane.b32.xlu0 %v11606, 16
      %v11863 = vpop.permute.xlu0 %11862
      %11864 = vrot.lane.b32.xlu0 %v11607, 16
      %v11865 = vpop.permute.xlu0 %11864
      %11866 = vrot.lane.b32.xlu0 %v11608, 16
      %v11867 = vpop.permute.xlu0 %11866
      %11868 = vrot.lane.b32.xlu0 %v11609, 16
      %v11869 = vpop.permute.xlu0 %11868
      %11870 = vrot.lane.b32.xlu0 %v11610, 16
      %v11871 = vpop.permute.xlu0 %11870
      %11872 = vrot.lane.b32.xlu0 %v11611, 16
      %v11873 = vpop.permute.xlu0 %11872
      %11874 = vrot.lane.b32.xlu0 %v11612, 16
      %v11875 = vpop.permute.xlu0 %11874
      %11876 = vrot.lane.b32.xlu0 %v11613, 16
      %v11877 = vpop.permute.xlu0 %11876
      %11878 = vrot.lane.b32.xlu0 %v11614, 16
      %v11879 = vpop.permute.xlu0 %11878
      %11880 = vrot.lane.b32.xlu0 %v11615, 16
      %v11881 = vpop.permute.xlu0 %11880
      %11882 = vrot.lane.b32.xlu0 %v11616, 16
      %v11883 = vpop.permute.xlu0 %11882
      %11884 = vrot.lane.b32.xlu0 %v11617, 16
      %v11885 = vpop.permute.xlu0 %11884
      %11886 = vrot.lane.b32.xlu0 %v11618, 16
      %v11887 = vpop.permute.xlu0 %11886
      %11888 = vrot.lane.b32.xlu0 %v11619, 16
      %v11889 = vpop.permute.xlu0 %11888
      %11890 = vrot.lane.b32.xlu0 %v11620, 16
      %v11891 = vpop.permute.xlu0 %11890
      %11892 = vrot.lane.b32.xlu0 %v11621, 16
      %v11893 = vpop.permute.xlu0 %11892
      %11894 = vrot.lane.b32.xlu0 %v11622, 16
      %v11895 = vpop.permute.xlu0 %11894
      %11896 = vrot.lane.b32.xlu0 %v11623, 16
      %v11897 = vpop.permute.xlu0 %11896
      %11898 = vrot.lane.b32.xlu0 %v11624, 16
      %v11899 = vpop.permute.xlu0 %11898
      %11900 = vrot.lane.b32.xlu0 %v11625, 16
      %v11901 = vpop.permute.xlu0 %11900
      %11902 = vrot.lane.b32.xlu0 %v11626, 16
      %v11903 = vpop.permute.xlu0 %11902
      %11904 = vrot.lane.b32.xlu0 %v11627, 16
      %v11905 = vpop.permute.xlu0 %11904
      %11906 = vrot.lane.b32.xlu0 %v11628, 16
      %v11907 = vpop.permute.xlu0 %11906
      %11908 = vrot.lane.b32.xlu0 %v11629, 16
      %v11909 = vpop.permute.xlu0 %11908
      %11910 = vrot.lane.b32.xlu0 %v11630, 16
      %v11911 = vpop.permute.xlu0 %11910
      %11912 = vrot.lane.b32.xlu0 %v11631, 16
      %v11913 = vpop.permute.xlu0 %11912
      %11914 = vrot.lane.b32.xlu0 %v11632, 16
      %v11915 = vpop.permute.xlu0 %11914
      %11916 = vrot.lane.b32.xlu0 %v11633, 16
      %v11917 = vpop.permute.xlu0 %11916
      %11918 = vrot.lane.b32.xlu0 %v11634, 16
      %v11919 = vpop.permute.xlu0 %11918
      %11920 = vrot.lane.b32.xlu0 %v11635, 16
      %v11921 = vpop.permute.xlu0 %11920
      %11922 = vrot.lane.b32.xlu0 %v11636, 16
      %v11923 = vpop.permute.xlu0 %11922
      %11924 = vrot.lane.b32.xlu0 %v11637, 16
      %v11925 = vpop.permute.xlu0 %11924
      %v11958 = vmul.f32 %v10886, %v11863
      %v11959 = vmul.f32 %v10888, %v11865
      %v11960 = vmul.f32 %v10890, %v11867
      %v11961 = vmul.f32 %v10892, %v11869
      %v11962 = vmul.f32 %v10894, %v11871
      %v11963 = vmul.f32 %v10896, %v11873
      %v11964 = vmul.f32 %v10898, %v11875
      %v11965 = vmul.f32 %v10900, %v11877
      %v11966 = vmul.f32 %v10902, %v11879
      %v11967 = vmul.f32 %v10904, %v11881
      %v11968 = vmul.f32 %v10906, %v11883
      %v11969 = vmul.f32 %v10908, %v11885
      %v11970 = vmul.f32 %v10910, %v11887
      %v11971 = vmul.f32 %v10912, %v11889
      %v11972 = vmul.f32 %v10914, %v11891
      %v11973 = vmul.f32 %v10916, %v11893
      %v11974 = vmul.f32 %v10918, %v11895
      %v11975 = vmul.f32 %v10920, %v11897
      %v11976 = vmul.f32 %v10922, %v11899
      %v11977 = vmul.f32 %v10924, %v11901
      %v11978 = vmul.f32 %v10926, %v11903
      %v11979 = vmul.f32 %v10928, %v11905
      %v11980 = vmul.f32 %v10930, %v11907
      %v11981 = vmul.f32 %v10932, %v11909
      %v11982 = vmul.f32 %v10934, %v11911
      %v11983 = vmul.f32 %v10936, %v11913
      %v11984 = vmul.f32 %v10938, %v11915
      %v11985 = vmul.f32 %v10940, %v11917
      %v11986 = vmul.f32 %v10942, %v11919
      %v11987 = vmul.f32 %v10944, %v11921
      %v11988 = vmul.f32 %v10946, %v11923
      %v11989 = vmul.f32 %v10948, %v11925
      %v11990 = vadd.f32 %v11798, %v11958
      %v11991 = vadd.f32 %v11799, %v11959
      %v11992 = vadd.f32 %v11800, %v11960
      %v11993 = vadd.f32 %v11801, %v11961
      %v11994 = vadd.f32 %v11802, %v11962
      %v11995 = vadd.f32 %v11803, %v11963
      %v11996 = vadd.f32 %v11804, %v11964
      %v11997 = vadd.f32 %v11805, %v11965
      %v11998 = vadd.f32 %v11806, %v11966
      %v11999 = vadd.f32 %v11807, %v11967
      %v12000 = vadd.f32 %v11808, %v11968
      %v12001 = vadd.f32 %v11809, %v11969
      %v12002 = vadd.f32 %v11810, %v11970
      %v12003 = vadd.f32 %v11811, %v11971
      %v12004 = vadd.f32 %v11812, %v11972
      %v12005 = vadd.f32 %v11813, %v11973
      %v12006 = vadd.f32 %v11814, %v11974
      %v12007 = vadd.f32 %v11815, %v11975
      %v12008 = vadd.f32 %v11816, %v11976
      %v12009 = vadd.f32 %v11817, %v11977
      %v12010 = vadd.f32 %v11818, %v11978
      %v12011 = vadd.f32 %v11819, %v11979
      %v12012 = vadd.f32 %v11820, %v11980
      %v12013 = vadd.f32 %v11821, %v11981
      %v12014 = vadd.f32 %v11822, %v11982
      %v12015 = vadd.f32 %v11823, %v11983
      %v12016 = vadd.f32 %v11824, %v11984
      %v12017 = vadd.f32 %v11825, %v11985
      %v12018 = vadd.f32 %v11826, %v11986
      %v12019 = vadd.f32 %v11827, %v11987
      %v12020 = vadd.f32 %v11828, %v11988
      %v12021 = vadd.f32 %v11829, %v11989
      %12054 = vrot.lane.b32.xlu0 %v11990, 112
      %v12055 = vpop.permute.xlu0 %12054
      %12056 = vrot.lane.b32.xlu0 %v11991, 112
      %v12057 = vpop.permute.xlu0 %12056
      %12058 = vrot.lane.b32.xlu0 %v11992, 112
      %v12059 = vpop.permute.xlu0 %12058
      %12060 = vrot.lane.b32.xlu0 %v11993, 112
      %v12061 = vpop.permute.xlu0 %12060
      %12062 = vrot.lane.b32.xlu0 %v11994, 112
      %v12063 = vpop.permute.xlu0 %12062
      %12064 = vrot.lane.b32.xlu0 %v11995, 112
      %v12065 = vpop.permute.xlu0 %12064
      %12066 = vrot.lane.b32.xlu0 %v11996, 112
      %v12067 = vpop.permute.xlu0 %12066
      %12068 = vrot.lane.b32.xlu0 %v11997, 112
      %v12069 = vpop.permute.xlu0 %12068
      %12070 = vrot.lane.b32.xlu0 %v11998, 112
      %v12071 = vpop.permute.xlu0 %12070
      %12072 = vrot.lane.b32.xlu0 %v11999, 112
      %v12073 = vpop.permute.xlu0 %12072
      %12074 = vrot.lane.b32.xlu0 %v12000, 112
      %v12075 = vpop.permute.xlu0 %12074
      %12076 = vrot.lane.b32.xlu0 %v12001, 112
      %v12077 = vpop.permute.xlu0 %12076
      %12078 = vrot.lane.b32.xlu0 %v12002, 112
      %v12079 = vpop.permute.xlu0 %12078
      %12080 = vrot.lane.b32.xlu0 %v12003, 112
      %v12081 = vpop.permute.xlu0 %12080
      %12082 = vrot.lane.b32.xlu0 %v12004, 112
      %v12083 = vpop.permute.xlu0 %12082
      %12084 = vrot.lane.b32.xlu0 %v12005, 112
      %v12085 = vpop.permute.xlu0 %12084
      %12086 = vrot.lane.b32.xlu0 %v12006, 112
      %v12087 = vpop.permute.xlu0 %12086
      %12088 = vrot.lane.b32.xlu0 %v12007, 112
      %v12089 = vpop.permute.xlu0 %12088
      %12090 = vrot.lane.b32.xlu0 %v12008, 112
      %v12091 = vpop.permute.xlu0 %12090
      %12092 = vrot.lane.b32.xlu0 %v12009, 112
      %v12093 = vpop.permute.xlu0 %12092
      %12094 = vrot.lane.b32.xlu0 %v12010, 112
      %v12095 = vpop.permute.xlu0 %12094
      %12096 = vrot.lane.b32.xlu0 %v12011, 112
      %v12097 = vpop.permute.xlu0 %12096
      %12098 = vrot.lane.b32.xlu0 %v12012, 112
      %v12099 = vpop.permute.xlu0 %12098
      %12100 = vrot.lane.b32.xlu0 %v12013, 112
      %v12101 = vpop.permute.xlu0 %12100
      %12102 = vrot.lane.b32.xlu0 %v12014, 112
      %v12103 = vpop.permute.xlu0 %12102
      %12104 = vrot.lane.b32.xlu0 %v12015, 112
      %v12105 = vpop.permute.xlu0 %12104
      %12106 = vrot.lane.b32.xlu0 %v12016, 112
      %v12107 = vpop.permute.xlu0 %12106
      %12108 = vrot.lane.b32.xlu0 %v12017, 112
      %v12109 = vpop.permute.xlu0 %12108
      %12110 = vrot.lane.b32.xlu0 %v12018, 112
      %v12111 = vpop.permute.xlu0 %12110
      %12112 = vrot.lane.b32.xlu0 %v12019, 112
      %v12113 = vpop.permute.xlu0 %12112
      %12114 = vrot.lane.b32.xlu0 %v12020, 112
      %v12115 = vpop.permute.xlu0 %12114
      %12116 = vrot.lane.b32.xlu0 %v12021, 112
      %v12117 = vpop.permute.xlu0 %12116
      %12150 = vst.msk [vmem:[%s712] sm:$0xff] %vm9794, %v12055
      %12151 = vst.msk [vmem:[%s712 + $0x8] sm:$0xff] %vm9794, %v12057
      %12152 = vst.msk [vmem:[%s712 + $0x10] sm:$0xff] %vm9794, %v12059
      %12153 = vst.msk [vmem:[%s712 + $0x18] sm:$0xff] %vm9794, %v12061
      %12154 = vst.msk [vmem:[%s712 + $0x20] sm:$0xff] %vm9794, %v12063
      %12155 = vst.msk [vmem:[%s712 + $0x28] sm:$0xff] %vm9794, %v12065
      %12156 = vst.msk [vmem:[%s712 + $0x30] sm:$0xff] %vm9794, %v12067
      %12157 = vst.msk [vmem:[%s712 + $0x38] sm:$0xff] %vm9794, %v12069
      %12158 = vst.msk [vmem:[%s712 + $0x40] sm:$0xff] %vm9794, %v12071
      %12159 = vst.msk [vmem:[%s712 + $0x48] sm:$0xff] %vm9794, %v12073
      %12160 = vst.msk [vmem:[%s712 + $0x50] sm:$0xff] %vm9794, %v12075
      %12161 = vst.msk [vmem:[%s712 + $0x58] sm:$0xff] %vm9794, %v12077
      %12162 = vst.msk [vmem:[%s712 + $0x60] sm:$0xff] %vm9794, %v12079
      %12163 = vst.msk [vmem:[%s712 + $0x68] sm:$0xff] %vm9794, %v12081
      %12164 = vst.msk [vmem:[%s712 + $0x70] sm:$0xff] %vm9794, %v12083
      %12165 = vst.msk [vmem:[%s712 + $0x78] sm:$0xff] %vm9794, %v12085
      %12166 = vst.msk [vmem:[%s712 + $0x80] sm:$0xff] %vm9794, %v12087
      %12167 = vst.msk [vmem:[%s712 + $0x88] sm:$0xff] %vm9794, %v12089
      %12168 = vst.msk [vmem:[%s712 + $0x90] sm:$0xff] %vm9794, %v12091
      %12169 = vst.msk [vmem:[%s712 + $0x98] sm:$0xff] %vm9794, %v12093
      %12170 = vst.msk [vmem:[%s712 + $0xa0] sm:$0xff] %vm9794, %v12095
      %12171 = vst.msk [vmem:[%s712 + $0xa8] sm:$0xff] %vm9794, %v12097
      %12172 = vst.msk [vmem:[%s712 + $0xb0] sm:$0xff] %vm9794, %v12099
      %12173 = vst.msk [vmem:[%s712 + $0xb8] sm:$0xff] %vm9794, %v12101
      %12174 = vst.msk [vmem:[%s712 + $0xc0] sm:$0xff] %vm9794, %v12103
      %12175 = vst.msk [vmem:[%s712 + $0xc8] sm:$0xff] %vm9794, %v12105
      %12176 = vst.msk [vmem:[%s712 + $0xd0] sm:$0xff] %vm9794, %v12107
      %12177 = vst.msk [vmem:[%s712 + $0xd8] sm:$0xff] %vm9794, %v12109
      %12178 = vst.msk [vmem:[%s712 + $0xe0] sm:$0xff] %vm9794, %v12111
      %12179 = vst.msk [vmem:[%s712 + $0xe8] sm:$0xff] %vm9794, %v12113
      %12180 = vst.msk [vmem:[%s712 + $0xf0] sm:$0xff] %vm9794, %v12115
      %12181 = vst.msk [vmem:[%s712 + $0xf8] sm:$0xff] %vm9794, %v12117
      %s12182 = smul.u32 32, %s34
      %p12183 = scmp.lt.s32.totalorder %s12182, 63
      %s12184 = scalar_select %p12183, %s12182, 63
      %s12185 = smul.addr %s12184, 8
      %s12186 = scalar_lea.vmem %s23, %s12185
      // Predicated region
      $region113: #{tpu_custom_call.1} parent=111 // pred_check
        %p12187 = pneg %p540
      $region114: #{tpu_custom_call.1} parent=111 // pred_check_branch
        %12189 = sbr.rel (%p12187) target = $region116
      $region115: #{tpu_custom_call.1} parent=111 // pred_region
        %s12190 = smul.u32 32, %s34
      $region116: #{tpu_custom_call.1} parent=111 // pred_fallthru
        _
    $region112: #{tpu_custom_call.1} parent=5 // pred_fallthru
      _
    %p12191 = scmp.le.s32.totalorder 2, %s29
    // Predicated region
    $region117: #{tpu_custom_call.1} parent=5 // pred_check
      %p12192 = pneg %p12191
    $region118: #{tpu_custom_call.1} parent=5 // pred_check_branch
      %12194 = sbr.rel (%p12192) target = $region120
    $region119: #{tpu_custom_call.1} parent=5 // pred_region
      %s12195 = ssub.s32 %s29, 2
      // Predicated region
      $region121: #{tpu_custom_call.1} parent=119 // pred_check
        %p12196 = pneg %p546
      $region122: #{tpu_custom_call.1} parent=119 // pred_check_branch
        %12198 = sbr.rel (%p12196) target = $region124
      $region123: #{tpu_custom_call.1} parent=119 // pred_region
        %s12199 = smul.u32 32, %s35
        %p12200 = scmp.lt.s32.totalorder %s12199, 63
        %s12201 = scalar_select %p12200, %s12199, 63
        %s12202 = smul.addr %s12201, 8
        %s12203 = scalar_lea.vmem %s23, %s12202
      $region124: #{tpu_custom_call.1} parent=119 // pred_fallthru
        _
    $region120: #{tpu_custom_call.1} parent=5 // pred_fallthru
      _
  $region6: #{tpu_custom_call.1} parent=0 // loop_footer
    %s33 = sadd.s32 1, %s29
  $region7: #{tpu_custom_call.1} parent=0 // loop_footer_branch
    %28 = sbr.rel target = $region3
  $region8: #{tpu_custom_call.1} parent=0 // loop_exit
    _

</llo_original>
